<compile_context>
chip_gen: v7x
topology: tpu7x:2x2x1
jax: 0.10.0
libtpu: 0.0.40
codegen_flags: <defaults>
</compile_context>

<pallas_src>
import functools

import jax
import jax.numpy as jnp
from jax.experimental import pallas as pl
from jax.experimental.pallas import tpu as pltpu


# ----------------------------------------------------------------------------
# Kernel 1: 3x3 conv (padding=1) + bias (+ReLU) as 9 shifted matmuls, per batch.
#
# The input is the row-flattened NHWC image padded with (W+1) zero rows on each
# side, so tap (dy, dx) is just rows [start, start+L) with start = (W+1)+dy*W+dx.
# Horizontal boundary wrap (dx = +/-1 crossing a row edge) is fixed with a cheap
# per-row mask on the w coordinate.
# ----------------------------------------------------------------------------
def _conv3x3_kernel(xp_ref, w_ref, b_ref, o_ref, *, H, W, relu):
    L = H * W
    cout = o_ref.shape[-1]

    # w-coordinate of each output row p = h*W + w (for dx boundary masking).
    col = jax.lax.broadcasted_iota(jnp.int32, (L, 1), 0) % W
    not_last_col = col != (W - 1)   # valid rows for dx = +1 taps
    not_first_col = col != 0        # valid rows for dx = -1 taps

    acc = jnp.zeros((L, cout), jnp.float32)
    t = 0
    for dy in (-1, 0, 1):
        for dx in (-1, 0, 1):
            start = (W + 1) + dy * W + dx                       # static offset
            win = xp_ref[0, pl.ds(start, L), :]                 # (L, Cin) bf16
            if dx == 1:
                win = jnp.where(not_last_col, win, jnp.zeros_like(win))
            elif dx == -1:
                win = jnp.where(not_first_col, win, jnp.zeros_like(win))
            acc += jnp.dot(win, w_ref[t], preferred_element_type=jnp.float32)
            t += 1

    acc = acc + b_ref[...]                                      # (1, Cout) f32 bias
    if relu:
        acc = jnp.maximum(acc, 0.0)
    o_ref[0] = acc.astype(o_ref.dtype)


def conv3x3(x_blc, w9, b2, *, H, W, relu=True, out_dtype=jnp.bfloat16):
    """x_blc: (B, H*W, Cin) token-major bf16; w9: (9, Cin, Cout) bf16; b2: (1, Cout) f32."""
    B, L, Cin = x_blc.shape
    Cout = w9.shape[-1]
    assert L == H * W
    pad = W + 1
    xp = jnp.pad(x_blc, ((0, 0), (pad, pad), (0, 0)))           # (B, L + 2W + 2, Cin)
    Lp = L + 2 * pad
    return pl.pallas_call(
        functools.partial(_conv3x3_kernel, H=H, W=W, relu=relu),
        out_shape=jax.ShapeDtypeStruct((B, L, Cout), out_dtype),
        grid=(B,),
        in_specs=[
            pl.BlockSpec((1, Lp, Cin), lambda i: (i, 0, 0)),
            pl.BlockSpec((9, Cin, Cout), lambda i: (0, 0, 0)),  # weights stay resident
            pl.BlockSpec((1, Cout), lambda i: (0, 0)),
        ],
        out_specs=pl.BlockSpec((1, L, Cout), lambda i: (i, 0, 0)),
        compiler_params=pltpu.CompilerParams(dimension_semantics=("parallel",)),
    )(xp, w9, b2)


# ----------------------------------------------------------------------------
# Kernel 2: fused  QKV in-proj -> per-head softmax attention -> out-proj -> 1x1 conv,
# gridded over batch. Heads are an unrolled static loop over lane slices; the head
# outputs are concatenated back into a lane-dense (L, E) slab before the two
# projection matmuls, and the only HBM write is the final (L, 128) f32 block.
# The 1/sqrt(Dh) scale is already folded into the q columns of in_proj_w/in_proj_b.
# ----------------------------------------------------------------------------
def _attn_block_kernel(x_ref, win_ref, bin_ref, wout_ref, bout_ref,
                       w1x1_ref, b1x1_ref, o_ref, *, num_heads, head_dim):
    E = num_heads * head_dim
    x = x_ref[0]                                                         # (L, E) bf16

    qkv = jnp.dot(x, win_ref[...], preferred_element_type=jnp.float32)
    qkv = qkv + bin_ref[...]                                             # (L, 3E) f32
    q = qkv[:, :E]
    k = qkv[:, E:2 * E]
    v = qkv[:, 2 * E:]

    heads = []
    for h in range(num_heads):                                           # static unroll
        sl = slice(h * head_dim, (h + 1) * head_dim)
        qh, kh, vh = q[:, sl], k[:, sl], v[:, sl]
        s = jnp.dot(qh, kh.T, preferred_element_type=jnp.float32)        # (L, L)
        m = jnp.max(s, axis=-1, keepdims=True)
        p = jnp.exp(s - m)
        p = p * pl.reciprocal(jnp.sum(p, axis=-1, keepdims=True), approx=True)
        heads.append(jnp.dot(p, vh, preferred_element_type=jnp.float32))  # (L, Dh)
    attn = jnp.concatenate(heads, axis=-1)                               # (L, E) lane-dense

    attn = attn.astype(wout_ref.dtype)
    proj = jnp.dot(attn, wout_ref[...], preferred_element_type=jnp.float32) + bout_ref[...]
    proj = proj.astype(w1x1_ref.dtype)
    out = jnp.dot(proj, w1x1_ref[...], preferred_element_type=jnp.float32) + b1x1_ref[...]
    o_ref[0] = out.astype(o_ref.dtype)


def attention_block(x, params, *, num_heads, head_dim):
    """x: (B, L, E) bf16 -> (B, L, out_channels) f32 (attention + out-proj + 1x1 conv)."""
    B, L, E = x.shape
    Cout = params["conv1x1_w"].shape[-1]
    kern = functools.partial(_attn_block_kernel, num_heads=num_heads, head_dim=head_dim)
    return pl.pallas_call(
        kern,
        out_shape=jax.ShapeDtypeStruct((B, L, Cout), jnp.float32),
        grid=(B,),
        in_specs=[
            pl.BlockSpec((1, L, E), lambda i: (i, 0, 0)),
            pl.BlockSpec((E, 3 * E), lambda i: (0, 0)),
            pl.BlockSpec((1, 3 * E), lambda i: (0, 0)),
            pl.BlockSpec((E, E), lambda i: (0, 0)),
            pl.BlockSpec((1, E), lambda i: (0, 0)),
            pl.BlockSpec((E, Cout), lambda i: (0, 0)),
            pl.BlockSpec((1, Cout), lambda i: (0, 0)),
        ],
        out_specs=pl.BlockSpec((1, L, Cout), lambda i: (i, 0, 0)),
        compiler_params=pltpu.CompilerParams(dimension_semantics=("parallel",)),
    )(x, params["in_proj_w"], params["in_proj_b"], params["out_proj_w"],
      params["out_proj_b"], params["conv1x1_w"], params["conv1x1_b"])


# ----------------------------------------------------------------------------
# Bottleneck forward (NCHW in / NCHW out, matching the PyTorch module)
# ----------------------------------------------------------------------------
def bottleneck_forward(x_nchw, params, *, embed_dim=128, num_heads=8):
    B, Cin, H, W = x_nchw.shape
    L = H * W
    Dh = embed_dim // num_heads

    # NCHW -> (B, H*W, C) token-major bf16; everything stays in this lane-dense
    # layout (no (L, B, E) sequence-first shuffles — attention batches are
    # independent, so per-batch (L, E) blocks are equivalent).
    x = jnp.transpose(x_nchw, (0, 2, 3, 1)).reshape(B, L, Cin).astype(jnp.bfloat16)

    # ConvBlock: conv3x3+ReLU, conv3x3+ReLU
    x = conv3x3(x, params["conv1_w"], params["conv1_b"], H=H, W=W, relu=True)
    x = conv3x3(x, params["conv2_w"], params["conv2_b"], H=H, W=W, relu=True)

    # Fused: in-proj -> multi-head attention -> out-proj -> conv1x1
    out = attention_block(x, params, num_heads=num_heads, head_dim=Dh)   # (B, L, 128) f32

    return jnp.transpose(out.reshape(B, H, W, -1), (0, 3, 1, 2))         # NCHW


# ----------------------------------------------------------------------------
# Parameters: raw PyTorch-layout weights + one-time load-time preparation
# (transposes, (9, Cin, Cout) conv layout, bf16 cast, softmax scale folding).
# ----------------------------------------------------------------------------
def init_raw_params(key, in_channels=64, embed_dim=128, out_channels=128):
    ks = jax.random.split(key, 10)
    s = 0.05
    E = embed_dim
    return {
        "conv1_w": jax.random.normal(ks[0], (E, in_channels, 3, 3), jnp.float32) * s,
        "conv1_b": jax.random.normal(ks[1], (E,), jnp.float32) * s,
        "conv2_w": jax.random.normal(ks[2], (E, E, 3, 3), jnp.float32) * s,
        "conv2_b": jax.random.normal(ks[3], (E,), jnp.float32) * s,
        "in_proj_w": jax.random.normal(ks[4], (3 * E, E), jnp.float32) * s,
        "in_proj_b": jax.random.normal(ks[5], (3 * E,), jnp.float32) * s,
        "out_proj_w": jax.random.normal(ks[6], (E, E), jnp.float32) * s,
        "out_proj_b": jax.random.normal(ks[7], (E,), jnp.float32) * s,
        "conv1x1_w": jax.random.normal(ks[8], (out_channels, E), jnp.float32) * s,
        "conv1x1_b": jax.random.normal(ks[9], (out_channels,), jnp.float32) * s,
    }


def prepare_params(raw, *, num_heads):
    """One-time (load-time) weight transform: kernel-friendly layouts, bf16 weights,
    f32 (1, N) biases, and 1/sqrt(head_dim) folded into the q part of the in-proj."""
    E = raw["out_proj_w"].shape[0]
    Dh = E // num_heads
    scale = 1.0 / (Dh ** 0.5)
    wdt = jnp.bfloat16

    def conv_w(w):  # torch (Cout, Cin, 3, 3) -> (9, Cin, Cout), tap order (ky, kx)
        cout, cin = w.shape[0], w.shape[1]
        return jnp.transpose(w, (2, 3, 1, 0)).reshape(9, cin, cout).astype(wdt)

    qscale = jnp.concatenate([jnp.full((E,), scale, jnp.float32),
                              jnp.ones((2 * E,), jnp.float32)])
    return {
        "conv1_w": conv_w(raw["conv1_w"]),
        "conv1_b": raw["conv1_b"].reshape(1, -1).astype(jnp.float32),
        "conv2_w": conv_w(raw["conv2_w"]),
        "conv2_b": raw["conv2_b"].reshape(1, -1).astype(jnp.float32),
        "in_proj_w": (raw["in_proj_w"].T * qscale[None, :]).astype(wdt),      # (E, 3E)
        "in_proj_b": (raw["in_proj_b"] * qscale).reshape(1, -1).astype(jnp.float32),
        "out_proj_w": raw["out_proj_w"].T.astype(wdt),                        # (E, E)
        "out_proj_b": raw["out_proj_b"].reshape(1, -1).astype(jnp.float32),
        "conv1x1_w": raw["conv1x1_w"].T.astype(wdt),                          # (E, 128)
        "conv1x1_b": raw["conv1x1_b"].reshape(1, -1).astype(jnp.float32),
    }


if __name__ == "__main__":
    key = jax.random.PRNGKey(0)
    k_x, k_p = jax.random.split(key)

    # Small shapes consistent with the module: in_channels=64, embed_dim=128, heads=8
    B, Cin, H, W = 2, 64, 8, 8
    x = jax.random.normal(k_x, (B, Cin, H, W), jnp.float32)
    params = prepare_params(init_raw_params(k_p), num_heads=8)

    fwd = jax.jit(functools.partial(bottleneck_forward, embed_dim=128, num_heads=8))
    out = jax.block_until_ready(fwd(x, params))

    assert out.shape == (B, 128, H, W), out.shape
    assert bool(jnp.all(jnp.isfinite(out)))
    print("KERNEL_OK")
</pallas_src>

<mosaic_0001>
module attributes {stable_mosaic.version = 11 : i64} {
  func.func @_conv3x3_kernel(%arg0: i32, %arg1: memref<1x82x64xbf16, #tpu.memory_space<vmem>>, %arg2: memref<9x64x128xbf16, #tpu.memory_space<vmem>>, %arg3: memref<1x128xf32, #tpu.memory_space<vmem>>, %arg4: memref<1x64x128xbf16, #tpu.memory_space<vmem>>) attributes {dimension_semantics = [#tpu.dimension_semantics<parallel>], iteration_bounds = array<i64: 2>, scalar_prefetch = 0 : i64, scratch_operands = 0 : i64, tpu.core_type = #tpu.core_type<tc>, window_params = [{transform_indices = @transform_0, window_bounds = array<i64: 1, 82, 64>}, {pipeline_mode = #tpu.pipeline_mode<synchronous>, transform_indices = @transform_1, window_bounds = array<i64: 9, 64, 128>}, {pipeline_mode = #tpu.pipeline_mode<synchronous>, transform_indices = @transform_2, window_bounds = array<i64: 1, 128>}, {transform_indices = @transform_3, window_bounds = array<i64: 1, 64, 128>}]} {
    %0 = tpu.iota {dimensions = array<i32: 0>} : vector<64x1xi32>
    %c8_i32 = arith.constant 8 : i32
    %c0_i32 = arith.constant 0 : i32
    %1 = arith.cmpi eq, %c8_i32, %c0_i32 : i32
    %c1_i32 = arith.constant 1 : i32
    %2 = arith.select %1, %c1_i32, %c8_i32 : i32
    %3 = vector.broadcast %2 : i32 to vector<64x1xi32>
    %4 = arith.remsi %0, %3 : vector<64x1xi32>
    %c0_i32_0 = arith.constant 0 : i32
    %5 = vector.broadcast %c0_i32_0 : i32 to vector<64x1xi32>
    %6 = arith.cmpi ne, %4, %5 : vector<64x1xi32>
    %c0_i32_1 = arith.constant 0 : i32
    %7 = vector.broadcast %c0_i32_1 : i32 to vector<64x1xi32>
    %8 = arith.cmpi slt, %4, %7 : vector<64x1xi32>
    %c0_i32_2 = arith.constant 0 : i32
    %9 = arith.cmpi slt, %2, %c0_i32_2 : i32
    %10 = vector.broadcast %9 : i1 to vector<64x1xi1>
    %11 = vector.broadcast %10 : vector<64x1xi1> to vector<64x1xi1>
    %12 = arith.xori %8, %11 : vector<64x1xi1>
    %13 = arith.andi %12, %6 : vector<64x1xi1>
    %14 = vector.broadcast %2 : i32 to vector<64x1xi32>
    %15 = arith.addi %4, %14 : vector<64x1xi32>
    %16 = arith.select %13, %15, %4 : vector<64x1xi1>, vector<64x1xi32>
    %c7_i32 = arith.constant 7 : i32
    %17 = vector.broadcast %c7_i32 : i32 to vector<64x1xi32>
    %18 = arith.cmpi ne, %16, %17 : vector<64x1xi32>
    %c0_i32_3 = arith.constant 0 : i32
    %19 = vector.broadcast %c0_i32_3 : i32 to vector<64x1xi32>
    %20 = arith.cmpi ne, %16, %19 : vector<64x1xi32>
    %cst = arith.constant 0.000000e+00 : f32
    %21 = vector.broadcast %cst : f32 to vector<64x128xf32>
    %c0 = arith.constant 0 : index
    %c0_4 = arith.constant 0 : index
    %c0_5 = arith.constant 0 : index
    %22 = vector.load %arg1[%c0, %c0_4, %c0_5] : memref<1x82x64xbf16, #tpu.memory_space<vmem>>, vector<1x64x64xbf16>
    %23 = vector.shape_cast %22 : vector<1x64x64xbf16> to vector<64x64xbf16>
    %cst_6 = arith.constant 0.000000e+00 : bf16
    %24 = vector.broadcast %cst_6 : bf16 to vector<64x64xbf16>
    %25 = vector.shape_cast %20 : vector<64x1xi1> to vector<64x1xi1>
    %26 = vector.broadcast %25 : vector<64x1xi1> to vector<64x64xi1>
    %27 = arith.select %26, %23, %24 : vector<64x64xi1>, vector<64x64xbf16>
    %c0_7 = arith.constant 0 : index
    %c0_8 = arith.constant 0 : index
    %c0_9 = arith.constant 0 : index
    %28 = vector.load %arg2[%c0_7, %c0_8, %c0_9] : memref<9x64x128xbf16, #tpu.memory_space<vmem>>, vector<1x64x128xbf16>
    %29 = vector.shape_cast %28 : vector<1x64x128xbf16> to vector<64x128xbf16>
    %cst_10 = arith.constant dense<0.000000e+00> : vector<64x128xf32>
    %30 = tpu.matmul %27, %29, %cst_10 {dimension_numbers = #tpu.dot_dimension_numbers<[1], [0], [0], [1], [0, 0, 1, 1], [], []>} : vector<64x64xbf16>, vector<64x128xbf16>, vector<64x128xf32> -> vector<64x128xf32>
    %31 = arith.addf %21, %30 : vector<64x128xf32>
    %c0_11 = arith.constant 0 : index
    %c1 = arith.constant 1 : index
    %c0_12 = arith.constant 0 : index
    %32 = vector.load %arg1[%c0_11, %c1, %c0_12] : memref<1x82x64xbf16, #tpu.memory_space<vmem>>, vector<1x64x64xbf16>
    %33 = vector.shape_cast %32 : vector<1x64x64xbf16> to vector<64x64xbf16>
    %c1_13 = arith.constant 1 : index
    %c0_14 = arith.constant 0 : index
    %c0_15 = arith.constant 0 : index
    %34 = vector.load %arg2[%c1_13, %c0_14, %c0_15] : memref<9x64x128xbf16, #tpu.memory_space<vmem>>, vector<1x64x128xbf16>
    %35 = vector.shape_cast %34 : vector<1x64x128xbf16> to vector<64x128xbf16>
    %cst_16 = arith.constant dense<0.000000e+00> : vector<64x128xf32>
    %36 = tpu.matmul %33, %35, %cst_16 {dimension_numbers = #tpu.dot_dimension_numbers<[1], [0], [0], [1], [0, 0, 1, 1], [], []>} : vector<64x64xbf16>, vector<64x128xbf16>, vector<64x128xf32> -> vector<64x128xf32>
    %37 = arith.addf %31, %36 : vector<64x128xf32>
    %c0_17 = arith.constant 0 : index
    %c2 = arith.constant 2 : index
    %c0_18 = arith.constant 0 : index
    %38 = vector.load %arg1[%c0_17, %c2, %c0_18] : memref<1x82x64xbf16, #tpu.memory_space<vmem>>, vector<1x64x64xbf16>
    %39 = vector.shape_cast %38 : vector<1x64x64xbf16> to vector<64x64xbf16>
    %cst_19 = arith.constant 0.000000e+00 : bf16
    %40 = vector.broadcast %cst_19 : bf16 to vector<64x64xbf16>
    %41 = vector.shape_cast %18 : vector<64x1xi1> to vector<64x1xi1>
    %42 = vector.broadcast %41 : vector<64x1xi1> to vector<64x64xi1>
    %43 = arith.select %42, %39, %40 : vector<64x64xi1>, vector<64x64xbf16>
    %c2_20 = arith.constant 2 : index
    %c0_21 = arith.constant 0 : index
    %c0_22 = arith.constant 0 : index
    %44 = vector.load %arg2[%c2_20, %c0_21, %c0_22] : memref<9x64x128xbf16, #tpu.memory_space<vmem>>, vector<1x64x128xbf16>
    %45 = vector.shape_cast %44 : vector<1x64x128xbf16> to vector<64x128xbf16>
    %cst_23 = arith.constant dense<0.000000e+00> : vector<64x128xf32>
    %46 = tpu.matmul %43, %45, %cst_23 {dimension_numbers = #tpu.dot_dimension_numbers<[1], [0], [0], [1], [0, 0, 1, 1], [], []>} : vector<64x64xbf16>, vector<64x128xbf16>, vector<64x128xf32> -> vector<64x128xf32>
    %47 = arith.addf %37, %46 : vector<64x128xf32>
    %c0_24 = arith.constant 0 : index
    %c8 = arith.constant 8 : index
    %c0_25 = arith.constant 0 : index
    %48 = vector.load %arg1[%c0_24, %c8, %c0_25] : memref<1x82x64xbf16, #tpu.memory_space<vmem>>, vector<1x64x64xbf16>
    %49 = vector.shape_cast %48 : vector<1x64x64xbf16> to vector<64x64xbf16>
    %cst_26 = arith.constant 0.000000e+00 : bf16
    %50 = vector.broadcast %cst_26 : bf16 to vector<64x64xbf16>
    %51 = vector.shape_cast %20 : vector<64x1xi1> to vector<64x1xi1>
    %52 = vector.broadcast %51 : vector<64x1xi1> to vector<64x64xi1>
    %53 = arith.select %52, %49, %50 : vector<64x64xi1>, vector<64x64xbf16>
    %c3 = arith.constant 3 : index
    %c0_27 = arith.constant 0 : index
    %c0_28 = arith.constant 0 : index
    %54 = vector.load %arg2[%c3, %c0_27, %c0_28] : memref<9x64x128xbf16, #tpu.memory_space<vmem>>, vector<1x64x128xbf16>
    %55 = vector.shape_cast %54 : vector<1x64x128xbf16> to vector<64x128xbf16>
    %cst_29 = arith.constant dense<0.000000e+00> : vector<64x128xf32>
    %56 = tpu.matmul %53, %55, %cst_29 {dimension_numbers = #tpu.dot_dimension_numbers<[1], [0], [0], [1], [0, 0, 1, 1], [], []>} : vector<64x64xbf16>, vector<64x128xbf16>, vector<64x128xf32> -> vector<64x128xf32>
    %57 = arith.addf %47, %56 : vector<64x128xf32>
    %c0_30 = arith.constant 0 : index
    %c9 = arith.constant 9 : index
    %c0_31 = arith.constant 0 : index
    %58 = vector.load %arg1[%c0_30, %c9, %c0_31] : memref<1x82x64xbf16, #tpu.memory_space<vmem>>, vector<1x64x64xbf16>
    %59 = vector.shape_cast %58 : vector<1x64x64xbf16> to vector<64x64xbf16>
    %c4 = arith.constant 4 : index
    %c0_32 = arith.constant 0 : index
    %c0_33 = arith.constant 0 : index
    %60 = vector.load %arg2[%c4, %c0_32, %c0_33] : memref<9x64x128xbf16, #tpu.memory_space<vmem>>, vector<1x64x128xbf16>
    %61 = vector.shape_cast %60 : vector<1x64x128xbf16> to vector<64x128xbf16>
    %cst_34 = arith.constant dense<0.000000e+00> : vector<64x128xf32>
    %62 = tpu.matmul %59, %61, %cst_34 {dimension_numbers = #tpu.dot_dimension_numbers<[1], [0], [0], [1], [0, 0, 1, 1], [], []>} : vector<64x64xbf16>, vector<64x128xbf16>, vector<64x128xf32> -> vector<64x128xf32>
    %63 = arith.addf %57, %62 : vector<64x128xf32>
    %c0_35 = arith.constant 0 : index
    %c10 = arith.constant 10 : index
    %c0_36 = arith.constant 0 : index
    %64 = vector.load %arg1[%c0_35, %c10, %c0_36] : memref<1x82x64xbf16, #tpu.memory_space<vmem>>, vector<1x64x64xbf16>
    %65 = vector.shape_cast %64 : vector<1x64x64xbf16> to vector<64x64xbf16>
    %cst_37 = arith.constant 0.000000e+00 : bf16
    %66 = vector.broadcast %cst_37 : bf16 to vector<64x64xbf16>
    %67 = vector.shape_cast %18 : vector<64x1xi1> to vector<64x1xi1>
    %68 = vector.broadcast %67 : vector<64x1xi1> to vector<64x64xi1>
    %69 = arith.select %68, %65, %66 : vector<64x64xi1>, vector<64x64xbf16>
    %c5 = arith.constant 5 : index
    %c0_38 = arith.constant 0 : index
    %c0_39 = arith.constant 0 : index
    %70 = vector.load %arg2[%c5, %c0_38, %c0_39] : memref<9x64x128xbf16, #tpu.memory_space<vmem>>, vector<1x64x128xbf16>
    %71 = vector.shape_cast %70 : vector<1x64x128xbf16> to vector<64x128xbf16>
    %cst_40 = arith.constant dense<0.000000e+00> : vector<64x128xf32>
    %72 = tpu.matmul %69, %71, %cst_40 {dimension_numbers = #tpu.dot_dimension_numbers<[1], [0], [0], [1], [0, 0, 1, 1], [], []>} : vector<64x64xbf16>, vector<64x128xbf16>, vector<64x128xf32> -> vector<64x128xf32>
    %73 = arith.addf %63, %72 : vector<64x128xf32>
    %c0_41 = arith.constant 0 : index
    %c16 = arith.constant 16 : index
    %c0_42 = arith.constant 0 : index
    %74 = vector.load %arg1[%c0_41, %c16, %c0_42] : memref<1x82x64xbf16, #tpu.memory_space<vmem>>, vector<1x64x64xbf16>
    %75 = vector.shape_cast %74 : vector<1x64x64xbf16> to vector<64x64xbf16>
    %cst_43 = arith.constant 0.000000e+00 : bf16
    %76 = vector.broadcast %cst_43 : bf16 to vector<64x64xbf16>
    %77 = vector.shape_cast %20 : vector<64x1xi1> to vector<64x1xi1>
    %78 = vector.broadcast %77 : vector<64x1xi1> to vector<64x64xi1>
    %79 = arith.select %78, %75, %76 : vector<64x64xi1>, vector<64x64xbf16>
    %c6 = arith.constant 6 : index
    %c0_44 = arith.constant 0 : index
    %c0_45 = arith.constant 0 : index
    %80 = vector.load %arg2[%c6, %c0_44, %c0_45] : memref<9x64x128xbf16, #tpu.memory_space<vmem>>, vector<1x64x128xbf16>
    %81 = vector.shape_cast %80 : vector<1x64x128xbf16> to vector<64x128xbf16>
    %cst_46 = arith.constant dense<0.000000e+00> : vector<64x128xf32>
    %82 = tpu.matmul %79, %81, %cst_46 {dimension_numbers = #tpu.dot_dimension_numbers<[1], [0], [0], [1], [0, 0, 1, 1], [], []>} : vector<64x64xbf16>, vector<64x128xbf16>, vector<64x128xf32> -> vector<64x128xf32>
    %83 = arith.addf %73, %82 : vector<64x128xf32>
    %c0_47 = arith.constant 0 : index
    %c17 = arith.constant 17 : index
    %c0_48 = arith.constant 0 : index
    %84 = vector.load %arg1[%c0_47, %c17, %c0_48] : memref<1x82x64xbf16, #tpu.memory_space<vmem>>, vector<1x64x64xbf16>
    %85 = vector.shape_cast %84 : vector<1x64x64xbf16> to vector<64x64xbf16>
    %c7 = arith.constant 7 : index
    %c0_49 = arith.constant 0 : index
    %c0_50 = arith.constant 0 : index
    %86 = vector.load %arg2[%c7, %c0_49, %c0_50] : memref<9x64x128xbf16, #tpu.memory_space<vmem>>, vector<1x64x128xbf16>
    %87 = vector.shape_cast %86 : vector<1x64x128xbf16> to vector<64x128xbf16>
    %cst_51 = arith.constant dense<0.000000e+00> : vector<64x128xf32>
    %88 = tpu.matmul %85, %87, %cst_51 {dimension_numbers = #tpu.dot_dimension_numbers<[1], [0], [0], [1], [0, 0, 1, 1], [], []>} : vector<64x64xbf16>, vector<64x128xbf16>, vector<64x128xf32> -> vector<64x128xf32>
    %89 = arith.addf %83, %88 : vector<64x128xf32>
    %c0_52 = arith.constant 0 : index
    %c18 = arith.constant 18 : index
    %c0_53 = arith.constant 0 : index
    %90 = vector.load %arg1[%c0_52, %c18, %c0_53] : memref<1x82x64xbf16, #tpu.memory_space<vmem>>, vector<1x64x64xbf16>
    %91 = vector.shape_cast %90 : vector<1x64x64xbf16> to vector<64x64xbf16>
    %cst_54 = arith.constant 0.000000e+00 : bf16
    %92 = vector.broadcast %cst_54 : bf16 to vector<64x64xbf16>
    %93 = vector.shape_cast %18 : vector<64x1xi1> to vector<64x1xi1>
    %94 = vector.broadcast %93 : vector<64x1xi1> to vector<64x64xi1>
    %95 = arith.select %94, %91, %92 : vector<64x64xi1>, vector<64x64xbf16>
    %c8_55 = arith.constant 8 : index
    %c0_56 = arith.constant 0 : index
    %c0_57 = arith.constant 0 : index
    %96 = vector.load %arg2[%c8_55, %c0_56, %c0_57] : memref<9x64x128xbf16, #tpu.memory_space<vmem>>, vector<1x64x128xbf16>
    %97 = vector.shape_cast %96 : vector<1x64x128xbf16> to vector<64x128xbf16>
    %cst_58 = arith.constant dense<0.000000e+00> : vector<64x128xf32>
    %98 = tpu.matmul %95, %97, %cst_58 {dimension_numbers = #tpu.dot_dimension_numbers<[1], [0], [0], [1], [0, 0, 1, 1], [], []>} : vector<64x64xbf16>, vector<64x128xbf16>, vector<64x128xf32> -> vector<64x128xf32>
    %99 = arith.addf %89, %98 : vector<64x128xf32>
    %c0_59 = arith.constant 0 : index
    %c0_60 = arith.constant 0 : index
    %100 = vector.load %arg3[%c0_59, %c0_60] : memref<1x128xf32, #tpu.memory_space<vmem>>, vector<1x128xf32>
    %101 = vector.broadcast %100 : vector<1x128xf32> to vector<64x128xf32>
    %102 = arith.addf %99, %101 : vector<64x128xf32>
    %cst_61 = arith.constant 0.000000e+00 : f32
    %103 = vector.broadcast %cst_61 : f32 to vector<64x128xf32>
    %104 = arith.maximumf %102, %103 : vector<64x128xf32>
    %105 = arith.truncf %104 : vector<64x128xf32> to vector<64x128xbf16>
    %c0_62 = arith.constant 0 : index
    %c0_63 = arith.constant 0 : index
    %c0_64 = arith.constant 0 : index
    %106 = vector.load %arg4[%c0_62, %c0_63, %c0_64] : memref<1x64x128xbf16, #tpu.memory_space<vmem>>, vector<1x64x128xbf16>
    %107 = vector.shape_cast %106 : vector<1x64x128xbf16> to vector<64x128xbf16>
    %108 = vector.shape_cast %105 : vector<64x128xbf16> to vector<1x64x128xbf16>
    tpu.vector_store %arg4[%c0_62, %c0_63, %c0_64], %108 {strides = array<i32>} : memref<1x64x128xbf16, #tpu.memory_space<vmem>>, vector<1x64x128xbf16>,
    return
  }
  func.func @transform_0(%arg0: i32) -> (i32, i32, i32) {
    %c0_i32 = arith.constant 0 : i32
    %c0_i32_0 = arith.constant 0 : i32
    %c0_i32_1 = arith.constant 0 : i32
    return %arg0, %c0_i32, %c0_i32_0 : i32, i32, i32
  }
  func.func @transform_1(%arg0: i32) -> (i32, i32, i32) {
    %c0_i32 = arith.constant 0 : i32
    %c0_i32_0 = arith.constant 0 : i32
    %c0_i32_1 = arith.constant 0 : i32
    %c0_i32_2 = arith.constant 0 : i32
    return %c0_i32, %c0_i32_0, %c0_i32_1 : i32, i32, i32
  }
  func.func @transform_2(%arg0: i32) -> (i32, i32) {
    %c0_i32 = arith.constant 0 : i32
    %c0_i32_0 = arith.constant 0 : i32
    %c0_i32_1 = arith.constant 0 : i32
    return %c0_i32, %c0_i32_0 : i32, i32
  }
  func.func @transform_3(%arg0: i32) -> (i32, i32, i32) {
    %c0_i32 = arith.constant 0 : i32
    %c0_i32_0 = arith.constant 0 : i32
    %c0_i32_1 = arith.constant 0 : i32
    return %arg0, %c0_i32, %c0_i32_0 : i32, i32, i32
  }
}

module attributes {stable_mosaic.version = 11 : i64} {
  func.func @_conv3x3_kernel(%arg0: i32, %arg1: memref<1x82x128xbf16, #tpu.memory_space<vmem>>, %arg2: memref<9x128x128xbf16, #tpu.memory_space<vmem>>, %arg3: memref<1x128xf32, #tpu.memory_space<vmem>>, %arg4: memref<1x64x128xbf16, #tpu.memory_space<vmem>>) attributes {dimension_semantics = [#tpu.dimension_semantics<parallel>], iteration_bounds = array<i64: 2>, scalar_prefetch = 0 : i64, scratch_operands = 0 : i64, tpu.core_type = #tpu.core_type<tc>, window_params = [{transform_indices = @transform_0, window_bounds = array<i64: 1, 82, 128>}, {pipeline_mode = #tpu.pipeline_mode<synchronous>, transform_indices = @transform_1, window_bounds = array<i64: 9, 128, 128>}, {pipeline_mode = #tpu.pipeline_mode<synchronous>, transform_indices = @transform_2, window_bounds = array<i64: 1, 128>}, {transform_indices = @transform_3, window_bounds = array<i64: 1, 64, 128>}]} {
    %0 = tpu.iota {dimensions = array<i32: 0>} : vector<64x1xi32>
    %c8_i32 = arith.constant 8 : i32
    %c0_i32 = arith.constant 0 : i32
    %1 = arith.cmpi eq, %c8_i32, %c0_i32 : i32
    %c1_i32 = arith.constant 1 : i32
    %2 = arith.select %1, %c1_i32, %c8_i32 : i32
    %3 = vector.broadcast %2 : i32 to vector<64x1xi32>
    %4 = arith.remsi %0, %3 : vector<64x1xi32>
    %c0_i32_0 = arith.constant 0 : i32
    %5 = vector.broadcast %c0_i32_0 : i32 to vector<64x1xi32>
    %6 = arith.cmpi ne, %4, %5 : vector<64x1xi32>
    %c0_i32_1 = arith.constant 0 : i32
    %7 = vector.broadcast %c0_i32_1 : i32 to vector<64x1xi32>
    %8 = arith.cmpi slt, %4, %7 : vector<64x1xi32>
    %c0_i32_2 = arith.constant 0 : i32
    %9 = arith.cmpi slt, %2, %c0_i32_2 : i32
    %10 = vector.broadcast %9 : i1 to vector<64x1xi1>
    %11 = vector.broadcast %10 : vector<64x1xi1> to vector<64x1xi1>
    %12 = arith.xori %8, %11 : vector<64x1xi1>
    %13 = arith.andi %12, %6 : vector<64x1xi1>
    %14 = vector.broadcast %2 : i32 to vector<64x1xi32>
    %15 = arith.addi %4, %14 : vector<64x1xi32>
    %16 = arith.select %13, %15, %4 : vector<64x1xi1>, vector<64x1xi32>
    %c7_i32 = arith.constant 7 : i32
    %17 = vector.broadcast %c7_i32 : i32 to vector<64x1xi32>
    %18 = arith.cmpi ne, %16, %17 : vector<64x1xi32>
    %c0_i32_3 = arith.constant 0 : i32
    %19 = vector.broadcast %c0_i32_3 : i32 to vector<64x1xi32>
    %20 = arith.cmpi ne, %16, %19 : vector<64x1xi32>
    %cst = arith.constant 0.000000e+00 : f32
    %21 = vector.broadcast %cst : f32 to vector<64x128xf32>
    %c0 = arith.constant 0 : index
    %c0_4 = arith.constant 0 : index
    %c0_5 = arith.constant 0 : index
    %22 = vector.load %arg1[%c0, %c0_4, %c0_5] : memref<1x82x128xbf16, #tpu.memory_space<vmem>>, vector<1x64x128xbf16>
    %23 = vector.shape_cast %22 : vector<1x64x128xbf16> to vector<64x128xbf16>
    %cst_6 = arith.constant 0.000000e+00 : bf16
    %24 = vector.broadcast %cst_6 : bf16 to vector<64x128xbf16>
    %25 = vector.shape_cast %20 : vector<64x1xi1> to vector<64x1xi1>
    %26 = vector.broadcast %25 : vector<64x1xi1> to vector<64x128xi1>
    %27 = arith.select %26, %23, %24 : vector<64x128xi1>, vector<64x128xbf16>
    %c0_7 = arith.constant 0 : index
    %c0_8 = arith.constant 0 : index
    %c0_9 = arith.constant 0 : index
    %28 = vector.load %arg2[%c0_7, %c0_8, %c0_9] : memref<9x128x128xbf16, #tpu.memory_space<vmem>>, vector<1x128x128xbf16>
    %29 = vector.shape_cast %28 : vector<1x128x128xbf16> to vector<128x128xbf16>
    %cst_10 = arith.constant dense<0.000000e+00> : vector<64x128xf32>
    %30 = tpu.matmul %27, %29, %cst_10 {dimension_numbers = #tpu.dot_dimension_numbers<[1], [0], [0], [1], [0, 0, 1, 1], [], []>} : vector<64x128xbf16>, vector<128x128xbf16>, vector<64x128xf32> -> vector<64x128xf32>
    %31 = arith.addf %21, %30 : vector<64x128xf32>
    %c0_11 = arith.constant 0 : index
    %c1 = arith.constant 1 : index
    %c0_12 = arith.constant 0 : index
    %32 = vector.load %arg1[%c0_11, %c1, %c0_12] : memref<1x82x128xbf16, #tpu.memory_space<vmem>>, vector<1x64x128xbf16>
    %33 = vector.shape_cast %32 : vector<1x64x128xbf16> to vector<64x128xbf16>
    %c1_13 = arith.constant 1 : index
    %c0_14 = arith.constant 0 : index
    %c0_15 = arith.constant 0 : index
    %34 = vector.load %arg2[%c1_13, %c0_14, %c0_15] : memref<9x128x128xbf16, #tpu.memory_space<vmem>>, vector<1x128x128xbf16>
    %35 = vector.shape_cast %34 : vector<1x128x128xbf16> to vector<128x128xbf16>
    %cst_16 = arith.constant dense<0.000000e+00> : vector<64x128xf32>
    %36 = tpu.matmul %33, %35, %cst_16 {dimension_numbers = #tpu.dot_dimension_numbers<[1], [0], [0], [1], [0, 0, 1, 1], [], []>} : vector<64x128xbf16>, vector<128x128xbf16>, vector<64x128xf32> -> vector<64x128xf32>
    %37 = arith.addf %31, %36 : vector<64x128xf32>
    %c0_17 = arith.constant 0 : index
    %c2 = arith.constant 2 : index
    %c0_18 = arith.constant 0 : index
    %38 = vector.load %arg1[%c0_17, %c2, %c0_18] : memref<1x82x128xbf16, #tpu.memory_space<vmem>>, vector<1x64x128xbf16>
    %39 = vector.shape_cast %38 : vector<1x64x128xbf16> to vector<64x128xbf16>
    %cst_19 = arith.constant 0.000000e+00 : bf16
    %40 = vector.broadcast %cst_19 : bf16 to vector<64x128xbf16>
    %41 = vector.shape_cast %18 : vector<64x1xi1> to vector<64x1xi1>
    %42 = vector.broadcast %41 : vector<64x1xi1> to vector<64x128xi1>
    %43 = arith.select %42, %39, %40 : vector<64x128xi1>, vector<64x128xbf16>
    %c2_20 = arith.constant 2 : index
    %c0_21 = arith.constant 0 : index
    %c0_22 = arith.constant 0 : index
    %44 = vector.load %arg2[%c2_20, %c0_21, %c0_22] : memref<9x128x128xbf16, #tpu.memory_space<vmem>>, vector<1x128x128xbf16>
    %45 = vector.shape_cast %44 : vector<1x128x128xbf16> to vector<128x128xbf16>
    %cst_23 = arith.constant dense<0.000000e+00> : vector<64x128xf32>
    %46 = tpu.matmul %43, %45, %cst_23 {dimension_numbers = #tpu.dot_dimension_numbers<[1], [0], [0], [1], [0, 0, 1, 1], [], []>} : vector<64x128xbf16>, vector<128x128xbf16>, vector<64x128xf32> -> vector<64x128xf32>
    %47 = arith.addf %37, %46 : vector<64x128xf32>
    %c0_24 = arith.constant 0 : index
    %c8 = arith.constant 8 : index
    %c0_25 = arith.constant 0 : index
    %48 = vector.load %arg1[%c0_24, %c8, %c0_25] : memref<1x82x128xbf16, #tpu.memory_space<vmem>>, vector<1x64x128xbf16>
    %49 = vector.shape_cast %48 : vector<1x64x128xbf16> to vector<64x128xbf16>
    %cst_26 = arith.constant 0.000000e+00 : bf16
    %50 = vector.broadcast %cst_26 : bf16 to vector<64x128xbf16>
    %51 = vector.shape_cast %20 : vector<64x1xi1> to vector<64x1xi1>
    %52 = vector.broadcast %51 : vector<64x1xi1> to vector<64x128xi1>
    %53 = arith.select %52, %49, %50 : vector<64x128xi1>, vector<64x128xbf16>
    %c3 = arith.constant 3 : index
    %c0_27 = arith.constant 0 : index
    %c0_28 = arith.constant 0 : index
    %54 = vector.load %arg2[%c3, %c0_27, %c0_28] : memref<9x128x128xbf16, #tpu.memory_space<vmem>>, vector<1x128x128xbf16>
    %55 = vector.shape_cast %54 : vector<1x128x128xbf16> to vector<128x128xbf16>
    %cst_29 = arith.constant dense<0.000000e+00> : vector<64x128xf32>
    %56 = tpu.matmul %53, %55, %cst_29 {dimension_numbers = #tpu.dot_dimension_numbers<[1], [0], [0], [1], [0, 0, 1, 1], [], []>} : vector<64x128xbf16>, vector<128x128xbf16>, vector<64x128xf32> -> vector<64x128xf32>
    %57 = arith.addf %47, %56 : vector<64x128xf32>
    %c0_30 = arith.constant 0 : index
    %c9 = arith.constant 9 : index
    %c0_31 = arith.constant 0 : index
    %58 = vector.load %arg1[%c0_30, %c9, %c0_31] : memref<1x82x128xbf16, #tpu.memory_space<vmem>>, vector<1x64x128xbf16>
    %59 = vector.shape_cast %58 : vector<1x64x128xbf16> to vector<64x128xbf16>
    %c4 = arith.constant 4 : index
    %c0_32 = arith.constant 0 : index
    %c0_33 = arith.constant 0 : index
    %60 = vector.load %arg2[%c4, %c0_32, %c0_33] : memref<9x128x128xbf16, #tpu.memory_space<vmem>>, vector<1x128x128xbf16>
    %61 = vector.shape_cast %60 : vector<1x128x128xbf16> to vector<128x128xbf16>
    %cst_34 = arith.constant dense<0.000000e+00> : vector<64x128xf32>
    %62 = tpu.matmul %59, %61, %cst_34 {dimension_numbers = #tpu.dot_dimension_numbers<[1], [0], [0], [1], [0, 0, 1, 1], [], []>} : vector<64x128xbf16>, vector<128x128xbf16>, vector<64x128xf32> -> vector<64x128xf32>
    %63 = arith.addf %57, %62 : vector<64x128xf32>
    %c0_35 = arith.constant 0 : index
    %c10 = arith.constant 10 : index
    %c0_36 = arith.constant 0 : index
    %64 = vector.load %arg1[%c0_35, %c10, %c0_36] : memref<1x82x128xbf16, #tpu.memory_space<vmem>>, vector<1x64x128xbf16>
    %65 = vector.shape_cast %64 : vector<1x64x128xbf16> to vector<64x128xbf16>
    %cst_37 = arith.constant 0.000000e+00 : bf16
    %66 = vector.broadcast %cst_37 : bf16 to vector<64x128xbf16>
    %67 = vector.shape_cast %18 : vector<64x1xi1> to vector<64x1xi1>
    %68 = vector.broadcast %67 : vector<64x1xi1> to vector<64x128xi1>
    %69 = arith.select %68, %65, %66 : vector<64x128xi1>, vector<64x128xbf16>
    %c5 = arith.constant 5 : index
    %c0_38 = arith.constant 0 : index
    %c0_39 = arith.constant 0 : index
    %70 = vector.load %arg2[%c5, %c0_38, %c0_39] : memref<9x128x128xbf16, #tpu.memory_space<vmem>>, vector<1x128x128xbf16>
    %71 = vector.shape_cast %70 : vector<1x128x128xbf16> to vector<128x128xbf16>
    %cst_40 = arith.constant dense<0.000000e+00> : vector<64x128xf32>
    %72 = tpu.matmul %69, %71, %cst_40 {dimension_numbers = #tpu.dot_dimension_numbers<[1], [0], [0], [1], [0, 0, 1, 1], [], []>} : vector<64x128xbf16>, vector<128x128xbf16>, vector<64x128xf32> -> vector<64x128xf32>
    %73 = arith.addf %63, %72 : vector<64x128xf32>
    %c0_41 = arith.constant 0 : index
    %c16 = arith.constant 16 : index
    %c0_42 = arith.constant 0 : index
    %74 = vector.load %arg1[%c0_41, %c16, %c0_42] : memref<1x82x128xbf16, #tpu.memory_space<vmem>>, vector<1x64x128xbf16>
    %75 = vector.shape_cast %74 : vector<1x64x128xbf16> to vector<64x128xbf16>
    %cst_43 = arith.constant 0.000000e+00 : bf16
    %76 = vector.broadcast %cst_43 : bf16 to vector<64x128xbf16>
    %77 = vector.shape_cast %20 : vector<64x1xi1> to vector<64x1xi1>
    %78 = vector.broadcast %77 : vector<64x1xi1> to vector<64x128xi1>
    %79 = arith.select %78, %75, %76 : vector<64x128xi1>, vector<64x128xbf16>
    %c6 = arith.constant 6 : index
    %c0_44 = arith.constant 0 : index
    %c0_45 = arith.constant 0 : index
    %80 = vector.load %arg2[%c6, %c0_44, %c0_45] : memref<9x128x128xbf16, #tpu.memory_space<vmem>>, vector<1x128x128xbf16>
    %81 = vector.shape_cast %80 : vector<1x128x128xbf16> to vector<128x128xbf16>
    %cst_46 = arith.constant dense<0.000000e+00> : vector<64x128xf32>
    %82 = tpu.matmul %79, %81, %cst_46 {dimension_numbers = #tpu.dot_dimension_numbers<[1], [0], [0], [1], [0, 0, 1, 1], [], []>} : vector<64x128xbf16>, vector<128x128xbf16>, vector<64x128xf32> -> vector<64x128xf32>
    %83 = arith.addf %73, %82 : vector<64x128xf32>
    %c0_47 = arith.constant 0 : index
    %c17 = arith.constant 17 : index
    %c0_48 = arith.constant 0 : index
    %84 = vector.load %arg1[%c0_47, %c17, %c0_48] : memref<1x82x128xbf16, #tpu.memory_space<vmem>>, vector<1x64x128xbf16>
    %85 = vector.shape_cast %84 : vector<1x64x128xbf16> to vector<64x128xbf16>
    %c7 = arith.constant 7 : index
    %c0_49 = arith.constant 0 : index
    %c0_50 = arith.constant 0 : index
    %86 = vector.load %arg2[%c7, %c0_49, %c0_50] : memref<9x128x128xbf16, #tpu.memory_space<vmem>>, vector<1x128x128xbf16>
    %87 = vector.shape_cast %86 : vector<1x128x128xbf16> to vector<128x128xbf16>
    %cst_51 = arith.constant dense<0.000000e+00> : vector<64x128xf32>
    %88 = tpu.matmul %85, %87, %cst_51 {dimension_numbers = #tpu.dot_dimension_numbers<[1], [0], [0], [1], [0, 0, 1, 1], [], []>} : vector<64x128xbf16>, vector<128x128xbf16>, vector<64x128xf32> -> vector<64x128xf32>
    %89 = arith.addf %83, %88 : vector<64x128xf32>
    %c0_52 = arith.constant 0 : index
    %c18 = arith.constant 18 : index
    %c0_53 = arith.constant 0 : index
    %90 = vector.load %arg1[%c0_52, %c18, %c0_53] : memref<1x82x128xbf16, #tpu.memory_space<vmem>>, vector<1x64x128xbf16>
    %91 = vector.shape_cast %90 : vector<1x64x128xbf16> to vector<64x128xbf16>
    %cst_54 = arith.constant 0.000000e+00 : bf16
    %92 = vector.broadcast %cst_54 : bf16 to vector<64x128xbf16>
    %93 = vector.shape_cast %18 : vector<64x1xi1> to vector<64x1xi1>
    %94 = vector.broadcast %93 : vector<64x1xi1> to vector<64x128xi1>
    %95 = arith.select %94, %91, %92 : vector<64x128xi1>, vector<64x128xbf16>
    %c8_55 = arith.constant 8 : index
    %c0_56 = arith.constant 0 : index
    %c0_57 = arith.constant 0 : index
    %96 = vector.load %arg2[%c8_55, %c0_56, %c0_57] : memref<9x128x128xbf16, #tpu.memory_space<vmem>>, vector<1x128x128xbf16>
    %97 = vector.shape_cast %96 : vector<1x128x128xbf16> to vector<128x128xbf16>
    %cst_58 = arith.constant dense<0.000000e+00> : vector<64x128xf32>
    %98 = tpu.matmul %95, %97, %cst_58 {dimension_numbers = #tpu.dot_dimension_numbers<[1], [0], [0], [1], [0, 0, 1, 1], [], []>} : vector<64x128xbf16>, vector<128x128xbf16>, vector<64x128xf32> -> vector<64x128xf32>
    %99 = arith.addf %89, %98 : vector<64x128xf32>
    %c0_59 = arith.constant 0 : index
    %c0_60 = arith.constant 0 : index
    %100 = vector.load %arg3[%c0_59, %c0_60] : memref<1x128xf32, #tpu.memory_space<vmem>>, vector<1x128xf32>
    %101 = vector.broadcast %100 : vector<1x128xf32> to vector<64x128xf32>
    %102 = arith.addf %99, %101 : vector<64x128xf32>
    %cst_61 = arith.constant 0.000000e+00 : f32
    %103 = vector.broadcast %cst_61 : f32 to vector<64x128xf32>
    %104 = arith.maximumf %102, %103 : vector<64x128xf32>
    %105 = arith.truncf %104 : vector<64x128xf32> to vector<64x128xbf16>
    %c0_62 = arith.constant 0 : index
    %c0_63 = arith.constant 0 : index
    %c0_64 = arith.constant 0 : index
    %106 = vector.load %arg4[%c0_62, %c0_63, %c0_64] : memref<1x64x128xbf16, #tpu.memory_space<vmem>>, vector<1x64x128xbf16>
    %107 = vector.shape_cast %106 : vector<1x64x128xbf16> to vector<64x128xbf16>
    %108 = vector.shape_cast %105 : vector<64x128xbf16> to vector<1x64x128xbf16>
    tpu.vector_store %arg4[%c0_62, %c0_63, %c0_64], %108 {strides = array<i32>} : memref<1x64x128xbf16, #tpu.memory_space<vmem>>, vector<1x64x128xbf16>,
    return
  }
  func.func @transform_0(%arg0: i32) -> (i32, i32, i32) {
    %c0_i32 = arith.constant 0 : i32
    %c0_i32_0 = arith.constant 0 : i32
    %c0_i32_1 = arith.constant 0 : i32
    return %arg0, %c0_i32, %c0_i32_0 : i32, i32, i32
  }
  func.func @transform_1(%arg0: i32) -> (i32, i32, i32) {
    %c0_i32 = arith.constant 0 : i32
    %c0_i32_0 = arith.constant 0 : i32
    %c0_i32_1 = arith.constant 0 : i32
    %c0_i32_2 = arith.constant 0 : i32
    return %c0_i32, %c0_i32_0, %c0_i32_1 : i32, i32, i32
  }
  func.func @transform_2(%arg0: i32) -> (i32, i32) {
    %c0_i32 = arith.constant 0 : i32
    %c0_i32_0 = arith.constant 0 : i32
    %c0_i32_1 = arith.constant 0 : i32
    return %c0_i32, %c0_i32_0 : i32, i32
  }
  func.func @transform_3(%arg0: i32) -> (i32, i32, i32) {
    %c0_i32 = arith.constant 0 : i32
    %c0_i32_0 = arith.constant 0 : i32
    %c0_i32_1 = arith.constant 0 : i32
    return %arg0, %c0_i32, %c0_i32_0 : i32, i32, i32
  }
}

module attributes {stable_mosaic.version = 11 : i64} {
  func.func @_attn_block_kernel(%arg0: i32, %arg1: memref<1x64x128xbf16, #tpu.memory_space<vmem>>, %arg2: memref<128x384xbf16, #tpu.memory_space<vmem>>, %arg3: memref<1x384xf32, #tpu.memory_space<vmem>>, %arg4: memref<128x128xbf16, #tpu.memory_space<vmem>>, %arg5: memref<1x128xf32, #tpu.memory_space<vmem>>, %arg6: memref<128x128xbf16, #tpu.memory_space<vmem>>, %arg7: memref<1x128xf32, #tpu.memory_space<vmem>>, %arg8: memref<1x64x128xf32, #tpu.memory_space<vmem>>) attributes {dimension_semantics = [#tpu.dimension_semantics<parallel>], iteration_bounds = array<i64: 2>, scalar_prefetch = 0 : i64, scratch_operands = 0 : i64, tpu.core_type = #tpu.core_type<tc>, window_params = [{transform_indices = @transform_0, window_bounds = array<i64: 1, 64, 128>}, {pipeline_mode = #tpu.pipeline_mode<synchronous>, transform_indices = @transform_1, window_bounds = array<i64: 128, 384>}, {pipeline_mode = #tpu.pipeline_mode<synchronous>, transform_indices = @transform_2, window_bounds = array<i64: 1, 384>}, {pipeline_mode = #tpu.pipeline_mode<synchronous>, transform_indices = @transform_3, window_bounds = array<i64: 128, 128>}, {pipeline_mode = #tpu.pipeline_mode<synchronous>, transform_indices = @transform_4, window_bounds = array<i64: 1, 128>}, {pipeline_mode = #tpu.pipeline_mode<synchronous>, transform_indices = @transform_5, window_bounds = array<i64: 128, 128>}, {pipeline_mode = #tpu.pipeline_mode<synchronous>, transform_indices = @transform_6, window_bounds = array<i64: 1, 128>}, {transform_indices = @transform_7, window_bounds = array<i64: 1, 64, 128>}]} {
    %c0 = arith.constant 0 : index
    %c0_0 = arith.constant 0 : index
    %c0_1 = arith.constant 0 : index
    %0 = vector.load %arg1[%c0, %c0_0, %c0_1] : memref<1x64x128xbf16, #tpu.memory_space<vmem>>, vector<1x64x128xbf16>
    %1 = vector.shape_cast %0 : vector<1x64x128xbf16> to vector<64x128xbf16>
    %c0_2 = arith.constant 0 : index
    %c0_3 = arith.constant 0 : index
    %2 = vector.load %arg2[%c0_2, %c0_3] : memref<128x384xbf16, #tpu.memory_space<vmem>>, vector<128x384xbf16>
    %cst = arith.constant dense<0.000000e+00> : vector<64x384xf32>
    %3 = tpu.matmul %1, %2, %cst {dimension_numbers = #tpu.dot_dimension_numbers<[1], [0], [0], [1], [0, 0, 1, 1], [], []>} : vector<64x128xbf16>, vector<128x384xbf16>, vector<64x384xf32> -> vector<64x384xf32>
    %c0_4 = arith.constant 0 : index
    %c0_5 = arith.constant 0 : index
    %4 = vector.load %arg3[%c0_4, %c0_5] : memref<1x384xf32, #tpu.memory_space<vmem>>, vector<1x384xf32>
    %5 = vector.broadcast %4 : vector<1x384xf32> to vector<64x384xf32>
    %6 = arith.addf %3, %5 : vector<64x384xf32>
    %7 = vector.extract_strided_slice %6 {offsets = [0, 0], sizes = [64, 128], strides = [1, 1]} : vector<64x384xf32> to vector<64x128xf32>
    %8 = vector.extract_strided_slice %6 {offsets = [0, 128], sizes = [64, 128], strides = [1, 1]} : vector<64x384xf32> to vector<64x128xf32>
    %9 = vector.extract_strided_slice %6 {offsets = [0, 256], sizes = [64, 128], strides = [1, 1]} : vector<64x384xf32> to vector<64x128xf32>
    %10 = vector.extract_strided_slice %7 {offsets = [0, 0], sizes = [64, 16], strides = [1, 1]} : vector<64x128xf32> to vector<64x16xf32>
    %11 = vector.extract_strided_slice %8 {offsets = [0, 0], sizes = [64, 16], strides = [1, 1]} : vector<64x128xf32> to vector<64x16xf32>
    %12 = vector.extract_strided_slice %9 {offsets = [0, 0], sizes = [64, 16], strides = [1, 1]} : vector<64x128xf32> to vector<64x16xf32>
    %13 = tpu.transpose %11, [1, 0] : vector<64x16xf32> -> vector<16x64xf32>
    %cst_6 = arith.constant dense<0.000000e+00> : vector<64x64xf32>
    %14 = tpu.matmul %10, %13, %cst_6 {dimension_numbers = #tpu.dot_dimension_numbers<[1], [0], [0], [1], [0, 0, 1, 1], [], []>} : vector<64x16xf32>, vector<16x64xf32>, vector<64x64xf32> -> vector<64x64xf32>
    %cst_7 = arith.constant dense<0xFF800000> : vector<64xf32>
    %15 = vector.multi_reduction <maximumf>, %14, %cst_7 [1] : vector<64x64xf32> to vector<64xf32>
    %16 = vector.shape_cast %15 : vector<64xf32> to vector<64x1xf32>
    %17 = vector.broadcast %16 : vector<64x1xf32> to vector<64x64xf32>
    %18 = arith.subf %14, %17 : vector<64x64xf32>
    %19 = math.exp %18 : vector<64x64xf32>
    %cst_8 = arith.constant dense<0.000000e+00> : vector<64xf32>
    %20 = vector.multi_reduction <add>, %19, %cst_8 [1] : vector<64x64xf32> to vector<64xf32>
    %21 = vector.shape_cast %20 : vector<64xf32> to vector<64x1xf32>
    %22 = tpu.reciprocal %21 {approx = true} : vector<64x1xf32> -> vector<64x1xf32>
    %23 = vector.broadcast %22 : vector<64x1xf32> to vector<64x64xf32>
    %24 = arith.mulf %19, %23 : vector<64x64xf32>
    %cst_9 = arith.constant dense<0.000000e+00> : vector<64x16xf32>
    %25 = tpu.matmul %24, %12, %cst_9 {dimension_numbers = #tpu.dot_dimension_numbers<[1], [0], [0], [1], [0, 0, 1, 1], [], []>} : vector<64x64xf32>, vector<64x16xf32>, vector<64x16xf32> -> vector<64x16xf32>
    %26 = vector.extract_strided_slice %7 {offsets = [0, 16], sizes = [64, 16], strides = [1, 1]} : vector<64x128xf32> to vector<64x16xf32>
    %27 = vector.extract_strided_slice %8 {offsets = [0, 16], sizes = [64, 16], strides = [1, 1]} : vector<64x128xf32> to vector<64x16xf32>
    %28 = vector.extract_strided_slice %9 {offsets = [0, 16], sizes = [64, 16], strides = [1, 1]} : vector<64x128xf32> to vector<64x16xf32>
    %29 = tpu.transpose %27, [1, 0] : vector<64x16xf32> -> vector<16x64xf32>
    %cst_10 = arith.constant dense<0.000000e+00> : vector<64x64xf32>
    %30 = tpu.matmul %26, %29, %cst_10 {dimension_numbers = #tpu.dot_dimension_numbers<[1], [0], [0], [1], [0, 0, 1, 1], [], []>} : vector<64x16xf32>, vector<16x64xf32>, vector<64x64xf32> -> vector<64x64xf32>
    %cst_11 = arith.constant dense<0xFF800000> : vector<64xf32>
    %31 = vector.multi_reduction <maximumf>, %30, %cst_11 [1] : vector<64x64xf32> to vector<64xf32>
    %32 = vector.shape_cast %31 : vector<64xf32> to vector<64x1xf32>
    %33 = vector.broadcast %32 : vector<64x1xf32> to vector<64x64xf32>
    %34 = arith.subf %30, %33 : vector<64x64xf32>
    %35 = math.exp %34 : vector<64x64xf32>
    %cst_12 = arith.constant dense<0.000000e+00> : vector<64xf32>
    %36 = vector.multi_reduction <add>, %35, %cst_12 [1] : vector<64x64xf32> to vector<64xf32>
    %37 = vector.shape_cast %36 : vector<64xf32> to vector<64x1xf32>
    %38 = tpu.reciprocal %37 {approx = true} : vector<64x1xf32> -> vector<64x1xf32>
    %39 = vector.broadcast %38 : vector<64x1xf32> to vector<64x64xf32>
    %40 = arith.mulf %35, %39 : vector<64x64xf32>
    %cst_13 = arith.constant dense<0.000000e+00> : vector<64x16xf32>
    %41 = tpu.matmul %40, %28, %cst_13 {dimension_numbers = #tpu.dot_dimension_numbers<[1], [0], [0], [1], [0, 0, 1, 1], [], []>} : vector<64x64xf32>, vector<64x16xf32>, vector<64x16xf32> -> vector<64x16xf32>
    %42 = vector.extract_strided_slice %7 {offsets = [0, 32], sizes = [64, 16], strides = [1, 1]} : vector<64x128xf32> to vector<64x16xf32>
    %43 = vector.extract_strided_slice %8 {offsets = [0, 32], sizes = [64, 16], strides = [1, 1]} : vector<64x128xf32> to vector<64x16xf32>
    %44 = vector.extract_strided_slice %9 {offsets = [0, 32], sizes = [64, 16], strides = [1, 1]} : vector<64x128xf32> to vector<64x16xf32>
    %45 = tpu.transpose %43, [1, 0] : vector<64x16xf32> -> vector<16x64xf32>
    %cst_14 = arith.constant dense<0.000000e+00> : vector<64x64xf32>
    %46 = tpu.matmul %42, %45, %cst_14 {dimension_numbers = #tpu.dot_dimension_numbers<[1], [0], [0], [1], [0, 0, 1, 1], [], []>} : vector<64x16xf32>, vector<16x64xf32>, vector<64x64xf32> -> vector<64x64xf32>
    %cst_15 = arith.constant dense<0xFF800000> : vector<64xf32>
    %47 = vector.multi_reduction <maximumf>, %46, %cst_15 [1] : vector<64x64xf32> to vector<64xf32>
    %48 = vector.shape_cast %47 : vector<64xf32> to vector<64x1xf32>
    %49 = vector.broadcast %48 : vector<64x1xf32> to vector<64x64xf32>
    %50 = arith.subf %46, %49 : vector<64x64xf32>
    %51 = math.exp %50 : vector<64x64xf32>
    %cst_16 = arith.constant dense<0.000000e+00> : vector<64xf32>
    %52 = vector.multi_reduction <add>, %51, %cst_16 [1] : vector<64x64xf32> to vector<64xf32>
    %53 = vector.shape_cast %52 : vector<64xf32> to vector<64x1xf32>
    %54 = tpu.reciprocal %53 {approx = true} : vector<64x1xf32> -> vector<64x1xf32>
    %55 = vector.broadcast %54 : vector<64x1xf32> to vector<64x64xf32>
    %56 = arith.mulf %51, %55 : vector<64x64xf32>
    %cst_17 = arith.constant dense<0.000000e+00> : vector<64x16xf32>
    %57 = tpu.matmul %56, %44, %cst_17 {dimension_numbers = #tpu.dot_dimension_numbers<[1], [0], [0], [1], [0, 0, 1, 1], [], []>} : vector<64x64xf32>, vector<64x16xf32>, vector<64x16xf32> -> vector<64x16xf32>
    %58 = vector.extract_strided_slice %7 {offsets = [0, 48], sizes = [64, 16], strides = [1, 1]} : vector<64x128xf32> to vector<64x16xf32>
    %59 = vector.extract_strided_slice %8 {offsets = [0, 48], sizes = [64, 16], strides = [1, 1]} : vector<64x128xf32> to vector<64x16xf32>
    %60 = vector.extract_strided_slice %9 {offsets = [0, 48], sizes = [64, 16], strides = [1, 1]} : vector<64x128xf32> to vector<64x16xf32>
    %61 = tpu.transpose %59, [1, 0] : vector<64x16xf32> -> vector<16x64xf32>
    %cst_18 = arith.constant dense<0.000000e+00> : vector<64x64xf32>
    %62 = tpu.matmul %58, %61, %cst_18 {dimension_numbers = #tpu.dot_dimension_numbers<[1], [0], [0], [1], [0, 0, 1, 1], [], []>} : vector<64x16xf32>, vector<16x64xf32>, vector<64x64xf32> -> vector<64x64xf32>
    %cst_19 = arith.constant dense<0xFF800000> : vector<64xf32>
    %63 = vector.multi_reduction <maximumf>, %62, %cst_19 [1] : vector<64x64xf32> to vector<64xf32>
    %64 = vector.shape_cast %63 : vector<64xf32> to vector<64x1xf32>
    %65 = vector.broadcast %64 : vector<64x1xf32> to vector<64x64xf32>
    %66 = arith.subf %62, %65 : vector<64x64xf32>
    %67 = math.exp %66 : vector<64x64xf32>
    %cst_20 = arith.constant dense<0.000000e+00> : vector<64xf32>
    %68 = vector.multi_reduction <add>, %67, %cst_20 [1] : vector<64x64xf32> to vector<64xf32>
    %69 = vector.shape_cast %68 : vector<64xf32> to vector<64x1xf32>
    %70 = tpu.reciprocal %69 {approx = true} : vector<64x1xf32> -> vector<64x1xf32>
    %71 = vector.broadcast %70 : vector<64x1xf32> to vector<64x64xf32>
    %72 = arith.mulf %67, %71 : vector<64x64xf32>
    %cst_21 = arith.constant dense<0.000000e+00> : vector<64x16xf32>
    %73 = tpu.matmul %72, %60, %cst_21 {dimension_numbers = #tpu.dot_dimension_numbers<[1], [0], [0], [1], [0, 0, 1, 1], [], []>} : vector<64x64xf32>, vector<64x16xf32>, vector<64x16xf32> -> vector<64x16xf32>
    %74 = vector.extract_strided_slice %7 {offsets = [0, 64], sizes = [64, 16], strides = [1, 1]} : vector<64x128xf32> to vector<64x16xf32>
    %75 = vector.extract_strided_slice %8 {offsets = [0, 64], sizes = [64, 16], strides = [1, 1]} : vector<64x128xf32> to vector<64x16xf32>
    %76 = vector.extract_strided_slice %9 {offsets = [0, 64], sizes = [64, 16], strides = [1, 1]} : vector<64x128xf32> to vector<64x16xf32>
    %77 = tpu.transpose %75, [1, 0] : vector<64x16xf32> -> vector<16x64xf32>
    %cst_22 = arith.constant dense<0.000000e+00> : vector<64x64xf32>
    %78 = tpu.matmul %74, %77, %cst_22 {dimension_numbers = #tpu.dot_dimension_numbers<[1], [0], [0], [1], [0, 0, 1, 1], [], []>} : vector<64x16xf32>, vector<16x64xf32>, vector<64x64xf32> -> vector<64x64xf32>
    %cst_23 = arith.constant dense<0xFF800000> : vector<64xf32>
    %79 = vector.multi_reduction <maximumf>, %78, %cst_23 [1] : vector<64x64xf32> to vector<64xf32>
    %80 = vector.shape_cast %79 : vector<64xf32> to vector<64x1xf32>
    %81 = vector.broadcast %80 : vector<64x1xf32> to vector<64x64xf32>
    %82 = arith.subf %78, %81 : vector<64x64xf32>
    %83 = math.exp %82 : vector<64x64xf32>
    %cst_24 = arith.constant dense<0.000000e+00> : vector<64xf32>
    %84 = vector.multi_reduction <add>, %83, %cst_24 [1] : vector<64x64xf32> to vector<64xf32>
    %85 = vector.shape_cast %84 : vector<64xf32> to vector<64x1xf32>
    %86 = tpu.reciprocal %85 {approx = true} : vector<64x1xf32> -> vector<64x1xf32>
    %87 = vector.broadcast %86 : vector<64x1xf32> to vector<64x64xf32>
    %88 = arith.mulf %83, %87 : vector<64x64xf32>
    %cst_25 = arith.constant dense<0.000000e+00> : vector<64x16xf32>
    %89 = tpu.matmul %88, %76, %cst_25 {dimension_numbers = #tpu.dot_dimension_numbers<[1], [0], [0], [1], [0, 0, 1, 1], [], []>} : vector<64x64xf32>, vector<64x16xf32>, vector<64x16xf32> -> vector<64x16xf32>
    %90 = vector.extract_strided_slice %7 {offsets = [0, 80], sizes = [64, 16], strides = [1, 1]} : vector<64x128xf32> to vector<64x16xf32>
    %91 = vector.extract_strided_slice %8 {offsets = [0, 80], sizes = [64, 16], strides = [1, 1]} : vector<64x128xf32> to vector<64x16xf32>
    %92 = vector.extract_strided_slice %9 {offsets = [0, 80], sizes = [64, 16], strides = [1, 1]} : vector<64x128xf32> to vector<64x16xf32>
    %93 = tpu.transpose %91, [1, 0] : vector<64x16xf32> -> vector<16x64xf32>
    %cst_26 = arith.constant dense<0.000000e+00> : vector<64x64xf32>
    %94 = tpu.matmul %90, %93, %cst_26 {dimension_numbers = #tpu.dot_dimension_numbers<[1], [0], [0], [1], [0, 0, 1, 1], [], []>} : vector<64x16xf32>, vector<16x64xf32>, vector<64x64xf32> -> vector<64x64xf32>
    %cst_27 = arith.constant dense<0xFF800000> : vector<64xf32>
    %95 = vector.multi_reduction <maximumf>, %94, %cst_27 [1] : vector<64x64xf32> to vector<64xf32>
    %96 = vector.shape_cast %95 : vector<64xf32> to vector<64x1xf32>
    %97 = vector.broadcast %96 : vector<64x1xf32> to vector<64x64xf32>
    %98 = arith.subf %94, %97 : vector<64x64xf32>
    %99 = math.exp %98 : vector<64x64xf32>
    %cst_28 = arith.constant dense<0.000000e+00> : vector<64xf32>
    %100 = vector.multi_reduction <add>, %99, %cst_28 [1] : vector<64x64xf32> to vector<64xf32>
    %101 = vector.shape_cast %100 : vector<64xf32> to vector<64x1xf32>
    %102 = tpu.reciprocal %101 {approx = true} : vector<64x1xf32> -> vector<64x1xf32>
    %103 = vector.broadcast %102 : vector<64x1xf32> to vector<64x64xf32>
    %104 = arith.mulf %99, %103 : vector<64x64xf32>
    %cst_29 = arith.constant dense<0.000000e+00> : vector<64x16xf32>
    %105 = tpu.matmul %104, %92, %cst_29 {dimension_numbers = #tpu.dot_dimension_numbers<[1], [0], [0], [1], [0, 0, 1, 1], [], []>} : vector<64x64xf32>, vector<64x16xf32>, vector<64x16xf32> -> vector<64x16xf32>
    %106 = vector.extract_strided_slice %7 {offsets = [0, 96], sizes = [64, 16], strides = [1, 1]} : vector<64x128xf32> to vector<64x16xf32>
    %107 = vector.extract_strided_slice %8 {offsets = [0, 96], sizes = [64, 16], strides = [1, 1]} : vector<64x128xf32> to vector<64x16xf32>
    %108 = vector.extract_strided_slice %9 {offsets = [0, 96], sizes = [64, 16], strides = [1, 1]} : vector<64x128xf32> to vector<64x16xf32>
    %109 = tpu.transpose %107, [1, 0] : vector<64x16xf32> -> vector<16x64xf32>
    %cst_30 = arith.constant dense<0.000000e+00> : vector<64x64xf32>
    %110 = tpu.matmul %106, %109, %cst_30 {dimension_numbers = #tpu.dot_dimension_numbers<[1], [0], [0], [1], [0, 0, 1, 1], [], []>} : vector<64x16xf32>, vector<16x64xf32>, vector<64x64xf32> -> vector<64x64xf32>
    %cst_31 = arith.constant dense<0xFF800000> : vector<64xf32>
    %111 = vector.multi_reduction <maximumf>, %110, %cst_31 [1] : vector<64x64xf32> to vector<64xf32>
    %112 = vector.shape_cast %111 : vector<64xf32> to vector<64x1xf32>
    %113 = vector.broadcast %112 : vector<64x1xf32> to vector<64x64xf32>
    %114 = arith.subf %110, %113 : vector<64x64xf32>
    %115 = math.exp %114 : vector<64x64xf32>
    %cst_32 = arith.constant dense<0.000000e+00> : vector<64xf32>
    %116 = vector.multi_reduction <add>, %115, %cst_32 [1] : vector<64x64xf32> to vector<64xf32>
    %117 = vector.shape_cast %116 : vector<64xf32> to vector<64x1xf32>
    %118 = tpu.reciprocal %117 {approx = true} : vector<64x1xf32> -> vector<64x1xf32>
    %119 = vector.broadcast %118 : vector<64x1xf32> to vector<64x64xf32>
    %120 = arith.mulf %115, %119 : vector<64x64xf32>
    %cst_33 = arith.constant dense<0.000000e+00> : vector<64x16xf32>
    %121 = tpu.matmul %120, %108, %cst_33 {dimension_numbers = #tpu.dot_dimension_numbers<[1], [0], [0], [1], [0, 0, 1, 1], [], []>} : vector<64x64xf32>, vector<64x16xf32>, vector<64x16xf32> -> vector<64x16xf32>
    %122 = vector.extract_strided_slice %7 {offsets = [0, 112], sizes = [64, 16], strides = [1, 1]} : vector<64x128xf32> to vector<64x16xf32>
    %123 = vector.extract_strided_slice %8 {offsets = [0, 112], sizes = [64, 16], strides = [1, 1]} : vector<64x128xf32> to vector<64x16xf32>
    %124 = vector.extract_strided_slice %9 {offsets = [0, 112], sizes = [64, 16], strides = [1, 1]} : vector<64x128xf32> to vector<64x16xf32>
    %125 = tpu.transpose %123, [1, 0] : vector<64x16xf32> -> vector<16x64xf32>
    %cst_34 = arith.constant dense<0.000000e+00> : vector<64x64xf32>
    %126 = tpu.matmul %122, %125, %cst_34 {dimension_numbers = #tpu.dot_dimension_numbers<[1], [0], [0], [1], [0, 0, 1, 1], [], []>} : vector<64x16xf32>, vector<16x64xf32>, vector<64x64xf32> -> vector<64x64xf32>
    %cst_35 = arith.constant dense<0xFF800000> : vector<64xf32>
    %127 = vector.multi_reduction <maximumf>, %126, %cst_35 [1] : vector<64x64xf32> to vector<64xf32>
    %128 = vector.shape_cast %127 : vector<64xf32> to vector<64x1xf32>
    %129 = vector.broadcast %128 : vector<64x1xf32> to vector<64x64xf32>
    %130 = arith.subf %126, %129 : vector<64x64xf32>
    %131 = math.exp %130 : vector<64x64xf32>
    %cst_36 = arith.constant dense<0.000000e+00> : vector<64xf32>
    %132 = vector.multi_reduction <add>, %131, %cst_36 [1] : vector<64x64xf32> to vector<64xf32>
    %133 = vector.shape_cast %132 : vector<64xf32> to vector<64x1xf32>
    %134 = tpu.reciprocal %133 {approx = true} : vector<64x1xf32> -> vector<64x1xf32>
    %135 = vector.broadcast %134 : vector<64x1xf32> to vector<64x64xf32>
    %136 = arith.mulf %131, %135 : vector<64x64xf32>
    %cst_37 = arith.constant dense<0.000000e+00> : vector<64x16xf32>
    %137 = tpu.matmul %136, %124, %cst_37 {dimension_numbers = #tpu.dot_dimension_numbers<[1], [0], [0], [1], [0, 0, 1, 1], [], []>} : vector<64x64xf32>, vector<64x16xf32>, vector<64x16xf32> -> vector<64x16xf32>
    %138 = tpu.concatenate %25, %41, %57, %73, %89, %105, %121, %137 in 1 : vector<64x16xf32>, vector<64x16xf32>, vector<64x16xf32>, vector<64x16xf32>, vector<64x16xf32>, vector<64x16xf32>, vector<64x16xf32>, vector<64x16xf32> -> vector<64x128xf32>
    %139 = arith.truncf %138 : vector<64x128xf32> to vector<64x128xbf16>
    %c0_38 = arith.constant 0 : index
    %c0_39 = arith.constant 0 : index
    %140 = vector.load %arg4[%c0_38, %c0_39] : memref<128x128xbf16, #tpu.memory_space<vmem>>, vector<128x128xbf16>
    %cst_40 = arith.constant dense<0.000000e+00> : vector<64x128xf32>
    %141 = tpu.matmul %139, %140, %cst_40 {dimension_numbers = #tpu.dot_dimension_numbers<[1], [0], [0], [1], [0, 0, 1, 1], [], []>} : vector<64x128xbf16>, vector<128x128xbf16>, vector<64x128xf32> -> vector<64x128xf32>
    %c0_41 = arith.constant 0 : index
    %c0_42 = arith.constant 0 : index
    %142 = vector.load %arg5[%c0_41, %c0_42] : memref<1x128xf32, #tpu.memory_space<vmem>>, vector<1x128xf32>
    %143 = vector.broadcast %142 : vector<1x128xf32> to vector<64x128xf32>
    %144 = arith.addf %141, %143 : vector<64x128xf32>
    %145 = arith.truncf %144 : vector<64x128xf32> to vector<64x128xbf16>
    %c0_43 = arith.constant 0 : index
    %c0_44 = arith.constant 0 : index
    %146 = vector.load %arg6[%c0_43, %c0_44] : memref<128x128xbf16, #tpu.memory_space<vmem>>, vector<128x128xbf16>
    %cst_45 = arith.constant dense<0.000000e+00> : vector<64x128xf32>
    %147 = tpu.matmul %145, %146, %cst_45 {dimension_numbers = #tpu.dot_dimension_numbers<[1], [0], [0], [1], [0, 0, 1, 1], [], []>} : vector<64x128xbf16>, vector<128x128xbf16>, vector<64x128xf32> -> vector<64x128xf32>
    %c0_46 = arith.constant 0 : index
    %c0_47 = arith.constant 0 : index
    %148 = vector.load %arg7[%c0_46, %c0_47] : memref<1x128xf32, #tpu.memory_space<vmem>>, vector<1x128xf32>
    %149 = vector.broadcast %148 : vector<1x128xf32> to vector<64x128xf32>
    %150 = arith.addf %147, %149 : vector<64x128xf32>
    %c0_48 = arith.constant 0 : index
    %c0_49 = arith.constant 0 : index
    %c0_50 = arith.constant 0 : index
    %151 = vector.load %arg8[%c0_48, %c0_49, %c0_50] : memref<1x64x128xf32, #tpu.memory_space<vmem>>, vector<1x64x128xf32>
    %152 = vector.shape_cast %151 : vector<1x64x128xf32> to vector<64x128xf32>
    %153 = vector.shape_cast %150 : vector<64x128xf32> to vector<1x64x128xf32>
    tpu.vector_store %arg8[%c0_48, %c0_49, %c0_50], %153 {strides = array<i32>} : memref<1x64x128xf32, #tpu.memory_space<vmem>>, vector<1x64x128xf32>,
    return
  }
  func.func @transform_0(%arg0: i32) -> (i32, i32, i32) {
    %c0_i32 = arith.constant 0 : i32
    %c0_i32_0 = arith.constant 0 : i32
    %c0_i32_1 = arith.constant 0 : i32
    return %arg0, %c0_i32, %c0_i32_0 : i32, i32, i32
  }
  func.func @transform_1(%arg0: i32) -> (i32, i32) {
    %c0_i32 = arith.constant 0 : i32
    %c0_i32_0 = arith.constant 0 : i32
    %c0_i32_1 = arith.constant 0 : i32
    return %c0_i32, %c0_i32_0 : i32, i32
  }
  func.func @transform_2(%arg0: i32) -> (i32, i32) {
    %c0_i32 = arith.constant 0 : i32
    %c0_i32_0 = arith.constant 0 : i32
    %c0_i32_1 = arith.constant 0 : i32
    return %c0_i32, %c0_i32_0 : i32, i32
  }
  func.func @transform_3(%arg0: i32) -> (i32, i32) {
    %c0_i32 = arith.constant 0 : i32
    %c0_i32_0 = arith.constant 0 : i32
    %c0_i32_1 = arith.constant 0 : i32
    return %c0_i32, %c0_i32_0 : i32, i32
  }
  func.func @transform_4(%arg0: i32) -> (i32, i32) {
    %c0_i32 = arith.constant 0 : i32
    %c0_i32_0 = arith.constant 0 : i32
    %c0_i32_1 = arith.constant 0 : i32
    return %c0_i32, %c0_i32_0 : i32, i32
  }
  func.func @transform_5(%arg0: i32) -> (i32, i32) {
    %c0_i32 = arith.constant 0 : i32
    %c0_i32_0 = arith.constant 0 : i32
    %c0_i32_1 = arith.constant 0 : i32
    return %c0_i32, %c0_i32_0 : i32, i32
  }
  func.func @transform_6(%arg0: i32) -> (i32, i32) {
    %c0_i32 = arith.constant 0 : i32
    %c0_i32_0 = arith.constant 0 : i32
    %c0_i32_1 = arith.constant 0 : i32
    return %c0_i32, %c0_i32_0 : i32, i32
  }
  func.func @transform_7(%arg0: i32) -> (i32, i32, i32) {
    %c0_i32 = arith.constant 0 : i32
    %c0_i32_0 = arith.constant 0 : i32
    %c0_i32_1 = arith.constant 0 : i32
    return %arg0, %c0_i32, %c0_i32_0 : i32, i32, i32
  }
}

</mosaic_0001>

<llo_original>
// kernel: bottleneck_forward.3
$region0: #{bottleneck_forward.3}
  #allocation0 [shape = 'u32[]', space=smem, size = 0x4, offset = 0x4, fixed_abs, tag = 'smem constant byte address 0x4 - core index']
  #allocation1 [shape = 'u32[144,128]{1,0:T(1,128)}', space=vmem, size = 0x12000, scoped, tag = 'internal scratch']
  %s0 = inlined_call_operand.vmem [shape: bf16[2,82,64], index: 0, kind: input, shape index: {}]
  %s1 = inlined_call_operand.hbm [shape: bf16[9,64,128], index: 1, kind: input, shape index: {}]
  %s2 = inlined_call_operand.hbm [shape: f32[1,128], index: 2, kind: input, shape index: {}]
  %s3 = inlined_call_operand.vmem [shape: bf16[2,64,128], index: 3, kind: output, shape index: {}]
  %s4 = sld [smem:[#allocation0]]
  $region53: #{bottleneck_forward.3} parent=0
    _
  %s6 = ssub.s32 1, %s4
  %s7 = scalar_select 0, %s6, %s4
  $region1: #{bottleneck_forward.3} parent=0
    #allocation2 [shape = 'u8[147456]{0}', space=vmem, size = 0x24000, scoped, tag = 'input window, operand 1, single buffered']
    #allocation3 [shape = 's32[2]{0}', space=sflag, size = 0x8, scoped, tag = 'scoped memory for bottleneck_forward.3']
    #allocation4 [shape = 'u8[512]{0}', space=vmem, size = 0x400, scoped, tag = 'input window, operand 2, single buffered']
    #allocation5 [shape = 's32[1]{0}', space=sflag, size = 0x4, scoped, tag = 'scoped memory for bottleneck_forward.3']
    %8 = vsyncpa [#allocation3], 0
    %9 = vsyncpa [#allocation5], 0
    loop: start=0, step=1, limit=4
    $region2: #{bottleneck_forward.3} parent=1 // loop_pre_header
      _
    $region3: #{bottleneck_forward.3} parent=1 // loop_header
      %s11 = sphi 0, %s15
      %p12 = scmp.ge.s32.totalorder %s11, 4
      %s21 = sphi 0, %s23
      %s24 = sphi 0, %s21
      %s25 = sphi 0, %s24
      %s41 = sphi 0, %s25
      %s45 = sphi 0, %s45
      %s47 = sphi 0, %s45
      %s48 = sphi 0, %s47
      %s62 = sphi 0, %s48
      %s66 = sphi 0, %s66
      %s68 = sphi 0, %s66
      %s69 = sphi 0, %s68
      %s83 = sphi 0, %s69
      %s89 = sphi 0, %s91
      %s92 = sphi 0, %s89
      %s93 = sphi 0, %s92
      %s109 = sphi 0, %s93
    $region4: #{bottleneck_forward.3} parent=1 // loop_header_branch
      %14 = sbr.rel (%p12) target = $region8
    $region5: #{bottleneck_forward.3} parent=1 // loop_body
      %s16 = ssub.s32 %s11, 1
      %s17 = ssub.s32 %s11, 2
      %s18 = sadd.s32 %s11, 1
      %s19 = ssub.s32 %s11, %s18
      %p20 = scmp.eq.s32.totalorder %s19, 0
      %s22 = sadd.s32 %s21, 1
      %s23 = scalar_select %p20, %s21, %s22
      %p26 = pneg %p20
      %p27 = scmp.eq.s32.totalorder %s11, 1
      %p28 = por %p26, %p27
      %p29 = scmp.ne.s32.totalorder %s21, %s24
      %p30 = scmp.eq.s32.totalorder %s11, 0
      %p31 = por %p29, %p30
      %p32 = scmp.ne.s32.totalorder %s21, %s24
      %p33 = scmp.eq.s32.totalorder %s16, 1
      %p34 = por %p32, %p33
      %p35 = scmp.ne.s32.totalorder %s24, %s25
      %p36 = scmp.eq.s32.totalorder %s16, 0
      %p37 = por %p35, %p36
      %p38 = scmp.ne.s32.totalorder %s24, %s25
      %p39 = scmp.eq.s32.totalorder %s17, 1
      %p40 = por %p38, %p39
      %p42 = scmp.ne.s32.totalorder %s25, %s41
      %p43 = scmp.eq.s32.totalorder %s17, 0
      %p44 = por %p42, %p43
      %s46 = sadd.s32 %s45, 1
      %p49 = scmp.eq.s32.totalorder %s11, 1
      %p50 = scmp.ne.s32.totalorder %s45, %s47
      %p51 = scmp.eq.s32.totalorder %s11, 0
      %p52 = por %p50, %p51
      %p53 = scmp.ne.s32.totalorder %s45, %s47
      %p54 = scmp.eq.s32.totalorder %s16, 1
      %p55 = por %p53, %p54
      %p56 = scmp.ne.s32.totalorder %s47, %s48
      %p57 = scmp.eq.s32.totalorder %s16, 0
      %p58 = por %p56, %p57
      %p59 = scmp.ne.s32.totalorder %s47, %s48
      %p60 = scmp.eq.s32.totalorder %s17, 1
      %p61 = por %p59, %p60
      %p63 = scmp.ne.s32.totalorder %s48, %s62
      %p64 = scmp.eq.s32.totalorder %s17, 0
      %p65 = por %p63, %p64
      %s67 = sadd.s32 %s66, 1
      %p70 = scmp.eq.s32.totalorder %s11, 1
      %p71 = scmp.ne.s32.totalorder %s66, %s68
      %p72 = scmp.eq.s32.totalorder %s11, 0
      %p73 = por %p71, %p72
      %p74 = scmp.ne.s32.totalorder %s66, %s68
      %p75 = scmp.eq.s32.totalorder %s16, 1
      %p76 = por %p74, %p75
      %p77 = scmp.ne.s32.totalorder %s68, %s69
      %p78 = scmp.eq.s32.totalorder %s16, 0
      %p79 = por %p77, %p78
      %p80 = scmp.ne.s32.totalorder %s68, %s69
      %p81 = scmp.eq.s32.totalorder %s17, 1
      %p82 = por %p80, %p81
      %p84 = scmp.ne.s32.totalorder %s69, %s83
      %p85 = scmp.eq.s32.totalorder %s17, 0
      %p86 = por %p84, %p85
      %s87 = ssub.s32 %s11, %s18
      %p88 = scmp.eq.s32.totalorder %s87, 0
      %s90 = sadd.s32 %s89, 1
      %s91 = scalar_select %p88, %s89, %s90
      %p94 = pneg %p88
      %p95 = scmp.eq.s32.totalorder %s11, 1
      %p96 = por %p94, %p95
      %p97 = scmp.ne.s32.totalorder %s89, %s92
      %p98 = scmp.eq.s32.totalorder %s11, 0
      %p99 = por %p97, %p98
      %p100 = scmp.ne.s32.totalorder %s89, %s92
      %p101 = scmp.eq.s32.totalorder %s16, 1
      %p102 = por %p100, %p101
      %p103 = scmp.ne.s32.totalorder %s92, %s93
      %p104 = scmp.eq.s32.totalorder %s16, 0
      %p105 = por %p103, %p104
      %p106 = scmp.ne.s32.totalorder %s92, %s93
      %p107 = scmp.eq.s32.totalorder %s17, 1
      %p108 = por %p106, %p107
      %p110 = scmp.ne.s32.totalorder %s93, %s109
      %p111 = scmp.eq.s32.totalorder %s17, 0
      %p112 = por %p110, %p111
      %p113 = scmp.le.s32.totalorder 1, %s11
      %p114 = scmp.lt.s32.totalorder %s11, 3
      %p115 = pnand %p113, %p114
      %p116 = pneg %p115
      // Predicated region
      $region9: #{bottleneck_forward.3} parent=5 // pred_check
        _
      $region10: #{bottleneck_forward.3} parent=5 // pred_check_branch
        %118 = sbr.rel (%p115) target = $region12
      $region11: #{bottleneck_forward.3} parent=5 // pred_region
        %s119 = ssub.s32 %s11, 1
        // Predicated region
        $region13: #{bottleneck_forward.3} parent=11 // pred_check
          %p120 = pneg %p58
        $region14: #{bottleneck_forward.3} parent=11 // pred_check_branch
          %122 = sbr.rel (%p120) target = $region16
        $region15: #{bottleneck_forward.3} parent=11 // pred_region
          %s124 = ssub.s32 4608, 4608
          %125 = vsyncadd [#allocation3], %s124
          %s126 = sshll.u32 [#allocation2], 4
          %s127 = int_to_ptr.vmem [resolvable:$true] %s126
          %132 = dma.hbm_to_vmem [thread:$0]  %s1, 4608, %s127, [#allocation3], 64, 64, 4
        $region16: #{bottleneck_forward.3} parent=11 // pred_fallthru
          _
        // Predicated region
        $region17: #{bottleneck_forward.3} parent=11 // pred_check
          %p133 = pneg %p79
        $region18: #{bottleneck_forward.3} parent=11 // pred_check_branch
          %135 = sbr.rel (%p133) target = $region20
        $region19: #{bottleneck_forward.3} parent=11 // pred_region
          %s137 = ssub.s32 16, 16
          %138 = vsyncadd [#allocation5], %s137
          %s140 = sshll.u32 [#allocation4], 4
          %s141 = int_to_ptr.vmem [resolvable:$true] %s140
          %143 = dma.hbm_to_vmem [thread:$0]  %s2, 16, %s141, [#allocation5]
        $region20: #{bottleneck_forward.3} parent=11 // pred_fallthru
          _
      $region12: #{bottleneck_forward.3} parent=5 // pred_fallthru
        _
      %p144 = scmp.lt.s32.totalorder %s11, 2
      // Predicated region
      $region21: #{bottleneck_forward.3} parent=5 // pred_check
        %p145 = pneg %p144
      $region22: #{bottleneck_forward.3} parent=5 // pred_check_branch
        %147 = sbr.rel (%p145) target = $region24
      $region23: #{bottleneck_forward.3} parent=5 // pred_region
        // Predicated region
        $region25: #{bottleneck_forward.3} parent=23 // pred_check
          %p148 = pneg %p31
        $region26: #{bottleneck_forward.3} parent=23 // pred_check_branch
          %150 = sbr.rel (%p148) target = $region28
        $region27: #{bottleneck_forward.3} parent=23 // pred_region
          %p151 = scmp.lt.s32.totalorder %s11, 1
          %s152 = scalar_select %p151, %s11, 1
          %s153 = smul.addr %s152, 11
          %s154 = smul.addr %s153, 4
          %s155 = scalar_lea.vmem %s0, %s154
        $region28: #{bottleneck_forward.3} parent=23 // pred_fallthru
          _
      $region24: #{bottleneck_forward.3} parent=5 // pred_fallthru
        _
      %p156 = scmp.le.s32.totalorder 1, %s11
      %p157 = scmp.lt.s32.totalorder %s11, 3
      %p158 = pnand %p156, %p157
      %p159 = pneg %p158
      // Predicated region
      $region29: #{bottleneck_forward.3} parent=5 // pred_check
        _
      $region30: #{bottleneck_forward.3} parent=5 // pred_check_branch
        %161 = sbr.rel (%p158) target = $region32
      $region31: #{bottleneck_forward.3} parent=5 // pred_region
        %s162 = ssub.s32 %s11, 1
        // Predicated region
        $region33: #{bottleneck_forward.3} parent=31 // pred_check
          %p163 = pneg %p58
        $region34: #{bottleneck_forward.3} parent=31 // pred_check_branch
          %165 = sbr.rel (%p163) target = $region36
        $region35: #{bottleneck_forward.3} parent=31 // pred_region
          %166 = dma.done [#allocation3], 4608
        $region36: #{bottleneck_forward.3} parent=31 // pred_fallthru
          _
        // Predicated region
        $region37: #{bottleneck_forward.3} parent=31 // pred_check
          %p167 = pneg %p79
        $region38: #{bottleneck_forward.3} parent=31 // pred_check_branch
          %169 = sbr.rel (%p167) target = $region40
        $region39: #{bottleneck_forward.3} parent=31 // pred_region
          %170 = dma.done [#allocation5], 16
        $region40: #{bottleneck_forward.3} parent=31 // pred_fallthru
          _
        %p171 = scmp.lt.s32.totalorder %s16, 1
        %s172 = scalar_select %p171, %s16, 1
        %s173 = smul.addr %s172, 11
        %s174 = smul.addr %s173, 4
        %s175 = scalar_lea.vmem %s0, %s174
        %p176 = pneg %p37
        %p177 = pneg %p34
        %p178 = pneg %p58
        %p179 = pneg %p55
        %p180 = pneg %p79
        %p181 = pneg %p76
        %p182 = pneg %p105
        %p183 = pneg %p102
        %p184 = scmp.lt.s32.totalorder %s16, 1
        %s185 = scalar_select %p184, %s16, 1
        %s186 = smul.addr %s185, 8
        %s187 = smul.addr %s186, 4
        %s188 = scalar_lea.vmem %s3, %s187
        %p189 = scmp.lt.s32.totalorder %s16, 1
        %s190 = scalar_select %p189, %s16, 1
        %s191 = smul.addr %s190, 11
        %s192 = smul.addr %s191, 4
        %s193 = scalar_lea.vmem %s0, %s192
        %p194 = scmp.lt.s32.totalorder %s16, 1
        %s195 = scalar_select %p194, %s16, 1
        %s196 = smul.addr %s195, 8
        %s197 = smul.addr %s196, 4
        %s198 = scalar_lea.vmem %s3, %s197
        %v202 = vlaneseq
        %v203 = vshrl.u32 %v202, 7
        %v204 = vadd.s32 %v203, 8
        %v205 = vadd.s32 %v203, 16
        %v206 = vadd.s32 %v203, 24
        %v207 = vadd.s32 %v203, 32
        %v208 = vadd.s32 %v203, 40
        %v209 = vadd.s32 %v203, 48
        %v210 = vadd.s32 %v203, 56
        %vm211 = vcmp.lt.s32.totalorder %v203, 0
        %v212 = vsub.s32 0, %v203
        %v213 = vsel %vm211, %v212, %v203
        %v214 = vshrl.u32 %v213, 3
        %v215 = vand.u32 %v213, 7
        %v216 = vsub.s32 0, %v215
        %v217 = vsel %vm211, %v216, %v215
        %vm218 = vcmp.lt.s32.totalorder %v204, 0
        %v219 = vsub.s32 0, %v204
        %v220 = vsel %vm218, %v219, %v204
        %v221 = vshrl.u32 %v220, 3
        %v222 = vand.u32 %v220, 7
        %v223 = vsub.s32 0, %v222
        %v224 = vsel %vm218, %v223, %v222
        %vm225 = vcmp.lt.s32.totalorder %v205, 0
        %v226 = vsub.s32 0, %v205
        %v227 = vsel %vm225, %v226, %v205
        %v228 = vshrl.u32 %v227, 3
        %v229 = vand.u32 %v227, 7
        %v230 = vsub.s32 0, %v229
        %v231 = vsel %vm225, %v230, %v229
        %vm232 = vcmp.lt.s32.totalorder %v206, 0
        %v233 = vsub.s32 0, %v206
        %v234 = vsel %vm232, %v233, %v206
        %v235 = vshrl.u32 %v234, 3
        %v236 = vand.u32 %v234, 7
        %v237 = vsub.s32 0, %v236
        %v238 = vsel %vm232, %v237, %v236
        %vm239 = vcmp.lt.s32.totalorder %v207, 0
        %v240 = vsub.s32 0, %v207
        %v241 = vsel %vm239, %v240, %v207
        %v242 = vshrl.u32 %v241, 3
        %v243 = vand.u32 %v241, 7
        %v244 = vsub.s32 0, %v243
        %v245 = vsel %vm239, %v244, %v243
        %vm246 = vcmp.lt.s32.totalorder %v208, 0
        %v247 = vsub.s32 0, %v208
        %v248 = vsel %vm246, %v247, %v208
        %v249 = vshrl.u32 %v248, 3
        %v250 = vand.u32 %v248, 7
        %v251 = vsub.s32 0, %v250
        %v252 = vsel %vm246, %v251, %v250
        %vm253 = vcmp.lt.s32.totalorder %v209, 0
        %v254 = vsub.s32 0, %v209
        %v255 = vsel %vm253, %v254, %v209
        %v256 = vshrl.u32 %v255, 3
        %v257 = vand.u32 %v255, 7
        %v258 = vsub.s32 0, %v257
        %v259 = vsel %vm253, %v258, %v257
        %vm260 = vcmp.lt.s32.totalorder %v210, 0
        %v261 = vsub.s32 0, %v210
        %v262 = vsel %vm260, %v261, %v210
        %v263 = vshrl.u32 %v262, 3
        %v264 = vand.u32 %v262, 7
        %v265 = vsub.s32 0, %v264
        %v266 = vsel %vm260, %v265, %v264
        %vm267 = vcmp.ne.s32.totalorder %v217, 0
        %vm268 = vcmp.ne.s32.totalorder %v224, 0
        %vm269 = vcmp.ne.s32.totalorder %v231, 0
        %vm270 = vcmp.ne.s32.totalorder %v238, 0
        %vm271 = vcmp.ne.s32.totalorder %v245, 0
        %vm272 = vcmp.ne.s32.totalorder %v252, 0
        %vm273 = vcmp.ne.s32.totalorder %v259, 0
        %vm274 = vcmp.ne.s32.totalorder %v266, 0
        %vm275 = vcmp.lt.s32.totalorder %v217, 0
        %vm276 = vcmp.lt.s32.totalorder %v224, 0
        %vm277 = vcmp.lt.s32.totalorder %v231, 0
        %vm278 = vcmp.lt.s32.totalorder %v238, 0
        %vm279 = vcmp.lt.s32.totalorder %v245, 0
        %vm280 = vcmp.lt.s32.totalorder %v252, 0
        %vm281 = vcmp.lt.s32.totalorder %v259, 0
        %vm282 = vcmp.lt.s32.totalorder %v266, 0
        %vm283 = vmand %vm275, %vm267
        %vm284 = vmand %vm276, %vm268
        %vm285 = vmand %vm277, %vm269
        %vm286 = vmand %vm278, %vm270
        %vm287 = vmand %vm279, %vm271
        %vm288 = vmand %vm280, %vm272
        %vm289 = vmand %vm281, %vm273
        %vm290 = vmand %vm282, %vm274
        %v291 = vadd.s32 %v217, 8
        %v292 = vadd.s32 %v224, 8
        %v293 = vadd.s32 %v231, 8
        %v294 = vadd.s32 %v238, 8
        %v295 = vadd.s32 %v245, 8
        %v296 = vadd.s32 %v252, 8
        %v297 = vadd.s32 %v259, 8
        %v298 = vadd.s32 %v266, 8
        %v299 = vsel %vm283, %v291, %v217
        %v300 = vsel %vm284, %v292, %v224
        %v301 = vsel %vm285, %v293, %v231
        %v302 = vsel %vm286, %v294, %v238
        %v303 = vsel %vm287, %v295, %v245
        %v304 = vsel %vm288, %v296, %v252
        %v305 = vsel %vm289, %v297, %v259
        %v306 = vsel %vm290, %v298, %v266
        %vm307 = vcmp.ne.s32.totalorder %v299, 7
        %vm308 = vcmp.ne.s32.totalorder %v300, 7
        %vm309 = vcmp.ne.s32.totalorder %v301, 7
        %vm310 = vcmp.ne.s32.totalorder %v302, 7
        %vm311 = vcmp.ne.s32.totalorder %v303, 7
        %vm312 = vcmp.ne.s32.totalorder %v304, 7
        %vm313 = vcmp.ne.s32.totalorder %v305, 7
        %vm314 = vcmp.ne.s32.totalorder %v306, 7
        %vm315 = vcmp.ne.s32.totalorder %v299, 0
        %vm316 = vcmp.ne.s32.totalorder %v300, 0
        %vm317 = vcmp.ne.s32.totalorder %v301, 0
        %vm318 = vcmp.ne.s32.totalorder %v302, 0
        %vm319 = vcmp.ne.s32.totalorder %v303, 0
        %vm320 = vcmp.ne.s32.totalorder %v304, 0
        %vm321 = vcmp.ne.s32.totalorder %v305, 0
        %vm322 = vcmp.ne.s32.totalorder %v306, 0
        %v323 = vld [vmem:[%s193] sm:$0xf]
        %v324 = vld [vmem:[%s193 + $0x4] sm:$0xf]
        %v325 = vld [vmem:[%s193 + $0x8] sm:$0xf]
        %v326 = vld [vmem:[%s193 + $0xc] sm:$0xf]
        %v327 = vld [vmem:[%s193 + $0x10] sm:$0xf]
        %v328 = vld [vmem:[%s193 + $0x14] sm:$0xf]
        %v329 = vld [vmem:[%s193 + $0x18] sm:$0xf]
        %v330 = vld [vmem:[%s193 + $0x1c] sm:$0xf]
        %v331 = vsel %vm315, 1, 0
        %v332 = vsel %vm316, 1, 0
        %v333 = vsel %vm317, 1, 0
        %v334 = vsel %vm318, 1, 0
        %v335 = vsel %vm319, 1, 0
        %v336 = vsel %vm320, 1, 0
        %v337 = vsel %vm321, 1, 0
        %v338 = vsel %vm322, 1, 0
        %vm339 = vcmp.eq.s32.totalorder %v331, 1
        %vm340 = vcmp.eq.s32.totalorder %v332, 1
        %vm341 = vcmp.eq.s32.totalorder %v333, 1
        %vm342 = vcmp.eq.s32.totalorder %v334, 1
        %vm343 = vcmp.eq.s32.totalorder %v335, 1
        %vm344 = vcmp.eq.s32.totalorder %v336, 1
        %vm345 = vcmp.eq.s32.totalorder %v337, 1
        %vm346 = vcmp.eq.s32.totalorder %v338, 1
        %vm347 = vmpackc.low %vm339, %vm339
        %vm348 = vmpackc.low %vm340, %vm340
        %vm349 = vmpackc.low %vm341, %vm341
        %vm350 = vmpackc.low %vm342, %vm342
        %vm351 = vmpackc.low %vm343, %vm343
        %vm352 = vmpackc.low %vm344, %vm344
        %vm353 = vmpackc.low %vm345, %vm345
        %vm354 = vmpackc.low %vm346, %vm346
        %v355 = vsel %vm347, %v323, 0
        %v356 = vsel %vm348, %v324, 0
        %v357 = vsel %vm349, %v325, 0
        %v358 = vsel %vm350, %v326, 0
        %v359 = vsel %vm351, %v327, 0
        %v360 = vsel %vm352, %v328, 0
        %v361 = vsel %vm353, %v329, 0
        %v362 = vsel %vm354, %v330, 0
        %v363 = vld [vmem:[#allocation2] sm:$0xf]
        %v364 = vld [vmem:[#allocation2 + $0x4] sm:$0xf]
        %v365 = vld [vmem:[#allocation2 + $0x8] sm:$0xf]
        %v366 = vld [vmem:[#allocation2 + $0xc] sm:$0xf]
        %v367 = vld [vmem:[#allocation2 + $0x10] sm:$0xf]
        %v368 = vld [vmem:[#allocation2 + $0x14] sm:$0xf]
        %v369 = vld [vmem:[#allocation2 + $0x18] sm:$0xf]
        %v370 = vld [vmem:[#allocation2 + $0x1c] sm:$0xf]
        %v371 = vld [vmem:[%s193 + $0x20] sm:$0x1]
        %s372 = scalar_lea.vmem [#allocation2], 32
        %v373 = vld [vmem:[%s372] sm:$0xf]
        %v374 = vld [vmem:[%s372 + $0x4] sm:$0xf]
        %v375 = vld [vmem:[%s372 + $0x8] sm:$0xf]
        %v376 = vld [vmem:[%s372 + $0xc] sm:$0xf]
        %v377 = vld [vmem:[%s372 + $0x10] sm:$0xf]
        %v378 = vld [vmem:[%s372 + $0x14] sm:$0xf]
        %v379 = vld [vmem:[%s372 + $0x18] sm:$0xf]
        %v380 = vld [vmem:[%s372 + $0x1c] sm:$0xf]
        %v390 = vunpack.c.l.b16 %v323
        %v391 = vunpack.c.l.b16 %v324
        %v392 = vunpack.c.l.b16 %v325
        %v393 = vunpack.c.l.b16 %v326
        %v394 = vunpack.c.l.b16 %v327
        %v395 = vunpack.c.l.b16 %v328
        %v396 = vunpack.c.l.b16 %v329
        %v397 = vunpack.c.l.b16 %v330
        %v398 = vunpack.c.l.b16 %v371
        %v399 = vpack.c.b16 %v391, %v390
        %v400 = vpack.c.b16 %v393, %v392
        %v401 = vpack.c.b16 %v395, %v394
        %v402 = vpack.c.b16 %v397, %v396
        %v403 = vpack.c.b16 %v398, %v398
        %vm404 = vsmask.f32 7424
        %v406 = vshrl.u32 %v399, 16
        %v408 = vshll.u32 %v399, 16
        %v410 = vrot.slane %v408, 1
        %v411 = vor.u32 %v406, %v410
        %v413 = vshll.u32 %v400, 16
        %v415 = vrot.slane %v413, 1
        %v416 = vsel %vm404, %v411, %v415
        %v417 = vshrl.u32 %v400, 16
        %v419 = vor.u32 %v417, %v415
        %v421 = vshll.u32 %v401, 16
        %v423 = vrot.slane %v421, 1
        %v424 = vsel %vm404, %v419, %v423
        %v425 = vshrl.u32 %v401, 16
        %v427 = vor.u32 %v425, %v423
        %v429 = vshll.u32 %v402, 16
        %v431 = vrot.slane %v429, 1
        %v432 = vsel %vm404, %v427, %v431
        %v433 = vshrl.u32 %v402, 16
        %v435 = vor.u32 %v433, %v431
        %v437 = vshll.u32 %v403, 16
        %v439 = vrot.slane %v437, 1
        %v440 = vsel %vm404, %v435, %v439
        %v449 = vunpack.c.l.b16 %v373
        %v450 = vunpack.c.l.b16 %v374
        %v451 = vunpack.c.l.b16 %v375
        %v452 = vunpack.c.l.b16 %v376
        %v453 = vunpack.c.l.b16 %v377
        %v454 = vunpack.c.l.b16 %v378
        %v455 = vunpack.c.l.b16 %v379
        %v456 = vunpack.c.l.b16 %v380
        %v457 = vpack.c.b16 %v450, %v449
        %v458 = vpack.c.b16 %v452, %v451
        %v459 = vpack.c.b16 %v454, %v453
        %v460 = vpack.c.b16 %v456, %v455
        %vm465 = vcmask 523264
        %v467 = vsel %vm465, %v416, 0
        %v470 = vsel %vm465, %v424, 0
        %v473 = vsel %vm465, %v432, 0
        %v476 = vsel %vm465, %v440, 0
        %478 = vmatprep.subr.bf16.mxu0 0
        %479 = vmatpush1.bf16.msra.mxu0 %v457
        %480 = vmatprep.subr.bf16.mxu0 0
        %481 = vmatpush1.bf16.msra.mxu0 %v458
        %482 = vmatprep.subr.bf16.mxu0 0
        %483 = vmatpush1.bf16.msra.mxu0 %v459
        %484 = vmatprep.subr.bf16.mxu0 0
        %485 = vmatpush1.bf16.msra.mxu0 %v460
        %486 = vmatprep.subr.bf16.mxu0 0
        %487 = vmatpush1.bf16.msra.mxu0 0
        %488 = vmatprep.subr.bf16.mxu0 0
        %489 = vmatpush1.bf16.msra.mxu0 0
        %490 = vmatprep.subr.bf16.mxu0 0
        %491 = vmatpush1.bf16.msra.mxu0 0
        %492 = vmatprep.subr.bf16.mxu0 0
        %493 = vmatpush1.bf16.msra.mxu0 0
        %494 = vmatprep.subr.bf16.mxu0 0
        %495 = vmatpush1.bf16.msra.mxu0 0
        %496 = vmatprep.subr.bf16.mxu0 0
        %497 = vmatpush1.bf16.msra.mxu0 0
        %498 = vmatprep.subr.bf16.mxu0 0
        %499 = vmatpush1.bf16.msra.mxu0 0
        %500 = vmatprep.subr.bf16.mxu0 0
        %501 = vmatpush1.bf16.msra.mxu0 0
        %502 = vmatprep.subr.bf16.mxu0 0
        %503 = vmatpush1.bf16.msra.mxu0 0
        %504 = vmatprep.subr.bf16.mxu0 0
        %505 = vmatpush1.bf16.msra.mxu0 0
        %506 = vmatprep.subr.bf16.mxu0 0
        %507 = vmatpush1.bf16.msra.mxu0 0
        %508 = vmatprep.subr.bf16.mxu0 0
        %509 = vmatpush1.bf16.msra.mxu0 0
        %510 = vmatprep.mubr.bf16.mxu0 0
        %511 = vmatmul.mubr.bf16.gmra.mrb[0].mxu0 %v467
        %v512 = vpop.f32.mrb[0].mxu0
        %v513 = vadd.f32 0.0, %v512
        %v514 = vpop.f32.mrb[0].mxu0
        %v515 = vpop.f32.mrb[0].mxu0
        %v516 = vadd.f32 0.0, %v515
        %v517 = vpop.f32.mrb[0].mxu0
        %518 = vmatprep.mubr.bf16.mxu0 0
        %519 = vmatmul.mubr.bf16.gmra.mrb[0].mxu0 %v470
        %v520 = vpop.f32.mrb[0].mxu0
        %v521 = vadd.f32 0.0, %v520
        %v522 = vpop.f32.mrb[0].mxu0
        %v523 = vpop.f32.mrb[0].mxu0
        %v524 = vadd.f32 0.0, %v523
        %v525 = vpop.f32.mrb[0].mxu0
        %526 = vmatprep.mubr.bf16.mxu0 0
        %527 = vmatmul.mubr.bf16.gmra.mrb[0].mxu0 %v473
        %v528 = vpop.f32.mrb[0].mxu0
        %v529 = vadd.f32 0.0, %v528
        %v530 = vpop.f32.mrb[0].mxu0
        %v531 = vpop.f32.mrb[0].mxu0
        %v532 = vadd.f32 0.0, %v531
        %v533 = vpop.f32.mrb[0].mxu0
        %534 = vmatprep.mubr.bf16.mxu0 0
        %535 = vmatmul.mubr.bf16.gmra.mrb[0].mxu0 %v476
        %v536 = vpop.f32.mrb[0].mxu0
        %v537 = vadd.f32 0.0, %v536
        %v538 = vpop.f32.mrb[0].mxu0
        %v539 = vpop.f32.mrb[0].mxu0
        %v540 = vadd.f32 0.0, %v539
        %v541 = vpop.f32.mrb[0].mxu0
        %542 = vdwg.mxu0
        %v551 = vunpack.c.l.b16 %v355
        %v552 = vunpack.c.l.b16 %v356
        %v553 = vunpack.c.l.b16 %v357
        %v554 = vunpack.c.l.b16 %v358
        %v555 = vunpack.c.l.b16 %v359
        %v556 = vunpack.c.l.b16 %v360
        %v557 = vunpack.c.l.b16 %v361
        %v558 = vunpack.c.l.b16 %v362
        %v559 = vpack.c.b16 %v552, %v551
        %v560 = vpack.c.b16 %v554, %v553
        %v561 = vpack.c.b16 %v556, %v555
        %v562 = vpack.c.b16 %v558, %v557
        %v571 = vunpack.c.l.b16 %v363
        %v572 = vunpack.c.l.b16 %v364
        %v573 = vunpack.c.l.b16 %v365
        %v574 = vunpack.c.l.b16 %v366
        %v575 = vunpack.c.l.b16 %v367
        %v576 = vunpack.c.l.b16 %v368
        %v577 = vunpack.c.l.b16 %v369
        %v578 = vunpack.c.l.b16 %v370
        %v579 = vpack.c.b16 %v572, %v571
        %v580 = vpack.c.b16 %v574, %v573
        %v581 = vpack.c.b16 %v576, %v575
        %v582 = vpack.c.b16 %v578, %v577
        %v588 = vsel %vm465, %v559, 0
        %v591 = vsel %vm465, %v560, 0
        %v594 = vsel %vm465, %v561, 0
        %v597 = vsel %vm465, %v562, 0
        %599 = vmatprep.subr.bf16.mxu0 0
        %600 = vmatpush1.bf16.msra.mxu0 %v579
        %601 = vmatprep.subr.bf16.mxu0 0
        %602 = vmatpush1.bf16.msra.mxu0 %v580
        %603 = vmatprep.subr.bf16.mxu0 0
        %604 = vmatpush1.bf16.msra.mxu0 %v581
        %605 = vmatprep.subr.bf16.mxu0 0
        %606 = vmatpush1.bf16.msra.mxu0 %v582
        %607 = vmatprep.subr.bf16.mxu0 0
        %608 = vmatpush1.bf16.msra.mxu0 0
        %609 = vmatprep.subr.bf16.mxu0 0
        %610 = vmatpush1.bf16.msra.mxu0 0
        %611 = vmatprep.subr.bf16.mxu0 0
        %612 = vmatpush1.bf16.msra.mxu0 0
        %613 = vmatprep.subr.bf16.mxu0 0
        %614 = vmatpush1.bf16.msra.mxu0 0
        %615 = vmatprep.subr.bf16.mxu0 0
        %616 = vmatpush1.bf16.msra.mxu0 0
        %617 = vmatprep.subr.bf16.mxu0 0
        %618 = vmatpush1.bf16.msra.mxu0 0
        %619 = vmatprep.subr.bf16.mxu0 0
        %620 = vmatpush1.bf16.msra.mxu0 0
        %621 = vmatprep.subr.bf16.mxu0 0
        %622 = vmatpush1.bf16.msra.mxu0 0
        %623 = vmatprep.subr.bf16.mxu0 0
        %624 = vmatpush1.bf16.msra.mxu0 0
        %625 = vmatprep.subr.bf16.mxu0 0
        %626 = vmatpush1.bf16.msra.mxu0 0
        %627 = vmatprep.subr.bf16.mxu0 0
        %628 = vmatpush1.bf16.msra.mxu0 0
        %629 = vmatprep.subr.bf16.mxu0 0
        %630 = vmatpush1.bf16.msra.mxu0 0
        %631 = vmatprep.mubr.bf16.mxu0 0
        %632 = vmatmul.mubr.bf16.gmra.mrb[0].mxu0 %v588
        %v633 = vpop.f32.mrb[0].mxu0
        %v634 = vadd.f32 %v513, %v633
        %v635 = vpop.f32.mrb[0].mxu0
        %v636 = vpop.f32.mrb[0].mxu0
        %v637 = vadd.f32 %v516, %v636
        %v638 = vpop.f32.mrb[0].mxu0
        %639 = vmatprep.mubr.bf16.mxu0 0
        %640 = vmatmul.mubr.bf16.gmra.mrb[0].mxu0 %v591
        %v641 = vpop.f32.mrb[0].mxu0
        %v642 = vadd.f32 %v521, %v641
        %v643 = vpop.f32.mrb[0].mxu0
        %v644 = vpop.f32.mrb[0].mxu0
        %v645 = vadd.f32 %v524, %v644
        %v646 = vpop.f32.mrb[0].mxu0
        %647 = vmatprep.mubr.bf16.mxu0 0
        %648 = vmatmul.mubr.bf16.gmra.mrb[0].mxu0 %v594
        %v649 = vpop.f32.mrb[0].mxu0
        %v650 = vadd.f32 %v529, %v649
        %v651 = vpop.f32.mrb[0].mxu0
        %v652 = vpop.f32.mrb[0].mxu0
        %v653 = vadd.f32 %v532, %v652
        %v654 = vpop.f32.mrb[0].mxu0
        %655 = vmatprep.mubr.bf16.mxu0 0
        %656 = vmatmul.mubr.bf16.gmra.mrb[0].mxu0 %v597
        %v657 = vpop.f32.mrb[0].mxu0
        %v658 = vadd.f32 %v537, %v657
        %v659 = vpop.f32.mrb[0].mxu0
        %v660 = vpop.f32.mrb[0].mxu0
        %v661 = vadd.f32 %v540, %v660
        %v662 = vpop.f32.mrb[0].mxu0
        %663 = vdwg.mxu0
        %v664 = vld [vmem:[%s193] sm:$0xe]
        %v665 = vsel %vm307, 1, 0
        %v666 = vsel %vm308, 1, 0
        %v667 = vsel %vm309, 1, 0
        %v668 = vsel %vm310, 1, 0
        %v669 = vsel %vm311, 1, 0
        %v670 = vsel %vm312, 1, 0
        %v671 = vsel %vm313, 1, 0
        %v672 = vsel %vm314, 1, 0
        %vm673 = vcmp.eq.s32.totalorder %v665, 1
        %vm674 = vcmp.eq.s32.totalorder %v666, 1
        %vm675 = vcmp.eq.s32.totalorder %v667, 1
        %vm676 = vcmp.eq.s32.totalorder %v668, 1
        %vm677 = vcmp.eq.s32.totalorder %v669, 1
        %vm678 = vcmp.eq.s32.totalorder %v670, 1
        %vm679 = vcmp.eq.s32.totalorder %v671, 1
        %vm680 = vcmp.eq.s32.totalorder %v672, 1
        %vm681 = vmpackc.low %vm673, %vm673
        %vm682 = vmpackc.low %vm674, %vm674
        %vm683 = vmpackc.low %vm675, %vm675
        %vm684 = vmpackc.low %vm676, %vm676
        %vm685 = vmpackc.low %vm677, %vm677
        %vm686 = vmpackc.low %vm678, %vm678
        %vm687 = vmpackc.low %vm679, %vm679
        %vm688 = vmpackc.low %vm680, %vm680
        %v689 = vsel %vm681, 65537, 0
        %v690 = vsel %vm682, 65537, 0
        %v691 = vsel %vm683, 65537, 0
        %v692 = vsel %vm684, 65537, 0
        %v693 = vsel %vm685, 65537, 0
        %v694 = vsel %vm686, 65537, 0
        %v695 = vsel %vm687, 65537, 0
        %v696 = vsel %vm688, 65537, 0
        %vm697 = vcmask 1040384
        %vm698 = vcmask 1044484
        %vm699 = vmor %vm697, %vm698
        %v700 = vrot.slane %v689, 7
        %v701 = vrot.slane %v700, 4
        %v702 = vrot.slane %v690, 7
        %v703 = vsel %vm699, %v701, %v702
        %v704 = vrot.slane %v702, 4
        %v705 = vrot.slane %v691, 7
        %v706 = vsel %vm699, %v704, %v705
        %v707 = vrot.slane %v705, 4
        %v708 = vrot.slane %v692, 7
        %v709 = vsel %vm699, %v707, %v708
        %v710 = vrot.slane %v708, 4
        %v711 = vrot.slane %v693, 7
        %v712 = vsel %vm699, %v710, %v711
        %v713 = vrot.slane %v711, 4
        %v714 = vrot.slane %v694, 7
        %v715 = vsel %vm699, %v713, %v714
        %v716 = vrot.slane %v714, 4
        %v717 = vrot.slane %v695, 7
        %v718 = vsel %vm699, %v716, %v717
        %v719 = vrot.slane %v717, 4
        %v720 = vrot.slane %v696, 7
        %v721 = vsel %vm699, %v719, %v720
        %v722 = vrot.slane %v720, 4
        %vm723 = vcmp.ne.s16.totalorder %v700, 0
        %vm724 = vcmp.ne.s16.totalorder %v703, 0
        %vm725 = vcmp.ne.s16.totalorder %v706, 0
        %vm726 = vcmp.ne.s16.totalorder %v709, 0
        %vm727 = vcmp.ne.s16.totalorder %v712, 0
        %vm728 = vcmp.ne.s16.totalorder %v715, 0
        %vm729 = vcmp.ne.s16.totalorder %v718, 0
        %vm730 = vcmp.ne.s16.totalorder %v721, 0
        %vm731 = vcmp.ne.s16.totalorder %v722, 0
        %v732 = vsel %vm723, %v664, 0
        %v733 = vsel %vm724, %v324, 0
        %v734 = vsel %vm725, %v325, 0
        %v735 = vsel %vm726, %v326, 0
        %v736 = vsel %vm727, %v327, 0
        %v737 = vsel %vm728, %v328, 0
        %v738 = vsel %vm729, %v329, 0
        %v739 = vsel %vm730, %v330, 0
        %v740 = vsel %vm731, %v371, 0
        %s741 = scalar_lea.vmem [#allocation2], 64
        %v742 = vld [vmem:[%s741] sm:$0xf]
        %v743 = vld [vmem:[%s741 + $0x4] sm:$0xf]
        %v744 = vld [vmem:[%s741 + $0x8] sm:$0xf]
        %v745 = vld [vmem:[%s741 + $0xc] sm:$0xf]
        %v746 = vld [vmem:[%s741 + $0x10] sm:$0xf]
        %v747 = vld [vmem:[%s741 + $0x14] sm:$0xf]
        %v748 = vld [vmem:[%s741 + $0x18] sm:$0xf]
        %v749 = vld [vmem:[%s741 + $0x1c] sm:$0xf]
        %v759 = vunpack.c.l.b16 %v732
        %v760 = vunpack.c.l.b16 %v733
        %v761 = vunpack.c.l.b16 %v734
        %v762 = vunpack.c.l.b16 %v735
        %v763 = vunpack.c.l.b16 %v736
        %v764 = vunpack.c.l.b16 %v737
        %v765 = vunpack.c.l.b16 %v738
        %v766 = vunpack.c.l.b16 %v739
        %v767 = vunpack.c.l.b16 %v740
        %v768 = vpack.c.b16 %v760, %v759
        %v769 = vpack.c.b16 %v762, %v761
        %v770 = vpack.c.b16 %v764, %v763
        %v771 = vpack.c.b16 %v766, %v765
        %v772 = vpack.c.b16 %v767, %v767
        %vm773 = vcmask 1046528
        %v774 = vrot.slane %v768, 1
        %v775 = vrot.slane %v769, 1
        %v776 = vsel %vm773, %v774, %v775
        %v777 = vrot.slane %v770, 1
        %v778 = vsel %vm773, %v775, %v777
        %v779 = vrot.slane %v771, 1
        %v780 = vsel %vm773, %v777, %v779
        %v781 = vrot.slane %v772, 1
        %v782 = vsel %vm773, %v779, %v781
        %v791 = vunpack.c.l.b16 %v742
        %v792 = vunpack.c.l.b16 %v743
        %v793 = vunpack.c.l.b16 %v744
        %v794 = vunpack.c.l.b16 %v745
        %v795 = vunpack.c.l.b16 %v746
        %v796 = vunpack.c.l.b16 %v747
        %v797 = vunpack.c.l.b16 %v748
        %v798 = vunpack.c.l.b16 %v749
        %v799 = vpack.c.b16 %v792, %v791
        %v800 = vpack.c.b16 %v794, %v793
        %v801 = vpack.c.b16 %v796, %v795
        %v802 = vpack.c.b16 %v798, %v797
        %v808 = vsel %vm465, %v776, 0
        %v811 = vsel %vm465, %v778, 0
        %v814 = vsel %vm465, %v780, 0
        %v817 = vsel %vm465, %v782, 0
        %819 = vmatprep.subr.bf16.mxu0 0
        %820 = vmatpush1.bf16.msra.mxu0 %v799
        %821 = vmatprep.subr.bf16.mxu0 0
        %822 = vmatpush1.bf16.msra.mxu0 %v800
        %823 = vmatprep.subr.bf16.mxu0 0
        %824 = vmatpush1.bf16.msra.mxu0 %v801
        %825 = vmatprep.subr.bf16.mxu0 0
        %826 = vmatpush1.bf16.msra.mxu0 %v802
        %827 = vmatprep.subr.bf16.mxu0 0
        %828 = vmatpush1.bf16.msra.mxu0 0
        %829 = vmatprep.subr.bf16.mxu0 0
        %830 = vmatpush1.bf16.msra.mxu0 0
        %831 = vmatprep.subr.bf16.mxu0 0
        %832 = vmatpush1.bf16.msra.mxu0 0
        %833 = vmatprep.subr.bf16.mxu0 0
        %834 = vmatpush1.bf16.msra.mxu0 0
        %835 = vmatprep.subr.bf16.mxu0 0
        %836 = vmatpush1.bf16.msra.mxu0 0
        %837 = vmatprep.subr.bf16.mxu0 0
        %838 = vmatpush1.bf16.msra.mxu0 0
        %839 = vmatprep.subr.bf16.mxu0 0
        %840 = vmatpush1.bf16.msra.mxu0 0
        %841 = vmatprep.subr.bf16.mxu0 0
        %842 = vmatpush1.bf16.msra.mxu0 0
        %843 = vmatprep.subr.bf16.mxu0 0
        %844 = vmatpush1.bf16.msra.mxu0 0
        %845 = vmatprep.subr.bf16.mxu0 0
        %846 = vmatpush1.bf16.msra.mxu0 0
        %847 = vmatprep.subr.bf16.mxu0 0
        %848 = vmatpush1.bf16.msra.mxu0 0
        %849 = vmatprep.subr.bf16.mxu0 0
        %850 = vmatpush1.bf16.msra.mxu0 0
        %851 = vmatprep.mubr.bf16.mxu0 0
        %852 = vmatmul.mubr.bf16.gmra.mrb[0].mxu0 %v808
        %v853 = vpop.f32.mrb[0].mxu0
        %v854 = vadd.f32 0.0, %v853
        %v855 = vpop.f32.mrb[0].mxu0
        %v856 = vpop.f32.mrb[0].mxu0
        %v857 = vadd.f32 0.0, %v856
        %v858 = vpop.f32.mrb[0].mxu0
        %859 = vmatprep.mubr.bf16.mxu0 0
        %860 = vmatmul.mubr.bf16.gmra.mrb[0].mxu0 %v811
        %v861 = vpop.f32.mrb[0].mxu0
        %v862 = vadd.f32 0.0, %v861
        %v863 = vpop.f32.mrb[0].mxu0
        %v864 = vpop.f32.mrb[0].mxu0
        %v865 = vadd.f32 0.0, %v864
        %v866 = vpop.f32.mrb[0].mxu0
        %867 = vmatprep.mubr.bf16.mxu0 0
        %868 = vmatmul.mubr.bf16.gmra.mrb[0].mxu0 %v814
        %v869 = vpop.f32.mrb[0].mxu0
        %v870 = vadd.f32 0.0, %v869
        %v871 = vpop.f32.mrb[0].mxu0
        %v872 = vpop.f32.mrb[0].mxu0
        %v873 = vadd.f32 0.0, %v872
        %v874 = vpop.f32.mrb[0].mxu0
        %875 = vmatprep.mubr.bf16.mxu0 0
        %876 = vmatmul.mubr.bf16.gmra.mrb[0].mxu0 %v817
        %v877 = vpop.f32.mrb[0].mxu0
        %v878 = vadd.f32 0.0, %v877
        %v879 = vpop.f32.mrb[0].mxu0
        %v880 = vpop.f32.mrb[0].mxu0
        %v881 = vadd.f32 0.0, %v880
        %v882 = vpop.f32.mrb[0].mxu0
        %883 = vdwg.mxu0
        %v884 = vadd.f32 %v634, %v854
        %v885 = vadd.f32 %v637, %v857
        %v886 = vadd.f32 %v642, %v862
        %v887 = vadd.f32 %v645, %v865
        %v888 = vadd.f32 %v650, %v870
        %v889 = vadd.f32 %v653, %v873
        %v890 = vadd.f32 %v658, %v878
        %v891 = vadd.f32 %v661, %v881
        %v892 = vld [vmem:[%s193 + $0x20] sm:$0xf]
        %v893 = vsel %vm347, %v324, 0
        %v894 = vsel %vm348, %v325, 0
        %v895 = vsel %vm349, %v326, 0
        %v896 = vsel %vm350, %v327, 0
        %v897 = vsel %vm351, %v328, 0
        %v898 = vsel %vm352, %v329, 0
        %v899 = vsel %vm353, %v330, 0
        %v900 = vsel %vm354, %v892, 0
        %s901 = scalar_lea.vmem [#allocation2], 96
        %v902 = vld [vmem:[%s901] sm:$0xf]
        %v903 = vld [vmem:[%s901 + $0x4] sm:$0xf]
        %v904 = vld [vmem:[%s901 + $0x8] sm:$0xf]
        %v905 = vld [vmem:[%s901 + $0xc] sm:$0xf]
        %v906 = vld [vmem:[%s901 + $0x10] sm:$0xf]
        %v907 = vld [vmem:[%s901 + $0x14] sm:$0xf]
        %v908 = vld [vmem:[%s901 + $0x18] sm:$0xf]
        %v909 = vld [vmem:[%s901 + $0x1c] sm:$0xf]
        %v918 = vunpack.c.l.b16 %v893
        %v919 = vunpack.c.l.b16 %v894
        %v920 = vunpack.c.l.b16 %v895
        %v921 = vunpack.c.l.b16 %v896
        %v922 = vunpack.c.l.b16 %v897
        %v923 = vunpack.c.l.b16 %v898
        %v924 = vunpack.c.l.b16 %v899
        %v925 = vunpack.c.l.b16 %v900
        %v926 = vpack.c.b16 %v919, %v918
        %v927 = vpack.c.b16 %v921, %v920
        %v928 = vpack.c.b16 %v923, %v922
        %v929 = vpack.c.b16 %v925, %v924
        %v938 = vunpack.c.l.b16 %v902
        %v939 = vunpack.c.l.b16 %v903
        %v940 = vunpack.c.l.b16 %v904
        %v941 = vunpack.c.l.b16 %v905
        %v942 = vunpack.c.l.b16 %v906
        %v943 = vunpack.c.l.b16 %v907
        %v944 = vunpack.c.l.b16 %v908
        %v945 = vunpack.c.l.b16 %v909
        %v946 = vpack.c.b16 %v939, %v938
        %v947 = vpack.c.b16 %v941, %v940
        %v948 = vpack.c.b16 %v943, %v942
        %v949 = vpack.c.b16 %v945, %v944
        %v955 = vsel %vm465, %v926, 0
        %v958 = vsel %vm465, %v927, 0
        %v961 = vsel %vm465, %v928, 0
        %v964 = vsel %vm465, %v929, 0
        %966 = vmatprep.subr.bf16.mxu0 0
        %967 = vmatpush1.bf16.msra.mxu0 %v946
        %968 = vmatprep.subr.bf16.mxu0 0
        %969 = vmatpush1.bf16.msra.mxu0 %v947
        %970 = vmatprep.subr.bf16.mxu0 0
        %971 = vmatpush1.bf16.msra.mxu0 %v948
        %972 = vmatprep.subr.bf16.mxu0 0
        %973 = vmatpush1.bf16.msra.mxu0 %v949
        %974 = vmatprep.subr.bf16.mxu0 0
        %975 = vmatpush1.bf16.msra.mxu0 0
        %976 = vmatprep.subr.bf16.mxu0 0
        %977 = vmatpush1.bf16.msra.mxu0 0
        %978 = vmatprep.subr.bf16.mxu0 0
        %979 = vmatpush1.bf16.msra.mxu0 0
        %980 = vmatprep.subr.bf16.mxu0 0
        %981 = vmatpush1.bf16.msra.mxu0 0
        %982 = vmatprep.subr.bf16.mxu0 0
        %983 = vmatpush1.bf16.msra.mxu0 0
        %984 = vmatprep.subr.bf16.mxu0 0
        %985 = vmatpush1.bf16.msra.mxu0 0
        %986 = vmatprep.subr.bf16.mxu0 0
        %987 = vmatpush1.bf16.msra.mxu0 0
        %988 = vmatprep.subr.bf16.mxu0 0
        %989 = vmatpush1.bf16.msra.mxu0 0
        %990 = vmatprep.subr.bf16.mxu0 0
        %991 = vmatpush1.bf16.msra.mxu0 0
        %992 = vmatprep.subr.bf16.mxu0 0
        %993 = vmatpush1.bf16.msra.mxu0 0
        %994 = vmatprep.subr.bf16.mxu0 0
        %995 = vmatpush1.bf16.msra.mxu0 0
        %996 = vmatprep.subr.bf16.mxu0 0
        %997 = vmatpush1.bf16.msra.mxu0 0
        %998 = vmatprep.mubr.bf16.mxu0 0
        %999 = vmatmul.mubr.bf16.gmra.mrb[0].mxu0 %v955
        %v1000 = vpop.f32.mrb[0].mxu0
        %v1001 = vadd.f32 0.0, %v1000
        %v1002 = vpop.f32.mrb[0].mxu0
        %v1003 = vpop.f32.mrb[0].mxu0
        %v1004 = vadd.f32 0.0, %v1003
        %v1005 = vpop.f32.mrb[0].mxu0
        %1006 = vmatprep.mubr.bf16.mxu0 0
        %1007 = vmatmul.mubr.bf16.gmra.mrb[0].mxu0 %v958
        %v1008 = vpop.f32.mrb[0].mxu0
        %v1009 = vadd.f32 0.0, %v1008
        %v1010 = vpop.f32.mrb[0].mxu0
        %v1011 = vpop.f32.mrb[0].mxu0
        %v1012 = vadd.f32 0.0, %v1011
        %v1013 = vpop.f32.mrb[0].mxu0
        %1014 = vmatprep.mubr.bf16.mxu0 0
        %1015 = vmatmul.mubr.bf16.gmra.mrb[0].mxu0 %v961
        %v1016 = vpop.f32.mrb[0].mxu0
        %v1017 = vadd.f32 0.0, %v1016
        %v1018 = vpop.f32.mrb[0].mxu0
        %v1019 = vpop.f32.mrb[0].mxu0
        %v1020 = vadd.f32 0.0, %v1019
        %v1021 = vpop.f32.mrb[0].mxu0
        %1022 = vmatprep.mubr.bf16.mxu0 0
        %1023 = vmatmul.mubr.bf16.gmra.mrb[0].mxu0 %v964
        %v1024 = vpop.f32.mrb[0].mxu0
        %v1025 = vadd.f32 0.0, %v1024
        %v1026 = vpop.f32.mrb[0].mxu0
        %v1027 = vpop.f32.mrb[0].mxu0
        %v1028 = vadd.f32 0.0, %v1027
        %v1029 = vpop.f32.mrb[0].mxu0
        %1030 = vdwg.mxu0
        %v1031 = vadd.f32 %v884, %v1001
        %v1032 = vadd.f32 %v885, %v1004
        %v1033 = vadd.f32 %v886, %v1009
        %v1034 = vadd.f32 %v887, %v1012
        %v1035 = vadd.f32 %v888, %v1017
        %v1036 = vadd.f32 %v889, %v1020
        %v1037 = vadd.f32 %v890, %v1025
        %v1038 = vadd.f32 %v891, %v1028
        %v1039 = vld [vmem:[%s193 + $0x4] sm:$0xf]
        %v1040 = vld [vmem:[%s193 + $0x8] sm:$0xf]
        %v1041 = vld [vmem:[%s193 + $0xc] sm:$0xf]
        %v1042 = vld [vmem:[%s193 + $0x10] sm:$0xf]
        %v1043 = vld [vmem:[%s193 + $0x14] sm:$0xf]
        %v1044 = vld [vmem:[%s193 + $0x18] sm:$0xf]
        %v1045 = vld [vmem:[%s193 + $0x1c] sm:$0xf]
        %v1046 = vld [vmem:[%s193 + $0x20] sm:$0xf]
        %v1047 = vld [vmem:[%s193 + $0x24] sm:$0x1]
        %s1048 = scalar_lea.vmem [#allocation2], 128
        %v1049 = vld [vmem:[%s1048] sm:$0xf]
        %v1050 = vld [vmem:[%s1048 + $0x4] sm:$0xf]
        %v1051 = vld [vmem:[%s1048 + $0x8] sm:$0xf]
        %v1052 = vld [vmem:[%s1048 + $0xc] sm:$0xf]
        %v1053 = vld [vmem:[%s1048 + $0x10] sm:$0xf]
        %v1054 = vld [vmem:[%s1048 + $0x14] sm:$0xf]
        %v1055 = vld [vmem:[%s1048 + $0x18] sm:$0xf]
        %v1056 = vld [vmem:[%s1048 + $0x1c] sm:$0xf]
        %v1066 = vunpack.c.l.b16 %v1039
        %v1067 = vunpack.c.l.b16 %v1040
        %v1068 = vunpack.c.l.b16 %v1041
        %v1069 = vunpack.c.l.b16 %v1042
        %v1070 = vunpack.c.l.b16 %v1043
        %v1071 = vunpack.c.l.b16 %v1044
        %v1072 = vunpack.c.l.b16 %v1045
        %v1073 = vunpack.c.l.b16 %v1046
        %v1074 = vunpack.c.l.b16 %v1047
        %v1075 = vpack.c.b16 %v1067, %v1066
        %v1076 = vpack.c.b16 %v1069, %v1068
        %v1077 = vpack.c.b16 %v1071, %v1070
        %v1078 = vpack.c.b16 %v1073, %v1072
        %v1079 = vpack.c.b16 %v1074, %v1074
        %v1081 = vshrl.u32 %v1075, 16
        %v1083 = vshll.u32 %v1075, 16
        %v1085 = vrot.slane %v1083, 1
        %v1086 = vor.u32 %v1081, %v1085
        %v1088 = vshll.u32 %v1076, 16
        %v1090 = vrot.slane %v1088, 1
        %v1091 = vsel %vm404, %v1086, %v1090
        %v1092 = vshrl.u32 %v1076, 16
        %v1094 = vor.u32 %v1092, %v1090
        %v1096 = vshll.u32 %v1077, 16
        %v1098 = vrot.slane %v1096, 1
        %v1099 = vsel %vm404, %v1094, %v1098
        %v1100 = vshrl.u32 %v1077, 16
        %v1102 = vor.u32 %v1100, %v1098
        %v1104 = vshll.u32 %v1078, 16
        %v1106 = vrot.slane %v1104, 1
        %v1107 = vsel %vm404, %v1102, %v1106
        %v1108 = vshrl.u32 %v1078, 16
        %v1110 = vor.u32 %v1108, %v1106
        %v1112 = vshll.u32 %v1079, 16
        %v1114 = vrot.slane %v1112, 1
        %v1115 = vsel %vm404, %v1110, %v1114
        %v1124 = vunpack.c.l.b16 %v1049
        %v1125 = vunpack.c.l.b16 %v1050
        %v1126 = vunpack.c.l.b16 %v1051
        %v1127 = vunpack.c.l.b16 %v1052
        %v1128 = vunpack.c.l.b16 %v1053
        %v1129 = vunpack.c.l.b16 %v1054
        %v1130 = vunpack.c.l.b16 %v1055
        %v1131 = vunpack.c.l.b16 %v1056
        %v1132 = vpack.c.b16 %v1125, %v1124
        %v1133 = vpack.c.b16 %v1127, %v1126
        %v1134 = vpack.c.b16 %v1129, %v1128
        %v1135 = vpack.c.b16 %v1131, %v1130
        %v1141 = vsel %vm465, %v1091, 0
        %v1144 = vsel %vm465, %v1099, 0
        %v1147 = vsel %vm465, %v1107, 0
        %v1150 = vsel %vm465, %v1115, 0
        %1152 = vmatprep.subr.bf16.mxu0 0
        %1153 = vmatpush1.bf16.msra.mxu0 %v1132
        %1154 = vmatprep.subr.bf16.mxu0 0
        %1155 = vmatpush1.bf16.msra.mxu0 %v1133
        %1156 = vmatprep.subr.bf16.mxu0 0
        %1157 = vmatpush1.bf16.msra.mxu0 %v1134
        %1158 = vmatprep.subr.bf16.mxu0 0
        %1159 = vmatpush1.bf16.msra.mxu0 %v1135
        %1160 = vmatprep.subr.bf16.mxu0 0
        %1161 = vmatpush1.bf16.msra.mxu0 0
        %1162 = vmatprep.subr.bf16.mxu0 0
        %1163 = vmatpush1.bf16.msra.mxu0 0
        %1164 = vmatprep.subr.bf16.mxu0 0
        %1165 = vmatpush1.bf16.msra.mxu0 0
        %1166 = vmatprep.subr.bf16.mxu0 0
        %1167 = vmatpush1.bf16.msra.mxu0 0
        %1168 = vmatprep.subr.bf16.mxu0 0
        %1169 = vmatpush1.bf16.msra.mxu0 0
        %1170 = vmatprep.subr.bf16.mxu0 0
        %1171 = vmatpush1.bf16.msra.mxu0 0
        %1172 = vmatprep.subr.bf16.mxu0 0
        %1173 = vmatpush1.bf16.msra.mxu0 0
        %1174 = vmatprep.subr.bf16.mxu0 0
        %1175 = vmatpush1.bf16.msra.mxu0 0
        %1176 = vmatprep.subr.bf16.mxu0 0
        %1177 = vmatpush1.bf16.msra.mxu0 0
        %1178 = vmatprep.subr.bf16.mxu0 0
        %1179 = vmatpush1.bf16.msra.mxu0 0
        %1180 = vmatprep.subr.bf16.mxu0 0
        %1181 = vmatpush1.bf16.msra.mxu0 0
        %1182 = vmatprep.subr.bf16.mxu0 0
        %1183 = vmatpush1.bf16.msra.mxu0 0
        %1184 = vmatprep.mubr.bf16.mxu0 0
        %1185 = vmatmul.mubr.bf16.gmra.mrb[0].mxu0 %v1141
        %v1186 = vpop.f32.mrb[0].mxu0
        %v1187 = vadd.f32 0.0, %v1186
        %v1188 = vpop.f32.mrb[0].mxu0
        %v1189 = vpop.f32.mrb[0].mxu0
        %v1190 = vadd.f32 0.0, %v1189
        %v1191 = vpop.f32.mrb[0].mxu0
        %1192 = vmatprep.mubr.bf16.mxu0 0
        %1193 = vmatmul.mubr.bf16.gmra.mrb[0].mxu0 %v1144
        %v1194 = vpop.f32.mrb[0].mxu0
        %v1195 = vadd.f32 0.0, %v1194
        %v1196 = vpop.f32.mrb[0].mxu0
        %v1197 = vpop.f32.mrb[0].mxu0
        %v1198 = vadd.f32 0.0, %v1197
        %v1199 = vpop.f32.mrb[0].mxu0
        %1200 = vmatprep.mubr.bf16.mxu0 0
        %1201 = vmatmul.mubr.bf16.gmra.mrb[0].mxu0 %v1147
        %v1202 = vpop.f32.mrb[0].mxu0
        %v1203 = vadd.f32 0.0, %v1202
        %v1204 = vpop.f32.mrb[0].mxu0
        %v1205 = vpop.f32.mrb[0].mxu0
        %v1206 = vadd.f32 0.0, %v1205
        %v1207 = vpop.f32.mrb[0].mxu0
        %1208 = vmatprep.mubr.bf16.mxu0 0
        %1209 = vmatmul.mubr.bf16.gmra.mrb[0].mxu0 %v1150
        %v1210 = vpop.f32.mrb[0].mxu0
        %v1211 = vadd.f32 0.0, %v1210
        %v1212 = vpop.f32.mrb[0].mxu0
        %v1213 = vpop.f32.mrb[0].mxu0
        %v1214 = vadd.f32 0.0, %v1213
        %v1215 = vpop.f32.mrb[0].mxu0
        %1216 = vdwg.mxu0
        %v1217 = vadd.f32 %v1031, %v1187
        %v1218 = vadd.f32 %v1032, %v1190
        %v1219 = vadd.f32 %v1033, %v1195
        %v1220 = vadd.f32 %v1034, %v1198
        %v1221 = vadd.f32 %v1035, %v1203
        %v1222 = vadd.f32 %v1036, %v1206
        %v1223 = vadd.f32 %v1037, %v1211
        %v1224 = vadd.f32 %v1038, %v1214
        %v1225 = vld [vmem:[%s193 + $0x4] sm:$0xe]
        %v1226 = vsel %vm723, %v1225, 0
        %v1227 = vsel %vm724, %v1040, 0
        %v1228 = vsel %vm725, %v1041, 0
        %v1229 = vsel %vm726, %v1042, 0
        %v1230 = vsel %vm727, %v1043, 0
        %v1231 = vsel %vm728, %v1044, 0
        %v1232 = vsel %vm729, %v1045, 0
        %v1233 = vsel %vm730, %v1046, 0
        %v1234 = vsel %vm731, %v1047, 0
        %s1235 = scalar_lea.vmem [#allocation2], 160
        %v1236 = vld [vmem:[%s1235] sm:$0xf]
        %v1237 = vld [vmem:[%s1235 + $0x4] sm:$0xf]
        %v1238 = vld [vmem:[%s1235 + $0x8] sm:$0xf]
        %v1239 = vld [vmem:[%s1235 + $0xc] sm:$0xf]
        %v1240 = vld [vmem:[%s1235 + $0x10] sm:$0xf]
        %v1241 = vld [vmem:[%s1235 + $0x14] sm:$0xf]
        %v1242 = vld [vmem:[%s1235 + $0x18] sm:$0xf]
        %v1243 = vld [vmem:[%s1235 + $0x1c] sm:$0xf]
        %v1253 = vunpack.c.l.b16 %v1226
        %v1254 = vunpack.c.l.b16 %v1227
        %v1255 = vunpack.c.l.b16 %v1228
        %v1256 = vunpack.c.l.b16 %v1229
        %v1257 = vunpack.c.l.b16 %v1230
        %v1258 = vunpack.c.l.b16 %v1231
        %v1259 = vunpack.c.l.b16 %v1232
        %v1260 = vunpack.c.l.b16 %v1233
        %v1261 = vunpack.c.l.b16 %v1234
        %v1262 = vpack.c.b16 %v1254, %v1253
        %v1263 = vpack.c.b16 %v1256, %v1255
        %v1264 = vpack.c.b16 %v1258, %v1257
        %v1265 = vpack.c.b16 %v1260, %v1259
        %v1266 = vpack.c.b16 %v1261, %v1261
        %v1267 = vrot.slane %v1262, 1
        %v1268 = vrot.slane %v1263, 1
        %v1269 = vsel %vm773, %v1267, %v1268
        %v1270 = vrot.slane %v1264, 1
        %v1271 = vsel %vm773, %v1268, %v1270
        %v1272 = vrot.slane %v1265, 1
        %v1273 = vsel %vm773, %v1270, %v1272
        %v1274 = vrot.slane %v1266, 1
        %v1275 = vsel %vm773, %v1272, %v1274
        %v1284 = vunpack.c.l.b16 %v1236
        %v1285 = vunpack.c.l.b16 %v1237
        %v1286 = vunpack.c.l.b16 %v1238
        %v1287 = vunpack.c.l.b16 %v1239
        %v1288 = vunpack.c.l.b16 %v1240
        %v1289 = vunpack.c.l.b16 %v1241
        %v1290 = vunpack.c.l.b16 %v1242
        %v1291 = vunpack.c.l.b16 %v1243
        %v1292 = vpack.c.b16 %v1285, %v1284
        %v1293 = vpack.c.b16 %v1287, %v1286
        %v1294 = vpack.c.b16 %v1289, %v1288
        %v1295 = vpack.c.b16 %v1291, %v1290
        %v1301 = vsel %vm465, %v1269, 0
        %v1304 = vsel %vm465, %v1271, 0
        %v1307 = vsel %vm465, %v1273, 0
        %v1310 = vsel %vm465, %v1275, 0
        %1312 = vmatprep.subr.bf16.mxu0 0
        %1313 = vmatpush1.bf16.msra.mxu0 %v1292
        %1314 = vmatprep.subr.bf16.mxu0 0
        %1315 = vmatpush1.bf16.msra.mxu0 %v1293
        %1316 = vmatprep.subr.bf16.mxu0 0
        %1317 = vmatpush1.bf16.msra.mxu0 %v1294
        %1318 = vmatprep.subr.bf16.mxu0 0
        %1319 = vmatpush1.bf16.msra.mxu0 %v1295
        %1320 = vmatprep.subr.bf16.mxu0 0
        %1321 = vmatpush1.bf16.msra.mxu0 0
        %1322 = vmatprep.subr.bf16.mxu0 0
        %1323 = vmatpush1.bf16.msra.mxu0 0
        %1324 = vmatprep.subr.bf16.mxu0 0
        %1325 = vmatpush1.bf16.msra.mxu0 0
        %1326 = vmatprep.subr.bf16.mxu0 0
        %1327 = vmatpush1.bf16.msra.mxu0 0
        %1328 = vmatprep.subr.bf16.mxu0 0
        %1329 = vmatpush1.bf16.msra.mxu0 0
        %1330 = vmatprep.subr.bf16.mxu0 0
        %1331 = vmatpush1.bf16.msra.mxu0 0
        %1332 = vmatprep.subr.bf16.mxu0 0
        %1333 = vmatpush1.bf16.msra.mxu0 0
        %1334 = vmatprep.subr.bf16.mxu0 0
        %1335 = vmatpush1.bf16.msra.mxu0 0
        %1336 = vmatprep.subr.bf16.mxu0 0
        %1337 = vmatpush1.bf16.msra.mxu0 0
        %1338 = vmatprep.subr.bf16.mxu0 0
        %1339 = vmatpush1.bf16.msra.mxu0 0
        %1340 = vmatprep.subr.bf16.mxu0 0
        %1341 = vmatpush1.bf16.msra.mxu0 0
        %1342 = vmatprep.subr.bf16.mxu0 0
        %1343 = vmatpush1.bf16.msra.mxu0 0
        %1344 = vmatprep.mubr.bf16.mxu0 0
        %1345 = vmatmul.mubr.bf16.gmra.mrb[0].mxu0 %v1301
        %v1346 = vpop.f32.mrb[0].mxu0
        %v1347 = vadd.f32 0.0, %v1346
        %v1348 = vpop.f32.mrb[0].mxu0
        %v1349 = vpop.f32.mrb[0].mxu0
        %v1350 = vadd.f32 0.0, %v1349
        %v1351 = vpop.f32.mrb[0].mxu0
        %1352 = vmatprep.mubr.bf16.mxu0 0
        %1353 = vmatmul.mubr.bf16.gmra.mrb[0].mxu0 %v1304
        %v1354 = vpop.f32.mrb[0].mxu0
        %v1355 = vadd.f32 0.0, %v1354
        %v1356 = vpop.f32.mrb[0].mxu0
        %v1357 = vpop.f32.mrb[0].mxu0
        %v1358 = vadd.f32 0.0, %v1357
        %v1359 = vpop.f32.mrb[0].mxu0
        %1360 = vmatprep.mubr.bf16.mxu0 0
        %1361 = vmatmul.mubr.bf16.gmra.mrb[0].mxu0 %v1307
        %v1362 = vpop.f32.mrb[0].mxu0
        %v1363 = vadd.f32 0.0, %v1362
        %v1364 = vpop.f32.mrb[0].mxu0
        %v1365 = vpop.f32.mrb[0].mxu0
        %v1366 = vadd.f32 0.0, %v1365
        %v1367 = vpop.f32.mrb[0].mxu0
        %1368 = vmatprep.mubr.bf16.mxu0 0
        %1369 = vmatmul.mubr.bf16.gmra.mrb[0].mxu0 %v1310
        %v1370 = vpop.f32.mrb[0].mxu0
        %v1371 = vadd.f32 0.0, %v1370
        %v1372 = vpop.f32.mrb[0].mxu0
        %v1373 = vpop.f32.mrb[0].mxu0
        %v1374 = vadd.f32 0.0, %v1373
        %v1375 = vpop.f32.mrb[0].mxu0
        %1376 = vdwg.mxu0
        %v1377 = vadd.f32 %v1217, %v1347
        %v1378 = vadd.f32 %v1218, %v1350
        %v1379 = vadd.f32 %v1219, %v1355
        %v1380 = vadd.f32 %v1220, %v1358
        %v1381 = vadd.f32 %v1221, %v1363
        %v1382 = vadd.f32 %v1222, %v1366
        %v1383 = vadd.f32 %v1223, %v1371
        %v1384 = vadd.f32 %v1224, %v1374
        %v1385 = vld [vmem:[%s193 + $0x24] sm:$0xf]
        %v1386 = vsel %vm347, %v1040, 0
        %v1387 = vsel %vm348, %v1041, 0
        %v1388 = vsel %vm349, %v1042, 0
        %v1389 = vsel %vm350, %v1043, 0
        %v1390 = vsel %vm351, %v1044, 0
        %v1391 = vsel %vm352, %v1045, 0
        %v1392 = vsel %vm353, %v1046, 0
        %v1393 = vsel %vm354, %v1385, 0
        %s1394 = scalar_lea.vmem [#allocation2], 192
        %v1395 = vld [vmem:[%s1394] sm:$0xf]
        %v1396 = vld [vmem:[%s1394 + $0x4] sm:$0xf]
        %v1397 = vld [vmem:[%s1394 + $0x8] sm:$0xf]
        %v1398 = vld [vmem:[%s1394 + $0xc] sm:$0xf]
        %v1399 = vld [vmem:[%s1394 + $0x10] sm:$0xf]
        %v1400 = vld [vmem:[%s1394 + $0x14] sm:$0xf]
        %v1401 = vld [vmem:[%s1394 + $0x18] sm:$0xf]
        %v1402 = vld [vmem:[%s1394 + $0x1c] sm:$0xf]
        %v1411 = vunpack.c.l.b16 %v1386
        %v1412 = vunpack.c.l.b16 %v1387
        %v1413 = vunpack.c.l.b16 %v1388
        %v1414 = vunpack.c.l.b16 %v1389
        %v1415 = vunpack.c.l.b16 %v1390
        %v1416 = vunpack.c.l.b16 %v1391
        %v1417 = vunpack.c.l.b16 %v1392
        %v1418 = vunpack.c.l.b16 %v1393
        %v1419 = vpack.c.b16 %v1412, %v1411
        %v1420 = vpack.c.b16 %v1414, %v1413
        %v1421 = vpack.c.b16 %v1416, %v1415
        %v1422 = vpack.c.b16 %v1418, %v1417
        %v1431 = vunpack.c.l.b16 %v1395
        %v1432 = vunpack.c.l.b16 %v1396
        %v1433 = vunpack.c.l.b16 %v1397
        %v1434 = vunpack.c.l.b16 %v1398
        %v1435 = vunpack.c.l.b16 %v1399
        %v1436 = vunpack.c.l.b16 %v1400
        %v1437 = vunpack.c.l.b16 %v1401
        %v1438 = vunpack.c.l.b16 %v1402
        %v1439 = vpack.c.b16 %v1432, %v1431
        %v1440 = vpack.c.b16 %v1434, %v1433
        %v1441 = vpack.c.b16 %v1436, %v1435
        %v1442 = vpack.c.b16 %v1438, %v1437
        %v1448 = vsel %vm465, %v1419, 0
        %v1451 = vsel %vm465, %v1420, 0
        %v1454 = vsel %vm465, %v1421, 0
        %v1457 = vsel %vm465, %v1422, 0
        %1459 = vmatprep.subr.bf16.mxu0 0
        %1460 = vmatpush1.bf16.msra.mxu0 %v1439
        %1461 = vmatprep.subr.bf16.mxu0 0
        %1462 = vmatpush1.bf16.msra.mxu0 %v1440
        %1463 = vmatprep.subr.bf16.mxu0 0
        %1464 = vmatpush1.bf16.msra.mxu0 %v1441
        %1465 = vmatprep.subr.bf16.mxu0 0
        %1466 = vmatpush1.bf16.msra.mxu0 %v1442
        %1467 = vmatprep.subr.bf16.mxu0 0
        %1468 = vmatpush1.bf16.msra.mxu0 0
        %1469 = vmatprep.subr.bf16.mxu0 0
        %1470 = vmatpush1.bf16.msra.mxu0 0
        %1471 = vmatprep.subr.bf16.mxu0 0
        %1472 = vmatpush1.bf16.msra.mxu0 0
        %1473 = vmatprep.subr.bf16.mxu0 0
        %1474 = vmatpush1.bf16.msra.mxu0 0
        %1475 = vmatprep.subr.bf16.mxu0 0
        %1476 = vmatpush1.bf16.msra.mxu0 0
        %1477 = vmatprep.subr.bf16.mxu0 0
        %1478 = vmatpush1.bf16.msra.mxu0 0
        %1479 = vmatprep.subr.bf16.mxu0 0
        %1480 = vmatpush1.bf16.msra.mxu0 0
        %1481 = vmatprep.subr.bf16.mxu0 0
        %1482 = vmatpush1.bf16.msra.mxu0 0
        %1483 = vmatprep.subr.bf16.mxu0 0
        %1484 = vmatpush1.bf16.msra.mxu0 0
        %1485 = vmatprep.subr.bf16.mxu0 0
        %1486 = vmatpush1.bf16.msra.mxu0 0
        %1487 = vmatprep.subr.bf16.mxu0 0
        %1488 = vmatpush1.bf16.msra.mxu0 0
        %1489 = vmatprep.subr.bf16.mxu0 0
        %1490 = vmatpush1.bf16.msra.mxu0 0
        %1491 = vmatprep.mubr.bf16.mxu0 0
        %1492 = vmatmul.mubr.bf16.gmra.mrb[0].mxu0 %v1448
        %v1493 = vpop.f32.mrb[0].mxu0
        %v1494 = vadd.f32 0.0, %v1493
        %v1495 = vpop.f32.mrb[0].mxu0
        %v1496 = vpop.f32.mrb[0].mxu0
        %v1497 = vadd.f32 0.0, %v1496
        %v1498 = vpop.f32.mrb[0].mxu0
        %1499 = vmatprep.mubr.bf16.mxu0 0
        %1500 = vmatmul.mubr.bf16.gmra.mrb[0].mxu0 %v1451
        %v1501 = vpop.f32.mrb[0].mxu0
        %v1502 = vadd.f32 0.0, %v1501
        %v1503 = vpop.f32.mrb[0].mxu0
        %v1504 = vpop.f32.mrb[0].mxu0
        %v1505 = vadd.f32 0.0, %v1504
        %v1506 = vpop.f32.mrb[0].mxu0
        %1507 = vmatprep.mubr.bf16.mxu0 0
        %1508 = vmatmul.mubr.bf16.gmra.mrb[0].mxu0 %v1454
        %v1509 = vpop.f32.mrb[0].mxu0
        %v1510 = vadd.f32 0.0, %v1509
        %v1511 = vpop.f32.mrb[0].mxu0
        %v1512 = vpop.f32.mrb[0].mxu0
        %v1513 = vadd.f32 0.0, %v1512
        %v1514 = vpop.f32.mrb[0].mxu0
        %1515 = vmatprep.mubr.bf16.mxu0 0
        %1516 = vmatmul.mubr.bf16.gmra.mrb[0].mxu0 %v1457
        %v1517 = vpop.f32.mrb[0].mxu0
        %v1518 = vadd.f32 0.0, %v1517
        %v1519 = vpop.f32.mrb[0].mxu0
        %v1520 = vpop.f32.mrb[0].mxu0
        %v1521 = vadd.f32 0.0, %v1520
        %v1522 = vpop.f32.mrb[0].mxu0
        %1523 = vdwg.mxu0
        %v1524 = vadd.f32 %v1377, %v1494
        %v1525 = vadd.f32 %v1378, %v1497
        %v1526 = vadd.f32 %v1379, %v1502
        %v1527 = vadd.f32 %v1380, %v1505
        %v1528 = vadd.f32 %v1381, %v1510
        %v1529 = vadd.f32 %v1382, %v1513
        %v1530 = vadd.f32 %v1383, %v1518
        %v1531 = vadd.f32 %v1384, %v1521
        %v1532 = vld [vmem:[%s193 + $0x8] sm:$0xf]
        %v1533 = vld [vmem:[%s193 + $0xc] sm:$0xf]
        %v1534 = vld [vmem:[%s193 + $0x10] sm:$0xf]
        %v1535 = vld [vmem:[%s193 + $0x14] sm:$0xf]
        %v1536 = vld [vmem:[%s193 + $0x18] sm:$0xf]
        %v1537 = vld [vmem:[%s193 + $0x1c] sm:$0xf]
        %v1538 = vld [vmem:[%s193 + $0x20] sm:$0xf]
        %v1539 = vld [vmem:[%s193 + $0x24] sm:$0xf]
        %v1540 = vld [vmem:[%s193 + $0x28] sm:$0x1]
        %s1541 = scalar_lea.vmem [#allocation2], 224
        %v1542 = vld [vmem:[%s1541] sm:$0xf]
        %v1543 = vld [vmem:[%s1541 + $0x4] sm:$0xf]
        %v1544 = vld [vmem:[%s1541 + $0x8] sm:$0xf]
        %v1545 = vld [vmem:[%s1541 + $0xc] sm:$0xf]
        %v1546 = vld [vmem:[%s1541 + $0x10] sm:$0xf]
        %v1547 = vld [vmem:[%s1541 + $0x14] sm:$0xf]
        %v1548 = vld [vmem:[%s1541 + $0x18] sm:$0xf]
        %v1549 = vld [vmem:[%s1541 + $0x1c] sm:$0xf]
        %v1559 = vunpack.c.l.b16 %v1532
        %v1560 = vunpack.c.l.b16 %v1533
        %v1561 = vunpack.c.l.b16 %v1534
        %v1562 = vunpack.c.l.b16 %v1535
        %v1563 = vunpack.c.l.b16 %v1536
        %v1564 = vunpack.c.l.b16 %v1537
        %v1565 = vunpack.c.l.b16 %v1538
        %v1566 = vunpack.c.l.b16 %v1539
        %v1567 = vunpack.c.l.b16 %v1540
        %v1568 = vpack.c.b16 %v1560, %v1559
        %v1569 = vpack.c.b16 %v1562, %v1561
        %v1570 = vpack.c.b16 %v1564, %v1563
        %v1571 = vpack.c.b16 %v1566, %v1565
        %v1572 = vpack.c.b16 %v1567, %v1567
        %v1574 = vshrl.u32 %v1568, 16
        %v1576 = vshll.u32 %v1568, 16
        %v1578 = vrot.slane %v1576, 1
        %v1579 = vor.u32 %v1574, %v1578
        %v1581 = vshll.u32 %v1569, 16
        %v1583 = vrot.slane %v1581, 1
        %v1584 = vsel %vm404, %v1579, %v1583
        %v1585 = vshrl.u32 %v1569, 16
        %v1587 = vor.u32 %v1585, %v1583
        %v1589 = vshll.u32 %v1570, 16
        %v1591 = vrot.slane %v1589, 1
        %v1592 = vsel %vm404, %v1587, %v1591
        %v1593 = vshrl.u32 %v1570, 16
        %v1595 = vor.u32 %v1593, %v1591
        %v1597 = vshll.u32 %v1571, 16
        %v1599 = vrot.slane %v1597, 1
        %v1600 = vsel %vm404, %v1595, %v1599
        %v1601 = vshrl.u32 %v1571, 16
        %v1603 = vor.u32 %v1601, %v1599
        %v1605 = vshll.u32 %v1572, 16
        %v1607 = vrot.slane %v1605, 1
        %v1608 = vsel %vm404, %v1603, %v1607
        %v1617 = vunpack.c.l.b16 %v1542
        %v1618 = vunpack.c.l.b16 %v1543
        %v1619 = vunpack.c.l.b16 %v1544
        %v1620 = vunpack.c.l.b16 %v1545
        %v1621 = vunpack.c.l.b16 %v1546
        %v1622 = vunpack.c.l.b16 %v1547
        %v1623 = vunpack.c.l.b16 %v1548
        %v1624 = vunpack.c.l.b16 %v1549
        %v1625 = vpack.c.b16 %v1618, %v1617
        %v1626 = vpack.c.b16 %v1620, %v1619
        %v1627 = vpack.c.b16 %v1622, %v1621
        %v1628 = vpack.c.b16 %v1624, %v1623
        %v1634 = vsel %vm465, %v1584, 0
        %v1637 = vsel %vm465, %v1592, 0
        %v1640 = vsel %vm465, %v1600, 0
        %v1643 = vsel %vm465, %v1608, 0
        %1645 = vmatprep.subr.bf16.mxu0 0
        %1646 = vmatpush1.bf16.msra.mxu0 %v1625
        %1647 = vmatprep.subr.bf16.mxu0 0
        %1648 = vmatpush1.bf16.msra.mxu0 %v1626
        %1649 = vmatprep.subr.bf16.mxu0 0
        %1650 = vmatpush1.bf16.msra.mxu0 %v1627
        %1651 = vmatprep.subr.bf16.mxu0 0
        %1652 = vmatpush1.bf16.msra.mxu0 %v1628
        %1653 = vmatprep.subr.bf16.mxu0 0
        %1654 = vmatpush1.bf16.msra.mxu0 0
        %1655 = vmatprep.subr.bf16.mxu0 0
        %1656 = vmatpush1.bf16.msra.mxu0 0
        %1657 = vmatprep.subr.bf16.mxu0 0
        %1658 = vmatpush1.bf16.msra.mxu0 0
        %1659 = vmatprep.subr.bf16.mxu0 0
        %1660 = vmatpush1.bf16.msra.mxu0 0
        %1661 = vmatprep.subr.bf16.mxu0 0
        %1662 = vmatpush1.bf16.msra.mxu0 0
        %1663 = vmatprep.subr.bf16.mxu0 0
        %1664 = vmatpush1.bf16.msra.mxu0 0
        %1665 = vmatprep.subr.bf16.mxu0 0
        %1666 = vmatpush1.bf16.msra.mxu0 0
        %1667 = vmatprep.subr.bf16.mxu0 0
        %1668 = vmatpush1.bf16.msra.mxu0 0
        %1669 = vmatprep.subr.bf16.mxu0 0
        %1670 = vmatpush1.bf16.msra.mxu0 0
        %1671 = vmatprep.subr.bf16.mxu0 0
        %1672 = vmatpush1.bf16.msra.mxu0 0
        %1673 = vmatprep.subr.bf16.mxu0 0
        %1674 = vmatpush1.bf16.msra.mxu0 0
        %1675 = vmatprep.subr.bf16.mxu0 0
        %1676 = vmatpush1.bf16.msra.mxu0 0
        %1677 = vmatprep.mubr.bf16.mxu0 0
        %1678 = vmatmul.mubr.bf16.gmra.mrb[0].mxu0 %v1634
        %v1679 = vpop.f32.mrb[0].mxu0
        %v1680 = vadd.f32 0.0, %v1679
        %v1681 = vpop.f32.mrb[0].mxu0
        %v1682 = vpop.f32.mrb[0].mxu0
        %v1683 = vadd.f32 0.0, %v1682
        %v1684 = vpop.f32.mrb[0].mxu0
        %1685 = vmatprep.mubr.bf16.mxu0 0
        %1686 = vmatmul.mubr.bf16.gmra.mrb[0].mxu0 %v1637
        %v1687 = vpop.f32.mrb[0].mxu0
        %v1688 = vadd.f32 0.0, %v1687
        %v1689 = vpop.f32.mrb[0].mxu0
        %v1690 = vpop.f32.mrb[0].mxu0
        %v1691 = vadd.f32 0.0, %v1690
        %v1692 = vpop.f32.mrb[0].mxu0
        %1693 = vmatprep.mubr.bf16.mxu0 0
        %1694 = vmatmul.mubr.bf16.gmra.mrb[0].mxu0 %v1640
        %v1695 = vpop.f32.mrb[0].mxu0
        %v1696 = vadd.f32 0.0, %v1695
        %v1697 = vpop.f32.mrb[0].mxu0
        %v1698 = vpop.f32.mrb[0].mxu0
        %v1699 = vadd.f32 0.0, %v1698
        %v1700 = vpop.f32.mrb[0].mxu0
        %1701 = vmatprep.mubr.bf16.mxu0 0
        %1702 = vmatmul.mubr.bf16.gmra.mrb[0].mxu0 %v1643
        %v1703 = vpop.f32.mrb[0].mxu0
        %v1704 = vadd.f32 0.0, %v1703
        %v1705 = vpop.f32.mrb[0].mxu0
        %v1706 = vpop.f32.mrb[0].mxu0
        %v1707 = vadd.f32 0.0, %v1706
        %v1708 = vpop.f32.mrb[0].mxu0
        %1709 = vdwg.mxu0
        %v1710 = vadd.f32 %v1524, %v1680
        %v1711 = vadd.f32 %v1525, %v1683
        %v1712 = vadd.f32 %v1526, %v1688
        %v1713 = vadd.f32 %v1527, %v1691
        %v1714 = vadd.f32 %v1528, %v1696
        %v1715 = vadd.f32 %v1529, %v1699
        %v1716 = vadd.f32 %v1530, %v1704
        %v1717 = vadd.f32 %v1531, %v1707
        %v1718 = vld [vmem:[%s193 + $0x8] sm:$0xe]
        %v1719 = vsel %vm723, %v1718, 0
        %v1720 = vsel %vm724, %v1533, 0
        %v1721 = vsel %vm725, %v1534, 0
        %v1722 = vsel %vm726, %v1535, 0
        %v1723 = vsel %vm727, %v1536, 0
        %v1724 = vsel %vm728, %v1537, 0
        %v1725 = vsel %vm729, %v1538, 0
        %v1726 = vsel %vm730, %v1539, 0
        %v1727 = vsel %vm731, %v1540, 0
        %s1728 = scalar_lea.vmem [#allocation2], 256
        %v1729 = vld [vmem:[%s1728] sm:$0xf]
        %v1730 = vld [vmem:[%s1728 + $0x4] sm:$0xf]
        %v1731 = vld [vmem:[%s1728 + $0x8] sm:$0xf]
        %v1732 = vld [vmem:[%s1728 + $0xc] sm:$0xf]
        %v1733 = vld [vmem:[%s1728 + $0x10] sm:$0xf]
        %v1734 = vld [vmem:[%s1728 + $0x14] sm:$0xf]
        %v1735 = vld [vmem:[%s1728 + $0x18] sm:$0xf]
        %v1736 = vld [vmem:[%s1728 + $0x1c] sm:$0xf]
        %v1746 = vunpack.c.l.b16 %v1719
        %v1747 = vunpack.c.l.b16 %v1720
        %v1748 = vunpack.c.l.b16 %v1721
        %v1749 = vunpack.c.l.b16 %v1722
        %v1750 = vunpack.c.l.b16 %v1723
        %v1751 = vunpack.c.l.b16 %v1724
        %v1752 = vunpack.c.l.b16 %v1725
        %v1753 = vunpack.c.l.b16 %v1726
        %v1754 = vunpack.c.l.b16 %v1727
        %v1755 = vpack.c.b16 %v1747, %v1746
        %v1756 = vpack.c.b16 %v1749, %v1748
        %v1757 = vpack.c.b16 %v1751, %v1750
        %v1758 = vpack.c.b16 %v1753, %v1752
        %v1759 = vpack.c.b16 %v1754, %v1754
        %v1760 = vrot.slane %v1755, 1
        %v1761 = vrot.slane %v1756, 1
        %v1762 = vsel %vm773, %v1760, %v1761
        %v1763 = vrot.slane %v1757, 1
        %v1764 = vsel %vm773, %v1761, %v1763
        %v1765 = vrot.slane %v1758, 1
        %v1766 = vsel %vm773, %v1763, %v1765
        %v1767 = vrot.slane %v1759, 1
        %v1768 = vsel %vm773, %v1765, %v1767
        %v1777 = vunpack.c.l.b16 %v1729
        %v1778 = vunpack.c.l.b16 %v1730
        %v1779 = vunpack.c.l.b16 %v1731
        %v1780 = vunpack.c.l.b16 %v1732
        %v1781 = vunpack.c.l.b16 %v1733
        %v1782 = vunpack.c.l.b16 %v1734
        %v1783 = vunpack.c.l.b16 %v1735
        %v1784 = vunpack.c.l.b16 %v1736
        %v1785 = vpack.c.b16 %v1778, %v1777
        %v1786 = vpack.c.b16 %v1780, %v1779
        %v1787 = vpack.c.b16 %v1782, %v1781
        %v1788 = vpack.c.b16 %v1784, %v1783
        %v1794 = vsel %vm465, %v1762, 0
        %v1797 = vsel %vm465, %v1764, 0
        %v1800 = vsel %vm465, %v1766, 0
        %v1803 = vsel %vm465, %v1768, 0
        %1805 = vmatprep.subr.bf16.mxu0 0
        %1806 = vmatpush1.bf16.msra.mxu0 %v1785
        %1807 = vmatprep.subr.bf16.mxu0 0
        %1808 = vmatpush1.bf16.msra.mxu0 %v1786
        %1809 = vmatprep.subr.bf16.mxu0 0
        %1810 = vmatpush1.bf16.msra.mxu0 %v1787
        %1811 = vmatprep.subr.bf16.mxu0 0
        %1812 = vmatpush1.bf16.msra.mxu0 %v1788
        %1813 = vmatprep.subr.bf16.mxu0 0
        %1814 = vmatpush1.bf16.msra.mxu0 0
        %1815 = vmatprep.subr.bf16.mxu0 0
        %1816 = vmatpush1.bf16.msra.mxu0 0
        %1817 = vmatprep.subr.bf16.mxu0 0
        %1818 = vmatpush1.bf16.msra.mxu0 0
        %1819 = vmatprep.subr.bf16.mxu0 0
        %1820 = vmatpush1.bf16.msra.mxu0 0
        %1821 = vmatprep.subr.bf16.mxu0 0
        %1822 = vmatpush1.bf16.msra.mxu0 0
        %1823 = vmatprep.subr.bf16.mxu0 0
        %1824 = vmatpush1.bf16.msra.mxu0 0
        %1825 = vmatprep.subr.bf16.mxu0 0
        %1826 = vmatpush1.bf16.msra.mxu0 0
        %1827 = vmatprep.subr.bf16.mxu0 0
        %1828 = vmatpush1.bf16.msra.mxu0 0
        %1829 = vmatprep.subr.bf16.mxu0 0
        %1830 = vmatpush1.bf16.msra.mxu0 0
        %1831 = vmatprep.subr.bf16.mxu0 0
        %1832 = vmatpush1.bf16.msra.mxu0 0
        %1833 = vmatprep.subr.bf16.mxu0 0
        %1834 = vmatpush1.bf16.msra.mxu0 0
        %1835 = vmatprep.subr.bf16.mxu0 0
        %1836 = vmatpush1.bf16.msra.mxu0 0
        %1837 = vmatprep.mubr.bf16.mxu0 0
        %1838 = vmatmul.mubr.bf16.gmra.mrb[0].mxu0 %v1794
        %v1839 = vpop.f32.mrb[0].mxu0
        %v1840 = vadd.f32 0.0, %v1839
        %v1841 = vpop.f32.mrb[0].mxu0
        %v1842 = vpop.f32.mrb[0].mxu0
        %v1843 = vadd.f32 0.0, %v1842
        %v1844 = vpop.f32.mrb[0].mxu0
        %1845 = vmatprep.mubr.bf16.mxu0 0
        %1846 = vmatmul.mubr.bf16.gmra.mrb[0].mxu0 %v1797
        %v1847 = vpop.f32.mrb[0].mxu0
        %v1848 = vadd.f32 0.0, %v1847
        %v1849 = vpop.f32.mrb[0].mxu0
        %v1850 = vpop.f32.mrb[0].mxu0
        %v1851 = vadd.f32 0.0, %v1850
        %v1852 = vpop.f32.mrb[0].mxu0
        %1853 = vmatprep.mubr.bf16.mxu0 0
        %1854 = vmatmul.mubr.bf16.gmra.mrb[0].mxu0 %v1800
        %v1855 = vpop.f32.mrb[0].mxu0
        %v1856 = vadd.f32 0.0, %v1855
        %v1857 = vpop.f32.mrb[0].mxu0
        %v1858 = vpop.f32.mrb[0].mxu0
        %v1859 = vadd.f32 0.0, %v1858
        %v1860 = vpop.f32.mrb[0].mxu0
        %1861 = vmatprep.mubr.bf16.mxu0 0
        %1862 = vmatmul.mubr.bf16.gmra.mrb[0].mxu0 %v1803
        %v1863 = vpop.f32.mrb[0].mxu0
        %v1864 = vadd.f32 0.0, %v1863
        %v1865 = vpop.f32.mrb[0].mxu0
        %v1866 = vpop.f32.mrb[0].mxu0
        %v1867 = vadd.f32 0.0, %v1866
        %v1868 = vpop.f32.mrb[0].mxu0
        %1869 = vdwg.mxu0
        %v1870 = vadd.f32 %v1710, %v1840
        %v1871 = vadd.f32 %v1711, %v1843
        %v1872 = vadd.f32 %v1712, %v1848
        %v1873 = vadd.f32 %v1713, %v1851
        %v1874 = vadd.f32 %v1714, %v1856
        %v1875 = vadd.f32 %v1715, %v1859
        %v1876 = vadd.f32 %v1716, %v1864
        %v1877 = vadd.f32 %v1717, %v1867
        %v1878 = vld [vmem:[#allocation4] sm:$0x1]
        %v1880 = vlaneseq
        %v1881 = vshrl.u32 %v1880, 7
        %v1882 = vsub.s32 0, %v1881
        %v1883 = vrot.slane %v1878, %v1882
        %v1885 = vadd.f32 %v1870, %v1883
        %v1886 = vadd.f32 %v1871, %v1883
        %v1887 = vadd.f32 %v1872, %v1883
        %v1888 = vadd.f32 %v1873, %v1883
        %v1889 = vadd.f32 %v1874, %v1883
        %v1890 = vadd.f32 %v1875, %v1883
        %v1891 = vadd.f32 %v1876, %v1883
        %v1892 = vadd.f32 %v1877, %v1883
        %v1893 = vmax.f32 %v1885, 0.0
        %v1894 = vmax.f32 %v1886, 0.0
        %v1895 = vmax.f32 %v1887, 0.0
        %v1896 = vmax.f32 %v1888, 0.0
        %v1897 = vmax.f32 %v1889, 0.0
        %v1898 = vmax.f32 %v1890, 0.0
        %v1899 = vmax.f32 %v1891, 0.0
        %v1900 = vmax.f32 %v1892, 0.0
        %v1901 = vpack.c.bf16 %v1894, %v1893
        %v1902 = vpack.c.bf16 %v1896, %v1895
        %v1903 = vpack.c.bf16 %v1898, %v1897
        %v1904 = vpack.c.bf16 %v1900, %v1899
        %v1909 = vunpack.c.l.b16 %v1901
        %v1910 = vunpack.c.h.b16 %v1901
        %v1911 = vunpack.c.l.b16 %v1902
        %v1912 = vunpack.c.h.b16 %v1902
        %v1913 = vunpack.c.l.b16 %v1903
        %v1914 = vunpack.c.h.b16 %v1903
        %v1915 = vunpack.c.l.b16 %v1904
        %v1916 = vunpack.c.h.b16 %v1904
        %v1917 = vpack.c.b16 %v1909, %v1909
        %v1918 = vpack.c.b16 %v1910, %v1910
        %v1919 = vpack.c.b16 %v1911, %v1911
        %v1920 = vpack.c.b16 %v1912, %v1912
        %v1921 = vpack.c.b16 %v1913, %v1913
        %v1922 = vpack.c.b16 %v1914, %v1914
        %v1923 = vpack.c.b16 %v1915, %v1915
        %v1924 = vpack.c.b16 %v1916, %v1916
        %1933 = vst [vmem:[%s198] sm:$0xf] %v1917
        %1934 = vst [vmem:[%s198 + $0x4] sm:$0xf] %v1918
        %1935 = vst [vmem:[%s198 + $0x8] sm:$0xf] %v1919
        %1936 = vst [vmem:[%s198 + $0xc] sm:$0xf] %v1920
        %1937 = vst [vmem:[%s198 + $0x10] sm:$0xf] %v1921
        %1938 = vst [vmem:[%s198 + $0x14] sm:$0xf] %v1922
        %1939 = vst [vmem:[%s198 + $0x18] sm:$0xf] %v1923
        %1940 = vst [vmem:[%s198 + $0x1c] sm:$0xf] %v1924
        %p1941 = scmp.lt.s32.totalorder %s16, 1
        %s1942 = scalar_select %p1941, %s16, 1
        %s1943 = smul.addr %s1942, 8
        %s1944 = smul.addr %s1943, 4
        %s1945 = scalar_lea.vmem %s3, %s1944
        // Predicated region
        $region41: #{bottleneck_forward.3} parent=31 // pred_check
          %p1946 = pneg %p102
        $region42: #{bottleneck_forward.3} parent=31 // pred_check_branch
          %1948 = sbr.rel (%p1946) target = $region44
        $region43: #{bottleneck_forward.3} parent=31 // pred_region
          _
        $region44: #{bottleneck_forward.3} parent=31 // pred_fallthru
          _
      $region32: #{bottleneck_forward.3} parent=5 // pred_fallthru
        _
      %p1949 = scmp.le.s32.totalorder 2, %s11
      // Predicated region
      $region45: #{bottleneck_forward.3} parent=5 // pred_check
        %p1950 = pneg %p1949
      $region46: #{bottleneck_forward.3} parent=5 // pred_check_branch
        %1952 = sbr.rel (%p1950) target = $region48
      $region47: #{bottleneck_forward.3} parent=5 // pred_region
        %s1953 = ssub.s32 %s11, 2
        // Predicated region
        $region49: #{bottleneck_forward.3} parent=47 // pred_check
          %p1954 = pneg %p108
        $region50: #{bottleneck_forward.3} parent=47 // pred_check_branch
          %1956 = sbr.rel (%p1954) target = $region52
        $region51: #{bottleneck_forward.3} parent=47 // pred_region
          %p1957 = scmp.lt.s32.totalorder %s17, 1
          %s1958 = scalar_select %p1957, %s17, 1
          %s1959 = smul.addr %s1958, 8
          %s1960 = smul.addr %s1959, 4
          %s1961 = scalar_lea.vmem %s3, %s1960
        $region52: #{bottleneck_forward.3} parent=47 // pred_fallthru
          _
      $region48: #{bottleneck_forward.3} parent=5 // pred_fallthru
        _
    $region6: #{bottleneck_forward.3} parent=1 // loop_footer
      %s15 = sadd.s32 1, %s11
    $region7: #{bottleneck_forward.3} parent=1 // loop_footer_branch
      %10 = sbr.rel target = $region3
    $region8: #{bottleneck_forward.3} parent=1 // loop_exit
      _
    %1962 = vsyncpa [#allocation3], 1
    %s1963 = scalar_lea.sflag [#allocation3], 1
    %1964 = vsyncpa %s1963, 1
    %1965 = vsyncpa [#allocation5], 1

// kernel: bottleneck_forward.4
$region0: #{bottleneck_forward.4}
  #allocation0 [shape = 'u32[]', space=smem, size = 0x4, offset = 0x4, fixed_abs, tag = 'smem constant byte address 0x4 - core index']
  #allocation1 [shape = 'u32[144,128]{1,0:T(1,128)}', space=vmem, size = 0x12000, scoped, tag = 'internal scratch']
  %s0 = inlined_call_operand.vmem [shape: bf16[2,82,128], index: 0, kind: input, shape index: {}]
  %s1 = inlined_call_operand.vmem [shape: bf16[9,128,128], index: 1, kind: input, shape index: {}]
  %s2 = inlined_call_operand.vmem [shape: f32[1,128], index: 2, kind: input, shape index: {}]
  %s3 = inlined_call_operand.vmem [shape: bf16[2,64,128], index: 3, kind: output, shape index: {}]
  %s4 = sld [smem:[#allocation0]]
  $region45: #{bottleneck_forward.4} parent=0
    _
  %s6 = ssub.s32 1, %s4
  %s7 = scalar_select 0, %s6, %s4
  loop: start=0, step=1, limit=4
  $region2: #{bottleneck_forward.4} parent=0 // loop_pre_header
    _
  $region3: #{bottleneck_forward.4} parent=0 // loop_header
    %s9 = sphi 0, %s13
    %p10 = scmp.ge.s32.totalorder %s9, 4
    %s19 = sphi 0, %s21
    %s22 = sphi 0, %s19
    %s23 = sphi 0, %s22
    %s39 = sphi 0, %s23
    %s43 = sphi 0, %s43
    %s45 = sphi 0, %s43
    %s46 = sphi 0, %s45
    %s60 = sphi 0, %s46
    %s64 = sphi 0, %s64
    %s66 = sphi 0, %s64
    %s67 = sphi 0, %s66
    %s81 = sphi 0, %s67
    %s87 = sphi 0, %s89
    %s90 = sphi 0, %s87
    %s91 = sphi 0, %s90
    %s107 = sphi 0, %s91
  $region4: #{bottleneck_forward.4} parent=0 // loop_header_branch
    %12 = sbr.rel (%p10) target = $region8
  $region5: #{bottleneck_forward.4} parent=0 // loop_body
    %s14 = ssub.s32 %s9, 1
    %s15 = ssub.s32 %s9, 2
    %s16 = sadd.s32 %s9, 1
    %s17 = ssub.s32 %s9, %s16
    %p18 = scmp.eq.s32.totalorder %s17, 0
    %s20 = sadd.s32 %s19, 1
    %s21 = scalar_select %p18, %s19, %s20
    %p24 = pneg %p18
    %p25 = scmp.eq.s32.totalorder %s9, 1
    %p26 = por %p24, %p25
    %p27 = scmp.ne.s32.totalorder %s19, %s22
    %p28 = scmp.eq.s32.totalorder %s9, 0
    %p29 = por %p27, %p28
    %p30 = scmp.ne.s32.totalorder %s19, %s22
    %p31 = scmp.eq.s32.totalorder %s14, 1
    %p32 = por %p30, %p31
    %p33 = scmp.ne.s32.totalorder %s22, %s23
    %p34 = scmp.eq.s32.totalorder %s14, 0
    %p35 = por %p33, %p34
    %p36 = scmp.ne.s32.totalorder %s22, %s23
    %p37 = scmp.eq.s32.totalorder %s15, 1
    %p38 = por %p36, %p37
    %p40 = scmp.ne.s32.totalorder %s23, %s39
    %p41 = scmp.eq.s32.totalorder %s15, 0
    %p42 = por %p40, %p41
    %s44 = sadd.s32 %s43, 1
    %p47 = scmp.eq.s32.totalorder %s9, 1
    %p48 = scmp.ne.s32.totalorder %s43, %s45
    %p49 = scmp.eq.s32.totalorder %s9, 0
    %p50 = por %p48, %p49
    %p51 = scmp.ne.s32.totalorder %s43, %s45
    %p52 = scmp.eq.s32.totalorder %s14, 1
    %p53 = por %p51, %p52
    %p54 = scmp.ne.s32.totalorder %s45, %s46
    %p55 = scmp.eq.s32.totalorder %s14, 0
    %p56 = por %p54, %p55
    %p57 = scmp.ne.s32.totalorder %s45, %s46
    %p58 = scmp.eq.s32.totalorder %s15, 1
    %p59 = por %p57, %p58
    %p61 = scmp.ne.s32.totalorder %s46, %s60
    %p62 = scmp.eq.s32.totalorder %s15, 0
    %p63 = por %p61, %p62
    %s65 = sadd.s32 %s64, 1
    %p68 = scmp.eq.s32.totalorder %s9, 1
    %p69 = scmp.ne.s32.totalorder %s64, %s66
    %p70 = scmp.eq.s32.totalorder %s9, 0
    %p71 = por %p69, %p70
    %p72 = scmp.ne.s32.totalorder %s64, %s66
    %p73 = scmp.eq.s32.totalorder %s14, 1
    %p74 = por %p72, %p73
    %p75 = scmp.ne.s32.totalorder %s66, %s67
    %p76 = scmp.eq.s32.totalorder %s14, 0
    %p77 = por %p75, %p76
    %p78 = scmp.ne.s32.totalorder %s66, %s67
    %p79 = scmp.eq.s32.totalorder %s15, 1
    %p80 = por %p78, %p79
    %p82 = scmp.ne.s32.totalorder %s67, %s81
    %p83 = scmp.eq.s32.totalorder %s15, 0
    %p84 = por %p82, %p83
    %s85 = ssub.s32 %s9, %s16
    %p86 = scmp.eq.s32.totalorder %s85, 0
    %s88 = sadd.s32 %s87, 1
    %s89 = scalar_select %p86, %s87, %s88
    %p92 = pneg %p86
    %p93 = scmp.eq.s32.totalorder %s9, 1
    %p94 = por %p92, %p93
    %p95 = scmp.ne.s32.totalorder %s87, %s90
    %p96 = scmp.eq.s32.totalorder %s9, 0
    %p97 = por %p95, %p96
    %p98 = scmp.ne.s32.totalorder %s87, %s90
    %p99 = scmp.eq.s32.totalorder %s14, 1
    %p100 = por %p98, %p99
    %p101 = scmp.ne.s32.totalorder %s90, %s91
    %p102 = scmp.eq.s32.totalorder %s14, 0
    %p103 = por %p101, %p102
    %p104 = scmp.ne.s32.totalorder %s90, %s91
    %p105 = scmp.eq.s32.totalorder %s15, 1
    %p106 = por %p104, %p105
    %p108 = scmp.ne.s32.totalorder %s91, %s107
    %p109 = scmp.eq.s32.totalorder %s15, 0
    %p110 = por %p108, %p109
    %p111 = scmp.le.s32.totalorder 1, %s9
    %p112 = scmp.lt.s32.totalorder %s9, 3
    %p113 = pnand %p111, %p112
    %p114 = pneg %p113
    // Predicated region
    $region9: #{bottleneck_forward.4} parent=5 // pred_check
      _
    $region10: #{bottleneck_forward.4} parent=5 // pred_check_branch
      %116 = sbr.rel (%p113) target = $region12
    $region11: #{bottleneck_forward.4} parent=5 // pred_region
      %s117 = ssub.s32 %s9, 1
      // Predicated region
      $region13: #{bottleneck_forward.4} parent=11 // pred_check
        %p118 = pneg %p56
      $region14: #{bottleneck_forward.4} parent=11 // pred_check_branch
        %120 = sbr.rel (%p118) target = $region16
      $region15: #{bottleneck_forward.4} parent=11 // pred_region
        _
      $region16: #{bottleneck_forward.4} parent=11 // pred_fallthru
        _
      // Predicated region
      $region17: #{bottleneck_forward.4} parent=11 // pred_check
        %p121 = pneg %p77
      $region18: #{bottleneck_forward.4} parent=11 // pred_check_branch
        %123 = sbr.rel (%p121) target = $region20
      $region19: #{bottleneck_forward.4} parent=11 // pred_region
        _
      $region20: #{bottleneck_forward.4} parent=11 // pred_fallthru
        _
    $region12: #{bottleneck_forward.4} parent=5 // pred_fallthru
      _
    %p124 = scmp.lt.s32.totalorder %s9, 2
    // Predicated region
    $region21: #{bottleneck_forward.4} parent=5 // pred_check
      %p125 = pneg %p124
    $region22: #{bottleneck_forward.4} parent=5 // pred_check_branch
      %127 = sbr.rel (%p125) target = $region24
    $region23: #{bottleneck_forward.4} parent=5 // pred_region
      // Predicated region
      $region25: #{bottleneck_forward.4} parent=23 // pred_check
        %p128 = pneg %p29
      $region26: #{bottleneck_forward.4} parent=23 // pred_check_branch
        %130 = sbr.rel (%p128) target = $region28
      $region27: #{bottleneck_forward.4} parent=23 // pred_region
        %p131 = scmp.lt.s32.totalorder %s9, 1
        %s132 = scalar_select %p131, %s9, 1
        %s133 = smul.addr %s132, 11
        %s134 = smul.addr %s133, 4
        %s135 = scalar_lea.vmem %s0, %s134
      $region28: #{bottleneck_forward.4} parent=23 // pred_fallthru
        _
    $region24: #{bottleneck_forward.4} parent=5 // pred_fallthru
      _
    %p136 = scmp.le.s32.totalorder 1, %s9
    %p137 = scmp.lt.s32.totalorder %s9, 3
    %p138 = pnand %p136, %p137
    %p139 = pneg %p138
    // Predicated region
    $region29: #{bottleneck_forward.4} parent=5 // pred_check
      _
    $region30: #{bottleneck_forward.4} parent=5 // pred_check_branch
      %141 = sbr.rel (%p138) target = $region32
    $region31: #{bottleneck_forward.4} parent=5 // pred_region
      %s142 = ssub.s32 %s9, 1
      %p143 = scmp.lt.s32.totalorder %s14, 1
      %s144 = scalar_select %p143, %s14, 1
      %s145 = smul.addr %s144, 11
      %s146 = smul.addr %s145, 4
      %s147 = scalar_lea.vmem %s0, %s146
      %p148 = pneg %p35
      %p149 = pneg %p32
      %p150 = pneg %p56
      %p151 = pneg %p53
      %p152 = pneg %p77
      %p153 = pneg %p74
      %p154 = pneg %p103
      %p155 = pneg %p100
      %p156 = scmp.lt.s32.totalorder %s14, 1
      %s157 = scalar_select %p156, %s14, 1
      %s158 = smul.addr %s157, 8
      %s159 = smul.addr %s158, 4
      %s160 = scalar_lea.vmem %s3, %s159
      %p161 = scmp.lt.s32.totalorder %s14, 1
      %s162 = scalar_select %p161, %s14, 1
      %s163 = smul.addr %s162, 11
      %s164 = smul.addr %s163, 4
      %s165 = scalar_lea.vmem %s0, %s164
      %p166 = scmp.lt.s32.totalorder %s14, 1
      %s167 = scalar_select %p166, %s14, 1
      %s168 = smul.addr %s167, 8
      %s169 = smul.addr %s168, 4
      %s170 = scalar_lea.vmem %s3, %s169
      %v174 = vlaneseq
      %v175 = vshrl.u32 %v174, 7
      %v176 = vadd.s32 %v175, 8
      %v177 = vadd.s32 %v175, 16
      %v178 = vadd.s32 %v175, 24
      %v179 = vadd.s32 %v175, 32
      %v180 = vadd.s32 %v175, 40
      %v181 = vadd.s32 %v175, 48
      %v182 = vadd.s32 %v175, 56
      %vm183 = vcmp.lt.s32.totalorder %v175, 0
      %v184 = vsub.s32 0, %v175
      %v185 = vsel %vm183, %v184, %v175
      %v186 = vshrl.u32 %v185, 3
      %v187 = vand.u32 %v185, 7
      %v188 = vsub.s32 0, %v187
      %v189 = vsel %vm183, %v188, %v187
      %vm190 = vcmp.lt.s32.totalorder %v176, 0
      %v191 = vsub.s32 0, %v176
      %v192 = vsel %vm190, %v191, %v176
      %v193 = vshrl.u32 %v192, 3
      %v194 = vand.u32 %v192, 7
      %v195 = vsub.s32 0, %v194
      %v196 = vsel %vm190, %v195, %v194
      %vm197 = vcmp.lt.s32.totalorder %v177, 0
      %v198 = vsub.s32 0, %v177
      %v199 = vsel %vm197, %v198, %v177
      %v200 = vshrl.u32 %v199, 3
      %v201 = vand.u32 %v199, 7
      %v202 = vsub.s32 0, %v201
      %v203 = vsel %vm197, %v202, %v201
      %vm204 = vcmp.lt.s32.totalorder %v178, 0
      %v205 = vsub.s32 0, %v178
      %v206 = vsel %vm204, %v205, %v178
      %v207 = vshrl.u32 %v206, 3
      %v208 = vand.u32 %v206, 7
      %v209 = vsub.s32 0, %v208
      %v210 = vsel %vm204, %v209, %v208
      %vm211 = vcmp.lt.s32.totalorder %v179, 0
      %v212 = vsub.s32 0, %v179
      %v213 = vsel %vm211, %v212, %v179
      %v214 = vshrl.u32 %v213, 3
      %v215 = vand.u32 %v213, 7
      %v216 = vsub.s32 0, %v215
      %v217 = vsel %vm211, %v216, %v215
      %vm218 = vcmp.lt.s32.totalorder %v180, 0
      %v219 = vsub.s32 0, %v180
      %v220 = vsel %vm218, %v219, %v180
      %v221 = vshrl.u32 %v220, 3
      %v222 = vand.u32 %v220, 7
      %v223 = vsub.s32 0, %v222
      %v224 = vsel %vm218, %v223, %v222
      %vm225 = vcmp.lt.s32.totalorder %v181, 0
      %v226 = vsub.s32 0, %v181
      %v227 = vsel %vm225, %v226, %v181
      %v228 = vshrl.u32 %v227, 3
      %v229 = vand.u32 %v227, 7
      %v230 = vsub.s32 0, %v229
      %v231 = vsel %vm225, %v230, %v229
      %vm232 = vcmp.lt.s32.totalorder %v182, 0
      %v233 = vsub.s32 0, %v182
      %v234 = vsel %vm232, %v233, %v182
      %v235 = vshrl.u32 %v234, 3
      %v236 = vand.u32 %v234, 7
      %v237 = vsub.s32 0, %v236
      %v238 = vsel %vm232, %v237, %v236
      %vm239 = vcmp.ne.s32.totalorder %v189, 0
      %vm240 = vcmp.ne.s32.totalorder %v196, 0
      %vm241 = vcmp.ne.s32.totalorder %v203, 0
      %vm242 = vcmp.ne.s32.totalorder %v210, 0
      %vm243 = vcmp.ne.s32.totalorder %v217, 0
      %vm244 = vcmp.ne.s32.totalorder %v224, 0
      %vm245 = vcmp.ne.s32.totalorder %v231, 0
      %vm246 = vcmp.ne.s32.totalorder %v238, 0
      %vm247 = vcmp.lt.s32.totalorder %v189, 0
      %vm248 = vcmp.lt.s32.totalorder %v196, 0
      %vm249 = vcmp.lt.s32.totalorder %v203, 0
      %vm250 = vcmp.lt.s32.totalorder %v210, 0
      %vm251 = vcmp.lt.s32.totalorder %v217, 0
      %vm252 = vcmp.lt.s32.totalorder %v224, 0
      %vm253 = vcmp.lt.s32.totalorder %v231, 0
      %vm254 = vcmp.lt.s32.totalorder %v238, 0
      %vm255 = vmand %vm247, %vm239
      %vm256 = vmand %vm248, %vm240
      %vm257 = vmand %vm249, %vm241
      %vm258 = vmand %vm250, %vm242
      %vm259 = vmand %vm251, %vm243
      %vm260 = vmand %vm252, %vm244
      %vm261 = vmand %vm253, %vm245
      %vm262 = vmand %vm254, %vm246
      %v263 = vadd.s32 %v189, 8
      %v264 = vadd.s32 %v196, 8
      %v265 = vadd.s32 %v203, 8
      %v266 = vadd.s32 %v210, 8
      %v267 = vadd.s32 %v217, 8
      %v268 = vadd.s32 %v224, 8
      %v269 = vadd.s32 %v231, 8
      %v270 = vadd.s32 %v238, 8
      %v271 = vsel %vm255, %v263, %v189
      %v272 = vsel %vm256, %v264, %v196
      %v273 = vsel %vm257, %v265, %v203
      %v274 = vsel %vm258, %v266, %v210
      %v275 = vsel %vm259, %v267, %v217
      %v276 = vsel %vm260, %v268, %v224
      %v277 = vsel %vm261, %v269, %v231
      %v278 = vsel %vm262, %v270, %v238
      %vm279 = vcmp.ne.s32.totalorder %v271, 7
      %vm280 = vcmp.ne.s32.totalorder %v272, 7
      %vm281 = vcmp.ne.s32.totalorder %v273, 7
      %vm282 = vcmp.ne.s32.totalorder %v274, 7
      %vm283 = vcmp.ne.s32.totalorder %v275, 7
      %vm284 = vcmp.ne.s32.totalorder %v276, 7
      %vm285 = vcmp.ne.s32.totalorder %v277, 7
      %vm286 = vcmp.ne.s32.totalorder %v278, 7
      %vm287 = vcmp.ne.s32.totalorder %v271, 0
      %vm288 = vcmp.ne.s32.totalorder %v272, 0
      %vm289 = vcmp.ne.s32.totalorder %v273, 0
      %vm290 = vcmp.ne.s32.totalorder %v274, 0
      %vm291 = vcmp.ne.s32.totalorder %v275, 0
      %vm292 = vcmp.ne.s32.totalorder %v276, 0
      %vm293 = vcmp.ne.s32.totalorder %v277, 0
      %vm294 = vcmp.ne.s32.totalorder %v278, 0
      %v295 = vld [vmem:[%s165] sm:$0xf]
      %v296 = vld [vmem:[%s165 + $0x4] sm:$0xf]
      %v297 = vld [vmem:[%s165 + $0x8] sm:$0xf]
      %v298 = vld [vmem:[%s165 + $0xc] sm:$0xf]
      %v299 = vld [vmem:[%s165 + $0x10] sm:$0xf]
      %v300 = vld [vmem:[%s165 + $0x14] sm:$0xf]
      %v301 = vld [vmem:[%s165 + $0x18] sm:$0xf]
      %v302 = vld [vmem:[%s165 + $0x1c] sm:$0xf]
      %v303 = vsel %vm287, 1, 0
      %v304 = vsel %vm288, 1, 0
      %v305 = vsel %vm289, 1, 0
      %v306 = vsel %vm290, 1, 0
      %v307 = vsel %vm291, 1, 0
      %v308 = vsel %vm292, 1, 0
      %v309 = vsel %vm293, 1, 0
      %v310 = vsel %vm294, 1, 0
      %vm311 = vcmp.eq.s32.totalorder %v303, 1
      %vm312 = vcmp.eq.s32.totalorder %v304, 1
      %vm313 = vcmp.eq.s32.totalorder %v305, 1
      %vm314 = vcmp.eq.s32.totalorder %v306, 1
      %vm315 = vcmp.eq.s32.totalorder %v307, 1
      %vm316 = vcmp.eq.s32.totalorder %v308, 1
      %vm317 = vcmp.eq.s32.totalorder %v309, 1
      %vm318 = vcmp.eq.s32.totalorder %v310, 1
      %vm319 = vmpackc.low %vm311, %vm311
      %vm320 = vmpackc.low %vm312, %vm312
      %vm321 = vmpackc.low %vm313, %vm313
      %vm322 = vmpackc.low %vm314, %vm314
      %vm323 = vmpackc.low %vm315, %vm315
      %vm324 = vmpackc.low %vm316, %vm316
      %vm325 = vmpackc.low %vm317, %vm317
      %vm326 = vmpackc.low %vm318, %vm318
      %v327 = vsel %vm319, %v295, 0
      %v328 = vsel %vm320, %v296, 0
      %v329 = vsel %vm321, %v297, 0
      %v330 = vsel %vm322, %v298, 0
      %v331 = vsel %vm323, %v299, 0
      %v332 = vsel %vm324, %v300, 0
      %v333 = vsel %vm325, %v301, 0
      %v334 = vsel %vm326, %v302, 0
      %v335 = vld [vmem:[%s1] sm:$0xf]
      %v336 = vld [vmem:[%s1 + $0x4] sm:$0xf]
      %v337 = vld [vmem:[%s1 + $0x8] sm:$0xf]
      %v338 = vld [vmem:[%s1 + $0xc] sm:$0xf]
      %v339 = vld [vmem:[%s1 + $0x10] sm:$0xf]
      %v340 = vld [vmem:[%s1 + $0x14] sm:$0xf]
      %v341 = vld [vmem:[%s1 + $0x18] sm:$0xf]
      %v342 = vld [vmem:[%s1 + $0x1c] sm:$0xf]
      %v343 = vld [vmem:[%s1 + $0x20] sm:$0xf]
      %v344 = vld [vmem:[%s1 + $0x24] sm:$0xf]
      %v345 = vld [vmem:[%s1 + $0x28] sm:$0xf]
      %v346 = vld [vmem:[%s1 + $0x2c] sm:$0xf]
      %v347 = vld [vmem:[%s1 + $0x30] sm:$0xf]
      %v348 = vld [vmem:[%s1 + $0x34] sm:$0xf]
      %v349 = vld [vmem:[%s1 + $0x38] sm:$0xf]
      %v350 = vld [vmem:[%s1 + $0x3c] sm:$0xf]
      %v351 = vld [vmem:[%s165 + $0x20] sm:$0x1]
      %s352 = scalar_lea.vmem %s1, 64
      %v353 = vld [vmem:[%s352] sm:$0xf]
      %v354 = vld [vmem:[%s352 + $0x4] sm:$0xf]
      %v355 = vld [vmem:[%s352 + $0x8] sm:$0xf]
      %v356 = vld [vmem:[%s352 + $0xc] sm:$0xf]
      %v357 = vld [vmem:[%s352 + $0x10] sm:$0xf]
      %v358 = vld [vmem:[%s352 + $0x14] sm:$0xf]
      %v359 = vld [vmem:[%s352 + $0x18] sm:$0xf]
      %v360 = vld [vmem:[%s352 + $0x1c] sm:$0xf]
      %v361 = vld [vmem:[%s352 + $0x20] sm:$0xf]
      %v362 = vld [vmem:[%s352 + $0x24] sm:$0xf]
      %v363 = vld [vmem:[%s352 + $0x28] sm:$0xf]
      %v364 = vld [vmem:[%s352 + $0x2c] sm:$0xf]
      %v365 = vld [vmem:[%s352 + $0x30] sm:$0xf]
      %v366 = vld [vmem:[%s352 + $0x34] sm:$0xf]
      %v367 = vld [vmem:[%s352 + $0x38] sm:$0xf]
      %v368 = vld [vmem:[%s352 + $0x3c] sm:$0xf]
      %v378 = vunpack.c.l.b16 %v295
      %v379 = vunpack.c.l.b16 %v296
      %v380 = vunpack.c.l.b16 %v297
      %v381 = vunpack.c.l.b16 %v298
      %v382 = vunpack.c.l.b16 %v299
      %v383 = vunpack.c.l.b16 %v300
      %v384 = vunpack.c.l.b16 %v301
      %v385 = vunpack.c.l.b16 %v302
      %v386 = vunpack.c.l.b16 %v351
      %v387 = vpack.c.b16 %v379, %v378
      %v388 = vpack.c.b16 %v381, %v380
      %v389 = vpack.c.b16 %v383, %v382
      %v390 = vpack.c.b16 %v385, %v384
      %v391 = vpack.c.b16 %v386, %v386
      %vm392 = vsmask.f32 7424
      %v394 = vshrl.u32 %v387, 16
      %v396 = vshll.u32 %v387, 16
      %v398 = vrot.slane %v396, 1
      %v399 = vor.u32 %v394, %v398
      %v401 = vshll.u32 %v388, 16
      %v403 = vrot.slane %v401, 1
      %v404 = vsel %vm392, %v399, %v403
      %v405 = vshrl.u32 %v388, 16
      %v407 = vor.u32 %v405, %v403
      %v409 = vshll.u32 %v389, 16
      %v411 = vrot.slane %v409, 1
      %v412 = vsel %vm392, %v407, %v411
      %v413 = vshrl.u32 %v389, 16
      %v415 = vor.u32 %v413, %v411
      %v417 = vshll.u32 %v390, 16
      %v419 = vrot.slane %v417, 1
      %v420 = vsel %vm392, %v415, %v419
      %v421 = vshrl.u32 %v390, 16
      %v423 = vor.u32 %v421, %v419
      %v425 = vshll.u32 %v391, 16
      %v427 = vrot.slane %v425, 1
      %v428 = vsel %vm392, %v423, %v427
      %v449 = vunpack.c.l.b16 %v353
      %v450 = vunpack.c.l.b16 %v354
      %v451 = vunpack.c.l.b16 %v355
      %v452 = vunpack.c.l.b16 %v356
      %v453 = vunpack.c.l.b16 %v357
      %v454 = vunpack.c.l.b16 %v358
      %v455 = vunpack.c.l.b16 %v359
      %v456 = vunpack.c.l.b16 %v360
      %v457 = vunpack.c.l.b16 %v361
      %v458 = vunpack.c.l.b16 %v362
      %v459 = vunpack.c.l.b16 %v363
      %v460 = vunpack.c.l.b16 %v364
      %v461 = vunpack.c.l.b16 %v365
      %v462 = vunpack.c.l.b16 %v366
      %v463 = vunpack.c.l.b16 %v367
      %v464 = vunpack.c.l.b16 %v368
      %v465 = vpack.c.b16 %v450, %v449
      %v466 = vpack.c.b16 %v452, %v451
      %v467 = vpack.c.b16 %v454, %v453
      %v468 = vpack.c.b16 %v456, %v455
      %v469 = vpack.c.b16 %v458, %v457
      %v470 = vpack.c.b16 %v460, %v459
      %v471 = vpack.c.b16 %v462, %v461
      %v472 = vpack.c.b16 %v464, %v463
      %481 = vmatprep.subr.bf16.mxu0 0
      %482 = vmatpush1.bf16.msra.mxu0 %v465
      %483 = vmatprep.subr.bf16.mxu0 0
      %484 = vmatpush1.bf16.msra.mxu0 %v466
      %485 = vmatprep.subr.bf16.mxu0 0
      %486 = vmatpush1.bf16.msra.mxu0 %v467
      %487 = vmatprep.subr.bf16.mxu0 0
      %488 = vmatpush1.bf16.msra.mxu0 %v468
      %489 = vmatprep.subr.bf16.mxu0 0
      %490 = vmatpush1.bf16.msra.mxu0 %v469
      %491 = vmatprep.subr.bf16.mxu0 0
      %492 = vmatpush1.bf16.msra.mxu0 %v470
      %493 = vmatprep.subr.bf16.mxu0 0
      %494 = vmatpush1.bf16.msra.mxu0 %v471
      %495 = vmatprep.subr.bf16.mxu0 0
      %496 = vmatpush1.bf16.msra.mxu0 %v472
      %497 = vmatprep.subr.bf16.mxu0 0
      %498 = vmatpush1.bf16.msra.mxu0 0
      %499 = vmatprep.subr.bf16.mxu0 0
      %500 = vmatpush1.bf16.msra.mxu0 0
      %501 = vmatprep.subr.bf16.mxu0 0
      %502 = vmatpush1.bf16.msra.mxu0 0
      %503 = vmatprep.subr.bf16.mxu0 0
      %504 = vmatpush1.bf16.msra.mxu0 0
      %505 = vmatprep.subr.bf16.mxu0 0
      %506 = vmatpush1.bf16.msra.mxu0 0
      %507 = vmatprep.subr.bf16.mxu0 0
      %508 = vmatpush1.bf16.msra.mxu0 0
      %509 = vmatprep.subr.bf16.mxu0 0
      %510 = vmatpush1.bf16.msra.mxu0 0
      %511 = vmatprep.subr.bf16.mxu0 0
      %512 = vmatpush1.bf16.msra.mxu0 0
      %513 = vmatprep.mubr.bf16.mxu0 0
      %514 = vmatmul.mubr.bf16.gmra.mrb[0].mxu0 %v404
      %v515 = vpop.f32.mrb[0].mxu0
      %v516 = vadd.f32 0.0, %v515
      %v517 = vpop.f32.mrb[0].mxu0
      %v518 = vpop.f32.mrb[0].mxu0
      %v519 = vadd.f32 0.0, %v518
      %v520 = vpop.f32.mrb[0].mxu0
      %521 = vmatprep.mubr.bf16.mxu0 0
      %522 = vmatmul.mubr.bf16.gmra.mrb[0].mxu0 %v412
      %v523 = vpop.f32.mrb[0].mxu0
      %v524 = vadd.f32 0.0, %v523
      %v525 = vpop.f32.mrb[0].mxu0
      %v526 = vpop.f32.mrb[0].mxu0
      %v527 = vadd.f32 0.0, %v526
      %v528 = vpop.f32.mrb[0].mxu0
      %529 = vmatprep.mubr.bf16.mxu0 0
      %530 = vmatmul.mubr.bf16.gmra.mrb[0].mxu0 %v420
      %v531 = vpop.f32.mrb[0].mxu0
      %v532 = vadd.f32 0.0, %v531
      %v533 = vpop.f32.mrb[0].mxu0
      %v534 = vpop.f32.mrb[0].mxu0
      %v535 = vadd.f32 0.0, %v534
      %v536 = vpop.f32.mrb[0].mxu0
      %537 = vmatprep.mubr.bf16.mxu0 0
      %538 = vmatmul.mubr.bf16.gmra.mrb[0].mxu0 %v428
      %v539 = vpop.f32.mrb[0].mxu0
      %v540 = vadd.f32 0.0, %v539
      %v541 = vpop.f32.mrb[0].mxu0
      %v542 = vpop.f32.mrb[0].mxu0
      %v543 = vadd.f32 0.0, %v542
      %v544 = vpop.f32.mrb[0].mxu0
      %545 = vdwg.mxu0
      %v554 = vunpack.c.l.b16 %v327
      %v555 = vunpack.c.l.b16 %v328
      %v556 = vunpack.c.l.b16 %v329
      %v557 = vunpack.c.l.b16 %v330
      %v558 = vunpack.c.l.b16 %v331
      %v559 = vunpack.c.l.b16 %v332
      %v560 = vunpack.c.l.b16 %v333
      %v561 = vunpack.c.l.b16 %v334
      %v562 = vpack.c.b16 %v555, %v554
      %v563 = vpack.c.b16 %v557, %v556
      %v564 = vpack.c.b16 %v559, %v558
      %v565 = vpack.c.b16 %v561, %v560
      %v586 = vunpack.c.l.b16 %v335
      %v587 = vunpack.c.l.b16 %v336
      %v588 = vunpack.c.l.b16 %v337
      %v589 = vunpack.c.l.b16 %v338
      %v590 = vunpack.c.l.b16 %v339
      %v591 = vunpack.c.l.b16 %v340
      %v592 = vunpack.c.l.b16 %v341
      %v593 = vunpack.c.l.b16 %v342
      %v594 = vunpack.c.l.b16 %v343
      %v595 = vunpack.c.l.b16 %v344
      %v596 = vunpack.c.l.b16 %v345
      %v597 = vunpack.c.l.b16 %v346
      %v598 = vunpack.c.l.b16 %v347
      %v599 = vunpack.c.l.b16 %v348
      %v600 = vunpack.c.l.b16 %v349
      %v601 = vunpack.c.l.b16 %v350
      %v602 = vpack.c.b16 %v587, %v586
      %v603 = vpack.c.b16 %v589, %v588
      %v604 = vpack.c.b16 %v591, %v590
      %v605 = vpack.c.b16 %v593, %v592
      %v606 = vpack.c.b16 %v595, %v594
      %v607 = vpack.c.b16 %v597, %v596
      %v608 = vpack.c.b16 %v599, %v598
      %v609 = vpack.c.b16 %v601, %v600
      %618 = vmatprep.subr.bf16.mxu0 0
      %619 = vmatpush1.bf16.msra.mxu0 %v602
      %620 = vmatprep.subr.bf16.mxu0 0
      %621 = vmatpush1.bf16.msra.mxu0 %v603
      %622 = vmatprep.subr.bf16.mxu0 0
      %623 = vmatpush1.bf16.msra.mxu0 %v604
      %624 = vmatprep.subr.bf16.mxu0 0
      %625 = vmatpush1.bf16.msra.mxu0 %v605
      %626 = vmatprep.subr.bf16.mxu0 0
      %627 = vmatpush1.bf16.msra.mxu0 %v606
      %628 = vmatprep.subr.bf16.mxu0 0
      %629 = vmatpush1.bf16.msra.mxu0 %v607
      %630 = vmatprep.subr.bf16.mxu0 0
      %631 = vmatpush1.bf16.msra.mxu0 %v608
      %632 = vmatprep.subr.bf16.mxu0 0
      %633 = vmatpush1.bf16.msra.mxu0 %v609
      %634 = vmatprep.subr.bf16.mxu0 0
      %635 = vmatpush1.bf16.msra.mxu0 0
      %636 = vmatprep.subr.bf16.mxu0 0
      %637 = vmatpush1.bf16.msra.mxu0 0
      %638 = vmatprep.subr.bf16.mxu0 0
      %639 = vmatpush1.bf16.msra.mxu0 0
      %640 = vmatprep.subr.bf16.mxu0 0
      %641 = vmatpush1.bf16.msra.mxu0 0
      %642 = vmatprep.subr.bf16.mxu0 0
      %643 = vmatpush1.bf16.msra.mxu0 0
      %644 = vmatprep.subr.bf16.mxu0 0
      %645 = vmatpush1.bf16.msra.mxu0 0
      %646 = vmatprep.subr.bf16.mxu0 0
      %647 = vmatpush1.bf16.msra.mxu0 0
      %648 = vmatprep.subr.bf16.mxu0 0
      %649 = vmatpush1.bf16.msra.mxu0 0
      %650 = vmatprep.mubr.bf16.mxu0 0
      %651 = vmatmul.mubr.bf16.gmra.mrb[0].mxu0 %v562
      %v652 = vpop.f32.mrb[0].mxu0
      %v653 = vadd.f32 %v516, %v652
      %v654 = vpop.f32.mrb[0].mxu0
      %v655 = vpop.f32.mrb[0].mxu0
      %v656 = vadd.f32 %v519, %v655
      %v657 = vpop.f32.mrb[0].mxu0
      %658 = vmatprep.mubr.bf16.mxu0 0
      %659 = vmatmul.mubr.bf16.gmra.mrb[0].mxu0 %v563
      %v660 = vpop.f32.mrb[0].mxu0
      %v661 = vadd.f32 %v524, %v660
      %v662 = vpop.f32.mrb[0].mxu0
      %v663 = vpop.f32.mrb[0].mxu0
      %v664 = vadd.f32 %v527, %v663
      %v665 = vpop.f32.mrb[0].mxu0
      %666 = vmatprep.mubr.bf16.mxu0 0
      %667 = vmatmul.mubr.bf16.gmra.mrb[0].mxu0 %v564
      %v668 = vpop.f32.mrb[0].mxu0
      %v669 = vadd.f32 %v532, %v668
      %v670 = vpop.f32.mrb[0].mxu0
      %v671 = vpop.f32.mrb[0].mxu0
      %v672 = vadd.f32 %v535, %v671
      %v673 = vpop.f32.mrb[0].mxu0
      %674 = vmatprep.mubr.bf16.mxu0 0
      %675 = vmatmul.mubr.bf16.gmra.mrb[0].mxu0 %v565
      %v676 = vpop.f32.mrb[0].mxu0
      %v677 = vadd.f32 %v540, %v676
      %v678 = vpop.f32.mrb[0].mxu0
      %v679 = vpop.f32.mrb[0].mxu0
      %v680 = vadd.f32 %v543, %v679
      %v681 = vpop.f32.mrb[0].mxu0
      %682 = vdwg.mxu0
      %v683 = vld [vmem:[%s165] sm:$0xe]
      %v684 = vsel %vm279, 1, 0
      %v685 = vsel %vm280, 1, 0
      %v686 = vsel %vm281, 1, 0
      %v687 = vsel %vm282, 1, 0
      %v688 = vsel %vm283, 1, 0
      %v689 = vsel %vm284, 1, 0
      %v690 = vsel %vm285, 1, 0
      %v691 = vsel %vm286, 1, 0
      %vm692 = vcmp.eq.s32.totalorder %v684, 1
      %vm693 = vcmp.eq.s32.totalorder %v685, 1
      %vm694 = vcmp.eq.s32.totalorder %v686, 1
      %vm695 = vcmp.eq.s32.totalorder %v687, 1
      %vm696 = vcmp.eq.s32.totalorder %v688, 1
      %vm697 = vcmp.eq.s32.totalorder %v689, 1
      %vm698 = vcmp.eq.s32.totalorder %v690, 1
      %vm699 = vcmp.eq.s32.totalorder %v691, 1
      %vm700 = vmpackc.low %vm692, %vm692
      %vm701 = vmpackc.low %vm693, %vm693
      %vm702 = vmpackc.low %vm694, %vm694
      %vm703 = vmpackc.low %vm695, %vm695
      %vm704 = vmpackc.low %vm696, %vm696
      %vm705 = vmpackc.low %vm697, %vm697
      %vm706 = vmpackc.low %vm698, %vm698
      %vm707 = vmpackc.low %vm699, %vm699
      %v708 = vsel %vm700, 65537, 0
      %v709 = vsel %vm701, 65537, 0
      %v710 = vsel %vm702, 65537, 0
      %v711 = vsel %vm703, 65537, 0
      %v712 = vsel %vm704, 65537, 0
      %v713 = vsel %vm705, 65537, 0
      %v714 = vsel %vm706, 65537, 0
      %v715 = vsel %vm707, 65537, 0
      %vm716 = vcmask 1040384
      %vm717 = vcmask 1044484
      %vm718 = vmor %vm716, %vm717
      %v719 = vrot.slane %v708, 7
      %v720 = vrot.slane %v719, 4
      %v721 = vrot.slane %v709, 7
      %v722 = vsel %vm718, %v720, %v721
      %v723 = vrot.slane %v721, 4
      %v724 = vrot.slane %v710, 7
      %v725 = vsel %vm718, %v723, %v724
      %v726 = vrot.slane %v724, 4
      %v727 = vrot.slane %v711, 7
      %v728 = vsel %vm718, %v726, %v727
      %v729 = vrot.slane %v727, 4
      %v730 = vrot.slane %v712, 7
      %v731 = vsel %vm718, %v729, %v730
      %v732 = vrot.slane %v730, 4
      %v733 = vrot.slane %v713, 7
      %v734 = vsel %vm718, %v732, %v733
      %v735 = vrot.slane %v733, 4
      %v736 = vrot.slane %v714, 7
      %v737 = vsel %vm718, %v735, %v736
      %v738 = vrot.slane %v736, 4
      %v739 = vrot.slane %v715, 7
      %v740 = vsel %vm718, %v738, %v739
      %v741 = vrot.slane %v739, 4
      %vm742 = vcmp.ne.s16.totalorder %v719, 0
      %vm743 = vcmp.ne.s16.totalorder %v722, 0
      %vm744 = vcmp.ne.s16.totalorder %v725, 0
      %vm745 = vcmp.ne.s16.totalorder %v728, 0
      %vm746 = vcmp.ne.s16.totalorder %v731, 0
      %vm747 = vcmp.ne.s16.totalorder %v734, 0
      %vm748 = vcmp.ne.s16.totalorder %v737, 0
      %vm749 = vcmp.ne.s16.totalorder %v740, 0
      %vm750 = vcmp.ne.s16.totalorder %v741, 0
      %v751 = vsel %vm742, %v683, 0
      %v752 = vsel %vm743, %v296, 0
      %v753 = vsel %vm744, %v297, 0
      %v754 = vsel %vm745, %v298, 0
      %v755 = vsel %vm746, %v299, 0
      %v756 = vsel %vm747, %v300, 0
      %v757 = vsel %vm748, %v301, 0
      %v758 = vsel %vm749, %v302, 0
      %v759 = vsel %vm750, %v351, 0
      %s760 = scalar_lea.vmem %s1, 128
      %v761 = vld [vmem:[%s760] sm:$0xf]
      %v762 = vld [vmem:[%s760 + $0x4] sm:$0xf]
      %v763 = vld [vmem:[%s760 + $0x8] sm:$0xf]
      %v764 = vld [vmem:[%s760 + $0xc] sm:$0xf]
      %v765 = vld [vmem:[%s760 + $0x10] sm:$0xf]
      %v766 = vld [vmem:[%s760 + $0x14] sm:$0xf]
      %v767 = vld [vmem:[%s760 + $0x18] sm:$0xf]
      %v768 = vld [vmem:[%s760 + $0x1c] sm:$0xf]
      %v769 = vld [vmem:[%s760 + $0x20] sm:$0xf]
      %v770 = vld [vmem:[%s760 + $0x24] sm:$0xf]
      %v771 = vld [vmem:[%s760 + $0x28] sm:$0xf]
      %v772 = vld [vmem:[%s760 + $0x2c] sm:$0xf]
      %v773 = vld [vmem:[%s760 + $0x30] sm:$0xf]
      %v774 = vld [vmem:[%s760 + $0x34] sm:$0xf]
      %v775 = vld [vmem:[%s760 + $0x38] sm:$0xf]
      %v776 = vld [vmem:[%s760 + $0x3c] sm:$0xf]
      %v786 = vunpack.c.l.b16 %v751
      %v787 = vunpack.c.l.b16 %v752
      %v788 = vunpack.c.l.b16 %v753
      %v789 = vunpack.c.l.b16 %v754
      %v790 = vunpack.c.l.b16 %v755
      %v791 = vunpack.c.l.b16 %v756
      %v792 = vunpack.c.l.b16 %v757
      %v793 = vunpack.c.l.b16 %v758
      %v794 = vunpack.c.l.b16 %v759
      %v795 = vpack.c.b16 %v787, %v786
      %v796 = vpack.c.b16 %v789, %v788
      %v797 = vpack.c.b16 %v791, %v790
      %v798 = vpack.c.b16 %v793, %v792
      %v799 = vpack.c.b16 %v794, %v794
      %vm800 = vcmask 1046528
      %v801 = vrot.slane %v795, 1
      %v802 = vrot.slane %v796, 1
      %v803 = vsel %vm800, %v801, %v802
      %v804 = vrot.slane %v797, 1
      %v805 = vsel %vm800, %v802, %v804
      %v806 = vrot.slane %v798, 1
      %v807 = vsel %vm800, %v804, %v806
      %v808 = vrot.slane %v799, 1
      %v809 = vsel %vm800, %v806, %v808
      %v830 = vunpack.c.l.b16 %v761
      %v831 = vunpack.c.l.b16 %v762
      %v832 = vunpack.c.l.b16 %v763
      %v833 = vunpack.c.l.b16 %v764
      %v834 = vunpack.c.l.b16 %v765
      %v835 = vunpack.c.l.b16 %v766
      %v836 = vunpack.c.l.b16 %v767
      %v837 = vunpack.c.l.b16 %v768
      %v838 = vunpack.c.l.b16 %v769
      %v839 = vunpack.c.l.b16 %v770
      %v840 = vunpack.c.l.b16 %v771
      %v841 = vunpack.c.l.b16 %v772
      %v842 = vunpack.c.l.b16 %v773
      %v843 = vunpack.c.l.b16 %v774
      %v844 = vunpack.c.l.b16 %v775
      %v845 = vunpack.c.l.b16 %v776
      %v846 = vpack.c.b16 %v831, %v830
      %v847 = vpack.c.b16 %v833, %v832
      %v848 = vpack.c.b16 %v835, %v834
      %v849 = vpack.c.b16 %v837, %v836
      %v850 = vpack.c.b16 %v839, %v838
      %v851 = vpack.c.b16 %v841, %v840
      %v852 = vpack.c.b16 %v843, %v842
      %v853 = vpack.c.b16 %v845, %v844
      %862 = vmatprep.subr.bf16.mxu0 0
      %863 = vmatpush1.bf16.msra.mxu0 %v846
      %864 = vmatprep.subr.bf16.mxu0 0
      %865 = vmatpush1.bf16.msra.mxu0 %v847
      %866 = vmatprep.subr.bf16.mxu0 0
      %867 = vmatpush1.bf16.msra.mxu0 %v848
      %868 = vmatprep.subr.bf16.mxu0 0
      %869 = vmatpush1.bf16.msra.mxu0 %v849
      %870 = vmatprep.subr.bf16.mxu0 0
      %871 = vmatpush1.bf16.msra.mxu0 %v850
      %872 = vmatprep.subr.bf16.mxu0 0
      %873 = vmatpush1.bf16.msra.mxu0 %v851
      %874 = vmatprep.subr.bf16.mxu0 0
      %875 = vmatpush1.bf16.msra.mxu0 %v852
      %876 = vmatprep.subr.bf16.mxu0 0
      %877 = vmatpush1.bf16.msra.mxu0 %v853
      %878 = vmatprep.subr.bf16.mxu0 0
      %879 = vmatpush1.bf16.msra.mxu0 0
      %880 = vmatprep.subr.bf16.mxu0 0
      %881 = vmatpush1.bf16.msra.mxu0 0
      %882 = vmatprep.subr.bf16.mxu0 0
      %883 = vmatpush1.bf16.msra.mxu0 0
      %884 = vmatprep.subr.bf16.mxu0 0
      %885 = vmatpush1.bf16.msra.mxu0 0
      %886 = vmatprep.subr.bf16.mxu0 0
      %887 = vmatpush1.bf16.msra.mxu0 0
      %888 = vmatprep.subr.bf16.mxu0 0
      %889 = vmatpush1.bf16.msra.mxu0 0
      %890 = vmatprep.subr.bf16.mxu0 0
      %891 = vmatpush1.bf16.msra.mxu0 0
      %892 = vmatprep.subr.bf16.mxu0 0
      %893 = vmatpush1.bf16.msra.mxu0 0
      %894 = vmatprep.mubr.bf16.mxu0 0
      %895 = vmatmul.mubr.bf16.gmra.mrb[0].mxu0 %v803
      %v896 = vpop.f32.mrb[0].mxu0
      %v897 = vadd.f32 0.0, %v896
      %v898 = vpop.f32.mrb[0].mxu0
      %v899 = vpop.f32.mrb[0].mxu0
      %v900 = vadd.f32 0.0, %v899
      %v901 = vpop.f32.mrb[0].mxu0
      %902 = vmatprep.mubr.bf16.mxu0 0
      %903 = vmatmul.mubr.bf16.gmra.mrb[0].mxu0 %v805
      %v904 = vpop.f32.mrb[0].mxu0
      %v905 = vadd.f32 0.0, %v904
      %v906 = vpop.f32.mrb[0].mxu0
      %v907 = vpop.f32.mrb[0].mxu0
      %v908 = vadd.f32 0.0, %v907
      %v909 = vpop.f32.mrb[0].mxu0
      %910 = vmatprep.mubr.bf16.mxu0 0
      %911 = vmatmul.mubr.bf16.gmra.mrb[0].mxu0 %v807
      %v912 = vpop.f32.mrb[0].mxu0
      %v913 = vadd.f32 0.0, %v912
      %v914 = vpop.f32.mrb[0].mxu0
      %v915 = vpop.f32.mrb[0].mxu0
      %v916 = vadd.f32 0.0, %v915
      %v917 = vpop.f32.mrb[0].mxu0
      %918 = vmatprep.mubr.bf16.mxu0 0
      %919 = vmatmul.mubr.bf16.gmra.mrb[0].mxu0 %v809
      %v920 = vpop.f32.mrb[0].mxu0
      %v921 = vadd.f32 0.0, %v920
      %v922 = vpop.f32.mrb[0].mxu0
      %v923 = vpop.f32.mrb[0].mxu0
      %v924 = vadd.f32 0.0, %v923
      %v925 = vpop.f32.mrb[0].mxu0
      %926 = vdwg.mxu0
      %v927 = vadd.f32 %v653, %v897
      %v928 = vadd.f32 %v656, %v900
      %v929 = vadd.f32 %v661, %v905
      %v930 = vadd.f32 %v664, %v908
      %v931 = vadd.f32 %v669, %v913
      %v932 = vadd.f32 %v672, %v916
      %v933 = vadd.f32 %v677, %v921
      %v934 = vadd.f32 %v680, %v924
      %v935 = vld [vmem:[%s165 + $0x20] sm:$0xf]
      %v936 = vsel %vm319, %v296, 0
      %v937 = vsel %vm320, %v297, 0
      %v938 = vsel %vm321, %v298, 0
      %v939 = vsel %vm322, %v299, 0
      %v940 = vsel %vm323, %v300, 0
      %v941 = vsel %vm324, %v301, 0
      %v942 = vsel %vm325, %v302, 0
      %v943 = vsel %vm326, %v935, 0
      %s944 = scalar_lea.vmem %s1, 192
      %v945 = vld [vmem:[%s944] sm:$0xf]
      %v946 = vld [vmem:[%s944 + $0x4] sm:$0xf]
      %v947 = vld [vmem:[%s944 + $0x8] sm:$0xf]
      %v948 = vld [vmem:[%s944 + $0xc] sm:$0xf]
      %v949 = vld [vmem:[%s944 + $0x10] sm:$0xf]
      %v950 = vld [vmem:[%s944 + $0x14] sm:$0xf]
      %v951 = vld [vmem:[%s944 + $0x18] sm:$0xf]
      %v952 = vld [vmem:[%s944 + $0x1c] sm:$0xf]
      %v953 = vld [vmem:[%s944 + $0x20] sm:$0xf]
      %v954 = vld [vmem:[%s944 + $0x24] sm:$0xf]
      %v955 = vld [vmem:[%s944 + $0x28] sm:$0xf]
      %v956 = vld [vmem:[%s944 + $0x2c] sm:$0xf]
      %v957 = vld [vmem:[%s944 + $0x30] sm:$0xf]
      %v958 = vld [vmem:[%s944 + $0x34] sm:$0xf]
      %v959 = vld [vmem:[%s944 + $0x38] sm:$0xf]
      %v960 = vld [vmem:[%s944 + $0x3c] sm:$0xf]
      %v969 = vunpack.c.l.b16 %v936
      %v970 = vunpack.c.l.b16 %v937
      %v971 = vunpack.c.l.b16 %v938
      %v972 = vunpack.c.l.b16 %v939
      %v973 = vunpack.c.l.b16 %v940
      %v974 = vunpack.c.l.b16 %v941
      %v975 = vunpack.c.l.b16 %v942
      %v976 = vunpack.c.l.b16 %v943
      %v977 = vpack.c.b16 %v970, %v969
      %v978 = vpack.c.b16 %v972, %v971
      %v979 = vpack.c.b16 %v974, %v973
      %v980 = vpack.c.b16 %v976, %v975
      %v1001 = vunpack.c.l.b16 %v945
      %v1002 = vunpack.c.l.b16 %v946
      %v1003 = vunpack.c.l.b16 %v947
      %v1004 = vunpack.c.l.b16 %v948
      %v1005 = vunpack.c.l.b16 %v949
      %v1006 = vunpack.c.l.b16 %v950
      %v1007 = vunpack.c.l.b16 %v951
      %v1008 = vunpack.c.l.b16 %v952
      %v1009 = vunpack.c.l.b16 %v953
      %v1010 = vunpack.c.l.b16 %v954
      %v1011 = vunpack.c.l.b16 %v955
      %v1012 = vunpack.c.l.b16 %v956
      %v1013 = vunpack.c.l.b16 %v957
      %v1014 = vunpack.c.l.b16 %v958
      %v1015 = vunpack.c.l.b16 %v959
      %v1016 = vunpack.c.l.b16 %v960
      %v1017 = vpack.c.b16 %v1002, %v1001
      %v1018 = vpack.c.b16 %v1004, %v1003
      %v1019 = vpack.c.b16 %v1006, %v1005
      %v1020 = vpack.c.b16 %v1008, %v1007
      %v1021 = vpack.c.b16 %v1010, %v1009
      %v1022 = vpack.c.b16 %v1012, %v1011
      %v1023 = vpack.c.b16 %v1014, %v1013
      %v1024 = vpack.c.b16 %v1016, %v1015
      %1033 = vmatprep.subr.bf16.mxu0 0
      %1034 = vmatpush1.bf16.msra.mxu0 %v1017
      %1035 = vmatprep.subr.bf16.mxu0 0
      %1036 = vmatpush1.bf16.msra.mxu0 %v1018
      %1037 = vmatprep.subr.bf16.mxu0 0
      %1038 = vmatpush1.bf16.msra.mxu0 %v1019
      %1039 = vmatprep.subr.bf16.mxu0 0
      %1040 = vmatpush1.bf16.msra.mxu0 %v1020
      %1041 = vmatprep.subr.bf16.mxu0 0
      %1042 = vmatpush1.bf16.msra.mxu0 %v1021
      %1043 = vmatprep.subr.bf16.mxu0 0
      %1044 = vmatpush1.bf16.msra.mxu0 %v1022
      %1045 = vmatprep.subr.bf16.mxu0 0
      %1046 = vmatpush1.bf16.msra.mxu0 %v1023
      %1047 = vmatprep.subr.bf16.mxu0 0
      %1048 = vmatpush1.bf16.msra.mxu0 %v1024
      %1049 = vmatprep.subr.bf16.mxu0 0
      %1050 = vmatpush1.bf16.msra.mxu0 0
      %1051 = vmatprep.subr.bf16.mxu0 0
      %1052 = vmatpush1.bf16.msra.mxu0 0
      %1053 = vmatprep.subr.bf16.mxu0 0
      %1054 = vmatpush1.bf16.msra.mxu0 0
      %1055 = vmatprep.subr.bf16.mxu0 0
      %1056 = vmatpush1.bf16.msra.mxu0 0
      %1057 = vmatprep.subr.bf16.mxu0 0
      %1058 = vmatpush1.bf16.msra.mxu0 0
      %1059 = vmatprep.subr.bf16.mxu0 0
      %1060 = vmatpush1.bf16.msra.mxu0 0
      %1061 = vmatprep.subr.bf16.mxu0 0
      %1062 = vmatpush1.bf16.msra.mxu0 0
      %1063 = vmatprep.subr.bf16.mxu0 0
      %1064 = vmatpush1.bf16.msra.mxu0 0
      %1065 = vmatprep.mubr.bf16.mxu0 0
      %1066 = vmatmul.mubr.bf16.gmra.mrb[0].mxu0 %v977
      %v1067 = vpop.f32.mrb[0].mxu0
      %v1068 = vadd.f32 0.0, %v1067
      %v1069 = vpop.f32.mrb[0].mxu0
      %v1070 = vpop.f32.mrb[0].mxu0
      %v1071 = vadd.f32 0.0, %v1070
      %v1072 = vpop.f32.mrb[0].mxu0
      %1073 = vmatprep.mubr.bf16.mxu0 0
      %1074 = vmatmul.mubr.bf16.gmra.mrb[0].mxu0 %v978
      %v1075 = vpop.f32.mrb[0].mxu0
      %v1076 = vadd.f32 0.0, %v1075
      %v1077 = vpop.f32.mrb[0].mxu0
      %v1078 = vpop.f32.mrb[0].mxu0
      %v1079 = vadd.f32 0.0, %v1078
      %v1080 = vpop.f32.mrb[0].mxu0
      %1081 = vmatprep.mubr.bf16.mxu0 0
      %1082 = vmatmul.mubr.bf16.gmra.mrb[0].mxu0 %v979
      %v1083 = vpop.f32.mrb[0].mxu0
      %v1084 = vadd.f32 0.0, %v1083
      %v1085 = vpop.f32.mrb[0].mxu0
      %v1086 = vpop.f32.mrb[0].mxu0
      %v1087 = vadd.f32 0.0, %v1086
      %v1088 = vpop.f32.mrb[0].mxu0
      %1089 = vmatprep.mubr.bf16.mxu0 0
      %1090 = vmatmul.mubr.bf16.gmra.mrb[0].mxu0 %v980
      %v1091 = vpop.f32.mrb[0].mxu0
      %v1092 = vadd.f32 0.0, %v1091
      %v1093 = vpop.f32.mrb[0].mxu0
      %v1094 = vpop.f32.mrb[0].mxu0
      %v1095 = vadd.f32 0.0, %v1094
      %v1096 = vpop.f32.mrb[0].mxu0
      %1097 = vdwg.mxu0
      %v1098 = vadd.f32 %v927, %v1068
      %v1099 = vadd.f32 %v928, %v1071
      %v1100 = vadd.f32 %v929, %v1076
      %v1101 = vadd.f32 %v930, %v1079
      %v1102 = vadd.f32 %v931, %v1084
      %v1103 = vadd.f32 %v932, %v1087
      %v1104 = vadd.f32 %v933, %v1092
      %v1105 = vadd.f32 %v934, %v1095
      %v1106 = vld [vmem:[%s165 + $0x4] sm:$0xf]
      %v1107 = vld [vmem:[%s165 + $0x8] sm:$0xf]
      %v1108 = vld [vmem:[%s165 + $0xc] sm:$0xf]
      %v1109 = vld [vmem:[%s165 + $0x10] sm:$0xf]
      %v1110 = vld [vmem:[%s165 + $0x14] sm:$0xf]
      %v1111 = vld [vmem:[%s165 + $0x18] sm:$0xf]
      %v1112 = vld [vmem:[%s165 + $0x1c] sm:$0xf]
      %v1113 = vld [vmem:[%s165 + $0x20] sm:$0xf]
      %v1114 = vld [vmem:[%s165 + $0x24] sm:$0x1]
      %s1115 = scalar_lea.vmem %s1, 256
      %v1116 = vld [vmem:[%s1115] sm:$0xf]
      %v1117 = vld [vmem:[%s1115 + $0x4] sm:$0xf]
      %v1118 = vld [vmem:[%s1115 + $0x8] sm:$0xf]
      %v1119 = vld [vmem:[%s1115 + $0xc] sm:$0xf]
      %v1120 = vld [vmem:[%s1115 + $0x10] sm:$0xf]
      %v1121 = vld [vmem:[%s1115 + $0x14] sm:$0xf]
      %v1122 = vld [vmem:[%s1115 + $0x18] sm:$0xf]
      %v1123 = vld [vmem:[%s1115 + $0x1c] sm:$0xf]
      %v1124 = vld [vmem:[%s1115 + $0x20] sm:$0xf]
      %v1125 = vld [vmem:[%s1115 + $0x24] sm:$0xf]
      %v1126 = vld [vmem:[%s1115 + $0x28] sm:$0xf]
      %v1127 = vld [vmem:[%s1115 + $0x2c] sm:$0xf]
      %v1128 = vld [vmem:[%s1115 + $0x30] sm:$0xf]
      %v1129 = vld [vmem:[%s1115 + $0x34] sm:$0xf]
      %v1130 = vld [vmem:[%s1115 + $0x38] sm:$0xf]
      %v1131 = vld [vmem:[%s1115 + $0x3c] sm:$0xf]
      %v1141 = vunpack.c.l.b16 %v1106
      %v1142 = vunpack.c.l.b16 %v1107
      %v1143 = vunpack.c.l.b16 %v1108
      %v1144 = vunpack.c.l.b16 %v1109
      %v1145 = vunpack.c.l.b16 %v1110
      %v1146 = vunpack.c.l.b16 %v1111
      %v1147 = vunpack.c.l.b16 %v1112
      %v1148 = vunpack.c.l.b16 %v1113
      %v1149 = vunpack.c.l.b16 %v1114
      %v1150 = vpack.c.b16 %v1142, %v1141
      %v1151 = vpack.c.b16 %v1144, %v1143
      %v1152 = vpack.c.b16 %v1146, %v1145
      %v1153 = vpack.c.b16 %v1148, %v1147
      %v1154 = vpack.c.b16 %v1149, %v1149
      %v1156 = vshrl.u32 %v1150, 16
      %v1158 = vshll.u32 %v1150, 16
      %v1160 = vrot.slane %v1158, 1
      %v1161 = vor.u32 %v1156, %v1160
      %v1163 = vshll.u32 %v1151, 16
      %v1165 = vrot.slane %v1163, 1
      %v1166 = vsel %vm392, %v1161, %v1165
      %v1167 = vshrl.u32 %v1151, 16
      %v1169 = vor.u32 %v1167, %v1165
      %v1171 = vshll.u32 %v1152, 16
      %v1173 = vrot.slane %v1171, 1
      %v1174 = vsel %vm392, %v1169, %v1173
      %v1175 = vshrl.u32 %v1152, 16
      %v1177 = vor.u32 %v1175, %v1173
      %v1179 = vshll.u32 %v1153, 16
      %v1181 = vrot.slane %v1179, 1
      %v1182 = vsel %vm392, %v1177, %v1181
      %v1183 = vshrl.u32 %v1153, 16
      %v1185 = vor.u32 %v1183, %v1181
      %v1187 = vshll.u32 %v1154, 16
      %v1189 = vrot.slane %v1187, 1
      %v1190 = vsel %vm392, %v1185, %v1189
      %v1211 = vunpack.c.l.b16 %v1116
      %v1212 = vunpack.c.l.b16 %v1117
      %v1213 = vunpack.c.l.b16 %v1118
      %v1214 = vunpack.c.l.b16 %v1119
      %v1215 = vunpack.c.l.b16 %v1120
      %v1216 = vunpack.c.l.b16 %v1121
      %v1217 = vunpack.c.l.b16 %v1122
      %v1218 = vunpack.c.l.b16 %v1123
      %v1219 = vunpack.c.l.b16 %v1124
      %v1220 = vunpack.c.l.b16 %v1125
      %v1221 = vunpack.c.l.b16 %v1126
      %v1222 = vunpack.c.l.b16 %v1127
      %v1223 = vunpack.c.l.b16 %v1128
      %v1224 = vunpack.c.l.b16 %v1129
      %v1225 = vunpack.c.l.b16 %v1130
      %v1226 = vunpack.c.l.b16 %v1131
      %v1227 = vpack.c.b16 %v1212, %v1211
      %v1228 = vpack.c.b16 %v1214, %v1213
      %v1229 = vpack.c.b16 %v1216, %v1215
      %v1230 = vpack.c.b16 %v1218, %v1217
      %v1231 = vpack.c.b16 %v1220, %v1219
      %v1232 = vpack.c.b16 %v1222, %v1221
      %v1233 = vpack.c.b16 %v1224, %v1223
      %v1234 = vpack.c.b16 %v1226, %v1225
      %1243 = vmatprep.subr.bf16.mxu0 0
      %1244 = vmatpush1.bf16.msra.mxu0 %v1227
      %1245 = vmatprep.subr.bf16.mxu0 0
      %1246 = vmatpush1.bf16.msra.mxu0 %v1228
      %1247 = vmatprep.subr.bf16.mxu0 0
      %1248 = vmatpush1.bf16.msra.mxu0 %v1229
      %1249 = vmatprep.subr.bf16.mxu0 0
      %1250 = vmatpush1.bf16.msra.mxu0 %v1230
      %1251 = vmatprep.subr.bf16.mxu0 0
      %1252 = vmatpush1.bf16.msra.mxu0 %v1231
      %1253 = vmatprep.subr.bf16.mxu0 0
      %1254 = vmatpush1.bf16.msra.mxu0 %v1232
      %1255 = vmatprep.subr.bf16.mxu0 0
      %1256 = vmatpush1.bf16.msra.mxu0 %v1233
      %1257 = vmatprep.subr.bf16.mxu0 0
      %1258 = vmatpush1.bf16.msra.mxu0 %v1234
      %1259 = vmatprep.subr.bf16.mxu0 0
      %1260 = vmatpush1.bf16.msra.mxu0 0
      %1261 = vmatprep.subr.bf16.mxu0 0
      %1262 = vmatpush1.bf16.msra.mxu0 0
      %1263 = vmatprep.subr.bf16.mxu0 0
      %1264 = vmatpush1.bf16.msra.mxu0 0
      %1265 = vmatprep.subr.bf16.mxu0 0
      %1266 = vmatpush1.bf16.msra.mxu0 0
      %1267 = vmatprep.subr.bf16.mxu0 0
      %1268 = vmatpush1.bf16.msra.mxu0 0
      %1269 = vmatprep.subr.bf16.mxu0 0
      %1270 = vmatpush1.bf16.msra.mxu0 0
      %1271 = vmatprep.subr.bf16.mxu0 0
      %1272 = vmatpush1.bf16.msra.mxu0 0
      %1273 = vmatprep.subr.bf16.mxu0 0
      %1274 = vmatpush1.bf16.msra.mxu0 0
      %1275 = vmatprep.mubr.bf16.mxu0 0
      %1276 = vmatmul.mubr.bf16.gmra.mrb[0].mxu0 %v1166
      %v1277 = vpop.f32.mrb[0].mxu0
      %v1278 = vadd.f32 0.0, %v1277
      %v1279 = vpop.f32.mrb[0].mxu0
      %v1280 = vpop.f32.mrb[0].mxu0
      %v1281 = vadd.f32 0.0, %v1280
      %v1282 = vpop.f32.mrb[0].mxu0
      %1283 = vmatprep.mubr.bf16.mxu0 0
      %1284 = vmatmul.mubr.bf16.gmra.mrb[0].mxu0 %v1174
      %v1285 = vpop.f32.mrb[0].mxu0
      %v1286 = vadd.f32 0.0, %v1285
      %v1287 = vpop.f32.mrb[0].mxu0
      %v1288 = vpop.f32.mrb[0].mxu0
      %v1289 = vadd.f32 0.0, %v1288
      %v1290 = vpop.f32.mrb[0].mxu0
      %1291 = vmatprep.mubr.bf16.mxu0 0
      %1292 = vmatmul.mubr.bf16.gmra.mrb[0].mxu0 %v1182
      %v1293 = vpop.f32.mrb[0].mxu0
      %v1294 = vadd.f32 0.0, %v1293
      %v1295 = vpop.f32.mrb[0].mxu0
      %v1296 = vpop.f32.mrb[0].mxu0
      %v1297 = vadd.f32 0.0, %v1296
      %v1298 = vpop.f32.mrb[0].mxu0
      %1299 = vmatprep.mubr.bf16.mxu0 0
      %1300 = vmatmul.mubr.bf16.gmra.mrb[0].mxu0 %v1190
      %v1301 = vpop.f32.mrb[0].mxu0
      %v1302 = vadd.f32 0.0, %v1301
      %v1303 = vpop.f32.mrb[0].mxu0
      %v1304 = vpop.f32.mrb[0].mxu0
      %v1305 = vadd.f32 0.0, %v1304
      %v1306 = vpop.f32.mrb[0].mxu0
      %1307 = vdwg.mxu0
      %v1308 = vadd.f32 %v1098, %v1278
      %v1309 = vadd.f32 %v1099, %v1281
      %v1310 = vadd.f32 %v1100, %v1286
      %v1311 = vadd.f32 %v1101, %v1289
      %v1312 = vadd.f32 %v1102, %v1294
      %v1313 = vadd.f32 %v1103, %v1297
      %v1314 = vadd.f32 %v1104, %v1302
      %v1315 = vadd.f32 %v1105, %v1305
      %v1316 = vld [vmem:[%s165 + $0x4] sm:$0xe]
      %v1317 = vsel %vm742, %v1316, 0
      %v1318 = vsel %vm743, %v1107, 0
      %v1319 = vsel %vm744, %v1108, 0
      %v1320 = vsel %vm745, %v1109, 0
      %v1321 = vsel %vm746, %v1110, 0
      %v1322 = vsel %vm747, %v1111, 0
      %v1323 = vsel %vm748, %v1112, 0
      %v1324 = vsel %vm749, %v1113, 0
      %v1325 = vsel %vm750, %v1114, 0
      %s1326 = scalar_lea.vmem %s1, 320
      %v1327 = vld [vmem:[%s1326] sm:$0xf]
      %v1328 = vld [vmem:[%s1326 + $0x4] sm:$0xf]
      %v1329 = vld [vmem:[%s1326 + $0x8] sm:$0xf]
      %v1330 = vld [vmem:[%s1326 + $0xc] sm:$0xf]
      %v1331 = vld [vmem:[%s1326 + $0x10] sm:$0xf]
      %v1332 = vld [vmem:[%s1326 + $0x14] sm:$0xf]
      %v1333 = vld [vmem:[%s1326 + $0x18] sm:$0xf]
      %v1334 = vld [vmem:[%s1326 + $0x1c] sm:$0xf]
      %v1335 = vld [vmem:[%s1326 + $0x20] sm:$0xf]
      %v1336 = vld [vmem:[%s1326 + $0x24] sm:$0xf]
      %v1337 = vld [vmem:[%s1326 + $0x28] sm:$0xf]
      %v1338 = vld [vmem:[%s1326 + $0x2c] sm:$0xf]
      %v1339 = vld [vmem:[%s1326 + $0x30] sm:$0xf]
      %v1340 = vld [vmem:[%s1326 + $0x34] sm:$0xf]
      %v1341 = vld [vmem:[%s1326 + $0x38] sm:$0xf]
      %v1342 = vld [vmem:[%s1326 + $0x3c] sm:$0xf]
      %v1352 = vunpack.c.l.b16 %v1317
      %v1353 = vunpack.c.l.b16 %v1318
      %v1354 = vunpack.c.l.b16 %v1319
      %v1355 = vunpack.c.l.b16 %v1320
      %v1356 = vunpack.c.l.b16 %v1321
      %v1357 = vunpack.c.l.b16 %v1322
      %v1358 = vunpack.c.l.b16 %v1323
      %v1359 = vunpack.c.l.b16 %v1324
      %v1360 = vunpack.c.l.b16 %v1325
      %v1361 = vpack.c.b16 %v1353, %v1352
      %v1362 = vpack.c.b16 %v1355, %v1354
      %v1363 = vpack.c.b16 %v1357, %v1356
      %v1364 = vpack.c.b16 %v1359, %v1358
      %v1365 = vpack.c.b16 %v1360, %v1360
      %v1366 = vrot.slane %v1361, 1
      %v1367 = vrot.slane %v1362, 1
      %v1368 = vsel %vm800, %v1366, %v1367
      %v1369 = vrot.slane %v1363, 1
      %v1370 = vsel %vm800, %v1367, %v1369
      %v1371 = vrot.slane %v1364, 1
      %v1372 = vsel %vm800, %v1369, %v1371
      %v1373 = vrot.slane %v1365, 1
      %v1374 = vsel %vm800, %v1371, %v1373
      %v1395 = vunpack.c.l.b16 %v1327
      %v1396 = vunpack.c.l.b16 %v1328
      %v1397 = vunpack.c.l.b16 %v1329
      %v1398 = vunpack.c.l.b16 %v1330
      %v1399 = vunpack.c.l.b16 %v1331
      %v1400 = vunpack.c.l.b16 %v1332
      %v1401 = vunpack.c.l.b16 %v1333
      %v1402 = vunpack.c.l.b16 %v1334
      %v1403 = vunpack.c.l.b16 %v1335
      %v1404 = vunpack.c.l.b16 %v1336
      %v1405 = vunpack.c.l.b16 %v1337
      %v1406 = vunpack.c.l.b16 %v1338
      %v1407 = vunpack.c.l.b16 %v1339
      %v1408 = vunpack.c.l.b16 %v1340
      %v1409 = vunpack.c.l.b16 %v1341
      %v1410 = vunpack.c.l.b16 %v1342
      %v1411 = vpack.c.b16 %v1396, %v1395
      %v1412 = vpack.c.b16 %v1398, %v1397
      %v1413 = vpack.c.b16 %v1400, %v1399
      %v1414 = vpack.c.b16 %v1402, %v1401
      %v1415 = vpack.c.b16 %v1404, %v1403
      %v1416 = vpack.c.b16 %v1406, %v1405
      %v1417 = vpack.c.b16 %v1408, %v1407
      %v1418 = vpack.c.b16 %v1410, %v1409
      %1427 = vmatprep.subr.bf16.mxu0 0
      %1428 = vmatpush1.bf16.msra.mxu0 %v1411
      %1429 = vmatprep.subr.bf16.mxu0 0
      %1430 = vmatpush1.bf16.msra.mxu0 %v1412
      %1431 = vmatprep.subr.bf16.mxu0 0
      %1432 = vmatpush1.bf16.msra.mxu0 %v1413
      %1433 = vmatprep.subr.bf16.mxu0 0
      %1434 = vmatpush1.bf16.msra.mxu0 %v1414
      %1435 = vmatprep.subr.bf16.mxu0 0
      %1436 = vmatpush1.bf16.msra.mxu0 %v1415
      %1437 = vmatprep.subr.bf16.mxu0 0
      %1438 = vmatpush1.bf16.msra.mxu0 %v1416
      %1439 = vmatprep.subr.bf16.mxu0 0
      %1440 = vmatpush1.bf16.msra.mxu0 %v1417
      %1441 = vmatprep.subr.bf16.mxu0 0
      %1442 = vmatpush1.bf16.msra.mxu0 %v1418
      %1443 = vmatprep.subr.bf16.mxu0 0
      %1444 = vmatpush1.bf16.msra.mxu0 0
      %1445 = vmatprep.subr.bf16.mxu0 0
      %1446 = vmatpush1.bf16.msra.mxu0 0
      %1447 = vmatprep.subr.bf16.mxu0 0
      %1448 = vmatpush1.bf16.msra.mxu0 0
      %1449 = vmatprep.subr.bf16.mxu0 0
      %1450 = vmatpush1.bf16.msra.mxu0 0
      %1451 = vmatprep.subr.bf16.mxu0 0
      %1452 = vmatpush1.bf16.msra.mxu0 0
      %1453 = vmatprep.subr.bf16.mxu0 0
      %1454 = vmatpush1.bf16.msra.mxu0 0
      %1455 = vmatprep.subr.bf16.mxu0 0
      %1456 = vmatpush1.bf16.msra.mxu0 0
      %1457 = vmatprep.subr.bf16.mxu0 0
      %1458 = vmatpush1.bf16.msra.mxu0 0
      %1459 = vmatprep.mubr.bf16.mxu0 0
      %1460 = vmatmul.mubr.bf16.gmra.mrb[0].mxu0 %v1368
      %v1461 = vpop.f32.mrb[0].mxu0
      %v1462 = vadd.f32 0.0, %v1461
      %v1463 = vpop.f32.mrb[0].mxu0
      %v1464 = vpop.f32.mrb[0].mxu0
      %v1465 = vadd.f32 0.0, %v1464
      %v1466 = vpop.f32.mrb[0].mxu0
      %1467 = vmatprep.mubr.bf16.mxu0 0
      %1468 = vmatmul.mubr.bf16.gmra.mrb[0].mxu0 %v1370
      %v1469 = vpop.f32.mrb[0].mxu0
      %v1470 = vadd.f32 0.0, %v1469
      %v1471 = vpop.f32.mrb[0].mxu0
      %v1472 = vpop.f32.mrb[0].mxu0
      %v1473 = vadd.f32 0.0, %v1472
      %v1474 = vpop.f32.mrb[0].mxu0
      %1475 = vmatprep.mubr.bf16.mxu0 0
      %1476 = vmatmul.mubr.bf16.gmra.mrb[0].mxu0 %v1372
      %v1477 = vpop.f32.mrb[0].mxu0
      %v1478 = vadd.f32 0.0, %v1477
      %v1479 = vpop.f32.mrb[0].mxu0
      %v1480 = vpop.f32.mrb[0].mxu0
      %v1481 = vadd.f32 0.0, %v1480
      %v1482 = vpop.f32.mrb[0].mxu0
      %1483 = vmatprep.mubr.bf16.mxu0 0
      %1484 = vmatmul.mubr.bf16.gmra.mrb[0].mxu0 %v1374
      %v1485 = vpop.f32.mrb[0].mxu0
      %v1486 = vadd.f32 0.0, %v1485
      %v1487 = vpop.f32.mrb[0].mxu0
      %v1488 = vpop.f32.mrb[0].mxu0
      %v1489 = vadd.f32 0.0, %v1488
      %v1490 = vpop.f32.mrb[0].mxu0
      %1491 = vdwg.mxu0
      %v1492 = vadd.f32 %v1308, %v1462
      %v1493 = vadd.f32 %v1309, %v1465
      %v1494 = vadd.f32 %v1310, %v1470
      %v1495 = vadd.f32 %v1311, %v1473
      %v1496 = vadd.f32 %v1312, %v1478
      %v1497 = vadd.f32 %v1313, %v1481
      %v1498 = vadd.f32 %v1314, %v1486
      %v1499 = vadd.f32 %v1315, %v1489
      %v1500 = vld [vmem:[%s165 + $0x24] sm:$0xf]
      %v1501 = vsel %vm319, %v1107, 0
      %v1502 = vsel %vm320, %v1108, 0
      %v1503 = vsel %vm321, %v1109, 0
      %v1504 = vsel %vm322, %v1110, 0
      %v1505 = vsel %vm323, %v1111, 0
      %v1506 = vsel %vm324, %v1112, 0
      %v1507 = vsel %vm325, %v1113, 0
      %v1508 = vsel %vm326, %v1500, 0
      %s1509 = scalar_lea.vmem %s1, 384
      %v1510 = vld [vmem:[%s1509] sm:$0xf]
      %v1511 = vld [vmem:[%s1509 + $0x4] sm:$0xf]
      %v1512 = vld [vmem:[%s1509 + $0x8] sm:$0xf]
      %v1513 = vld [vmem:[%s1509 + $0xc] sm:$0xf]
      %v1514 = vld [vmem:[%s1509 + $0x10] sm:$0xf]
      %v1515 = vld [vmem:[%s1509 + $0x14] sm:$0xf]
      %v1516 = vld [vmem:[%s1509 + $0x18] sm:$0xf]
      %v1517 = vld [vmem:[%s1509 + $0x1c] sm:$0xf]
      %v1518 = vld [vmem:[%s1509 + $0x20] sm:$0xf]
      %v1519 = vld [vmem:[%s1509 + $0x24] sm:$0xf]
      %v1520 = vld [vmem:[%s1509 + $0x28] sm:$0xf]
      %v1521 = vld [vmem:[%s1509 + $0x2c] sm:$0xf]
      %v1522 = vld [vmem:[%s1509 + $0x30] sm:$0xf]
      %v1523 = vld [vmem:[%s1509 + $0x34] sm:$0xf]
      %v1524 = vld [vmem:[%s1509 + $0x38] sm:$0xf]
      %v1525 = vld [vmem:[%s1509 + $0x3c] sm:$0xf]
      %v1534 = vunpack.c.l.b16 %v1501
      %v1535 = vunpack.c.l.b16 %v1502
      %v1536 = vunpack.c.l.b16 %v1503
      %v1537 = vunpack.c.l.b16 %v1504
      %v1538 = vunpack.c.l.b16 %v1505
      %v1539 = vunpack.c.l.b16 %v1506
      %v1540 = vunpack.c.l.b16 %v1507
      %v1541 = vunpack.c.l.b16 %v1508
      %v1542 = vpack.c.b16 %v1535, %v1534
      %v1543 = vpack.c.b16 %v1537, %v1536
      %v1544 = vpack.c.b16 %v1539, %v1538
      %v1545 = vpack.c.b16 %v1541, %v1540
      %v1566 = vunpack.c.l.b16 %v1510
      %v1567 = vunpack.c.l.b16 %v1511
      %v1568 = vunpack.c.l.b16 %v1512
      %v1569 = vunpack.c.l.b16 %v1513
      %v1570 = vunpack.c.l.b16 %v1514
      %v1571 = vunpack.c.l.b16 %v1515
      %v1572 = vunpack.c.l.b16 %v1516
      %v1573 = vunpack.c.l.b16 %v1517
      %v1574 = vunpack.c.l.b16 %v1518
      %v1575 = vunpack.c.l.b16 %v1519
      %v1576 = vunpack.c.l.b16 %v1520
      %v1577 = vunpack.c.l.b16 %v1521
      %v1578 = vunpack.c.l.b16 %v1522
      %v1579 = vunpack.c.l.b16 %v1523
      %v1580 = vunpack.c.l.b16 %v1524
      %v1581 = vunpack.c.l.b16 %v1525
      %v1582 = vpack.c.b16 %v1567, %v1566
      %v1583 = vpack.c.b16 %v1569, %v1568
      %v1584 = vpack.c.b16 %v1571, %v1570
      %v1585 = vpack.c.b16 %v1573, %v1572
      %v1586 = vpack.c.b16 %v1575, %v1574
      %v1587 = vpack.c.b16 %v1577, %v1576
      %v1588 = vpack.c.b16 %v1579, %v1578
      %v1589 = vpack.c.b16 %v1581, %v1580
      %1598 = vmatprep.subr.bf16.mxu0 0
      %1599 = vmatpush1.bf16.msra.mxu0 %v1582
      %1600 = vmatprep.subr.bf16.mxu0 0
      %1601 = vmatpush1.bf16.msra.mxu0 %v1583
      %1602 = vmatprep.subr.bf16.mxu0 0
      %1603 = vmatpush1.bf16.msra.mxu0 %v1584
      %1604 = vmatprep.subr.bf16.mxu0 0
      %1605 = vmatpush1.bf16.msra.mxu0 %v1585
      %1606 = vmatprep.subr.bf16.mxu0 0
      %1607 = vmatpush1.bf16.msra.mxu0 %v1586
      %1608 = vmatprep.subr.bf16.mxu0 0
      %1609 = vmatpush1.bf16.msra.mxu0 %v1587
      %1610 = vmatprep.subr.bf16.mxu0 0
      %1611 = vmatpush1.bf16.msra.mxu0 %v1588
      %1612 = vmatprep.subr.bf16.mxu0 0
      %1613 = vmatpush1.bf16.msra.mxu0 %v1589
      %1614 = vmatprep.subr.bf16.mxu0 0
      %1615 = vmatpush1.bf16.msra.mxu0 0
      %1616 = vmatprep.subr.bf16.mxu0 0
      %1617 = vmatpush1.bf16.msra.mxu0 0
      %1618 = vmatprep.subr.bf16.mxu0 0
      %1619 = vmatpush1.bf16.msra.mxu0 0
      %1620 = vmatprep.subr.bf16.mxu0 0
      %1621 = vmatpush1.bf16.msra.mxu0 0
      %1622 = vmatprep.subr.bf16.mxu0 0
      %1623 = vmatpush1.bf16.msra.mxu0 0
      %1624 = vmatprep.subr.bf16.mxu0 0
      %1625 = vmatpush1.bf16.msra.mxu0 0
      %1626 = vmatprep.subr.bf16.mxu0 0
      %1627 = vmatpush1.bf16.msra.mxu0 0
      %1628 = vmatprep.subr.bf16.mxu0 0
      %1629 = vmatpush1.bf16.msra.mxu0 0
      %1630 = vmatprep.mubr.bf16.mxu0 0
      %1631 = vmatmul.mubr.bf16.gmra.mrb[0].mxu0 %v1542
      %v1632 = vpop.f32.mrb[0].mxu0
      %v1633 = vadd.f32 0.0, %v1632
      %v1634 = vpop.f32.mrb[0].mxu0
      %v1635 = vpop.f32.mrb[0].mxu0
      %v1636 = vadd.f32 0.0, %v1635
      %v1637 = vpop.f32.mrb[0].mxu0
      %1638 = vmatprep.mubr.bf16.mxu0 0
      %1639 = vmatmul.mubr.bf16.gmra.mrb[0].mxu0 %v1543
      %v1640 = vpop.f32.mrb[0].mxu0
      %v1641 = vadd.f32 0.0, %v1640
      %v1642 = vpop.f32.mrb[0].mxu0
      %v1643 = vpop.f32.mrb[0].mxu0
      %v1644 = vadd.f32 0.0, %v1643
      %v1645 = vpop.f32.mrb[0].mxu0
      %1646 = vmatprep.mubr.bf16.mxu0 0
      %1647 = vmatmul.mubr.bf16.gmra.mrb[0].mxu0 %v1544
      %v1648 = vpop.f32.mrb[0].mxu0
      %v1649 = vadd.f32 0.0, %v1648
      %v1650 = vpop.f32.mrb[0].mxu0
      %v1651 = vpop.f32.mrb[0].mxu0
      %v1652 = vadd.f32 0.0, %v1651
      %v1653 = vpop.f32.mrb[0].mxu0
      %1654 = vmatprep.mubr.bf16.mxu0 0
      %1655 = vmatmul.mubr.bf16.gmra.mrb[0].mxu0 %v1545
      %v1656 = vpop.f32.mrb[0].mxu0
      %v1657 = vadd.f32 0.0, %v1656
      %v1658 = vpop.f32.mrb[0].mxu0
      %v1659 = vpop.f32.mrb[0].mxu0
      %v1660 = vadd.f32 0.0, %v1659
      %v1661 = vpop.f32.mrb[0].mxu0
      %1662 = vdwg.mxu0
      %v1663 = vadd.f32 %v1492, %v1633
      %v1664 = vadd.f32 %v1493, %v1636
      %v1665 = vadd.f32 %v1494, %v1641
      %v1666 = vadd.f32 %v1495, %v1644
      %v1667 = vadd.f32 %v1496, %v1649
      %v1668 = vadd.f32 %v1497, %v1652
      %v1669 = vadd.f32 %v1498, %v1657
      %v1670 = vadd.f32 %v1499, %v1660
      %v1671 = vld [vmem:[%s165 + $0x8] sm:$0xf]
      %v1672 = vld [vmem:[%s165 + $0xc] sm:$0xf]
      %v1673 = vld [vmem:[%s165 + $0x10] sm:$0xf]
      %v1674 = vld [vmem:[%s165 + $0x14] sm:$0xf]
      %v1675 = vld [vmem:[%s165 + $0x18] sm:$0xf]
      %v1676 = vld [vmem:[%s165 + $0x1c] sm:$0xf]
      %v1677 = vld [vmem:[%s165 + $0x20] sm:$0xf]
      %v1678 = vld [vmem:[%s165 + $0x24] sm:$0xf]
      %v1679 = vld [vmem:[%s165 + $0x28] sm:$0x1]
      %s1680 = scalar_lea.vmem %s1, 448
      %v1681 = vld [vmem:[%s1680] sm:$0xf]
      %v1682 = vld [vmem:[%s1680 + $0x4] sm:$0xf]
      %v1683 = vld [vmem:[%s1680 + $0x8] sm:$0xf]
      %v1684 = vld [vmem:[%s1680 + $0xc] sm:$0xf]
      %v1685 = vld [vmem:[%s1680 + $0x10] sm:$0xf]
      %v1686 = vld [vmem:[%s1680 + $0x14] sm:$0xf]
      %v1687 = vld [vmem:[%s1680 + $0x18] sm:$0xf]
      %v1688 = vld [vmem:[%s1680 + $0x1c] sm:$0xf]
      %v1689 = vld [vmem:[%s1680 + $0x20] sm:$0xf]
      %v1690 = vld [vmem:[%s1680 + $0x24] sm:$0xf]
      %v1691 = vld [vmem:[%s1680 + $0x28] sm:$0xf]
      %v1692 = vld [vmem:[%s1680 + $0x2c] sm:$0xf]
      %v1693 = vld [vmem:[%s1680 + $0x30] sm:$0xf]
      %v1694 = vld [vmem:[%s1680 + $0x34] sm:$0xf]
      %v1695 = vld [vmem:[%s1680 + $0x38] sm:$0xf]
      %v1696 = vld [vmem:[%s1680 + $0x3c] sm:$0xf]
      %v1706 = vunpack.c.l.b16 %v1671
      %v1707 = vunpack.c.l.b16 %v1672
      %v1708 = vunpack.c.l.b16 %v1673
      %v1709 = vunpack.c.l.b16 %v1674
      %v1710 = vunpack.c.l.b16 %v1675
      %v1711 = vunpack.c.l.b16 %v1676
      %v1712 = vunpack.c.l.b16 %v1677
      %v1713 = vunpack.c.l.b16 %v1678
      %v1714 = vunpack.c.l.b16 %v1679
      %v1715 = vpack.c.b16 %v1707, %v1706
      %v1716 = vpack.c.b16 %v1709, %v1708
      %v1717 = vpack.c.b16 %v1711, %v1710
      %v1718 = vpack.c.b16 %v1713, %v1712
      %v1719 = vpack.c.b16 %v1714, %v1714
      %v1721 = vshrl.u32 %v1715, 16
      %v1723 = vshll.u32 %v1715, 16
      %v1725 = vrot.slane %v1723, 1
      %v1726 = vor.u32 %v1721, %v1725
      %v1728 = vshll.u32 %v1716, 16
      %v1730 = vrot.slane %v1728, 1
      %v1731 = vsel %vm392, %v1726, %v1730
      %v1732 = vshrl.u32 %v1716, 16
      %v1734 = vor.u32 %v1732, %v1730
      %v1736 = vshll.u32 %v1717, 16
      %v1738 = vrot.slane %v1736, 1
      %v1739 = vsel %vm392, %v1734, %v1738
      %v1740 = vshrl.u32 %v1717, 16
      %v1742 = vor.u32 %v1740, %v1738
      %v1744 = vshll.u32 %v1718, 16
      %v1746 = vrot.slane %v1744, 1
      %v1747 = vsel %vm392, %v1742, %v1746
      %v1748 = vshrl.u32 %v1718, 16
      %v1750 = vor.u32 %v1748, %v1746
      %v1752 = vshll.u32 %v1719, 16
      %v1754 = vrot.slane %v1752, 1
      %v1755 = vsel %vm392, %v1750, %v1754
      %v1776 = vunpack.c.l.b16 %v1681
      %v1777 = vunpack.c.l.b16 %v1682
      %v1778 = vunpack.c.l.b16 %v1683
      %v1779 = vunpack.c.l.b16 %v1684
      %v1780 = vunpack.c.l.b16 %v1685
      %v1781 = vunpack.c.l.b16 %v1686
      %v1782 = vunpack.c.l.b16 %v1687
      %v1783 = vunpack.c.l.b16 %v1688
      %v1784 = vunpack.c.l.b16 %v1689
      %v1785 = vunpack.c.l.b16 %v1690
      %v1786 = vunpack.c.l.b16 %v1691
      %v1787 = vunpack.c.l.b16 %v1692
      %v1788 = vunpack.c.l.b16 %v1693
      %v1789 = vunpack.c.l.b16 %v1694
      %v1790 = vunpack.c.l.b16 %v1695
      %v1791 = vunpack.c.l.b16 %v1696
      %v1792 = vpack.c.b16 %v1777, %v1776
      %v1793 = vpack.c.b16 %v1779, %v1778
      %v1794 = vpack.c.b16 %v1781, %v1780
      %v1795 = vpack.c.b16 %v1783, %v1782
      %v1796 = vpack.c.b16 %v1785, %v1784
      %v1797 = vpack.c.b16 %v1787, %v1786
      %v1798 = vpack.c.b16 %v1789, %v1788
      %v1799 = vpack.c.b16 %v1791, %v1790
      %1808 = vmatprep.subr.bf16.mxu0 0
      %1809 = vmatpush1.bf16.msra.mxu0 %v1792
      %1810 = vmatprep.subr.bf16.mxu0 0
      %1811 = vmatpush1.bf16.msra.mxu0 %v1793
      %1812 = vmatprep.subr.bf16.mxu0 0
      %1813 = vmatpush1.bf16.msra.mxu0 %v1794
      %1814 = vmatprep.subr.bf16.mxu0 0
      %1815 = vmatpush1.bf16.msra.mxu0 %v1795
      %1816 = vmatprep.subr.bf16.mxu0 0
      %1817 = vmatpush1.bf16.msra.mxu0 %v1796
      %1818 = vmatprep.subr.bf16.mxu0 0
      %1819 = vmatpush1.bf16.msra.mxu0 %v1797
      %1820 = vmatprep.subr.bf16.mxu0 0
      %1821 = vmatpush1.bf16.msra.mxu0 %v1798
      %1822 = vmatprep.subr.bf16.mxu0 0
      %1823 = vmatpush1.bf16.msra.mxu0 %v1799
      %1824 = vmatprep.subr.bf16.mxu0 0
      %1825 = vmatpush1.bf16.msra.mxu0 0
      %1826 = vmatprep.subr.bf16.mxu0 0
      %1827 = vmatpush1.bf16.msra.mxu0 0
      %1828 = vmatprep.subr.bf16.mxu0 0
      %1829 = vmatpush1.bf16.msra.mxu0 0
      %1830 = vmatprep.subr.bf16.mxu0 0
      %1831 = vmatpush1.bf16.msra.mxu0 0
      %1832 = vmatprep.subr.bf16.mxu0 0
      %1833 = vmatpush1.bf16.msra.mxu0 0
      %1834 = vmatprep.subr.bf16.mxu0 0
      %1835 = vmatpush1.bf16.msra.mxu0 0
      %1836 = vmatprep.subr.bf16.mxu0 0
      %1837 = vmatpush1.bf16.msra.mxu0 0
      %1838 = vmatprep.subr.bf16.mxu0 0
      %1839 = vmatpush1.bf16.msra.mxu0 0
      %1840 = vmatprep.mubr.bf16.mxu0 0
      %1841 = vmatmul.mubr.bf16.gmra.mrb[0].mxu0 %v1731
      %v1842 = vpop.f32.mrb[0].mxu0
      %v1843 = vadd.f32 0.0, %v1842
      %v1844 = vpop.f32.mrb[0].mxu0
      %v1845 = vpop.f32.mrb[0].mxu0
      %v1846 = vadd.f32 0.0, %v1845
      %v1847 = vpop.f32.mrb[0].mxu0
      %1848 = vmatprep.mubr.bf16.mxu0 0
      %1849 = vmatmul.mubr.bf16.gmra.mrb[0].mxu0 %v1739
      %v1850 = vpop.f32.mrb[0].mxu0
      %v1851 = vadd.f32 0.0, %v1850
      %v1852 = vpop.f32.mrb[0].mxu0
      %v1853 = vpop.f32.mrb[0].mxu0
      %v1854 = vadd.f32 0.0, %v1853
      %v1855 = vpop.f32.mrb[0].mxu0
      %1856 = vmatprep.mubr.bf16.mxu0 0
      %1857 = vmatmul.mubr.bf16.gmra.mrb[0].mxu0 %v1747
      %v1858 = vpop.f32.mrb[0].mxu0
      %v1859 = vadd.f32 0.0, %v1858
      %v1860 = vpop.f32.mrb[0].mxu0
      %v1861 = vpop.f32.mrb[0].mxu0
      %v1862 = vadd.f32 0.0, %v1861
      %v1863 = vpop.f32.mrb[0].mxu0
      %1864 = vmatprep.mubr.bf16.mxu0 0
      %1865 = vmatmul.mubr.bf16.gmra.mrb[0].mxu0 %v1755
      %v1866 = vpop.f32.mrb[0].mxu0
      %v1867 = vadd.f32 0.0, %v1866
      %v1868 = vpop.f32.mrb[0].mxu0
      %v1869 = vpop.f32.mrb[0].mxu0
      %v1870 = vadd.f32 0.0, %v1869
      %v1871 = vpop.f32.mrb[0].mxu0
      %1872 = vdwg.mxu0
      %v1873 = vadd.f32 %v1663, %v1843
      %v1874 = vadd.f32 %v1664, %v1846
      %v1875 = vadd.f32 %v1665, %v1851
      %v1876 = vadd.f32 %v1666, %v1854
      %v1877 = vadd.f32 %v1667, %v1859
      %v1878 = vadd.f32 %v1668, %v1862
      %v1879 = vadd.f32 %v1669, %v1867
      %v1880 = vadd.f32 %v1670, %v1870
      %v1881 = vld [vmem:[%s165 + $0x8] sm:$0xe]
      %v1882 = vsel %vm742, %v1881, 0
      %v1883 = vsel %vm743, %v1672, 0
      %v1884 = vsel %vm744, %v1673, 0
      %v1885 = vsel %vm745, %v1674, 0
      %v1886 = vsel %vm746, %v1675, 0
      %v1887 = vsel %vm747, %v1676, 0
      %v1888 = vsel %vm748, %v1677, 0
      %v1889 = vsel %vm749, %v1678, 0
      %v1890 = vsel %vm750, %v1679, 0
      %s1891 = scalar_lea.vmem %s1, 512
      %v1892 = vld [vmem:[%s1891] sm:$0xf]
      %v1893 = vld [vmem:[%s1891 + $0x4] sm:$0xf]
      %v1894 = vld [vmem:[%s1891 + $0x8] sm:$0xf]
      %v1895 = vld [vmem:[%s1891 + $0xc] sm:$0xf]
      %v1896 = vld [vmem:[%s1891 + $0x10] sm:$0xf]
      %v1897 = vld [vmem:[%s1891 + $0x14] sm:$0xf]
      %v1898 = vld [vmem:[%s1891 + $0x18] sm:$0xf]
      %v1899 = vld [vmem:[%s1891 + $0x1c] sm:$0xf]
      %v1900 = vld [vmem:[%s1891 + $0x20] sm:$0xf]
      %v1901 = vld [vmem:[%s1891 + $0x24] sm:$0xf]
      %v1902 = vld [vmem:[%s1891 + $0x28] sm:$0xf]
      %v1903 = vld [vmem:[%s1891 + $0x2c] sm:$0xf]
      %v1904 = vld [vmem:[%s1891 + $0x30] sm:$0xf]
      %v1905 = vld [vmem:[%s1891 + $0x34] sm:$0xf]
      %v1906 = vld [vmem:[%s1891 + $0x38] sm:$0xf]
      %v1907 = vld [vmem:[%s1891 + $0x3c] sm:$0xf]
      %v1917 = vunpack.c.l.b16 %v1882
      %v1918 = vunpack.c.l.b16 %v1883
      %v1919 = vunpack.c.l.b16 %v1884
      %v1920 = vunpack.c.l.b16 %v1885
      %v1921 = vunpack.c.l.b16 %v1886
      %v1922 = vunpack.c.l.b16 %v1887
      %v1923 = vunpack.c.l.b16 %v1888
      %v1924 = vunpack.c.l.b16 %v1889
      %v1925 = vunpack.c.l.b16 %v1890
      %v1926 = vpack.c.b16 %v1918, %v1917
      %v1927 = vpack.c.b16 %v1920, %v1919
      %v1928 = vpack.c.b16 %v1922, %v1921
      %v1929 = vpack.c.b16 %v1924, %v1923
      %v1930 = vpack.c.b16 %v1925, %v1925
      %v1931 = vrot.slane %v1926, 1
      %v1932 = vrot.slane %v1927, 1
      %v1933 = vsel %vm800, %v1931, %v1932
      %v1934 = vrot.slane %v1928, 1
      %v1935 = vsel %vm800, %v1932, %v1934
      %v1936 = vrot.slane %v1929, 1
      %v1937 = vsel %vm800, %v1934, %v1936
      %v1938 = vrot.slane %v1930, 1
      %v1939 = vsel %vm800, %v1936, %v1938
      %v1960 = vunpack.c.l.b16 %v1892
      %v1961 = vunpack.c.l.b16 %v1893
      %v1962 = vunpack.c.l.b16 %v1894
      %v1963 = vunpack.c.l.b16 %v1895
      %v1964 = vunpack.c.l.b16 %v1896
      %v1965 = vunpack.c.l.b16 %v1897
      %v1966 = vunpack.c.l.b16 %v1898
      %v1967 = vunpack.c.l.b16 %v1899
      %v1968 = vunpack.c.l.b16 %v1900
      %v1969 = vunpack.c.l.b16 %v1901
      %v1970 = vunpack.c.l.b16 %v1902
      %v1971 = vunpack.c.l.b16 %v1903
      %v1972 = vunpack.c.l.b16 %v1904
      %v1973 = vunpack.c.l.b16 %v1905
      %v1974 = vunpack.c.l.b16 %v1906
      %v1975 = vunpack.c.l.b16 %v1907
      %v1976 = vpack.c.b16 %v1961, %v1960
      %v1977 = vpack.c.b16 %v1963, %v1962
      %v1978 = vpack.c.b16 %v1965, %v1964
      %v1979 = vpack.c.b16 %v1967, %v1966
      %v1980 = vpack.c.b16 %v1969, %v1968
      %v1981 = vpack.c.b16 %v1971, %v1970
      %v1982 = vpack.c.b16 %v1973, %v1972
      %v1983 = vpack.c.b16 %v1975, %v1974
      %1992 = vmatprep.subr.bf16.mxu0 0
      %1993 = vmatpush1.bf16.msra.mxu0 %v1976
      %1994 = vmatprep.subr.bf16.mxu0 0
      %1995 = vmatpush1.bf16.msra.mxu0 %v1977
      %1996 = vmatprep.subr.bf16.mxu0 0
      %1997 = vmatpush1.bf16.msra.mxu0 %v1978
      %1998 = vmatprep.subr.bf16.mxu0 0
      %1999 = vmatpush1.bf16.msra.mxu0 %v1979
      %2000 = vmatprep.subr.bf16.mxu0 0
      %2001 = vmatpush1.bf16.msra.mxu0 %v1980
      %2002 = vmatprep.subr.bf16.mxu0 0
      %2003 = vmatpush1.bf16.msra.mxu0 %v1981
      %2004 = vmatprep.subr.bf16.mxu0 0
      %2005 = vmatpush1.bf16.msra.mxu0 %v1982
      %2006 = vmatprep.subr.bf16.mxu0 0
      %2007 = vmatpush1.bf16.msra.mxu0 %v1983
      %2008 = vmatprep.subr.bf16.mxu0 0
      %2009 = vmatpush1.bf16.msra.mxu0 0
      %2010 = vmatprep.subr.bf16.mxu0 0
      %2011 = vmatpush1.bf16.msra.mxu0 0
      %2012 = vmatprep.subr.bf16.mxu0 0
      %2013 = vmatpush1.bf16.msra.mxu0 0
      %2014 = vmatprep.subr.bf16.mxu0 0
      %2015 = vmatpush1.bf16.msra.mxu0 0
      %2016 = vmatprep.subr.bf16.mxu0 0
      %2017 = vmatpush1.bf16.msra.mxu0 0
      %2018 = vmatprep.subr.bf16.mxu0 0
      %2019 = vmatpush1.bf16.msra.mxu0 0
      %2020 = vmatprep.subr.bf16.mxu0 0
      %2021 = vmatpush1.bf16.msra.mxu0 0
      %2022 = vmatprep.subr.bf16.mxu0 0
      %2023 = vmatpush1.bf16.msra.mxu0 0
      %2024 = vmatprep.mubr.bf16.mxu0 0
      %2025 = vmatmul.mubr.bf16.gmra.mrb[0].mxu0 %v1933
      %v2026 = vpop.f32.mrb[0].mxu0
      %v2027 = vadd.f32 0.0, %v2026
      %v2028 = vpop.f32.mrb[0].mxu0
      %v2029 = vpop.f32.mrb[0].mxu0
      %v2030 = vadd.f32 0.0, %v2029
      %v2031 = vpop.f32.mrb[0].mxu0
      %2032 = vmatprep.mubr.bf16.mxu0 0
      %2033 = vmatmul.mubr.bf16.gmra.mrb[0].mxu0 %v1935
      %v2034 = vpop.f32.mrb[0].mxu0
      %v2035 = vadd.f32 0.0, %v2034
      %v2036 = vpop.f32.mrb[0].mxu0
      %v2037 = vpop.f32.mrb[0].mxu0
      %v2038 = vadd.f32 0.0, %v2037
      %v2039 = vpop.f32.mrb[0].mxu0
      %2040 = vmatprep.mubr.bf16.mxu0 0
      %2041 = vmatmul.mubr.bf16.gmra.mrb[0].mxu0 %v1937
      %v2042 = vpop.f32.mrb[0].mxu0
      %v2043 = vadd.f32 0.0, %v2042
      %v2044 = vpop.f32.mrb[0].mxu0
      %v2045 = vpop.f32.mrb[0].mxu0
      %v2046 = vadd.f32 0.0, %v2045
      %v2047 = vpop.f32.mrb[0].mxu0
      %2048 = vmatprep.mubr.bf16.mxu0 0
      %2049 = vmatmul.mubr.bf16.gmra.mrb[0].mxu0 %v1939
      %v2050 = vpop.f32.mrb[0].mxu0
      %v2051 = vadd.f32 0.0, %v2050
      %v2052 = vpop.f32.mrb[0].mxu0
      %v2053 = vpop.f32.mrb[0].mxu0
      %v2054 = vadd.f32 0.0, %v2053
      %v2055 = vpop.f32.mrb[0].mxu0
      %2056 = vdwg.mxu0
      %v2057 = vadd.f32 %v1873, %v2027
      %v2058 = vadd.f32 %v1874, %v2030
      %v2059 = vadd.f32 %v1875, %v2035
      %v2060 = vadd.f32 %v1876, %v2038
      %v2061 = vadd.f32 %v1877, %v2043
      %v2062 = vadd.f32 %v1878, %v2046
      %v2063 = vadd.f32 %v1879, %v2051
      %v2064 = vadd.f32 %v1880, %v2054
      %v2065 = vld [vmem:[%s2] sm:$0x1]
      %v2067 = vlaneseq
      %v2068 = vshrl.u32 %v2067, 7
      %v2069 = vsub.s32 0, %v2068
      %v2070 = vrot.slane %v2065, %v2069
      %v2072 = vadd.f32 %v2057, %v2070
      %v2073 = vadd.f32 %v2058, %v2070
      %v2074 = vadd.f32 %v2059, %v2070
      %v2075 = vadd.f32 %v2060, %v2070
      %v2076 = vadd.f32 %v2061, %v2070
      %v2077 = vadd.f32 %v2062, %v2070
      %v2078 = vadd.f32 %v2063, %v2070
      %v2079 = vadd.f32 %v2064, %v2070
      %v2080 = vmax.f32 %v2072, 0.0
      %v2081 = vmax.f32 %v2073, 0.0
      %v2082 = vmax.f32 %v2074, 0.0
      %v2083 = vmax.f32 %v2075, 0.0
      %v2084 = vmax.f32 %v2076, 0.0
      %v2085 = vmax.f32 %v2077, 0.0
      %v2086 = vmax.f32 %v2078, 0.0
      %v2087 = vmax.f32 %v2079, 0.0
      %v2088 = vpack.c.bf16 %v2081, %v2080
      %v2089 = vpack.c.bf16 %v2083, %v2082
      %v2090 = vpack.c.bf16 %v2085, %v2084
      %v2091 = vpack.c.bf16 %v2087, %v2086
      %v2096 = vunpack.c.l.b16 %v2088
      %v2097 = vunpack.c.h.b16 %v2088
      %v2098 = vunpack.c.l.b16 %v2089
      %v2099 = vunpack.c.h.b16 %v2089
      %v2100 = vunpack.c.l.b16 %v2090
      %v2101 = vunpack.c.h.b16 %v2090
      %v2102 = vunpack.c.l.b16 %v2091
      %v2103 = vunpack.c.h.b16 %v2091
      %v2104 = vpack.c.b16 %v2096, %v2096
      %v2105 = vpack.c.b16 %v2097, %v2097
      %v2106 = vpack.c.b16 %v2098, %v2098
      %v2107 = vpack.c.b16 %v2099, %v2099
      %v2108 = vpack.c.b16 %v2100, %v2100
      %v2109 = vpack.c.b16 %v2101, %v2101
      %v2110 = vpack.c.b16 %v2102, %v2102
      %v2111 = vpack.c.b16 %v2103, %v2103
      %2120 = vst [vmem:[%s170] sm:$0xf] %v2104
      %2121 = vst [vmem:[%s170 + $0x4] sm:$0xf] %v2105
      %2122 = vst [vmem:[%s170 + $0x8] sm:$0xf] %v2106
      %2123 = vst [vmem:[%s170 + $0xc] sm:$0xf] %v2107
      %2124 = vst [vmem:[%s170 + $0x10] sm:$0xf] %v2108
      %2125 = vst [vmem:[%s170 + $0x14] sm:$0xf] %v2109
      %2126 = vst [vmem:[%s170 + $0x18] sm:$0xf] %v2110
      %2127 = vst [vmem:[%s170 + $0x1c] sm:$0xf] %v2111
      %p2128 = scmp.lt.s32.totalorder %s14, 1
      %s2129 = scalar_select %p2128, %s14, 1
      %s2130 = smul.addr %s2129, 8
      %s2131 = smul.addr %s2130, 4
      %s2132 = scalar_lea.vmem %s3, %s2131
      // Predicated region
      $region33: #{bottleneck_forward.4} parent=31 // pred_check
        %p2133 = pneg %p100
      $region34: #{bottleneck_forward.4} parent=31 // pred_check_branch
        %2135 = sbr.rel (%p2133) target = $region36
      $region35: #{bottleneck_forward.4} parent=31 // pred_region
        _
      $region36: #{bottleneck_forward.4} parent=31 // pred_fallthru
        _
    $region32: #{bottleneck_forward.4} parent=5 // pred_fallthru
      _
    %p2136 = scmp.le.s32.totalorder 2, %s9
    // Predicated region
    $region37: #{bottleneck_forward.4} parent=5 // pred_check
      %p2137 = pneg %p2136
    $region38: #{bottleneck_forward.4} parent=5 // pred_check_branch
      %2139 = sbr.rel (%p2137) target = $region40
    $region39: #{bottleneck_forward.4} parent=5 // pred_region
      %s2140 = ssub.s32 %s9, 2
      // Predicated region
      $region41: #{bottleneck_forward.4} parent=39 // pred_check
        %p2141 = pneg %p106
      $region42: #{bottleneck_forward.4} parent=39 // pred_check_branch
        %2143 = sbr.rel (%p2141) target = $region44
      $region43: #{bottleneck_forward.4} parent=39 // pred_region
        %p2144 = scmp.lt.s32.totalorder %s15, 1
        %s2145 = scalar_select %p2144, %s15, 1
        %s2146 = smul.addr %s2145, 8
        %s2147 = smul.addr %s2146, 4
        %s2148 = scalar_lea.vmem %s3, %s2147
      $region44: #{bottleneck_forward.4} parent=39 // pred_fallthru
        _
    $region40: #{bottleneck_forward.4} parent=5 // pred_fallthru
      _
  $region6: #{bottleneck_forward.4} parent=0 // loop_footer
    %s13 = sadd.s32 1, %s9
  $region7: #{bottleneck_forward.4} parent=0 // loop_footer_branch
    %8 = sbr.rel target = $region3
  $region8: #{bottleneck_forward.4} parent=0 // loop_exit
    _

// kernel: bottleneck_forward.5
$region0: #{bottleneck_forward.5}
  #allocation0 [shape = 'u32[]', space=smem, size = 0x4, offset = 0x4, fixed_abs, tag = 'smem constant byte address 0x4 - core index']
  #allocation1 [shape = 'u32[144,128]{1,0:T(1,128)}', space=vmem, size = 0x12000, scoped, tag = 'internal scratch']
  %s0 = inlined_call_operand.vmem [shape: bf16[2,64,128], index: 0, kind: input, shape index: {}]
  %s1 = inlined_call_operand.vmem [shape: bf16[128,384], index: 1, kind: input, shape index: {}]
  %s2 = inlined_call_operand.vmem [shape: f32[1,384], index: 2, kind: input, shape index: {}]
  %s3 = inlined_call_operand.vmem [shape: bf16[128,128], index: 3, kind: input, shape index: {}]
  %s4 = inlined_call_operand.vmem [shape: f32[1,128], index: 4, kind: input, shape index: {}]
  %s5 = inlined_call_operand.vmem [shape: bf16[128,128], index: 5, kind: input, shape index: {}]
  %s6 = inlined_call_operand.vmem [shape: f32[1,128], index: 6, kind: input, shape index: {}]
  %s7 = inlined_call_operand.hbm [shape: f32[2,64,128], index: 7, kind: output, shape index: {}]
  %s8 = sld [smem:[#allocation0]]
  $region61: #{bottleneck_forward.5} parent=0
    _
  %s10 = ssub.s32 1, %s8
  %s11 = scalar_select 0, %s10, %s8
  $region1: #{bottleneck_forward.5} parent=0
    #allocation2 [shape = 'u8[65536]{0}', space=vmem, size = 0x10000, scoped, tag = 'output window, operand 0']
    #allocation3 [shape = 's32[2]{0}', space=sflag, size = 0x8, scoped, tag = 'scoped memory for bottleneck_forward.5']
    %12 = vsyncpa [#allocation3], 0
    %s13 = scalar_lea.sflag [#allocation3], 1
    %14 = vsyncpa %s13, 0
    loop: start=0, step=1, limit=4
    $region2: #{bottleneck_forward.5} parent=1 // loop_pre_header
      _
    $region3: #{bottleneck_forward.5} parent=1 // loop_header
      %s16 = sphi 0, %s20
      %p17 = scmp.ge.s32.totalorder %s16, 4
      %s26 = sphi 0, %s28
      %s29 = sphi 0, %s26
      %s30 = sphi 0, %s29
      %s46 = sphi 0, %s30
      %s50 = sphi 0, %s50
      %s52 = sphi 0, %s50
      %s53 = sphi 0, %s52
      %s67 = sphi 0, %s53
      %s71 = sphi 0, %s71
      %s73 = sphi 0, %s71
      %s74 = sphi 0, %s73
      %s88 = sphi 0, %s74
      %s92 = sphi 0, %s92
      %s94 = sphi 0, %s92
      %s95 = sphi 0, %s94
      %s109 = sphi 0, %s95
      %s113 = sphi 0, %s113
      %s115 = sphi 0, %s113
      %s116 = sphi 0, %s115
      %s130 = sphi 0, %s116
      %s134 = sphi 0, %s134
      %s136 = sphi 0, %s134
      %s137 = sphi 0, %s136
      %s151 = sphi 0, %s137
      %s155 = sphi 0, %s155
      %s157 = sphi 0, %s155
      %s158 = sphi 0, %s157
      %s172 = sphi 0, %s158
      %s178 = sphi 0, %s180
      %s181 = sphi 0, %s178
      %s182 = sphi 0, %s181
      %s198 = sphi 0, %s182
    $region4: #{bottleneck_forward.5} parent=1 // loop_header_branch
      %19 = sbr.rel (%p17) target = $region8
    $region5: #{bottleneck_forward.5} parent=1 // loop_body
      %s21 = ssub.s32 %s16, 1
      %s22 = ssub.s32 %s16, 2
      %s23 = sadd.s32 %s16, 1
      %s24 = ssub.s32 %s16, %s23
      %p25 = scmp.eq.s32.totalorder %s24, 0
      %s27 = sadd.s32 %s26, 1
      %s28 = scalar_select %p25, %s26, %s27
      %p31 = pneg %p25
      %p32 = scmp.eq.s32.totalorder %s16, 1
      %p33 = por %p31, %p32
      %p34 = scmp.ne.s32.totalorder %s26, %s29
      %p35 = scmp.eq.s32.totalorder %s16, 0
      %p36 = por %p34, %p35
      %p37 = scmp.ne.s32.totalorder %s26, %s29
      %p38 = scmp.eq.s32.totalorder %s21, 1
      %p39 = por %p37, %p38
      %p40 = scmp.ne.s32.totalorder %s29, %s30
      %p41 = scmp.eq.s32.totalorder %s21, 0
      %p42 = por %p40, %p41
      %p43 = scmp.ne.s32.totalorder %s29, %s30
      %p44 = scmp.eq.s32.totalorder %s22, 1
      %p45 = por %p43, %p44
      %p47 = scmp.ne.s32.totalorder %s30, %s46
      %p48 = scmp.eq.s32.totalorder %s22, 0
      %p49 = por %p47, %p48
      %s51 = sadd.s32 %s50, 1
      %p54 = scmp.eq.s32.totalorder %s16, 1
      %p55 = scmp.ne.s32.totalorder %s50, %s52
      %p56 = scmp.eq.s32.totalorder %s16, 0
      %p57 = por %p55, %p56
      %p58 = scmp.ne.s32.totalorder %s50, %s52
      %p59 = scmp.eq.s32.totalorder %s21, 1
      %p60 = por %p58, %p59
      %p61 = scmp.ne.s32.totalorder %s52, %s53
      %p62 = scmp.eq.s32.totalorder %s21, 0
      %p63 = por %p61, %p62
      %p64 = scmp.ne.s32.totalorder %s52, %s53
      %p65 = scmp.eq.s32.totalorder %s22, 1
      %p66 = por %p64, %p65
      %p68 = scmp.ne.s32.totalorder %s53, %s67
      %p69 = scmp.eq.s32.totalorder %s22, 0
      %p70 = por %p68, %p69
      %s72 = sadd.s32 %s71, 1
      %p75 = scmp.eq.s32.totalorder %s16, 1
      %p76 = scmp.ne.s32.totalorder %s71, %s73
      %p77 = scmp.eq.s32.totalorder %s16, 0
      %p78 = por %p76, %p77
      %p79 = scmp.ne.s32.totalorder %s71, %s73
      %p80 = scmp.eq.s32.totalorder %s21, 1
      %p81 = por %p79, %p80
      %p82 = scmp.ne.s32.totalorder %s73, %s74
      %p83 = scmp.eq.s32.totalorder %s21, 0
      %p84 = por %p82, %p83
      %p85 = scmp.ne.s32.totalorder %s73, %s74
      %p86 = scmp.eq.s32.totalorder %s22, 1
      %p87 = por %p85, %p86
      %p89 = scmp.ne.s32.totalorder %s74, %s88
      %p90 = scmp.eq.s32.totalorder %s22, 0
      %p91 = por %p89, %p90
      %s93 = sadd.s32 %s92, 1
      %p96 = scmp.eq.s32.totalorder %s16, 1
      %p97 = scmp.ne.s32.totalorder %s92, %s94
      %p98 = scmp.eq.s32.totalorder %s16, 0
      %p99 = por %p97, %p98
      %p100 = scmp.ne.s32.totalorder %s92, %s94
      %p101 = scmp.eq.s32.totalorder %s21, 1
      %p102 = por %p100, %p101
      %p103 = scmp.ne.s32.totalorder %s94, %s95
      %p104 = scmp.eq.s32.totalorder %s21, 0
      %p105 = por %p103, %p104
      %p106 = scmp.ne.s32.totalorder %s94, %s95
      %p107 = scmp.eq.s32.totalorder %s22, 1
      %p108 = por %p106, %p107
      %p110 = scmp.ne.s32.totalorder %s95, %s109
      %p111 = scmp.eq.s32.totalorder %s22, 0
      %p112 = por %p110, %p111
      %s114 = sadd.s32 %s113, 1
      %p117 = scmp.eq.s32.totalorder %s16, 1
      %p118 = scmp.ne.s32.totalorder %s113, %s115
      %p119 = scmp.eq.s32.totalorder %s16, 0
      %p120 = por %p118, %p119
      %p121 = scmp.ne.s32.totalorder %s113, %s115
      %p122 = scmp.eq.s32.totalorder %s21, 1
      %p123 = por %p121, %p122
      %p124 = scmp.ne.s32.totalorder %s115, %s116
      %p125 = scmp.eq.s32.totalorder %s21, 0
      %p126 = por %p124, %p125
      %p127 = scmp.ne.s32.totalorder %s115, %s116
      %p128 = scmp.eq.s32.totalorder %s22, 1
      %p129 = por %p127, %p128
      %p131 = scmp.ne.s32.totalorder %s116, %s130
      %p132 = scmp.eq.s32.totalorder %s22, 0
      %p133 = por %p131, %p132
      %s135 = sadd.s32 %s134, 1
      %p138 = scmp.eq.s32.totalorder %s16, 1
      %p139 = scmp.ne.s32.totalorder %s134, %s136
      %p140 = scmp.eq.s32.totalorder %s16, 0
      %p141 = por %p139, %p140
      %p142 = scmp.ne.s32.totalorder %s134, %s136
      %p143 = scmp.eq.s32.totalorder %s21, 1
      %p144 = por %p142, %p143
      %p145 = scmp.ne.s32.totalorder %s136, %s137
      %p146 = scmp.eq.s32.totalorder %s21, 0
      %p147 = por %p145, %p146
      %p148 = scmp.ne.s32.totalorder %s136, %s137
      %p149 = scmp.eq.s32.totalorder %s22, 1
      %p150 = por %p148, %p149
      %p152 = scmp.ne.s32.totalorder %s137, %s151
      %p153 = scmp.eq.s32.totalorder %s22, 0
      %p154 = por %p152, %p153
      %s156 = sadd.s32 %s155, 1
      %p159 = scmp.eq.s32.totalorder %s16, 1
      %p160 = scmp.ne.s32.totalorder %s155, %s157
      %p161 = scmp.eq.s32.totalorder %s16, 0
      %p162 = por %p160, %p161
      %p163 = scmp.ne.s32.totalorder %s155, %s157
      %p164 = scmp.eq.s32.totalorder %s21, 1
      %p165 = por %p163, %p164
      %p166 = scmp.ne.s32.totalorder %s157, %s158
      %p167 = scmp.eq.s32.totalorder %s21, 0
      %p168 = por %p166, %p167
      %p169 = scmp.ne.s32.totalorder %s157, %s158
      %p170 = scmp.eq.s32.totalorder %s22, 1
      %p171 = por %p169, %p170
      %p173 = scmp.ne.s32.totalorder %s158, %s172
      %p174 = scmp.eq.s32.totalorder %s22, 0
      %p175 = por %p173, %p174
      %s176 = ssub.s32 %s16, %s23
      %p177 = scmp.eq.s32.totalorder %s176, 0
      %s179 = sadd.s32 %s178, 1
      %s180 = scalar_select %p177, %s178, %s179
      %p183 = pneg %p177
      %p184 = scmp.eq.s32.totalorder %s16, 1
      %p185 = por %p183, %p184
      %p186 = scmp.ne.s32.totalorder %s178, %s181
      %p187 = scmp.eq.s32.totalorder %s16, 0
      %p188 = por %p186, %p187
      %p189 = scmp.ne.s32.totalorder %s178, %s181
      %p190 = scmp.eq.s32.totalorder %s21, 1
      %p191 = por %p189, %p190
      %p192 = scmp.ne.s32.totalorder %s181, %s182
      %p193 = scmp.eq.s32.totalorder %s21, 0
      %p194 = por %p192, %p193
      %p195 = scmp.ne.s32.totalorder %s181, %s182
      %p196 = scmp.eq.s32.totalorder %s22, 1
      %p197 = por %p195, %p196
      %p199 = scmp.ne.s32.totalorder %s182, %s198
      %p200 = scmp.eq.s32.totalorder %s22, 0
      %p201 = por %p199, %p200
      %p202 = scmp.le.s32.totalorder 1, %s16
      %p203 = scmp.lt.s32.totalorder %s16, 3
      %p204 = pnand %p202, %p203
      %p205 = pneg %p204
      // Predicated region
      $region9: #{bottleneck_forward.5} parent=5 // pred_check
        _
      $region10: #{bottleneck_forward.5} parent=5 // pred_check_branch
        %207 = sbr.rel (%p204) target = $region12
      $region11: #{bottleneck_forward.5} parent=5 // pred_region
        %s208 = ssub.s32 %s16, 1
        // Predicated region
        $region13: #{bottleneck_forward.5} parent=11 // pred_check
          %p209 = pneg %p63
        $region14: #{bottleneck_forward.5} parent=11 // pred_check_branch
          %211 = sbr.rel (%p209) target = $region16
        $region15: #{bottleneck_forward.5} parent=11 // pred_region
          _
        $region16: #{bottleneck_forward.5} parent=11 // pred_fallthru
          _
        // Predicated region
        $region17: #{bottleneck_forward.5} parent=11 // pred_check
          %p212 = pneg %p84
        $region18: #{bottleneck_forward.5} parent=11 // pred_check_branch
          %214 = sbr.rel (%p212) target = $region20
        $region19: #{bottleneck_forward.5} parent=11 // pred_region
          _
        $region20: #{bottleneck_forward.5} parent=11 // pred_fallthru
          _
        // Predicated region
        $region21: #{bottleneck_forward.5} parent=11 // pred_check
          %p215 = pneg %p105
        $region22: #{bottleneck_forward.5} parent=11 // pred_check_branch
          %217 = sbr.rel (%p215) target = $region24
        $region23: #{bottleneck_forward.5} parent=11 // pred_region
          _
        $region24: #{bottleneck_forward.5} parent=11 // pred_fallthru
          _
        // Predicated region
        $region25: #{bottleneck_forward.5} parent=11 // pred_check
          %p218 = pneg %p126
        $region26: #{bottleneck_forward.5} parent=11 // pred_check_branch
          %220 = sbr.rel (%p218) target = $region28
        $region27: #{bottleneck_forward.5} parent=11 // pred_region
          _
        $region28: #{bottleneck_forward.5} parent=11 // pred_fallthru
          _
        // Predicated region
        $region29: #{bottleneck_forward.5} parent=11 // pred_check
          %p221 = pneg %p147
        $region30: #{bottleneck_forward.5} parent=11 // pred_check_branch
          %223 = sbr.rel (%p221) target = $region32
        $region31: #{bottleneck_forward.5} parent=11 // pred_region
          _
        $region32: #{bottleneck_forward.5} parent=11 // pred_fallthru
          _
        // Predicated region
        $region33: #{bottleneck_forward.5} parent=11 // pred_check
          %p224 = pneg %p168
        $region34: #{bottleneck_forward.5} parent=11 // pred_check_branch
          %226 = sbr.rel (%p224) target = $region36
        $region35: #{bottleneck_forward.5} parent=11 // pred_region
          _
        $region36: #{bottleneck_forward.5} parent=11 // pred_fallthru
          _
      $region12: #{bottleneck_forward.5} parent=5 // pred_fallthru
        _
      %p227 = scmp.lt.s32.totalorder %s16, 2
      // Predicated region
      $region37: #{bottleneck_forward.5} parent=5 // pred_check
        %p228 = pneg %p227
      $region38: #{bottleneck_forward.5} parent=5 // pred_check_branch
        %230 = sbr.rel (%p228) target = $region40
      $region39: #{bottleneck_forward.5} parent=5 // pred_region
        // Predicated region
        $region41: #{bottleneck_forward.5} parent=39 // pred_check
          %p231 = pneg %p36
        $region42: #{bottleneck_forward.5} parent=39 // pred_check_branch
          %233 = sbr.rel (%p231) target = $region44
        $region43: #{bottleneck_forward.5} parent=39 // pred_region
          %p234 = scmp.lt.s32.totalorder %s16, 1
          %s235 = scalar_select %p234, %s16, 1
          %s236 = smul.addr %s235, 8
          %s237 = smul.addr %s236, 4
          %s238 = scalar_lea.vmem %s0, %s237
        $region44: #{bottleneck_forward.5} parent=39 // pred_fallthru
          _
      $region40: #{bottleneck_forward.5} parent=5 // pred_fallthru
        _
      %p239 = scmp.le.s32.totalorder 1, %s16
      %p240 = scmp.lt.s32.totalorder %s16, 3
      %p241 = pnand %p239, %p240
      %p242 = pneg %p241
      // Predicated region
      $region45: #{bottleneck_forward.5} parent=5 // pred_check
        _
      $region46: #{bottleneck_forward.5} parent=5 // pred_check_branch
        %244 = sbr.rel (%p241) target = $region48
      $region47: #{bottleneck_forward.5} parent=5 // pred_region
        %s245 = ssub.s32 %s16, 1
        %p246 = scmp.lt.s32.totalorder %s21, 1
        %s247 = scalar_select %p246, %s21, 1
        %s248 = smul.addr %s247, 8
        %s249 = smul.addr %s248, 4
        %s250 = scalar_lea.vmem %s0, %s249
        %p251 = pneg %p42
        %p252 = pneg %p39
        %p253 = pneg %p63
        %p254 = pneg %p60
        %p255 = pneg %p84
        %p256 = pneg %p81
        %p257 = pneg %p105
        %p258 = pneg %p102
        %p259 = pneg %p126
        %p260 = pneg %p123
        %p261 = pneg %p147
        %p262 = pneg %p144
        %p263 = pneg %p168
        %p264 = pneg %p165
        %p265 = pneg %p194
        %p266 = pneg %p191
        %s267 = sand.u32 %s181, 1
        %s268 = scalar_lea.sflag [#allocation3], %s267
        %s269 = sand.u32 %s181, 1
        %s270 = smul.addr %s269, 64
        %s271 = scalar_lea.vmem [#allocation2], %s270
        %p272 = scmp.lt.s32.totalorder %s21, 1
        %s273 = scalar_select %p272, %s21, 1
        %s274 = smul.addr %s273, 8
        %s275 = smul.addr %s274, 4
        %s276 = scalar_lea.vmem %s0, %s275
        %v278 = vld [vmem:[%s276] sm:$0xf]
        %v279 = vld [vmem:[%s276 + $0x4] sm:$0xf]
        %v280 = vld [vmem:[%s276 + $0x8] sm:$0xf]
        %v281 = vld [vmem:[%s276 + $0xc] sm:$0xf]
        %v282 = vld [vmem:[%s276 + $0x10] sm:$0xf]
        %v283 = vld [vmem:[%s276 + $0x14] sm:$0xf]
        %v284 = vld [vmem:[%s276 + $0x18] sm:$0xf]
        %v285 = vld [vmem:[%s276 + $0x1c] sm:$0xf]
        %v286 = vld [vmem:[%s1] sm:$0xff]
        %v287 = vld [vmem:[%s1 + $0x8] sm:$0xf]
        %v288 = vld [vmem:[%s1 + $0xc] sm:$0xff]
        %v289 = vld [vmem:[%s1 + $0x14] sm:$0xf]
        %v290 = vld [vmem:[%s1 + $0x18] sm:$0xff]
        %v291 = vld [vmem:[%s1 + $0x20] sm:$0xf]
        %v292 = vld [vmem:[%s1 + $0x24] sm:$0xff]
        %v293 = vld [vmem:[%s1 + $0x2c] sm:$0xf]
        %v294 = vld [vmem:[%s1 + $0x30] sm:$0xff]
        %v295 = vld [vmem:[%s1 + $0x38] sm:$0xf]
        %v296 = vld [vmem:[%s1 + $0x3c] sm:$0xff]
        %v297 = vld [vmem:[%s1 + $0x44] sm:$0xf]
        %v298 = vld [vmem:[%s1 + $0x48] sm:$0xff]
        %v299 = vld [vmem:[%s1 + $0x50] sm:$0xf]
        %v300 = vld [vmem:[%s1 + $0x54] sm:$0xff]
        %v301 = vld [vmem:[%s1 + $0x5c] sm:$0xf]
        %v302 = vld [vmem:[%s1 + $0x60] sm:$0xff]
        %v303 = vld [vmem:[%s1 + $0x68] sm:$0xf]
        %v304 = vld [vmem:[%s1 + $0x6c] sm:$0xff]
        %v305 = vld [vmem:[%s1 + $0x74] sm:$0xf]
        %v306 = vld [vmem:[%s1 + $0x78] sm:$0xff]
        %v307 = vld [vmem:[%s1 + $0x80] sm:$0xf]
        %v308 = vld [vmem:[%s1 + $0x84] sm:$0xff]
        %v309 = vld [vmem:[%s1 + $0x8c] sm:$0xf]
        %v310 = vld [vmem:[%s1 + $0x90] sm:$0xff]
        %v311 = vld [vmem:[%s1 + $0x98] sm:$0xf]
        %v312 = vld [vmem:[%s1 + $0x9c] sm:$0xff]
        %v313 = vld [vmem:[%s1 + $0xa4] sm:$0xf]
        %v314 = vld [vmem:[%s1 + $0xa8] sm:$0xff]
        %v315 = vld [vmem:[%s1 + $0xb0] sm:$0xf]
        %v316 = vld [vmem:[%s1 + $0xb4] sm:$0xff]
        %v317 = vld [vmem:[%s1 + $0xbc] sm:$0xf]
        %v318 = vld [vmem:[%s2] sm:$0x7]
        %v320 = vlaneseq
        %v321 = vshrl.u32 %v320, 7
        %v322 = vsub.s32 0, %v321
        %v323 = vrot.slane %v318, %v322
        %v324 = vlaneseq
        %v325 = vshrl.u32 %v324, 7
        %v326 = vsub.s32 1, %v325
        %v327 = vrot.slane %v318, %v326
        %v328 = vlaneseq
        %v329 = vshrl.u32 %v328, 7
        %v330 = vsub.s32 2, %v329
        %v331 = vrot.slane %v318, %v330
        %v343 = vunpack.c.l.b16 %v278
        %v344 = vunpack.c.l.b16 %v279
        %v345 = vunpack.c.l.b16 %v280
        %v346 = vunpack.c.l.b16 %v281
        %v347 = vunpack.c.l.b16 %v282
        %v348 = vunpack.c.l.b16 %v283
        %v349 = vunpack.c.l.b16 %v284
        %v350 = vunpack.c.l.b16 %v285
        %v351 = vpack.c.b16 %v344, %v343
        %v352 = vpack.c.b16 %v346, %v345
        %v353 = vpack.c.b16 %v348, %v347
        %v354 = vpack.c.b16 %v350, %v349
        %v391 = vunpack.c.l.b16 %v286
        %v392 = vunpack.c.h.b16 %v286
        %v393 = vunpack.c.l.b16 %v287
        %v394 = vunpack.c.l.b16 %v288
        %v395 = vunpack.c.h.b16 %v288
        %v396 = vunpack.c.l.b16 %v289
        %v397 = vunpack.c.l.b16 %v290
        %v398 = vunpack.c.h.b16 %v290
        %v399 = vunpack.c.l.b16 %v291
        %v400 = vunpack.c.l.b16 %v292
        %v401 = vunpack.c.h.b16 %v292
        %v402 = vunpack.c.l.b16 %v293
        %v403 = vunpack.c.l.b16 %v294
        %v404 = vunpack.c.h.b16 %v294
        %v405 = vunpack.c.l.b16 %v295
        %v406 = vunpack.c.l.b16 %v296
        %v407 = vunpack.c.h.b16 %v296
        %v408 = vunpack.c.l.b16 %v297
        %v409 = vunpack.c.l.b16 %v298
        %v410 = vunpack.c.h.b16 %v298
        %v411 = vunpack.c.l.b16 %v299
        %v412 = vunpack.c.l.b16 %v300
        %v413 = vunpack.c.h.b16 %v300
        %v414 = vunpack.c.l.b16 %v301
        %v415 = vunpack.c.l.b16 %v302
        %v416 = vunpack.c.h.b16 %v302
        %v417 = vunpack.c.l.b16 %v303
        %v418 = vunpack.c.l.b16 %v304
        %v419 = vunpack.c.h.b16 %v304
        %v420 = vunpack.c.l.b16 %v305
        %v421 = vunpack.c.l.b16 %v306
        %v422 = vunpack.c.h.b16 %v306
        %v423 = vunpack.c.l.b16 %v307
        %v424 = vunpack.c.l.b16 %v308
        %v425 = vunpack.c.h.b16 %v308
        %v426 = vunpack.c.l.b16 %v309
        %v427 = vunpack.c.l.b16 %v310
        %v428 = vunpack.c.h.b16 %v310
        %v429 = vunpack.c.l.b16 %v311
        %v430 = vunpack.c.l.b16 %v312
        %v431 = vunpack.c.h.b16 %v312
        %v432 = vunpack.c.l.b16 %v313
        %v433 = vunpack.c.l.b16 %v314
        %v434 = vunpack.c.h.b16 %v314
        %v435 = vunpack.c.l.b16 %v315
        %v436 = vunpack.c.l.b16 %v316
        %v437 = vunpack.c.h.b16 %v316
        %v438 = vunpack.c.l.b16 %v317
        %v439 = vpack.c.b16 %v394, %v391
        %v440 = vpack.c.b16 %v395, %v392
        %v441 = vpack.c.b16 %v396, %v393
        %v442 = vpack.c.b16 %v400, %v397
        %v443 = vpack.c.b16 %v401, %v398
        %v444 = vpack.c.b16 %v402, %v399
        %v445 = vpack.c.b16 %v406, %v403
        %v446 = vpack.c.b16 %v407, %v404
        %v447 = vpack.c.b16 %v408, %v405
        %v448 = vpack.c.b16 %v412, %v409
        %v449 = vpack.c.b16 %v413, %v410
        %v450 = vpack.c.b16 %v414, %v411
        %v451 = vpack.c.b16 %v418, %v415
        %v452 = vpack.c.b16 %v419, %v416
        %v453 = vpack.c.b16 %v420, %v417
        %v454 = vpack.c.b16 %v424, %v421
        %v455 = vpack.c.b16 %v425, %v422
        %v456 = vpack.c.b16 %v426, %v423
        %v457 = vpack.c.b16 %v430, %v427
        %v458 = vpack.c.b16 %v431, %v428
        %v459 = vpack.c.b16 %v432, %v429
        %v460 = vpack.c.b16 %v436, %v433
        %v461 = vpack.c.b16 %v437, %v434
        %v462 = vpack.c.b16 %v438, %v435
        %487 = vmatprep.subr.bf16.mxu0 %v440
        %488 = vmatpush1.bf16.msra.mxu0 %v439
        %489 = vmatprep.subr.bf16.mxu0 %v443
        %490 = vmatpush1.bf16.msra.mxu0 %v442
        %491 = vmatprep.subr.bf16.mxu0 %v446
        %492 = vmatpush1.bf16.msra.mxu0 %v445
        %493 = vmatprep.subr.bf16.mxu0 %v449
        %494 = vmatpush1.bf16.msra.mxu0 %v448
        %495 = vmatprep.subr.bf16.mxu0 %v452
        %496 = vmatpush1.bf16.msra.mxu0 %v451
        %497 = vmatprep.subr.bf16.mxu0 %v455
        %498 = vmatpush1.bf16.msra.mxu0 %v454
        %499 = vmatprep.subr.bf16.mxu0 %v458
        %500 = vmatpush1.bf16.msra.mxu0 %v457
        %501 = vmatprep.subr.bf16.mxu0 %v461
        %502 = vmatpush1.bf16.msra.mxu0 %v460
        %503 = vmatprep.subr.bf16.mxu0 0
        %504 = vmatpush1.bf16.msra.mxu0 0
        %505 = vmatprep.subr.bf16.mxu0 0
        %506 = vmatpush1.bf16.msra.mxu0 0
        %507 = vmatprep.subr.bf16.mxu0 0
        %508 = vmatpush1.bf16.msra.mxu0 0
        %509 = vmatprep.subr.bf16.mxu0 0
        %510 = vmatpush1.bf16.msra.mxu0 0
        %511 = vmatprep.subr.bf16.mxu0 0
        %512 = vmatpush1.bf16.msra.mxu0 0
        %513 = vmatprep.subr.bf16.mxu0 0
        %514 = vmatpush1.bf16.msra.mxu0 0
        %515 = vmatprep.subr.bf16.mxu0 0
        %516 = vmatpush1.bf16.msra.mxu0 0
        %517 = vmatprep.subr.bf16.mxu0 0
        %518 = vmatpush1.bf16.msra.mxu0 0
        %519 = vmatprep.mubr.bf16.mxu0 0
        %520 = vmatmul.mubr.bf16.gmra.mrb[0].mxu0 %v351
        %v521 = vpop.f32.mrb[0].mxu0
        %v522 = vadd.f32 %v323, %v521
        %v523 = vpop.f32.mrb[0].mxu0
        %v524 = vadd.f32 %v327, %v523
        %v525 = vpop.f32.mrb[0].mxu0
        %v526 = vadd.f32 %v323, %v525
        %v527 = vpop.f32.mrb[0].mxu0
        %v528 = vadd.f32 %v327, %v527
        %529 = vmatprep.mubr.bf16.mxu0 0
        %530 = vmatmul.mubr.bf16.gmra.mrb[0].mxu0 %v352
        %v531 = vpop.f32.mrb[0].mxu0
        %v532 = vadd.f32 %v323, %v531
        %v533 = vpop.f32.mrb[0].mxu0
        %v534 = vadd.f32 %v327, %v533
        %v535 = vpop.f32.mrb[0].mxu0
        %v536 = vadd.f32 %v323, %v535
        %v537 = vpop.f32.mrb[0].mxu0
        %v538 = vadd.f32 %v327, %v537
        %539 = vmatprep.mubr.bf16.mxu0 0
        %540 = vmatmul.mubr.bf16.gmra.mrb[0].mxu0 %v353
        %v541 = vpop.f32.mrb[0].mxu0
        %v542 = vadd.f32 %v323, %v541
        %v543 = vpop.f32.mrb[0].mxu0
        %v544 = vadd.f32 %v327, %v543
        %v545 = vpop.f32.mrb[0].mxu0
        %v546 = vadd.f32 %v323, %v545
        %v547 = vpop.f32.mrb[0].mxu0
        %v548 = vadd.f32 %v327, %v547
        %549 = vmatprep.mubr.bf16.mxu0 0
        %550 = vmatmul.mubr.bf16.gmra.mrb[0].mxu0 %v354
        %v551 = vpop.f32.mrb[0].mxu0
        %v552 = vadd.f32 %v323, %v551
        %v553 = vpop.f32.mrb[0].mxu0
        %v554 = vadd.f32 %v327, %v553
        %v555 = vpop.f32.mrb[0].mxu0
        %v556 = vadd.f32 %v323, %v555
        %v557 = vpop.f32.mrb[0].mxu0
        %v558 = vadd.f32 %v327, %v557
        %559 = vdwg.mxu0
        %560 = vmatprep.subr.bf16.mxu0 0
        %561 = vmatpush1.bf16.msra.mxu0 %v441
        %562 = vmatprep.subr.bf16.mxu0 0
        %563 = vmatpush1.bf16.msra.mxu0 %v444
        %564 = vmatprep.subr.bf16.mxu0 0
        %565 = vmatpush1.bf16.msra.mxu0 %v447
        %566 = vmatprep.subr.bf16.mxu0 0
        %567 = vmatpush1.bf16.msra.mxu0 %v450
        %568 = vmatprep.subr.bf16.mxu0 0
        %569 = vmatpush1.bf16.msra.mxu0 %v453
        %570 = vmatprep.subr.bf16.mxu0 0
        %571 = vmatpush1.bf16.msra.mxu0 %v456
        %572 = vmatprep.subr.bf16.mxu0 0
        %573 = vmatpush1.bf16.msra.mxu0 %v459
        %574 = vmatprep.subr.bf16.mxu0 0
        %575 = vmatpush1.bf16.msra.mxu0 %v462
        %576 = vmatprep.subr.bf16.mxu0 0
        %577 = vmatpush1.bf16.msra.mxu0 0
        %578 = vmatprep.subr.bf16.mxu0 0
        %579 = vmatpush1.bf16.msra.mxu0 0
        %580 = vmatprep.subr.bf16.mxu0 0
        %581 = vmatpush1.bf16.msra.mxu0 0
        %582 = vmatprep.subr.bf16.mxu0 0
        %583 = vmatpush1.bf16.msra.mxu0 0
        %584 = vmatprep.subr.bf16.mxu0 0
        %585 = vmatpush1.bf16.msra.mxu0 0
        %586 = vmatprep.subr.bf16.mxu0 0
        %587 = vmatpush1.bf16.msra.mxu0 0
        %588 = vmatprep.subr.bf16.mxu0 0
        %589 = vmatpush1.bf16.msra.mxu0 0
        %590 = vmatprep.subr.bf16.mxu0 0
        %591 = vmatpush1.bf16.msra.mxu0 0
        %592 = vmatprep.mubr.bf16.mxu0 0
        %593 = vmatmul.mubr.bf16.gmra.mrb[0].mxu0 %v351
        %v594 = vpop.f32.mrb[0].mxu0
        %v595 = vadd.f32 %v331, %v594
        %v596 = vpop.f32.mrb[0].mxu0
        %v597 = vpop.f32.mrb[0].mxu0
        %v598 = vadd.f32 %v331, %v597
        %v599 = vpop.f32.mrb[0].mxu0
        %600 = vmatprep.mubr.bf16.mxu0 0
        %601 = vmatmul.mubr.bf16.gmra.mrb[0].mxu0 %v352
        %v602 = vpop.f32.mrb[0].mxu0
        %v603 = vadd.f32 %v331, %v602
        %v604 = vpop.f32.mrb[0].mxu0
        %v605 = vpop.f32.mrb[0].mxu0
        %v606 = vadd.f32 %v331, %v605
        %v607 = vpop.f32.mrb[0].mxu0
        %608 = vmatprep.mubr.bf16.mxu0 0
        %609 = vmatmul.mubr.bf16.gmra.mrb[0].mxu0 %v353
        %v610 = vpop.f32.mrb[0].mxu0
        %v611 = vadd.f32 %v331, %v610
        %v612 = vpop.f32.mrb[0].mxu0
        %v613 = vpop.f32.mrb[0].mxu0
        %v614 = vadd.f32 %v331, %v613
        %v615 = vpop.f32.mrb[0].mxu0
        %616 = vmatprep.mubr.bf16.mxu0 0
        %617 = vmatmul.mubr.bf16.gmra.mrb[0].mxu0 %v354
        %v618 = vpop.f32.mrb[0].mxu0
        %v619 = vadd.f32 %v331, %v618
        %v620 = vpop.f32.mrb[0].mxu0
        %v621 = vpop.f32.mrb[0].mxu0
        %v622 = vadd.f32 %v331, %v621
        %v623 = vpop.f32.mrb[0].mxu0
        %624 = vdwg.mxu0
        %vm625 = vcmask 130048
        %v627 = vsel %vm625, %v522, 0
        %v630 = vsel %vm625, %v526, 0
        %v633 = vsel %vm625, %v532, 0
        %v636 = vsel %vm625, %v536, 0
        %v639 = vsel %vm625, %v542, 0
        %v642 = vsel %vm625, %v546, 0
        %v645 = vsel %vm625, %v552, 0
        %v648 = vsel %vm625, %v556, 0
        %v651 = vsel %vm625, %v524, 0
        %v654 = vsel %vm625, %v528, 0
        %v657 = vsel %vm625, %v534, 0
        %v660 = vsel %vm625, %v538, 0
        %v663 = vsel %vm625, %v544, 0
        %v666 = vsel %vm625, %v548, 0
        %v669 = vsel %vm625, %v554, 0
        %v672 = vsel %vm625, %v558, 0
        %674 = vmatprep.subr.mxu0 0.0
        %675 = vmatpush1.xpose.msra.mxu0 %v651
        %676 = vmatprep.subr.mxu0 0.0
        %677 = vmatpush1.xpose.msra.mxu0 %v654
        %678 = vmatprep.subr.mxu0 0.0
        %679 = vmatpush1.xpose.msra.mxu0 %v657
        %680 = vmatprep.subr.mxu0 0.0
        %681 = vmatpush1.xpose.msra.mxu0 %v660
        %682 = vmatprep.subr.mxu0 0.0
        %683 = vmatpush1.xpose.msra.mxu0 %v663
        %684 = vmatprep.subr.mxu0 0.0
        %685 = vmatpush1.xpose.msra.mxu0 %v666
        %686 = vmatprep.subr.mxu0 0.0
        %687 = vmatpush1.xpose.msra.mxu0 %v669
        %688 = vmatprep.subr.mxu0 0.0
        %689 = vmatpush1.xpose.msra.mxu0 %v672
        %690 = vmatprep.subr.mxu0 0.0
        %691 = vmatpush1.xpose.msra.mxu0 0.0
        %692 = vmatprep.subr.mxu0 0.0
        %693 = vmatpush1.xpose.msra.mxu0 0.0
        %694 = vmatprep.subr.mxu0 0.0
        %695 = vmatpush1.xpose.msra.mxu0 0.0
        %696 = vmatprep.subr.mxu0 0.0
        %697 = vmatpush1.xpose.msra.mxu0 0.0
        %698 = vmatprep.subr.mxu0 0.0
        %699 = vmatpush1.xpose.msra.mxu0 0.0
        %700 = vmatprep.subr.mxu0 0.0
        %701 = vmatpush1.xpose.msra.mxu0 0.0
        %702 = vmatprep.subr.mxu0 0.0
        %703 = vmatpush1.xpose.msra.mxu0 0.0
        %704 = vmatprep.subr.mxu0 0.0
        %705 = vmatpush1.xpose.msra.mxu0 0.0
        %706 = vmatprep.subr.mxu0 0.0
        %707 = vmatpush1.xpose.msra.mxu0 0.0
        %708 = vmatprep.subr.mxu0 0.0
        %709 = vmatpush1.xpose.msra.mxu0 0.0
        %710 = vmatprep.subr.mxu0 0.0
        %711 = vmatpush1.xpose.msra.mxu0 0.0
        %712 = vmatprep.subr.mxu0 0.0
        %713 = vmatpush1.xpose.msra.mxu0 0.0
        %714 = vmatprep.subr.mxu0 0.0
        %715 = vmatpush1.xpose.msra.mxu0 0.0
        %716 = vmatprep.subr.mxu0 0.0
        %717 = vmatpush1.xpose.msra.mxu0 0.0
        %718 = vmatprep.subr.mxu0 0.0
        %719 = vmatpush1.xpose.msra.mxu0 0.0
        %720 = vmatprep.subr.mxu0 0.0
        %721 = vmatpush1.xpose.msra.mxu0 0.0
        %722 = vmatprep.subr.mxu0 0.0
        %723 = vmatpush1.xpose.msra.mxu0 0.0
        %724 = vmatprep.subr.mxu0 0.0
        %725 = vmatpush1.xpose.msra.mxu0 0.0
        %726 = vmatprep.subr.mxu0 0.0
        %727 = vmatpush1.xpose.msra.mxu0 0.0
        %728 = vmatprep.subr.mxu0 0.0
        %729 = vmatpush1.xpose.msra.mxu0 0.0
        %730 = vmatprep.subr.mxu0 0.0
        %731 = vmatpush1.xpose.msra.mxu0 0.0
        %732 = vmatprep.subr.mxu0 0.0
        %733 = vmatpush1.xpose.msra.mxu0 0.0
        %734 = vmatprep.subr.mxu0 0.0
        %735 = vmatpush1.xpose.msra.mxu0 0.0
        %736 = vmatprep.subr.mxu0 0.0
        %737 = vmatpush1.xpose.msra.mxu0 0.0
        %738 = vmatprep.mubr.f32.mxu0 0.0
        %739 = vmatmul.mubr.f32.gmra.mrb[0].mxu0 %v627
        %v740 = vpop.f32.mrb[0].mxu0
        %v741 = vadd.f32 0.0, %v740
        %v742 = vpop.f32.mrb[0].mxu0
        %743 = vmatprep.mubr.f32.mxu0 0.0
        %744 = vmatmul.mubr.f32.gmra.mrb[0].mxu0 %v630
        %v745 = vpop.f32.mrb[0].mxu0
        %v746 = vadd.f32 0.0, %v745
        %v747 = vpop.f32.mrb[0].mxu0
        %748 = vmatprep.mubr.f32.mxu0 0.0
        %749 = vmatmul.mubr.f32.gmra.mrb[0].mxu0 %v633
        %v750 = vpop.f32.mrb[0].mxu0
        %v751 = vadd.f32 0.0, %v750
        %v752 = vpop.f32.mrb[0].mxu0
        %753 = vmatprep.mubr.f32.mxu0 0.0
        %754 = vmatmul.mubr.f32.gmra.mrb[0].mxu0 %v636
        %v755 = vpop.f32.mrb[0].mxu0
        %v756 = vadd.f32 0.0, %v755
        %v757 = vpop.f32.mrb[0].mxu0
        %758 = vmatprep.mubr.f32.mxu0 0.0
        %759 = vmatmul.mubr.f32.gmra.mrb[0].mxu0 %v639
        %v760 = vpop.f32.mrb[0].mxu0
        %v761 = vadd.f32 0.0, %v760
        %v762 = vpop.f32.mrb[0].mxu0
        %763 = vmatprep.mubr.f32.mxu0 0.0
        %764 = vmatmul.mubr.f32.gmra.mrb[0].mxu0 %v642
        %v765 = vpop.f32.mrb[0].mxu0
        %v766 = vadd.f32 0.0, %v765
        %v767 = vpop.f32.mrb[0].mxu0
        %768 = vmatprep.mubr.f32.mxu0 0.0
        %769 = vmatmul.mubr.f32.gmra.mrb[0].mxu0 %v645
        %v770 = vpop.f32.mrb[0].mxu0
        %v771 = vadd.f32 0.0, %v770
        %v772 = vpop.f32.mrb[0].mxu0
        %773 = vmatprep.mubr.f32.mxu0 0.0
        %774 = vmatmul.mubr.f32.gmra.mrb[0].mxu0 %v648
        %v775 = vpop.f32.mrb[0].mxu0
        %v776 = vadd.f32 0.0, %v775
        %v777 = vpop.f32.mrb[0].mxu0
        %778 = vdwg.mxu0
        %vm779 = vcmask 523264
        %v780 = vsel %vm779, %v741, -inf
        %781 = vmax.xlane.f32.xlu0 %v780
        %v782 = vpop.xlane.xlu0 %781
        %v783 = vsel %vm779, %v746, -inf
        %784 = vmax.xlane.f32.xlu0 %v783
        %v785 = vpop.xlane.xlu0 %784
        %v786 = vsel %vm779, %v751, -inf
        %787 = vmax.xlane.f32.xlu0 %v786
        %v788 = vpop.xlane.xlu0 %787
        %v789 = vsel %vm779, %v756, -inf
        %790 = vmax.xlane.f32.xlu0 %v789
        %v791 = vpop.xlane.xlu0 %790
        %v792 = vsel %vm779, %v761, -inf
        %793 = vmax.xlane.f32.xlu0 %v792
        %v794 = vpop.xlane.xlu0 %793
        %v795 = vsel %vm779, %v766, -inf
        %796 = vmax.xlane.f32.xlu0 %v795
        %v797 = vpop.xlane.xlu0 %796
        %v798 = vsel %vm779, %v771, -inf
        %799 = vmax.xlane.f32.xlu0 %v798
        %v800 = vpop.xlane.xlu0 %799
        %v801 = vsel %vm779, %v776, -inf
        %802 = vmax.xlane.f32.xlu0 %v801
        %v803 = vpop.xlane.xlu0 %802
        %v804 = vsub.f32 %v741, %v782
        %v805 = vsub.f32 %v746, %v785
        %v806 = vsub.f32 %v751, %v788
        %v807 = vsub.f32 %v756, %v791
        %v808 = vsub.f32 %v761, %v794
        %v809 = vsub.f32 %v766, %v797
        %v810 = vsub.f32 %v771, %v800
        %v811 = vsub.f32 %v776, %v803
        %v812 = vmul.f32 %v804, 1.442695
        %v813 = vpow.pop %v812
        %v814 = vmul.f32 %v805, 1.442695
        %v815 = vpow.pop %v814
        %v816 = vmul.f32 %v806, 1.442695
        %v817 = vpow.pop %v816
        %v818 = vmul.f32 %v807, 1.442695
        %v819 = vpow.pop %v818
        %v820 = vmul.f32 %v808, 1.442695
        %v821 = vpow.pop %v820
        %v822 = vmul.f32 %v809, 1.442695
        %v823 = vpow.pop %v822
        %v824 = vmul.f32 %v810, 1.442695
        %v825 = vpow.pop %v824
        %v826 = vmul.f32 %v811, 1.442695
        %v827 = vpow.pop %v826
        %v828 = vsel %vm779, %v813, 0.0
        %829 = vadd.xlane.f32.xlu0 %v828
        %v830 = vpop.xlane.xlu0 %829
        %v831 = vsel %vm779, %v815, 0.0
        %832 = vadd.xlane.f32.xlu0 %v831
        %v833 = vpop.xlane.xlu0 %832
        %v834 = vsel %vm779, %v817, 0.0
        %835 = vadd.xlane.f32.xlu0 %v834
        %v836 = vpop.xlane.xlu0 %835
        %v837 = vsel %vm779, %v819, 0.0
        %838 = vadd.xlane.f32.xlu0 %v837
        %v839 = vpop.xlane.xlu0 %838
        %v840 = vsel %vm779, %v821, 0.0
        %841 = vadd.xlane.f32.xlu0 %v840
        %v842 = vpop.xlane.xlu0 %841
        %v843 = vsel %vm779, %v823, 0.0
        %844 = vadd.xlane.f32.xlu0 %v843
        %v845 = vpop.xlane.xlu0 %844
        %v846 = vsel %vm779, %v825, 0.0
        %847 = vadd.xlane.f32.xlu0 %v846
        %v848 = vpop.xlane.xlu0 %847
        %v849 = vsel %vm779, %v827, 0.0
        %850 = vadd.xlane.f32.xlu0 %v849
        %v851 = vpop.xlane.xlu0 %850
        %v852 = vrcp.pop %v830
        %v853 = vrcp.pop %v833
        %v854 = vrcp.pop %v836
        %v855 = vrcp.pop %v839
        %v856 = vrcp.pop %v842
        %v857 = vrcp.pop %v845
        %v858 = vrcp.pop %v848
        %v859 = vrcp.pop %v851
        %v860 = vmul.f32 %v813, %v852
        %v861 = vmul.f32 %v815, %v853
        %v862 = vmul.f32 %v817, %v854
        %v863 = vmul.f32 %v819, %v855
        %v864 = vmul.f32 %v821, %v856
        %v865 = vmul.f32 %v823, %v857
        %v866 = vmul.f32 %v825, %v858
        %v867 = vmul.f32 %v827, %v859
        %v869 = vsel %vm779, %v860, 0
        %v872 = vsel %vm779, %v861, 0
        %v875 = vsel %vm779, %v862, 0
        %v878 = vsel %vm779, %v863, 0
        %v881 = vsel %vm779, %v864, 0
        %v884 = vsel %vm779, %v865, 0
        %v887 = vsel %vm779, %v866, 0
        %v890 = vsel %vm779, %v867, 0
        %892 = vmatprep.subr.mxu0 0.0
        %893 = vmatpush1.msra.mxu0 %v595
        %894 = vmatprep.subr.mxu0 0.0
        %895 = vmatpush1.msra.mxu0 %v598
        %896 = vmatprep.subr.mxu0 0.0
        %897 = vmatpush1.msra.mxu0 %v603
        %898 = vmatprep.subr.mxu0 0.0
        %899 = vmatpush1.msra.mxu0 %v606
        %900 = vmatprep.subr.mxu0 0.0
        %901 = vmatpush1.msra.mxu0 %v611
        %902 = vmatprep.subr.mxu0 0.0
        %903 = vmatpush1.msra.mxu0 %v614
        %904 = vmatprep.subr.mxu0 0.0
        %905 = vmatpush1.msra.mxu0 %v619
        %906 = vmatprep.subr.mxu0 0.0
        %907 = vmatpush1.msra.mxu0 %v622
        %908 = vmatprep.subr.mxu0 0.0
        %909 = vmatpush1.msra.mxu0 0.0
        %910 = vmatprep.subr.mxu0 0.0
        %911 = vmatpush1.msra.mxu0 0.0
        %912 = vmatprep.subr.mxu0 0.0
        %913 = vmatpush1.msra.mxu0 0.0
        %914 = vmatprep.subr.mxu0 0.0
        %915 = vmatpush1.msra.mxu0 0.0
        %916 = vmatprep.subr.mxu0 0.0
        %917 = vmatpush1.msra.mxu0 0.0
        %918 = vmatprep.subr.mxu0 0.0
        %919 = vmatpush1.msra.mxu0 0.0
        %920 = vmatprep.subr.mxu0 0.0
        %921 = vmatpush1.msra.mxu0 0.0
        %922 = vmatprep.subr.mxu0 0.0
        %923 = vmatpush1.msra.mxu0 0.0
        %924 = vmatprep.subr.mxu0 0.0
        %925 = vmatpush1.msra.mxu0 0.0
        %926 = vmatprep.subr.mxu0 0.0
        %927 = vmatpush1.msra.mxu0 0.0
        %928 = vmatprep.subr.mxu0 0.0
        %929 = vmatpush1.msra.mxu0 0.0
        %930 = vmatprep.subr.mxu0 0.0
        %931 = vmatpush1.msra.mxu0 0.0
        %932 = vmatprep.subr.mxu0 0.0
        %933 = vmatpush1.msra.mxu0 0.0
        %934 = vmatprep.subr.mxu0 0.0
        %935 = vmatpush1.msra.mxu0 0.0
        %936 = vmatprep.subr.mxu0 0.0
        %937 = vmatpush1.msra.mxu0 0.0
        %938 = vmatprep.subr.mxu0 0.0
        %939 = vmatpush1.msra.mxu0 0.0
        %940 = vmatprep.subr.mxu0 0.0
        %941 = vmatpush1.msra.mxu0 0.0
        %942 = vmatprep.subr.mxu0 0.0
        %943 = vmatpush1.msra.mxu0 0.0
        %944 = vmatprep.subr.mxu0 0.0
        %945 = vmatpush1.msra.mxu0 0.0
        %946 = vmatprep.subr.mxu0 0.0
        %947 = vmatpush1.msra.mxu0 0.0
        %948 = vmatprep.subr.mxu0 0.0
        %949 = vmatpush1.msra.mxu0 0.0
        %950 = vmatprep.subr.mxu0 0.0
        %951 = vmatpush1.msra.mxu0 0.0
        %952 = vmatprep.subr.mxu0 0.0
        %953 = vmatpush1.msra.mxu0 0.0
        %954 = vmatprep.subr.mxu0 0.0
        %955 = vmatpush1.msra.mxu0 0.0
        %956 = vmatprep.mubr.f32.mxu0 0.0
        %957 = vmatmul.mubr.f32.gmra.mrb[0].mxu0 %v869
        %v958 = vpop.f32.mrb[0].mxu0
        %v959 = vadd.f32 0.0, %v958
        %v960 = vpop.f32.mrb[0].mxu0
        %961 = vmatprep.mubr.f32.mxu0 0.0
        %962 = vmatmul.mubr.f32.gmra.mrb[0].mxu0 %v872
        %v963 = vpop.f32.mrb[0].mxu0
        %v964 = vadd.f32 0.0, %v963
        %v965 = vpop.f32.mrb[0].mxu0
        %966 = vmatprep.mubr.f32.mxu0 0.0
        %967 = vmatmul.mubr.f32.gmra.mrb[0].mxu0 %v875
        %v968 = vpop.f32.mrb[0].mxu0
        %v969 = vadd.f32 0.0, %v968
        %v970 = vpop.f32.mrb[0].mxu0
        %971 = vmatprep.mubr.f32.mxu0 0.0
        %972 = vmatmul.mubr.f32.gmra.mrb[0].mxu0 %v878
        %v973 = vpop.f32.mrb[0].mxu0
        %v974 = vadd.f32 0.0, %v973
        %v975 = vpop.f32.mrb[0].mxu0
        %976 = vmatprep.mubr.f32.mxu0 0.0
        %977 = vmatmul.mubr.f32.gmra.mrb[0].mxu0 %v881
        %v978 = vpop.f32.mrb[0].mxu0
        %v979 = vadd.f32 0.0, %v978
        %v980 = vpop.f32.mrb[0].mxu0
        %981 = vmatprep.mubr.f32.mxu0 0.0
        %982 = vmatmul.mubr.f32.gmra.mrb[0].mxu0 %v884
        %v983 = vpop.f32.mrb[0].mxu0
        %v984 = vadd.f32 0.0, %v983
        %v985 = vpop.f32.mrb[0].mxu0
        %986 = vmatprep.mubr.f32.mxu0 0.0
        %987 = vmatmul.mubr.f32.gmra.mrb[0].mxu0 %v887
        %v988 = vpop.f32.mrb[0].mxu0
        %v989 = vadd.f32 0.0, %v988
        %v990 = vpop.f32.mrb[0].mxu0
        %991 = vmatprep.mubr.f32.mxu0 0.0
        %992 = vmatmul.mubr.f32.gmra.mrb[0].mxu0 %v890
        %v993 = vpop.f32.mrb[0].mxu0
        %v994 = vadd.f32 0.0, %v993
        %v995 = vpop.f32.mrb[0].mxu0
        %996 = vdwg.mxu0
        %997 = vrot.lane.b32.xlu0 %v522, 112
        %v998 = vpop.permute.xlu0 %997
        %999 = vrot.lane.b32.xlu0 %v526, 112
        %v1000 = vpop.permute.xlu0 %999
        %1001 = vrot.lane.b32.xlu0 %v532, 112
        %v1002 = vpop.permute.xlu0 %1001
        %1003 = vrot.lane.b32.xlu0 %v536, 112
        %v1004 = vpop.permute.xlu0 %1003
        %1005 = vrot.lane.b32.xlu0 %v542, 112
        %v1006 = vpop.permute.xlu0 %1005
        %1007 = vrot.lane.b32.xlu0 %v546, 112
        %v1008 = vpop.permute.xlu0 %1007
        %1009 = vrot.lane.b32.xlu0 %v552, 112
        %v1010 = vpop.permute.xlu0 %1009
        %1011 = vrot.lane.b32.xlu0 %v556, 112
        %v1012 = vpop.permute.xlu0 %1011
        %1013 = vrot.lane.b32.xlu0 %v524, 112
        %v1014 = vpop.permute.xlu0 %1013
        %1015 = vrot.lane.b32.xlu0 %v528, 112
        %v1016 = vpop.permute.xlu0 %1015
        %1017 = vrot.lane.b32.xlu0 %v534, 112
        %v1018 = vpop.permute.xlu0 %1017
        %1019 = vrot.lane.b32.xlu0 %v538, 112
        %v1020 = vpop.permute.xlu0 %1019
        %1021 = vrot.lane.b32.xlu0 %v544, 112
        %v1022 = vpop.permute.xlu0 %1021
        %1023 = vrot.lane.b32.xlu0 %v548, 112
        %v1024 = vpop.permute.xlu0 %1023
        %1025 = vrot.lane.b32.xlu0 %v554, 112
        %v1026 = vpop.permute.xlu0 %1025
        %1027 = vrot.lane.b32.xlu0 %v558, 112
        %v1028 = vpop.permute.xlu0 %1027
        %v1029 = vsel %vm625, %v998, 0
        %v1031 = vsel %vm625, %v1000, 0
        %v1033 = vsel %vm625, %v1002, 0
        %v1035 = vsel %vm625, %v1004, 0
        %v1037 = vsel %vm625, %v1006, 0
        %v1039 = vsel %vm625, %v1008, 0
        %v1041 = vsel %vm625, %v1010, 0
        %v1043 = vsel %vm625, %v1012, 0
        %v1045 = vsel %vm625, %v1014, 0
        %v1047 = vsel %vm625, %v1016, 0
        %v1049 = vsel %vm625, %v1018, 0
        %v1051 = vsel %vm625, %v1020, 0
        %v1053 = vsel %vm625, %v1022, 0
        %v1055 = vsel %vm625, %v1024, 0
        %v1057 = vsel %vm625, %v1026, 0
        %v1059 = vsel %vm625, %v1028, 0
        %1061 = vmatprep.subr.mxu0 0.0
        %1062 = vmatpush1.xpose.msra.mxu0 %v1045
        %1063 = vmatprep.subr.mxu0 0.0
        %1064 = vmatpush1.xpose.msra.mxu0 %v1047
        %1065 = vmatprep.subr.mxu0 0.0
        %1066 = vmatpush1.xpose.msra.mxu0 %v1049
        %1067 = vmatprep.subr.mxu0 0.0
        %1068 = vmatpush1.xpose.msra.mxu0 %v1051
        %1069 = vmatprep.subr.mxu0 0.0
        %1070 = vmatpush1.xpose.msra.mxu0 %v1053
        %1071 = vmatprep.subr.mxu0 0.0
        %1072 = vmatpush1.xpose.msra.mxu0 %v1055
        %1073 = vmatprep.subr.mxu0 0.0
        %1074 = vmatpush1.xpose.msra.mxu0 %v1057
        %1075 = vmatprep.subr.mxu0 0.0
        %1076 = vmatpush1.xpose.msra.mxu0 %v1059
        %1077 = vmatprep.subr.mxu0 0.0
        %1078 = vmatpush1.xpose.msra.mxu0 0.0
        %1079 = vmatprep.subr.mxu0 0.0
        %1080 = vmatpush1.xpose.msra.mxu0 0.0
        %1081 = vmatprep.subr.mxu0 0.0
        %1082 = vmatpush1.xpose.msra.mxu0 0.0
        %1083 = vmatprep.subr.mxu0 0.0
        %1084 = vmatpush1.xpose.msra.mxu0 0.0
        %1085 = vmatprep.subr.mxu0 0.0
        %1086 = vmatpush1.xpose.msra.mxu0 0.0
        %1087 = vmatprep.subr.mxu0 0.0
        %1088 = vmatpush1.xpose.msra.mxu0 0.0
        %1089 = vmatprep.subr.mxu0 0.0
        %1090 = vmatpush1.xpose.msra.mxu0 0.0
        %1091 = vmatprep.subr.mxu0 0.0
        %1092 = vmatpush1.xpose.msra.mxu0 0.0
        %1093 = vmatprep.subr.mxu0 0.0
        %1094 = vmatpush1.xpose.msra.mxu0 0.0
        %1095 = vmatprep.subr.mxu0 0.0
        %1096 = vmatpush1.xpose.msra.mxu0 0.0
        %1097 = vmatprep.subr.mxu0 0.0
        %1098 = vmatpush1.xpose.msra.mxu0 0.0
        %1099 = vmatprep.subr.mxu0 0.0
        %1100 = vmatpush1.xpose.msra.mxu0 0.0
        %1101 = vmatprep.subr.mxu0 0.0
        %1102 = vmatpush1.xpose.msra.mxu0 0.0
        %1103 = vmatprep.subr.mxu0 0.0
        %1104 = vmatpush1.xpose.msra.mxu0 0.0
        %1105 = vmatprep.subr.mxu0 0.0
        %1106 = vmatpush1.xpose.msra.mxu0 0.0
        %1107 = vmatprep.subr.mxu0 0.0
        %1108 = vmatpush1.xpose.msra.mxu0 0.0
        %1109 = vmatprep.subr.mxu0 0.0
        %1110 = vmatpush1.xpose.msra.mxu0 0.0
        %1111 = vmatprep.subr.mxu0 0.0
        %1112 = vmatpush1.xpose.msra.mxu0 0.0
        %1113 = vmatprep.subr.mxu0 0.0
        %1114 = vmatpush1.xpose.msra.mxu0 0.0
        %1115 = vmatprep.subr.mxu0 0.0
        %1116 = vmatpush1.xpose.msra.mxu0 0.0
        %1117 = vmatprep.subr.mxu0 0.0
        %1118 = vmatpush1.xpose.msra.mxu0 0.0
        %1119 = vmatprep.subr.mxu0 0.0
        %1120 = vmatpush1.xpose.msra.mxu0 0.0
        %1121 = vmatprep.subr.mxu0 0.0
        %1122 = vmatpush1.xpose.msra.mxu0 0.0
        %1123 = vmatprep.subr.mxu0 0.0
        %1124 = vmatpush1.xpose.msra.mxu0 0.0
        %1125 = vmatprep.mubr.f32.mxu0 0.0
        %1126 = vmatmul.mubr.f32.gmra.mrb[0].mxu0 %v1029
        %v1127 = vpop.f32.mrb[0].mxu0
        %v1128 = vadd.f32 0.0, %v1127
        %v1129 = vpop.f32.mrb[0].mxu0
        %1130 = vmatprep.mubr.f32.mxu0 0.0
        %1131 = vmatmul.mubr.f32.gmra.mrb[0].mxu0 %v1031
        %v1132 = vpop.f32.mrb[0].mxu0
        %v1133 = vadd.f32 0.0, %v1132
        %v1134 = vpop.f32.mrb[0].mxu0
        %1135 = vmatprep.mubr.f32.mxu0 0.0
        %1136 = vmatmul.mubr.f32.gmra.mrb[0].mxu0 %v1033
        %v1137 = vpop.f32.mrb[0].mxu0
        %v1138 = vadd.f32 0.0, %v1137
        %v1139 = vpop.f32.mrb[0].mxu0
        %1140 = vmatprep.mubr.f32.mxu0 0.0
        %1141 = vmatmul.mubr.f32.gmra.mrb[0].mxu0 %v1035
        %v1142 = vpop.f32.mrb[0].mxu0
        %v1143 = vadd.f32 0.0, %v1142
        %v1144 = vpop.f32.mrb[0].mxu0
        %1145 = vmatprep.mubr.f32.mxu0 0.0
        %1146 = vmatmul.mubr.f32.gmra.mrb[0].mxu0 %v1037
        %v1147 = vpop.f32.mrb[0].mxu0
        %v1148 = vadd.f32 0.0, %v1147
        %v1149 = vpop.f32.mrb[0].mxu0
        %1150 = vmatprep.mubr.f32.mxu0 0.0
        %1151 = vmatmul.mubr.f32.gmra.mrb[0].mxu0 %v1039
        %v1152 = vpop.f32.mrb[0].mxu0
        %v1153 = vadd.f32 0.0, %v1152
        %v1154 = vpop.f32.mrb[0].mxu0
        %1155 = vmatprep.mubr.f32.mxu0 0.0
        %1156 = vmatmul.mubr.f32.gmra.mrb[0].mxu0 %v1041
        %v1157 = vpop.f32.mrb[0].mxu0
        %v1158 = vadd.f32 0.0, %v1157
        %v1159 = vpop.f32.mrb[0].mxu0
        %1160 = vmatprep.mubr.f32.mxu0 0.0
        %1161 = vmatmul.mubr.f32.gmra.mrb[0].mxu0 %v1043
        %v1162 = vpop.f32.mrb[0].mxu0
        %v1163 = vadd.f32 0.0, %v1162
        %v1164 = vpop.f32.mrb[0].mxu0
        %1165 = vdwg.mxu0
        %v1166 = vsel %vm779, %v1128, -inf
        %1167 = vmax.xlane.f32.xlu0 %v1166
        %v1168 = vpop.xlane.xlu0 %1167
        %v1169 = vsel %vm779, %v1133, -inf
        %1170 = vmax.xlane.f32.xlu0 %v1169
        %v1171 = vpop.xlane.xlu0 %1170
        %v1172 = vsel %vm779, %v1138, -inf
        %1173 = vmax.xlane.f32.xlu0 %v1172
        %v1174 = vpop.xlane.xlu0 %1173
        %v1175 = vsel %vm779, %v1143, -inf
        %1176 = vmax.xlane.f32.xlu0 %v1175
        %v1177 = vpop.xlane.xlu0 %1176
        %v1178 = vsel %vm779, %v1148, -inf
        %1179 = vmax.xlane.f32.xlu0 %v1178
        %v1180 = vpop.xlane.xlu0 %1179
        %v1181 = vsel %vm779, %v1153, -inf
        %1182 = vmax.xlane.f32.xlu0 %v1181
        %v1183 = vpop.xlane.xlu0 %1182
        %v1184 = vsel %vm779, %v1158, -inf
        %1185 = vmax.xlane.f32.xlu0 %v1184
        %v1186 = vpop.xlane.xlu0 %1185
        %v1187 = vsel %vm779, %v1163, -inf
        %1188 = vmax.xlane.f32.xlu0 %v1187
        %v1189 = vpop.xlane.xlu0 %1188
        %v1190 = vsub.f32 %v1128, %v1168
        %v1191 = vsub.f32 %v1133, %v1171
        %v1192 = vsub.f32 %v1138, %v1174
        %v1193 = vsub.f32 %v1143, %v1177
        %v1194 = vsub.f32 %v1148, %v1180
        %v1195 = vsub.f32 %v1153, %v1183
        %v1196 = vsub.f32 %v1158, %v1186
        %v1197 = vsub.f32 %v1163, %v1189
        %v1198 = vmul.f32 %v1190, 1.442695
        %v1199 = vpow.pop %v1198
        %v1200 = vmul.f32 %v1191, 1.442695
        %v1201 = vpow.pop %v1200
        %v1202 = vmul.f32 %v1192, 1.442695
        %v1203 = vpow.pop %v1202
        %v1204 = vmul.f32 %v1193, 1.442695
        %v1205 = vpow.pop %v1204
        %v1206 = vmul.f32 %v1194, 1.442695
        %v1207 = vpow.pop %v1206
        %v1208 = vmul.f32 %v1195, 1.442695
        %v1209 = vpow.pop %v1208
        %v1210 = vmul.f32 %v1196, 1.442695
        %v1211 = vpow.pop %v1210
        %v1212 = vmul.f32 %v1197, 1.442695
        %v1213 = vpow.pop %v1212
        %v1214 = vsel %vm779, %v1199, 0.0
        %1215 = vadd.xlane.f32.xlu0 %v1214
        %v1216 = vpop.xlane.xlu0 %1215
        %v1217 = vsel %vm779, %v1201, 0.0
        %1218 = vadd.xlane.f32.xlu0 %v1217
        %v1219 = vpop.xlane.xlu0 %1218
        %v1220 = vsel %vm779, %v1203, 0.0
        %1221 = vadd.xlane.f32.xlu0 %v1220
        %v1222 = vpop.xlane.xlu0 %1221
        %v1223 = vsel %vm779, %v1205, 0.0
        %1224 = vadd.xlane.f32.xlu0 %v1223
        %v1225 = vpop.xlane.xlu0 %1224
        %v1226 = vsel %vm779, %v1207, 0.0
        %1227 = vadd.xlane.f32.xlu0 %v1226
        %v1228 = vpop.xlane.xlu0 %1227
        %v1229 = vsel %vm779, %v1209, 0.0
        %1230 = vadd.xlane.f32.xlu0 %v1229
        %v1231 = vpop.xlane.xlu0 %1230
        %v1232 = vsel %vm779, %v1211, 0.0
        %1233 = vadd.xlane.f32.xlu0 %v1232
        %v1234 = vpop.xlane.xlu0 %1233
        %v1235 = vsel %vm779, %v1213, 0.0
        %1236 = vadd.xlane.f32.xlu0 %v1235
        %v1237 = vpop.xlane.xlu0 %1236
        %v1238 = vrcp.pop %v1216
        %v1239 = vrcp.pop %v1219
        %v1240 = vrcp.pop %v1222
        %v1241 = vrcp.pop %v1225
        %v1242 = vrcp.pop %v1228
        %v1243 = vrcp.pop %v1231
        %v1244 = vrcp.pop %v1234
        %v1245 = vrcp.pop %v1237
        %v1246 = vmul.f32 %v1199, %v1238
        %v1247 = vmul.f32 %v1201, %v1239
        %v1248 = vmul.f32 %v1203, %v1240
        %v1249 = vmul.f32 %v1205, %v1241
        %v1250 = vmul.f32 %v1207, %v1242
        %v1251 = vmul.f32 %v1209, %v1243
        %v1252 = vmul.f32 %v1211, %v1244
        %v1253 = vmul.f32 %v1213, %v1245
        %1262 = vrot.lane.b32.xlu0 %v595, 112
        %v1263 = vpop.permute.xlu0 %1262
        %1264 = vrot.lane.b32.xlu0 %v598, 112
        %v1265 = vpop.permute.xlu0 %1264
        %1266 = vrot.lane.b32.xlu0 %v603, 112
        %v1267 = vpop.permute.xlu0 %1266
        %1268 = vrot.lane.b32.xlu0 %v606, 112
        %v1269 = vpop.permute.xlu0 %1268
        %1270 = vrot.lane.b32.xlu0 %v611, 112
        %v1271 = vpop.permute.xlu0 %1270
        %1272 = vrot.lane.b32.xlu0 %v614, 112
        %v1273 = vpop.permute.xlu0 %1272
        %1274 = vrot.lane.b32.xlu0 %v619, 112
        %v1275 = vpop.permute.xlu0 %1274
        %1276 = vrot.lane.b32.xlu0 %v622, 112
        %v1277 = vpop.permute.xlu0 %1276
        %v1287 = vsel %vm779, %v1246, 0
        %v1290 = vsel %vm779, %v1247, 0
        %v1293 = vsel %vm779, %v1248, 0
        %v1296 = vsel %vm779, %v1249, 0
        %v1299 = vsel %vm779, %v1250, 0
        %v1302 = vsel %vm779, %v1251, 0
        %v1305 = vsel %vm779, %v1252, 0
        %v1308 = vsel %vm779, %v1253, 0
        %1310 = vmatprep.subr.mxu0 0.0
        %1311 = vmatpush1.msra.mxu0 %v1263
        %1312 = vmatprep.subr.mxu0 0.0
        %1313 = vmatpush1.msra.mxu0 %v1265
        %1314 = vmatprep.subr.mxu0 0.0
        %1315 = vmatpush1.msra.mxu0 %v1267
        %1316 = vmatprep.subr.mxu0 0.0
        %1317 = vmatpush1.msra.mxu0 %v1269
        %1318 = vmatprep.subr.mxu0 0.0
        %1319 = vmatpush1.msra.mxu0 %v1271
        %1320 = vmatprep.subr.mxu0 0.0
        %1321 = vmatpush1.msra.mxu0 %v1273
        %1322 = vmatprep.subr.mxu0 0.0
        %1323 = vmatpush1.msra.mxu0 %v1275
        %1324 = vmatprep.subr.mxu0 0.0
        %1325 = vmatpush1.msra.mxu0 %v1277
        %1326 = vmatprep.subr.mxu0 0.0
        %1327 = vmatpush1.msra.mxu0 0.0
        %1328 = vmatprep.subr.mxu0 0.0
        %1329 = vmatpush1.msra.mxu0 0.0
        %1330 = vmatprep.subr.mxu0 0.0
        %1331 = vmatpush1.msra.mxu0 0.0
        %1332 = vmatprep.subr.mxu0 0.0
        %1333 = vmatpush1.msra.mxu0 0.0
        %1334 = vmatprep.subr.mxu0 0.0
        %1335 = vmatpush1.msra.mxu0 0.0
        %1336 = vmatprep.subr.mxu0 0.0
        %1337 = vmatpush1.msra.mxu0 0.0
        %1338 = vmatprep.subr.mxu0 0.0
        %1339 = vmatpush1.msra.mxu0 0.0
        %1340 = vmatprep.subr.mxu0 0.0
        %1341 = vmatpush1.msra.mxu0 0.0
        %1342 = vmatprep.subr.mxu0 0.0
        %1343 = vmatpush1.msra.mxu0 0.0
        %1344 = vmatprep.subr.mxu0 0.0
        %1345 = vmatpush1.msra.mxu0 0.0
        %1346 = vmatprep.subr.mxu0 0.0
        %1347 = vmatpush1.msra.mxu0 0.0
        %1348 = vmatprep.subr.mxu0 0.0
        %1349 = vmatpush1.msra.mxu0 0.0
        %1350 = vmatprep.subr.mxu0 0.0
        %1351 = vmatpush1.msra.mxu0 0.0
        %1352 = vmatprep.subr.mxu0 0.0
        %1353 = vmatpush1.msra.mxu0 0.0
        %1354 = vmatprep.subr.mxu0 0.0
        %1355 = vmatpush1.msra.mxu0 0.0
        %1356 = vmatprep.subr.mxu0 0.0
        %1357 = vmatpush1.msra.mxu0 0.0
        %1358 = vmatprep.subr.mxu0 0.0
        %1359 = vmatpush1.msra.mxu0 0.0
        %1360 = vmatprep.subr.mxu0 0.0
        %1361 = vmatpush1.msra.mxu0 0.0
        %1362 = vmatprep.subr.mxu0 0.0
        %1363 = vmatpush1.msra.mxu0 0.0
        %1364 = vmatprep.subr.mxu0 0.0
        %1365 = vmatpush1.msra.mxu0 0.0
        %1366 = vmatprep.subr.mxu0 0.0
        %1367 = vmatpush1.msra.mxu0 0.0
        %1368 = vmatprep.subr.mxu0 0.0
        %1369 = vmatpush1.msra.mxu0 0.0
        %1370 = vmatprep.subr.mxu0 0.0
        %1371 = vmatpush1.msra.mxu0 0.0
        %1372 = vmatprep.subr.mxu0 0.0
        %1373 = vmatpush1.msra.mxu0 0.0
        %1374 = vmatprep.mubr.f32.mxu0 0.0
        %1375 = vmatmul.mubr.f32.gmra.mrb[0].mxu0 %v1287
        %v1376 = vpop.f32.mrb[0].mxu0
        %v1377 = vadd.f32 0.0, %v1376
        %v1378 = vpop.f32.mrb[0].mxu0
        %1379 = vmatprep.mubr.f32.mxu0 0.0
        %1380 = vmatmul.mubr.f32.gmra.mrb[0].mxu0 %v1290
        %v1381 = vpop.f32.mrb[0].mxu0
        %v1382 = vadd.f32 0.0, %v1381
        %v1383 = vpop.f32.mrb[0].mxu0
        %1384 = vmatprep.mubr.f32.mxu0 0.0
        %1385 = vmatmul.mubr.f32.gmra.mrb[0].mxu0 %v1293
        %v1386 = vpop.f32.mrb[0].mxu0
        %v1387 = vadd.f32 0.0, %v1386
        %v1388 = vpop.f32.mrb[0].mxu0
        %1389 = vmatprep.mubr.f32.mxu0 0.0
        %1390 = vmatmul.mubr.f32.gmra.mrb[0].mxu0 %v1296
        %v1391 = vpop.f32.mrb[0].mxu0
        %v1392 = vadd.f32 0.0, %v1391
        %v1393 = vpop.f32.mrb[0].mxu0
        %1394 = vmatprep.mubr.f32.mxu0 0.0
        %1395 = vmatmul.mubr.f32.gmra.mrb[0].mxu0 %v1299
        %v1396 = vpop.f32.mrb[0].mxu0
        %v1397 = vadd.f32 0.0, %v1396
        %v1398 = vpop.f32.mrb[0].mxu0
        %1399 = vmatprep.mubr.f32.mxu0 0.0
        %1400 = vmatmul.mubr.f32.gmra.mrb[0].mxu0 %v1302
        %v1401 = vpop.f32.mrb[0].mxu0
        %v1402 = vadd.f32 0.0, %v1401
        %v1403 = vpop.f32.mrb[0].mxu0
        %1404 = vmatprep.mubr.f32.mxu0 0.0
        %1405 = vmatmul.mubr.f32.gmra.mrb[0].mxu0 %v1305
        %v1406 = vpop.f32.mrb[0].mxu0
        %v1407 = vadd.f32 0.0, %v1406
        %v1408 = vpop.f32.mrb[0].mxu0
        %1409 = vmatprep.mubr.f32.mxu0 0.0
        %1410 = vmatmul.mubr.f32.gmra.mrb[0].mxu0 %v1308
        %v1411 = vpop.f32.mrb[0].mxu0
        %v1412 = vadd.f32 0.0, %v1411
        %v1413 = vpop.f32.mrb[0].mxu0
        %1414 = vdwg.mxu0
        %1415 = vrot.lane.b32.xlu0 %v522, 96
        %v1416 = vpop.permute.xlu0 %1415
        %1417 = vrot.lane.b32.xlu0 %v526, 96
        %v1418 = vpop.permute.xlu0 %1417
        %1419 = vrot.lane.b32.xlu0 %v532, 96
        %v1420 = vpop.permute.xlu0 %1419
        %1421 = vrot.lane.b32.xlu0 %v536, 96
        %v1422 = vpop.permute.xlu0 %1421
        %1423 = vrot.lane.b32.xlu0 %v542, 96
        %v1424 = vpop.permute.xlu0 %1423
        %1425 = vrot.lane.b32.xlu0 %v546, 96
        %v1426 = vpop.permute.xlu0 %1425
        %1427 = vrot.lane.b32.xlu0 %v552, 96
        %v1428 = vpop.permute.xlu0 %1427
        %1429 = vrot.lane.b32.xlu0 %v556, 96
        %v1430 = vpop.permute.xlu0 %1429
        %1431 = vrot.lane.b32.xlu0 %v524, 96
        %v1432 = vpop.permute.xlu0 %1431
        %1433 = vrot.lane.b32.xlu0 %v528, 96
        %v1434 = vpop.permute.xlu0 %1433
        %1435 = vrot.lane.b32.xlu0 %v534, 96
        %v1436 = vpop.permute.xlu0 %1435
        %1437 = vrot.lane.b32.xlu0 %v538, 96
        %v1438 = vpop.permute.xlu0 %1437
        %1439 = vrot.lane.b32.xlu0 %v544, 96
        %v1440 = vpop.permute.xlu0 %1439
        %1441 = vrot.lane.b32.xlu0 %v548, 96
        %v1442 = vpop.permute.xlu0 %1441
        %1443 = vrot.lane.b32.xlu0 %v554, 96
        %v1444 = vpop.permute.xlu0 %1443
        %1445 = vrot.lane.b32.xlu0 %v558, 96
        %v1446 = vpop.permute.xlu0 %1445
        %v1447 = vsel %vm625, %v1416, 0
        %v1449 = vsel %vm625, %v1418, 0
        %v1451 = vsel %vm625, %v1420, 0
        %v1453 = vsel %vm625, %v1422, 0
        %v1455 = vsel %vm625, %v1424, 0
        %v1457 = vsel %vm625, %v1426, 0
        %v1459 = vsel %vm625, %v1428, 0
        %v1461 = vsel %vm625, %v1430, 0
        %v1463 = vsel %vm625, %v1432, 0
        %v1465 = vsel %vm625, %v1434, 0
        %v1467 = vsel %vm625, %v1436, 0
        %v1469 = vsel %vm625, %v1438, 0
        %v1471 = vsel %vm625, %v1440, 0
        %v1473 = vsel %vm625, %v1442, 0
        %v1475 = vsel %vm625, %v1444, 0
        %v1477 = vsel %vm625, %v1446, 0
        %1479 = vmatprep.subr.mxu0 0.0
        %1480 = vmatpush1.xpose.msra.mxu0 %v1463
        %1481 = vmatprep.subr.mxu0 0.0
        %1482 = vmatpush1.xpose.msra.mxu0 %v1465
        %1483 = vmatprep.subr.mxu0 0.0
        %1484 = vmatpush1.xpose.msra.mxu0 %v1467
        %1485 = vmatprep.subr.mxu0 0.0
        %1486 = vmatpush1.xpose.msra.mxu0 %v1469
        %1487 = vmatprep.subr.mxu0 0.0
        %1488 = vmatpush1.xpose.msra.mxu0 %v1471
        %1489 = vmatprep.subr.mxu0 0.0
        %1490 = vmatpush1.xpose.msra.mxu0 %v1473
        %1491 = vmatprep.subr.mxu0 0.0
        %1492 = vmatpush1.xpose.msra.mxu0 %v1475
        %1493 = vmatprep.subr.mxu0 0.0
        %1494 = vmatpush1.xpose.msra.mxu0 %v1477
        %1495 = vmatprep.subr.mxu0 0.0
        %1496 = vmatpush1.xpose.msra.mxu0 0.0
        %1497 = vmatprep.subr.mxu0 0.0
        %1498 = vmatpush1.xpose.msra.mxu0 0.0
        %1499 = vmatprep.subr.mxu0 0.0
        %1500 = vmatpush1.xpose.msra.mxu0 0.0
        %1501 = vmatprep.subr.mxu0 0.0
        %1502 = vmatpush1.xpose.msra.mxu0 0.0
        %1503 = vmatprep.subr.mxu0 0.0
        %1504 = vmatpush1.xpose.msra.mxu0 0.0
        %1505 = vmatprep.subr.mxu0 0.0
        %1506 = vmatpush1.xpose.msra.mxu0 0.0
        %1507 = vmatprep.subr.mxu0 0.0
        %1508 = vmatpush1.xpose.msra.mxu0 0.0
        %1509 = vmatprep.subr.mxu0 0.0
        %1510 = vmatpush1.xpose.msra.mxu0 0.0
        %1511 = vmatprep.subr.mxu0 0.0
        %1512 = vmatpush1.xpose.msra.mxu0 0.0
        %1513 = vmatprep.subr.mxu0 0.0
        %1514 = vmatpush1.xpose.msra.mxu0 0.0
        %1515 = vmatprep.subr.mxu0 0.0
        %1516 = vmatpush1.xpose.msra.mxu0 0.0
        %1517 = vmatprep.subr.mxu0 0.0
        %1518 = vmatpush1.xpose.msra.mxu0 0.0
        %1519 = vmatprep.subr.mxu0 0.0
        %1520 = vmatpush1.xpose.msra.mxu0 0.0
        %1521 = vmatprep.subr.mxu0 0.0
        %1522 = vmatpush1.xpose.msra.mxu0 0.0
        %1523 = vmatprep.subr.mxu0 0.0
        %1524 = vmatpush1.xpose.msra.mxu0 0.0
        %1525 = vmatprep.subr.mxu0 0.0
        %1526 = vmatpush1.xpose.msra.mxu0 0.0
        %1527 = vmatprep.subr.mxu0 0.0
        %1528 = vmatpush1.xpose.msra.mxu0 0.0
        %1529 = vmatprep.subr.mxu0 0.0
        %1530 = vmatpush1.xpose.msra.mxu0 0.0
        %1531 = vmatprep.subr.mxu0 0.0
        %1532 = vmatpush1.xpose.msra.mxu0 0.0
        %1533 = vmatprep.subr.mxu0 0.0
        %1534 = vmatpush1.xpose.msra.mxu0 0.0
        %1535 = vmatprep.subr.mxu0 0.0
        %1536 = vmatpush1.xpose.msra.mxu0 0.0
        %1537 = vmatprep.subr.mxu0 0.0
        %1538 = vmatpush1.xpose.msra.mxu0 0.0
        %1539 = vmatprep.subr.mxu0 0.0
        %1540 = vmatpush1.xpose.msra.mxu0 0.0
        %1541 = vmatprep.subr.mxu0 0.0
        %1542 = vmatpush1.xpose.msra.mxu0 0.0
        %1543 = vmatprep.mubr.f32.mxu0 0.0
        %1544 = vmatmul.mubr.f32.gmra.mrb[0].mxu0 %v1447
        %v1545 = vpop.f32.mrb[0].mxu0
        %v1546 = vadd.f32 0.0, %v1545
        %v1547 = vpop.f32.mrb[0].mxu0
        %1548 = vmatprep.mubr.f32.mxu0 0.0
        %1549 = vmatmul.mubr.f32.gmra.mrb[0].mxu0 %v1449
        %v1550 = vpop.f32.mrb[0].mxu0
        %v1551 = vadd.f32 0.0, %v1550
        %v1552 = vpop.f32.mrb[0].mxu0
        %1553 = vmatprep.mubr.f32.mxu0 0.0
        %1554 = vmatmul.mubr.f32.gmra.mrb[0].mxu0 %v1451
        %v1555 = vpop.f32.mrb[0].mxu0
        %v1556 = vadd.f32 0.0, %v1555
        %v1557 = vpop.f32.mrb[0].mxu0
        %1558 = vmatprep.mubr.f32.mxu0 0.0
        %1559 = vmatmul.mubr.f32.gmra.mrb[0].mxu0 %v1453
        %v1560 = vpop.f32.mrb[0].mxu0
        %v1561 = vadd.f32 0.0, %v1560
        %v1562 = vpop.f32.mrb[0].mxu0
        %1563 = vmatprep.mubr.f32.mxu0 0.0
        %1564 = vmatmul.mubr.f32.gmra.mrb[0].mxu0 %v1455
        %v1565 = vpop.f32.mrb[0].mxu0
        %v1566 = vadd.f32 0.0, %v1565
        %v1567 = vpop.f32.mrb[0].mxu0
        %1568 = vmatprep.mubr.f32.mxu0 0.0
        %1569 = vmatmul.mubr.f32.gmra.mrb[0].mxu0 %v1457
        %v1570 = vpop.f32.mrb[0].mxu0
        %v1571 = vadd.f32 0.0, %v1570
        %v1572 = vpop.f32.mrb[0].mxu0
        %1573 = vmatprep.mubr.f32.mxu0 0.0
        %1574 = vmatmul.mubr.f32.gmra.mrb[0].mxu0 %v1459
        %v1575 = vpop.f32.mrb[0].mxu0
        %v1576 = vadd.f32 0.0, %v1575
        %v1577 = vpop.f32.mrb[0].mxu0
        %1578 = vmatprep.mubr.f32.mxu0 0.0
        %1579 = vmatmul.mubr.f32.gmra.mrb[0].mxu0 %v1461
        %v1580 = vpop.f32.mrb[0].mxu0
        %v1581 = vadd.f32 0.0, %v1580
        %v1582 = vpop.f32.mrb[0].mxu0
        %1583 = vdwg.mxu0
        %v1584 = vsel %vm779, %v1546, -inf
        %1585 = vmax.xlane.f32.xlu0 %v1584
        %v1586 = vpop.xlane.xlu0 %1585
        %v1587 = vsel %vm779, %v1551, -inf
        %1588 = vmax.xlane.f32.xlu0 %v1587
        %v1589 = vpop.xlane.xlu0 %1588
        %v1590 = vsel %vm779, %v1556, -inf
        %1591 = vmax.xlane.f32.xlu0 %v1590
        %v1592 = vpop.xlane.xlu0 %1591
        %v1593 = vsel %vm779, %v1561, -inf
        %1594 = vmax.xlane.f32.xlu0 %v1593
        %v1595 = vpop.xlane.xlu0 %1594
        %v1596 = vsel %vm779, %v1566, -inf
        %1597 = vmax.xlane.f32.xlu0 %v1596
        %v1598 = vpop.xlane.xlu0 %1597
        %v1599 = vsel %vm779, %v1571, -inf
        %1600 = vmax.xlane.f32.xlu0 %v1599
        %v1601 = vpop.xlane.xlu0 %1600
        %v1602 = vsel %vm779, %v1576, -inf
        %1603 = vmax.xlane.f32.xlu0 %v1602
        %v1604 = vpop.xlane.xlu0 %1603
        %v1605 = vsel %vm779, %v1581, -inf
        %1606 = vmax.xlane.f32.xlu0 %v1605
        %v1607 = vpop.xlane.xlu0 %1606
        %v1608 = vsub.f32 %v1546, %v1586
        %v1609 = vsub.f32 %v1551, %v1589
        %v1610 = vsub.f32 %v1556, %v1592
        %v1611 = vsub.f32 %v1561, %v1595
        %v1612 = vsub.f32 %v1566, %v1598
        %v1613 = vsub.f32 %v1571, %v1601
        %v1614 = vsub.f32 %v1576, %v1604
        %v1615 = vsub.f32 %v1581, %v1607
        %v1616 = vmul.f32 %v1608, 1.442695
        %v1617 = vpow.pop %v1616
        %v1618 = vmul.f32 %v1609, 1.442695
        %v1619 = vpow.pop %v1618
        %v1620 = vmul.f32 %v1610, 1.442695
        %v1621 = vpow.pop %v1620
        %v1622 = vmul.f32 %v1611, 1.442695
        %v1623 = vpow.pop %v1622
        %v1624 = vmul.f32 %v1612, 1.442695
        %v1625 = vpow.pop %v1624
        %v1626 = vmul.f32 %v1613, 1.442695
        %v1627 = vpow.pop %v1626
        %v1628 = vmul.f32 %v1614, 1.442695
        %v1629 = vpow.pop %v1628
        %v1630 = vmul.f32 %v1615, 1.442695
        %v1631 = vpow.pop %v1630
        %v1632 = vsel %vm779, %v1617, 0.0
        %1633 = vadd.xlane.f32.xlu0 %v1632
        %v1634 = vpop.xlane.xlu0 %1633
        %v1635 = vsel %vm779, %v1619, 0.0
        %1636 = vadd.xlane.f32.xlu0 %v1635
        %v1637 = vpop.xlane.xlu0 %1636
        %v1638 = vsel %vm779, %v1621, 0.0
        %1639 = vadd.xlane.f32.xlu0 %v1638
        %v1640 = vpop.xlane.xlu0 %1639
        %v1641 = vsel %vm779, %v1623, 0.0
        %1642 = vadd.xlane.f32.xlu0 %v1641
        %v1643 = vpop.xlane.xlu0 %1642
        %v1644 = vsel %vm779, %v1625, 0.0
        %1645 = vadd.xlane.f32.xlu0 %v1644
        %v1646 = vpop.xlane.xlu0 %1645
        %v1647 = vsel %vm779, %v1627, 0.0
        %1648 = vadd.xlane.f32.xlu0 %v1647
        %v1649 = vpop.xlane.xlu0 %1648
        %v1650 = vsel %vm779, %v1629, 0.0
        %1651 = vadd.xlane.f32.xlu0 %v1650
        %v1652 = vpop.xlane.xlu0 %1651
        %v1653 = vsel %vm779, %v1631, 0.0
        %1654 = vadd.xlane.f32.xlu0 %v1653
        %v1655 = vpop.xlane.xlu0 %1654
        %v1656 = vrcp.pop %v1634
        %v1657 = vrcp.pop %v1637
        %v1658 = vrcp.pop %v1640
        %v1659 = vrcp.pop %v1643
        %v1660 = vrcp.pop %v1646
        %v1661 = vrcp.pop %v1649
        %v1662 = vrcp.pop %v1652
        %v1663 = vrcp.pop %v1655
        %v1664 = vmul.f32 %v1617, %v1656
        %v1665 = vmul.f32 %v1619, %v1657
        %v1666 = vmul.f32 %v1621, %v1658
        %v1667 = vmul.f32 %v1623, %v1659
        %v1668 = vmul.f32 %v1625, %v1660
        %v1669 = vmul.f32 %v1627, %v1661
        %v1670 = vmul.f32 %v1629, %v1662
        %v1671 = vmul.f32 %v1631, %v1663
        %1672 = vrot.lane.b32.xlu0 %v595, 96
        %v1673 = vpop.permute.xlu0 %1672
        %1674 = vrot.lane.b32.xlu0 %v598, 96
        %v1675 = vpop.permute.xlu0 %1674
        %1676 = vrot.lane.b32.xlu0 %v603, 96
        %v1677 = vpop.permute.xlu0 %1676
        %1678 = vrot.lane.b32.xlu0 %v606, 96
        %v1679 = vpop.permute.xlu0 %1678
        %1680 = vrot.lane.b32.xlu0 %v611, 96
        %v1681 = vpop.permute.xlu0 %1680
        %1682 = vrot.lane.b32.xlu0 %v614, 96
        %v1683 = vpop.permute.xlu0 %1682
        %1684 = vrot.lane.b32.xlu0 %v619, 96
        %v1685 = vpop.permute.xlu0 %1684
        %1686 = vrot.lane.b32.xlu0 %v622, 96
        %v1687 = vpop.permute.xlu0 %1686
        %v1697 = vsel %vm779, %v1664, 0
        %v1700 = vsel %vm779, %v1665, 0
        %v1703 = vsel %vm779, %v1666, 0
        %v1706 = vsel %vm779, %v1667, 0
        %v1709 = vsel %vm779, %v1668, 0
        %v1712 = vsel %vm779, %v1669, 0
        %v1715 = vsel %vm779, %v1670, 0
        %v1718 = vsel %vm779, %v1671, 0
        %1720 = vmatprep.subr.mxu0 0.0
        %1721 = vmatpush1.msra.mxu0 %v1673
        %1722 = vmatprep.subr.mxu0 0.0
        %1723 = vmatpush1.msra.mxu0 %v1675
        %1724 = vmatprep.subr.mxu0 0.0
        %1725 = vmatpush1.msra.mxu0 %v1677
        %1726 = vmatprep.subr.mxu0 0.0
        %1727 = vmatpush1.msra.mxu0 %v1679
        %1728 = vmatprep.subr.mxu0 0.0
        %1729 = vmatpush1.msra.mxu0 %v1681
        %1730 = vmatprep.subr.mxu0 0.0
        %1731 = vmatpush1.msra.mxu0 %v1683
        %1732 = vmatprep.subr.mxu0 0.0
        %1733 = vmatpush1.msra.mxu0 %v1685
        %1734 = vmatprep.subr.mxu0 0.0
        %1735 = vmatpush1.msra.mxu0 %v1687
        %1736 = vmatprep.subr.mxu0 0.0
        %1737 = vmatpush1.msra.mxu0 0.0
        %1738 = vmatprep.subr.mxu0 0.0
        %1739 = vmatpush1.msra.mxu0 0.0
        %1740 = vmatprep.subr.mxu0 0.0
        %1741 = vmatpush1.msra.mxu0 0.0
        %1742 = vmatprep.subr.mxu0 0.0
        %1743 = vmatpush1.msra.mxu0 0.0
        %1744 = vmatprep.subr.mxu0 0.0
        %1745 = vmatpush1.msra.mxu0 0.0
        %1746 = vmatprep.subr.mxu0 0.0
        %1747 = vmatpush1.msra.mxu0 0.0
        %1748 = vmatprep.subr.mxu0 0.0
        %1749 = vmatpush1.msra.mxu0 0.0
        %1750 = vmatprep.subr.mxu0 0.0
        %1751 = vmatpush1.msra.mxu0 0.0
        %1752 = vmatprep.subr.mxu0 0.0
        %1753 = vmatpush1.msra.mxu0 0.0
        %1754 = vmatprep.subr.mxu0 0.0
        %1755 = vmatpush1.msra.mxu0 0.0
        %1756 = vmatprep.subr.mxu0 0.0
        %1757 = vmatpush1.msra.mxu0 0.0
        %1758 = vmatprep.subr.mxu0 0.0
        %1759 = vmatpush1.msra.mxu0 0.0
        %1760 = vmatprep.subr.mxu0 0.0
        %1761 = vmatpush1.msra.mxu0 0.0
        %1762 = vmatprep.subr.mxu0 0.0
        %1763 = vmatpush1.msra.mxu0 0.0
        %1764 = vmatprep.subr.mxu0 0.0
        %1765 = vmatpush1.msra.mxu0 0.0
        %1766 = vmatprep.subr.mxu0 0.0
        %1767 = vmatpush1.msra.mxu0 0.0
        %1768 = vmatprep.subr.mxu0 0.0
        %1769 = vmatpush1.msra.mxu0 0.0
        %1770 = vmatprep.subr.mxu0 0.0
        %1771 = vmatpush1.msra.mxu0 0.0
        %1772 = vmatprep.subr.mxu0 0.0
        %1773 = vmatpush1.msra.mxu0 0.0
        %1774 = vmatprep.subr.mxu0 0.0
        %1775 = vmatpush1.msra.mxu0 0.0
        %1776 = vmatprep.subr.mxu0 0.0
        %1777 = vmatpush1.msra.mxu0 0.0
        %1778 = vmatprep.subr.mxu0 0.0
        %1779 = vmatpush1.msra.mxu0 0.0
        %1780 = vmatprep.subr.mxu0 0.0
        %1781 = vmatpush1.msra.mxu0 0.0
        %1782 = vmatprep.subr.mxu0 0.0
        %1783 = vmatpush1.msra.mxu0 0.0
        %1784 = vmatprep.mubr.f32.mxu0 0.0
        %1785 = vmatmul.mubr.f32.gmra.mrb[0].mxu0 %v1697
        %v1786 = vpop.f32.mrb[0].mxu0
        %v1787 = vadd.f32 0.0, %v1786
        %v1788 = vpop.f32.mrb[0].mxu0
        %1789 = vmatprep.mubr.f32.mxu0 0.0
        %1790 = vmatmul.mubr.f32.gmra.mrb[0].mxu0 %v1700
        %v1791 = vpop.f32.mrb[0].mxu0
        %v1792 = vadd.f32 0.0, %v1791
        %v1793 = vpop.f32.mrb[0].mxu0
        %1794 = vmatprep.mubr.f32.mxu0 0.0
        %1795 = vmatmul.mubr.f32.gmra.mrb[0].mxu0 %v1703
        %v1796 = vpop.f32.mrb[0].mxu0
        %v1797 = vadd.f32 0.0, %v1796
        %v1798 = vpop.f32.mrb[0].mxu0
        %1799 = vmatprep.mubr.f32.mxu0 0.0
        %1800 = vmatmul.mubr.f32.gmra.mrb[0].mxu0 %v1706
        %v1801 = vpop.f32.mrb[0].mxu0
        %v1802 = vadd.f32 0.0, %v1801
        %v1803 = vpop.f32.mrb[0].mxu0
        %1804 = vmatprep.mubr.f32.mxu0 0.0
        %1805 = vmatmul.mubr.f32.gmra.mrb[0].mxu0 %v1709
        %v1806 = vpop.f32.mrb[0].mxu0
        %v1807 = vadd.f32 0.0, %v1806
        %v1808 = vpop.f32.mrb[0].mxu0
        %1809 = vmatprep.mubr.f32.mxu0 0.0
        %1810 = vmatmul.mubr.f32.gmra.mrb[0].mxu0 %v1712
        %v1811 = vpop.f32.mrb[0].mxu0
        %v1812 = vadd.f32 0.0, %v1811
        %v1813 = vpop.f32.mrb[0].mxu0
        %1814 = vmatprep.mubr.f32.mxu0 0.0
        %1815 = vmatmul.mubr.f32.gmra.mrb[0].mxu0 %v1715
        %v1816 = vpop.f32.mrb[0].mxu0
        %v1817 = vadd.f32 0.0, %v1816
        %v1818 = vpop.f32.mrb[0].mxu0
        %1819 = vmatprep.mubr.f32.mxu0 0.0
        %1820 = vmatmul.mubr.f32.gmra.mrb[0].mxu0 %v1718
        %v1821 = vpop.f32.mrb[0].mxu0
        %v1822 = vadd.f32 0.0, %v1821
        %v1823 = vpop.f32.mrb[0].mxu0
        %1824 = vdwg.mxu0
        %1825 = vrot.lane.b32.xlu0 %v522, 80
        %v1826 = vpop.permute.xlu0 %1825
        %1827 = vrot.lane.b32.xlu0 %v526, 80
        %v1828 = vpop.permute.xlu0 %1827
        %1829 = vrot.lane.b32.xlu0 %v532, 80
        %v1830 = vpop.permute.xlu0 %1829
        %1831 = vrot.lane.b32.xlu0 %v536, 80
        %v1832 = vpop.permute.xlu0 %1831
        %1833 = vrot.lane.b32.xlu0 %v542, 80
        %v1834 = vpop.permute.xlu0 %1833
        %1835 = vrot.lane.b32.xlu0 %v546, 80
        %v1836 = vpop.permute.xlu0 %1835
        %1837 = vrot.lane.b32.xlu0 %v552, 80
        %v1838 = vpop.permute.xlu0 %1837
        %1839 = vrot.lane.b32.xlu0 %v556, 80
        %v1840 = vpop.permute.xlu0 %1839
        %1841 = vrot.lane.b32.xlu0 %v524, 80
        %v1842 = vpop.permute.xlu0 %1841
        %1843 = vrot.lane.b32.xlu0 %v528, 80
        %v1844 = vpop.permute.xlu0 %1843
        %1845 = vrot.lane.b32.xlu0 %v534, 80
        %v1846 = vpop.permute.xlu0 %1845
        %1847 = vrot.lane.b32.xlu0 %v538, 80
        %v1848 = vpop.permute.xlu0 %1847
        %1849 = vrot.lane.b32.xlu0 %v544, 80
        %v1850 = vpop.permute.xlu0 %1849
        %1851 = vrot.lane.b32.xlu0 %v548, 80
        %v1852 = vpop.permute.xlu0 %1851
        %1853 = vrot.lane.b32.xlu0 %v554, 80
        %v1854 = vpop.permute.xlu0 %1853
        %1855 = vrot.lane.b32.xlu0 %v558, 80
        %v1856 = vpop.permute.xlu0 %1855
        %v1857 = vsel %vm625, %v1826, 0
        %v1859 = vsel %vm625, %v1828, 0
        %v1861 = vsel %vm625, %v1830, 0
        %v1863 = vsel %vm625, %v1832, 0
        %v1865 = vsel %vm625, %v1834, 0
        %v1867 = vsel %vm625, %v1836, 0
        %v1869 = vsel %vm625, %v1838, 0
        %v1871 = vsel %vm625, %v1840, 0
        %v1873 = vsel %vm625, %v1842, 0
        %v1875 = vsel %vm625, %v1844, 0
        %v1877 = vsel %vm625, %v1846, 0
        %v1879 = vsel %vm625, %v1848, 0
        %v1881 = vsel %vm625, %v1850, 0
        %v1883 = vsel %vm625, %v1852, 0
        %v1885 = vsel %vm625, %v1854, 0
        %v1887 = vsel %vm625, %v1856, 0
        %1889 = vmatprep.subr.mxu0 0.0
        %1890 = vmatpush1.xpose.msra.mxu0 %v1873
        %1891 = vmatprep.subr.mxu0 0.0
        %1892 = vmatpush1.xpose.msra.mxu0 %v1875
        %1893 = vmatprep.subr.mxu0 0.0
        %1894 = vmatpush1.xpose.msra.mxu0 %v1877
        %1895 = vmatprep.subr.mxu0 0.0
        %1896 = vmatpush1.xpose.msra.mxu0 %v1879
        %1897 = vmatprep.subr.mxu0 0.0
        %1898 = vmatpush1.xpose.msra.mxu0 %v1881
        %1899 = vmatprep.subr.mxu0 0.0
        %1900 = vmatpush1.xpose.msra.mxu0 %v1883
        %1901 = vmatprep.subr.mxu0 0.0
        %1902 = vmatpush1.xpose.msra.mxu0 %v1885
        %1903 = vmatprep.subr.mxu0 0.0
        %1904 = vmatpush1.xpose.msra.mxu0 %v1887
        %1905 = vmatprep.subr.mxu0 0.0
        %1906 = vmatpush1.xpose.msra.mxu0 0.0
        %1907 = vmatprep.subr.mxu0 0.0
        %1908 = vmatpush1.xpose.msra.mxu0 0.0
        %1909 = vmatprep.subr.mxu0 0.0
        %1910 = vmatpush1.xpose.msra.mxu0 0.0
        %1911 = vmatprep.subr.mxu0 0.0
        %1912 = vmatpush1.xpose.msra.mxu0 0.0
        %1913 = vmatprep.subr.mxu0 0.0
        %1914 = vmatpush1.xpose.msra.mxu0 0.0
        %1915 = vmatprep.subr.mxu0 0.0
        %1916 = vmatpush1.xpose.msra.mxu0 0.0
        %1917 = vmatprep.subr.mxu0 0.0
        %1918 = vmatpush1.xpose.msra.mxu0 0.0
        %1919 = vmatprep.subr.mxu0 0.0
        %1920 = vmatpush1.xpose.msra.mxu0 0.0
        %1921 = vmatprep.subr.mxu0 0.0
        %1922 = vmatpush1.xpose.msra.mxu0 0.0
        %1923 = vmatprep.subr.mxu0 0.0
        %1924 = vmatpush1.xpose.msra.mxu0 0.0
        %1925 = vmatprep.subr.mxu0 0.0
        %1926 = vmatpush1.xpose.msra.mxu0 0.0
        %1927 = vmatprep.subr.mxu0 0.0
        %1928 = vmatpush1.xpose.msra.mxu0 0.0
        %1929 = vmatprep.subr.mxu0 0.0
        %1930 = vmatpush1.xpose.msra.mxu0 0.0
        %1931 = vmatprep.subr.mxu0 0.0
        %1932 = vmatpush1.xpose.msra.mxu0 0.0
        %1933 = vmatprep.subr.mxu0 0.0
        %1934 = vmatpush1.xpose.msra.mxu0 0.0
        %1935 = vmatprep.subr.mxu0 0.0
        %1936 = vmatpush1.xpose.msra.mxu0 0.0
        %1937 = vmatprep.subr.mxu0 0.0
        %1938 = vmatpush1.xpose.msra.mxu0 0.0
        %1939 = vmatprep.subr.mxu0 0.0
        %1940 = vmatpush1.xpose.msra.mxu0 0.0
        %1941 = vmatprep.subr.mxu0 0.0
        %1942 = vmatpush1.xpose.msra.mxu0 0.0
        %1943 = vmatprep.subr.mxu0 0.0
        %1944 = vmatpush1.xpose.msra.mxu0 0.0
        %1945 = vmatprep.subr.mxu0 0.0
        %1946 = vmatpush1.xpose.msra.mxu0 0.0
        %1947 = vmatprep.subr.mxu0 0.0
        %1948 = vmatpush1.xpose.msra.mxu0 0.0
        %1949 = vmatprep.subr.mxu0 0.0
        %1950 = vmatpush1.xpose.msra.mxu0 0.0
        %1951 = vmatprep.subr.mxu0 0.0
        %1952 = vmatpush1.xpose.msra.mxu0 0.0
        %1953 = vmatprep.mubr.f32.mxu0 0.0
        %1954 = vmatmul.mubr.f32.gmra.mrb[0].mxu0 %v1857
        %v1955 = vpop.f32.mrb[0].mxu0
        %v1956 = vadd.f32 0.0, %v1955
        %v1957 = vpop.f32.mrb[0].mxu0
        %1958 = vmatprep.mubr.f32.mxu0 0.0
        %1959 = vmatmul.mubr.f32.gmra.mrb[0].mxu0 %v1859
        %v1960 = vpop.f32.mrb[0].mxu0
        %v1961 = vadd.f32 0.0, %v1960
        %v1962 = vpop.f32.mrb[0].mxu0
        %1963 = vmatprep.mubr.f32.mxu0 0.0
        %1964 = vmatmul.mubr.f32.gmra.mrb[0].mxu0 %v1861
        %v1965 = vpop.f32.mrb[0].mxu0
        %v1966 = vadd.f32 0.0, %v1965
        %v1967 = vpop.f32.mrb[0].mxu0
        %1968 = vmatprep.mubr.f32.mxu0 0.0
        %1969 = vmatmul.mubr.f32.gmra.mrb[0].mxu0 %v1863
        %v1970 = vpop.f32.mrb[0].mxu0
        %v1971 = vadd.f32 0.0, %v1970
        %v1972 = vpop.f32.mrb[0].mxu0
        %1973 = vmatprep.mubr.f32.mxu0 0.0
        %1974 = vmatmul.mubr.f32.gmra.mrb[0].mxu0 %v1865
        %v1975 = vpop.f32.mrb[0].mxu0
        %v1976 = vadd.f32 0.0, %v1975
        %v1977 = vpop.f32.mrb[0].mxu0
        %1978 = vmatprep.mubr.f32.mxu0 0.0
        %1979 = vmatmul.mubr.f32.gmra.mrb[0].mxu0 %v1867
        %v1980 = vpop.f32.mrb[0].mxu0
        %v1981 = vadd.f32 0.0, %v1980
        %v1982 = vpop.f32.mrb[0].mxu0
        %1983 = vmatprep.mubr.f32.mxu0 0.0
        %1984 = vmatmul.mubr.f32.gmra.mrb[0].mxu0 %v1869
        %v1985 = vpop.f32.mrb[0].mxu0
        %v1986 = vadd.f32 0.0, %v1985
        %v1987 = vpop.f32.mrb[0].mxu0
        %1988 = vmatprep.mubr.f32.mxu0 0.0
        %1989 = vmatmul.mubr.f32.gmra.mrb[0].mxu0 %v1871
        %v1990 = vpop.f32.mrb[0].mxu0
        %v1991 = vadd.f32 0.0, %v1990
        %v1992 = vpop.f32.mrb[0].mxu0
        %1993 = vdwg.mxu0
        %v1994 = vsel %vm779, %v1956, -inf
        %1995 = vmax.xlane.f32.xlu0 %v1994
        %v1996 = vpop.xlane.xlu0 %1995
        %v1997 = vsel %vm779, %v1961, -inf
        %1998 = vmax.xlane.f32.xlu0 %v1997
        %v1999 = vpop.xlane.xlu0 %1998
        %v2000 = vsel %vm779, %v1966, -inf
        %2001 = vmax.xlane.f32.xlu0 %v2000
        %v2002 = vpop.xlane.xlu0 %2001
        %v2003 = vsel %vm779, %v1971, -inf
        %2004 = vmax.xlane.f32.xlu0 %v2003
        %v2005 = vpop.xlane.xlu0 %2004
        %v2006 = vsel %vm779, %v1976, -inf
        %2007 = vmax.xlane.f32.xlu0 %v2006
        %v2008 = vpop.xlane.xlu0 %2007
        %v2009 = vsel %vm779, %v1981, -inf
        %2010 = vmax.xlane.f32.xlu0 %v2009
        %v2011 = vpop.xlane.xlu0 %2010
        %v2012 = vsel %vm779, %v1986, -inf
        %2013 = vmax.xlane.f32.xlu0 %v2012
        %v2014 = vpop.xlane.xlu0 %2013
        %v2015 = vsel %vm779, %v1991, -inf
        %2016 = vmax.xlane.f32.xlu0 %v2015
        %v2017 = vpop.xlane.xlu0 %2016
        %v2018 = vsub.f32 %v1956, %v1996
        %v2019 = vsub.f32 %v1961, %v1999
        %v2020 = vsub.f32 %v1966, %v2002
        %v2021 = vsub.f32 %v1971, %v2005
        %v2022 = vsub.f32 %v1976, %v2008
        %v2023 = vsub.f32 %v1981, %v2011
        %v2024 = vsub.f32 %v1986, %v2014
        %v2025 = vsub.f32 %v1991, %v2017
        %v2026 = vmul.f32 %v2018, 1.442695
        %v2027 = vpow.pop %v2026
        %v2028 = vmul.f32 %v2019, 1.442695
        %v2029 = vpow.pop %v2028
        %v2030 = vmul.f32 %v2020, 1.442695
        %v2031 = vpow.pop %v2030
        %v2032 = vmul.f32 %v2021, 1.442695
        %v2033 = vpow.pop %v2032
        %v2034 = vmul.f32 %v2022, 1.442695
        %v2035 = vpow.pop %v2034
        %v2036 = vmul.f32 %v2023, 1.442695
        %v2037 = vpow.pop %v2036
        %v2038 = vmul.f32 %v2024, 1.442695
        %v2039 = vpow.pop %v2038
        %v2040 = vmul.f32 %v2025, 1.442695
        %v2041 = vpow.pop %v2040
        %v2042 = vsel %vm779, %v2027, 0.0
        %2043 = vadd.xlane.f32.xlu0 %v2042
        %v2044 = vpop.xlane.xlu0 %2043
        %v2045 = vsel %vm779, %v2029, 0.0
        %2046 = vadd.xlane.f32.xlu0 %v2045
        %v2047 = vpop.xlane.xlu0 %2046
        %v2048 = vsel %vm779, %v2031, 0.0
        %2049 = vadd.xlane.f32.xlu0 %v2048
        %v2050 = vpop.xlane.xlu0 %2049
        %v2051 = vsel %vm779, %v2033, 0.0
        %2052 = vadd.xlane.f32.xlu0 %v2051
        %v2053 = vpop.xlane.xlu0 %2052
        %v2054 = vsel %vm779, %v2035, 0.0
        %2055 = vadd.xlane.f32.xlu0 %v2054
        %v2056 = vpop.xlane.xlu0 %2055
        %v2057 = vsel %vm779, %v2037, 0.0
        %2058 = vadd.xlane.f32.xlu0 %v2057
        %v2059 = vpop.xlane.xlu0 %2058
        %v2060 = vsel %vm779, %v2039, 0.0
        %2061 = vadd.xlane.f32.xlu0 %v2060
        %v2062 = vpop.xlane.xlu0 %2061
        %v2063 = vsel %vm779, %v2041, 0.0
        %2064 = vadd.xlane.f32.xlu0 %v2063
        %v2065 = vpop.xlane.xlu0 %2064
        %v2066 = vrcp.pop %v2044
        %v2067 = vrcp.pop %v2047
        %v2068 = vrcp.pop %v2050
        %v2069 = vrcp.pop %v2053
        %v2070 = vrcp.pop %v2056
        %v2071 = vrcp.pop %v2059
        %v2072 = vrcp.pop %v2062
        %v2073 = vrcp.pop %v2065
        %v2074 = vmul.f32 %v2027, %v2066
        %v2075 = vmul.f32 %v2029, %v2067
        %v2076 = vmul.f32 %v2031, %v2068
        %v2077 = vmul.f32 %v2033, %v2069
        %v2078 = vmul.f32 %v2035, %v2070
        %v2079 = vmul.f32 %v2037, %v2071
        %v2080 = vmul.f32 %v2039, %v2072
        %v2081 = vmul.f32 %v2041, %v2073
        %2082 = vrot.lane.b32.xlu0 %v595, 80
        %v2083 = vpop.permute.xlu0 %2082
        %2084 = vrot.lane.b32.xlu0 %v598, 80
        %v2085 = vpop.permute.xlu0 %2084
        %2086 = vrot.lane.b32.xlu0 %v603, 80
        %v2087 = vpop.permute.xlu0 %2086
        %2088 = vrot.lane.b32.xlu0 %v606, 80
        %v2089 = vpop.permute.xlu0 %2088
        %2090 = vrot.lane.b32.xlu0 %v611, 80
        %v2091 = vpop.permute.xlu0 %2090
        %2092 = vrot.lane.b32.xlu0 %v614, 80
        %v2093 = vpop.permute.xlu0 %2092
        %2094 = vrot.lane.b32.xlu0 %v619, 80
        %v2095 = vpop.permute.xlu0 %2094
        %2096 = vrot.lane.b32.xlu0 %v622, 80
        %v2097 = vpop.permute.xlu0 %2096
        %v2107 = vsel %vm779, %v2074, 0
        %v2110 = vsel %vm779, %v2075, 0
        %v2113 = vsel %vm779, %v2076, 0
        %v2116 = vsel %vm779, %v2077, 0
        %v2119 = vsel %vm779, %v2078, 0
        %v2122 = vsel %vm779, %v2079, 0
        %v2125 = vsel %vm779, %v2080, 0
        %v2128 = vsel %vm779, %v2081, 0
        %2130 = vmatprep.subr.mxu0 0.0
        %2131 = vmatpush1.msra.mxu0 %v2083
        %2132 = vmatprep.subr.mxu0 0.0
        %2133 = vmatpush1.msra.mxu0 %v2085
        %2134 = vmatprep.subr.mxu0 0.0
        %2135 = vmatpush1.msra.mxu0 %v2087
        %2136 = vmatprep.subr.mxu0 0.0
        %2137 = vmatpush1.msra.mxu0 %v2089
        %2138 = vmatprep.subr.mxu0 0.0
        %2139 = vmatpush1.msra.mxu0 %v2091
        %2140 = vmatprep.subr.mxu0 0.0
        %2141 = vmatpush1.msra.mxu0 %v2093
        %2142 = vmatprep.subr.mxu0 0.0
        %2143 = vmatpush1.msra.mxu0 %v2095
        %2144 = vmatprep.subr.mxu0 0.0
        %2145 = vmatpush1.msra.mxu0 %v2097
        %2146 = vmatprep.subr.mxu0 0.0
        %2147 = vmatpush1.msra.mxu0 0.0
        %2148 = vmatprep.subr.mxu0 0.0
        %2149 = vmatpush1.msra.mxu0 0.0
        %2150 = vmatprep.subr.mxu0 0.0
        %2151 = vmatpush1.msra.mxu0 0.0
        %2152 = vmatprep.subr.mxu0 0.0
        %2153 = vmatpush1.msra.mxu0 0.0
        %2154 = vmatprep.subr.mxu0 0.0
        %2155 = vmatpush1.msra.mxu0 0.0
        %2156 = vmatprep.subr.mxu0 0.0
        %2157 = vmatpush1.msra.mxu0 0.0
        %2158 = vmatprep.subr.mxu0 0.0
        %2159 = vmatpush1.msra.mxu0 0.0
        %2160 = vmatprep.subr.mxu0 0.0
        %2161 = vmatpush1.msra.mxu0 0.0
        %2162 = vmatprep.subr.mxu0 0.0
        %2163 = vmatpush1.msra.mxu0 0.0
        %2164 = vmatprep.subr.mxu0 0.0
        %2165 = vmatpush1.msra.mxu0 0.0
        %2166 = vmatprep.subr.mxu0 0.0
        %2167 = vmatpush1.msra.mxu0 0.0
        %2168 = vmatprep.subr.mxu0 0.0
        %2169 = vmatpush1.msra.mxu0 0.0
        %2170 = vmatprep.subr.mxu0 0.0
        %2171 = vmatpush1.msra.mxu0 0.0
        %2172 = vmatprep.subr.mxu0 0.0
        %2173 = vmatpush1.msra.mxu0 0.0
        %2174 = vmatprep.subr.mxu0 0.0
        %2175 = vmatpush1.msra.mxu0 0.0
        %2176 = vmatprep.subr.mxu0 0.0
        %2177 = vmatpush1.msra.mxu0 0.0
        %2178 = vmatprep.subr.mxu0 0.0
        %2179 = vmatpush1.msra.mxu0 0.0
        %2180 = vmatprep.subr.mxu0 0.0
        %2181 = vmatpush1.msra.mxu0 0.0
        %2182 = vmatprep.subr.mxu0 0.0
        %2183 = vmatpush1.msra.mxu0 0.0
        %2184 = vmatprep.subr.mxu0 0.0
        %2185 = vmatpush1.msra.mxu0 0.0
        %2186 = vmatprep.subr.mxu0 0.0
        %2187 = vmatpush1.msra.mxu0 0.0
        %2188 = vmatprep.subr.mxu0 0.0
        %2189 = vmatpush1.msra.mxu0 0.0
        %2190 = vmatprep.subr.mxu0 0.0
        %2191 = vmatpush1.msra.mxu0 0.0
        %2192 = vmatprep.subr.mxu0 0.0
        %2193 = vmatpush1.msra.mxu0 0.0
        %2194 = vmatprep.mubr.f32.mxu0 0.0
        %2195 = vmatmul.mubr.f32.gmra.mrb[0].mxu0 %v2107
        %v2196 = vpop.f32.mrb[0].mxu0
        %v2197 = vadd.f32 0.0, %v2196
        %v2198 = vpop.f32.mrb[0].mxu0
        %2199 = vmatprep.mubr.f32.mxu0 0.0
        %2200 = vmatmul.mubr.f32.gmra.mrb[0].mxu0 %v2110
        %v2201 = vpop.f32.mrb[0].mxu0
        %v2202 = vadd.f32 0.0, %v2201
        %v2203 = vpop.f32.mrb[0].mxu0
        %2204 = vmatprep.mubr.f32.mxu0 0.0
        %2205 = vmatmul.mubr.f32.gmra.mrb[0].mxu0 %v2113
        %v2206 = vpop.f32.mrb[0].mxu0
        %v2207 = vadd.f32 0.0, %v2206
        %v2208 = vpop.f32.mrb[0].mxu0
        %2209 = vmatprep.mubr.f32.mxu0 0.0
        %2210 = vmatmul.mubr.f32.gmra.mrb[0].mxu0 %v2116
        %v2211 = vpop.f32.mrb[0].mxu0
        %v2212 = vadd.f32 0.0, %v2211
        %v2213 = vpop.f32.mrb[0].mxu0
        %2214 = vmatprep.mubr.f32.mxu0 0.0
        %2215 = vmatmul.mubr.f32.gmra.mrb[0].mxu0 %v2119
        %v2216 = vpop.f32.mrb[0].mxu0
        %v2217 = vadd.f32 0.0, %v2216
        %v2218 = vpop.f32.mrb[0].mxu0
        %2219 = vmatprep.mubr.f32.mxu0 0.0
        %2220 = vmatmul.mubr.f32.gmra.mrb[0].mxu0 %v2122
        %v2221 = vpop.f32.mrb[0].mxu0
        %v2222 = vadd.f32 0.0, %v2221
        %v2223 = vpop.f32.mrb[0].mxu0
        %2224 = vmatprep.mubr.f32.mxu0 0.0
        %2225 = vmatmul.mubr.f32.gmra.mrb[0].mxu0 %v2125
        %v2226 = vpop.f32.mrb[0].mxu0
        %v2227 = vadd.f32 0.0, %v2226
        %v2228 = vpop.f32.mrb[0].mxu0
        %2229 = vmatprep.mubr.f32.mxu0 0.0
        %2230 = vmatmul.mubr.f32.gmra.mrb[0].mxu0 %v2128
        %v2231 = vpop.f32.mrb[0].mxu0
        %v2232 = vadd.f32 0.0, %v2231
        %v2233 = vpop.f32.mrb[0].mxu0
        %2234 = vdwg.mxu0
        %2235 = vrot.lane.b32.xlu0 %v522, 64
        %v2236 = vpop.permute.xlu0 %2235
        %2237 = vrot.lane.b32.xlu0 %v526, 64
        %v2238 = vpop.permute.xlu0 %2237
        %2239 = vrot.lane.b32.xlu0 %v532, 64
        %v2240 = vpop.permute.xlu0 %2239
        %2241 = vrot.lane.b32.xlu0 %v536, 64
        %v2242 = vpop.permute.xlu0 %2241
        %2243 = vrot.lane.b32.xlu0 %v542, 64
        %v2244 = vpop.permute.xlu0 %2243
        %2245 = vrot.lane.b32.xlu0 %v546, 64
        %v2246 = vpop.permute.xlu0 %2245
        %2247 = vrot.lane.b32.xlu0 %v552, 64
        %v2248 = vpop.permute.xlu0 %2247
        %2249 = vrot.lane.b32.xlu0 %v556, 64
        %v2250 = vpop.permute.xlu0 %2249
        %2251 = vrot.lane.b32.xlu0 %v524, 64
        %v2252 = vpop.permute.xlu0 %2251
        %2253 = vrot.lane.b32.xlu0 %v528, 64
        %v2254 = vpop.permute.xlu0 %2253
        %2255 = vrot.lane.b32.xlu0 %v534, 64
        %v2256 = vpop.permute.xlu0 %2255
        %2257 = vrot.lane.b32.xlu0 %v538, 64
        %v2258 = vpop.permute.xlu0 %2257
        %2259 = vrot.lane.b32.xlu0 %v544, 64
        %v2260 = vpop.permute.xlu0 %2259
        %2261 = vrot.lane.b32.xlu0 %v548, 64
        %v2262 = vpop.permute.xlu0 %2261
        %2263 = vrot.lane.b32.xlu0 %v554, 64
        %v2264 = vpop.permute.xlu0 %2263
        %2265 = vrot.lane.b32.xlu0 %v558, 64
        %v2266 = vpop.permute.xlu0 %2265
        %v2267 = vsel %vm625, %v2236, 0
        %v2269 = vsel %vm625, %v2238, 0
        %v2271 = vsel %vm625, %v2240, 0
        %v2273 = vsel %vm625, %v2242, 0
        %v2275 = vsel %vm625, %v2244, 0
        %v2277 = vsel %vm625, %v2246, 0
        %v2279 = vsel %vm625, %v2248, 0
        %v2281 = vsel %vm625, %v2250, 0
        %v2283 = vsel %vm625, %v2252, 0
        %v2285 = vsel %vm625, %v2254, 0
        %v2287 = vsel %vm625, %v2256, 0
        %v2289 = vsel %vm625, %v2258, 0
        %v2291 = vsel %vm625, %v2260, 0
        %v2293 = vsel %vm625, %v2262, 0
        %v2295 = vsel %vm625, %v2264, 0
        %v2297 = vsel %vm625, %v2266, 0
        %2299 = vmatprep.subr.mxu0 0.0
        %2300 = vmatpush1.xpose.msra.mxu0 %v2283
        %2301 = vmatprep.subr.mxu0 0.0
        %2302 = vmatpush1.xpose.msra.mxu0 %v2285
        %2303 = vmatprep.subr.mxu0 0.0
        %2304 = vmatpush1.xpose.msra.mxu0 %v2287
        %2305 = vmatprep.subr.mxu0 0.0
        %2306 = vmatpush1.xpose.msra.mxu0 %v2289
        %2307 = vmatprep.subr.mxu0 0.0
        %2308 = vmatpush1.xpose.msra.mxu0 %v2291
        %2309 = vmatprep.subr.mxu0 0.0
        %2310 = vmatpush1.xpose.msra.mxu0 %v2293
        %2311 = vmatprep.subr.mxu0 0.0
        %2312 = vmatpush1.xpose.msra.mxu0 %v2295
        %2313 = vmatprep.subr.mxu0 0.0
        %2314 = vmatpush1.xpose.msra.mxu0 %v2297
        %2315 = vmatprep.subr.mxu0 0.0
        %2316 = vmatpush1.xpose.msra.mxu0 0.0
        %2317 = vmatprep.subr.mxu0 0.0
        %2318 = vmatpush1.xpose.msra.mxu0 0.0
        %2319 = vmatprep.subr.mxu0 0.0
        %2320 = vmatpush1.xpose.msra.mxu0 0.0
        %2321 = vmatprep.subr.mxu0 0.0
        %2322 = vmatpush1.xpose.msra.mxu0 0.0
        %2323 = vmatprep.subr.mxu0 0.0
        %2324 = vmatpush1.xpose.msra.mxu0 0.0
        %2325 = vmatprep.subr.mxu0 0.0
        %2326 = vmatpush1.xpose.msra.mxu0 0.0
        %2327 = vmatprep.subr.mxu0 0.0
        %2328 = vmatpush1.xpose.msra.mxu0 0.0
        %2329 = vmatprep.subr.mxu0 0.0
        %2330 = vmatpush1.xpose.msra.mxu0 0.0
        %2331 = vmatprep.subr.mxu0 0.0
        %2332 = vmatpush1.xpose.msra.mxu0 0.0
        %2333 = vmatprep.subr.mxu0 0.0
        %2334 = vmatpush1.xpose.msra.mxu0 0.0
        %2335 = vmatprep.subr.mxu0 0.0
        %2336 = vmatpush1.xpose.msra.mxu0 0.0
        %2337 = vmatprep.subr.mxu0 0.0
        %2338 = vmatpush1.xpose.msra.mxu0 0.0
        %2339 = vmatprep.subr.mxu0 0.0
        %2340 = vmatpush1.xpose.msra.mxu0 0.0
        %2341 = vmatprep.subr.mxu0 0.0
        %2342 = vmatpush1.xpose.msra.mxu0 0.0
        %2343 = vmatprep.subr.mxu0 0.0
        %2344 = vmatpush1.xpose.msra.mxu0 0.0
        %2345 = vmatprep.subr.mxu0 0.0
        %2346 = vmatpush1.xpose.msra.mxu0 0.0
        %2347 = vmatprep.subr.mxu0 0.0
        %2348 = vmatpush1.xpose.msra.mxu0 0.0
        %2349 = vmatprep.subr.mxu0 0.0
        %2350 = vmatpush1.xpose.msra.mxu0 0.0
        %2351 = vmatprep.subr.mxu0 0.0
        %2352 = vmatpush1.xpose.msra.mxu0 0.0
        %2353 = vmatprep.subr.mxu0 0.0
        %2354 = vmatpush1.xpose.msra.mxu0 0.0
        %2355 = vmatprep.subr.mxu0 0.0
        %2356 = vmatpush1.xpose.msra.mxu0 0.0
        %2357 = vmatprep.subr.mxu0 0.0
        %2358 = vmatpush1.xpose.msra.mxu0 0.0
        %2359 = vmatprep.subr.mxu0 0.0
        %2360 = vmatpush1.xpose.msra.mxu0 0.0
        %2361 = vmatprep.subr.mxu0 0.0
        %2362 = vmatpush1.xpose.msra.mxu0 0.0
        %2363 = vmatprep.mubr.f32.mxu0 0.0
        %2364 = vmatmul.mubr.f32.gmra.mrb[0].mxu0 %v2267
        %v2365 = vpop.f32.mrb[0].mxu0
        %v2366 = vadd.f32 0.0, %v2365
        %v2367 = vpop.f32.mrb[0].mxu0
        %2368 = vmatprep.mubr.f32.mxu0 0.0
        %2369 = vmatmul.mubr.f32.gmra.mrb[0].mxu0 %v2269
        %v2370 = vpop.f32.mrb[0].mxu0
        %v2371 = vadd.f32 0.0, %v2370
        %v2372 = vpop.f32.mrb[0].mxu0
        %2373 = vmatprep.mubr.f32.mxu0 0.0
        %2374 = vmatmul.mubr.f32.gmra.mrb[0].mxu0 %v2271
        %v2375 = vpop.f32.mrb[0].mxu0
        %v2376 = vadd.f32 0.0, %v2375
        %v2377 = vpop.f32.mrb[0].mxu0
        %2378 = vmatprep.mubr.f32.mxu0 0.0
        %2379 = vmatmul.mubr.f32.gmra.mrb[0].mxu0 %v2273
        %v2380 = vpop.f32.mrb[0].mxu0
        %v2381 = vadd.f32 0.0, %v2380
        %v2382 = vpop.f32.mrb[0].mxu0
        %2383 = vmatprep.mubr.f32.mxu0 0.0
        %2384 = vmatmul.mubr.f32.gmra.mrb[0].mxu0 %v2275
        %v2385 = vpop.f32.mrb[0].mxu0
        %v2386 = vadd.f32 0.0, %v2385
        %v2387 = vpop.f32.mrb[0].mxu0
        %2388 = vmatprep.mubr.f32.mxu0 0.0
        %2389 = vmatmul.mubr.f32.gmra.mrb[0].mxu0 %v2277
        %v2390 = vpop.f32.mrb[0].mxu0
        %v2391 = vadd.f32 0.0, %v2390
        %v2392 = vpop.f32.mrb[0].mxu0
        %2393 = vmatprep.mubr.f32.mxu0 0.0
        %2394 = vmatmul.mubr.f32.gmra.mrb[0].mxu0 %v2279
        %v2395 = vpop.f32.mrb[0].mxu0
        %v2396 = vadd.f32 0.0, %v2395
        %v2397 = vpop.f32.mrb[0].mxu0
        %2398 = vmatprep.mubr.f32.mxu0 0.0
        %2399 = vmatmul.mubr.f32.gmra.mrb[0].mxu0 %v2281
        %v2400 = vpop.f32.mrb[0].mxu0
        %v2401 = vadd.f32 0.0, %v2400
        %v2402 = vpop.f32.mrb[0].mxu0
        %2403 = vdwg.mxu0
        %v2404 = vsel %vm779, %v2366, -inf
        %2405 = vmax.xlane.f32.xlu0 %v2404
        %v2406 = vpop.xlane.xlu0 %2405
        %v2407 = vsel %vm779, %v2371, -inf
        %2408 = vmax.xlane.f32.xlu0 %v2407
        %v2409 = vpop.xlane.xlu0 %2408
        %v2410 = vsel %vm779, %v2376, -inf
        %2411 = vmax.xlane.f32.xlu0 %v2410
        %v2412 = vpop.xlane.xlu0 %2411
        %v2413 = vsel %vm779, %v2381, -inf
        %2414 = vmax.xlane.f32.xlu0 %v2413
        %v2415 = vpop.xlane.xlu0 %2414
        %v2416 = vsel %vm779, %v2386, -inf
        %2417 = vmax.xlane.f32.xlu0 %v2416
        %v2418 = vpop.xlane.xlu0 %2417
        %v2419 = vsel %vm779, %v2391, -inf
        %2420 = vmax.xlane.f32.xlu0 %v2419
        %v2421 = vpop.xlane.xlu0 %2420
        %v2422 = vsel %vm779, %v2396, -inf
        %2423 = vmax.xlane.f32.xlu0 %v2422
        %v2424 = vpop.xlane.xlu0 %2423
        %v2425 = vsel %vm779, %v2401, -inf
        %2426 = vmax.xlane.f32.xlu0 %v2425
        %v2427 = vpop.xlane.xlu0 %2426
        %v2428 = vsub.f32 %v2366, %v2406
        %v2429 = vsub.f32 %v2371, %v2409
        %v2430 = vsub.f32 %v2376, %v2412
        %v2431 = vsub.f32 %v2381, %v2415
        %v2432 = vsub.f32 %v2386, %v2418
        %v2433 = vsub.f32 %v2391, %v2421
        %v2434 = vsub.f32 %v2396, %v2424
        %v2435 = vsub.f32 %v2401, %v2427
        %v2436 = vmul.f32 %v2428, 1.442695
        %v2437 = vpow.pop %v2436
        %v2438 = vmul.f32 %v2429, 1.442695
        %v2439 = vpow.pop %v2438
        %v2440 = vmul.f32 %v2430, 1.442695
        %v2441 = vpow.pop %v2440
        %v2442 = vmul.f32 %v2431, 1.442695
        %v2443 = vpow.pop %v2442
        %v2444 = vmul.f32 %v2432, 1.442695
        %v2445 = vpow.pop %v2444
        %v2446 = vmul.f32 %v2433, 1.442695
        %v2447 = vpow.pop %v2446
        %v2448 = vmul.f32 %v2434, 1.442695
        %v2449 = vpow.pop %v2448
        %v2450 = vmul.f32 %v2435, 1.442695
        %v2451 = vpow.pop %v2450
        %v2452 = vsel %vm779, %v2437, 0.0
        %2453 = vadd.xlane.f32.xlu0 %v2452
        %v2454 = vpop.xlane.xlu0 %2453
        %v2455 = vsel %vm779, %v2439, 0.0
        %2456 = vadd.xlane.f32.xlu0 %v2455
        %v2457 = vpop.xlane.xlu0 %2456
        %v2458 = vsel %vm779, %v2441, 0.0
        %2459 = vadd.xlane.f32.xlu0 %v2458
        %v2460 = vpop.xlane.xlu0 %2459
        %v2461 = vsel %vm779, %v2443, 0.0
        %2462 = vadd.xlane.f32.xlu0 %v2461
        %v2463 = vpop.xlane.xlu0 %2462
        %v2464 = vsel %vm779, %v2445, 0.0
        %2465 = vadd.xlane.f32.xlu0 %v2464
        %v2466 = vpop.xlane.xlu0 %2465
        %v2467 = vsel %vm779, %v2447, 0.0
        %2468 = vadd.xlane.f32.xlu0 %v2467
        %v2469 = vpop.xlane.xlu0 %2468
        %v2470 = vsel %vm779, %v2449, 0.0
        %2471 = vadd.xlane.f32.xlu0 %v2470
        %v2472 = vpop.xlane.xlu0 %2471
        %v2473 = vsel %vm779, %v2451, 0.0
        %2474 = vadd.xlane.f32.xlu0 %v2473
        %v2475 = vpop.xlane.xlu0 %2474
        %v2476 = vrcp.pop %v2454
        %v2477 = vrcp.pop %v2457
        %v2478 = vrcp.pop %v2460
        %v2479 = vrcp.pop %v2463
        %v2480 = vrcp.pop %v2466
        %v2481 = vrcp.pop %v2469
        %v2482 = vrcp.pop %v2472
        %v2483 = vrcp.pop %v2475
        %v2484 = vmul.f32 %v2437, %v2476
        %v2485 = vmul.f32 %v2439, %v2477
        %v2486 = vmul.f32 %v2441, %v2478
        %v2487 = vmul.f32 %v2443, %v2479
        %v2488 = vmul.f32 %v2445, %v2480
        %v2489 = vmul.f32 %v2447, %v2481
        %v2490 = vmul.f32 %v2449, %v2482
        %v2491 = vmul.f32 %v2451, %v2483
        %2492 = vrot.lane.b32.xlu0 %v595, 64
        %v2493 = vpop.permute.xlu0 %2492
        %2494 = vrot.lane.b32.xlu0 %v598, 64
        %v2495 = vpop.permute.xlu0 %2494
        %2496 = vrot.lane.b32.xlu0 %v603, 64
        %v2497 = vpop.permute.xlu0 %2496
        %2498 = vrot.lane.b32.xlu0 %v606, 64
        %v2499 = vpop.permute.xlu0 %2498
        %2500 = vrot.lane.b32.xlu0 %v611, 64
        %v2501 = vpop.permute.xlu0 %2500
        %2502 = vrot.lane.b32.xlu0 %v614, 64
        %v2503 = vpop.permute.xlu0 %2502
        %2504 = vrot.lane.b32.xlu0 %v619, 64
        %v2505 = vpop.permute.xlu0 %2504
        %2506 = vrot.lane.b32.xlu0 %v622, 64
        %v2507 = vpop.permute.xlu0 %2506
        %v2517 = vsel %vm779, %v2484, 0
        %v2520 = vsel %vm779, %v2485, 0
        %v2523 = vsel %vm779, %v2486, 0
        %v2526 = vsel %vm779, %v2487, 0
        %v2529 = vsel %vm779, %v2488, 0
        %v2532 = vsel %vm779, %v2489, 0
        %v2535 = vsel %vm779, %v2490, 0
        %v2538 = vsel %vm779, %v2491, 0
        %2540 = vmatprep.subr.mxu0 0.0
        %2541 = vmatpush1.msra.mxu0 %v2493
        %2542 = vmatprep.subr.mxu0 0.0
        %2543 = vmatpush1.msra.mxu0 %v2495
        %2544 = vmatprep.subr.mxu0 0.0
        %2545 = vmatpush1.msra.mxu0 %v2497
        %2546 = vmatprep.subr.mxu0 0.0
        %2547 = vmatpush1.msra.mxu0 %v2499
        %2548 = vmatprep.subr.mxu0 0.0
        %2549 = vmatpush1.msra.mxu0 %v2501
        %2550 = vmatprep.subr.mxu0 0.0
        %2551 = vmatpush1.msra.mxu0 %v2503
        %2552 = vmatprep.subr.mxu0 0.0
        %2553 = vmatpush1.msra.mxu0 %v2505
        %2554 = vmatprep.subr.mxu0 0.0
        %2555 = vmatpush1.msra.mxu0 %v2507
        %2556 = vmatprep.subr.mxu0 0.0
        %2557 = vmatpush1.msra.mxu0 0.0
        %2558 = vmatprep.subr.mxu0 0.0
        %2559 = vmatpush1.msra.mxu0 0.0
        %2560 = vmatprep.subr.mxu0 0.0
        %2561 = vmatpush1.msra.mxu0 0.0
        %2562 = vmatprep.subr.mxu0 0.0
        %2563 = vmatpush1.msra.mxu0 0.0
        %2564 = vmatprep.subr.mxu0 0.0
        %2565 = vmatpush1.msra.mxu0 0.0
        %2566 = vmatprep.subr.mxu0 0.0
        %2567 = vmatpush1.msra.mxu0 0.0
        %2568 = vmatprep.subr.mxu0 0.0
        %2569 = vmatpush1.msra.mxu0 0.0
        %2570 = vmatprep.subr.mxu0 0.0
        %2571 = vmatpush1.msra.mxu0 0.0
        %2572 = vmatprep.subr.mxu0 0.0
        %2573 = vmatpush1.msra.mxu0 0.0
        %2574 = vmatprep.subr.mxu0 0.0
        %2575 = vmatpush1.msra.mxu0 0.0
        %2576 = vmatprep.subr.mxu0 0.0
        %2577 = vmatpush1.msra.mxu0 0.0
        %2578 = vmatprep.subr.mxu0 0.0
        %2579 = vmatpush1.msra.mxu0 0.0
        %2580 = vmatprep.subr.mxu0 0.0
        %2581 = vmatpush1.msra.mxu0 0.0
        %2582 = vmatprep.subr.mxu0 0.0
        %2583 = vmatpush1.msra.mxu0 0.0
        %2584 = vmatprep.subr.mxu0 0.0
        %2585 = vmatpush1.msra.mxu0 0.0
        %2586 = vmatprep.subr.mxu0 0.0
        %2587 = vmatpush1.msra.mxu0 0.0
        %2588 = vmatprep.subr.mxu0 0.0
        %2589 = vmatpush1.msra.mxu0 0.0
        %2590 = vmatprep.subr.mxu0 0.0
        %2591 = vmatpush1.msra.mxu0 0.0
        %2592 = vmatprep.subr.mxu0 0.0
        %2593 = vmatpush1.msra.mxu0 0.0
        %2594 = vmatprep.subr.mxu0 0.0
        %2595 = vmatpush1.msra.mxu0 0.0
        %2596 = vmatprep.subr.mxu0 0.0
        %2597 = vmatpush1.msra.mxu0 0.0
        %2598 = vmatprep.subr.mxu0 0.0
        %2599 = vmatpush1.msra.mxu0 0.0
        %2600 = vmatprep.subr.mxu0 0.0
        %2601 = vmatpush1.msra.mxu0 0.0
        %2602 = vmatprep.subr.mxu0 0.0
        %2603 = vmatpush1.msra.mxu0 0.0
        %2604 = vmatprep.mubr.f32.mxu0 0.0
        %2605 = vmatmul.mubr.f32.gmra.mrb[0].mxu0 %v2517
        %v2606 = vpop.f32.mrb[0].mxu0
        %v2607 = vadd.f32 0.0, %v2606
        %v2608 = vpop.f32.mrb[0].mxu0
        %2609 = vmatprep.mubr.f32.mxu0 0.0
        %2610 = vmatmul.mubr.f32.gmra.mrb[0].mxu0 %v2520
        %v2611 = vpop.f32.mrb[0].mxu0
        %v2612 = vadd.f32 0.0, %v2611
        %v2613 = vpop.f32.mrb[0].mxu0
        %2614 = vmatprep.mubr.f32.mxu0 0.0
        %2615 = vmatmul.mubr.f32.gmra.mrb[0].mxu0 %v2523
        %v2616 = vpop.f32.mrb[0].mxu0
        %v2617 = vadd.f32 0.0, %v2616
        %v2618 = vpop.f32.mrb[0].mxu0
        %2619 = vmatprep.mubr.f32.mxu0 0.0
        %2620 = vmatmul.mubr.f32.gmra.mrb[0].mxu0 %v2526
        %v2621 = vpop.f32.mrb[0].mxu0
        %v2622 = vadd.f32 0.0, %v2621
        %v2623 = vpop.f32.mrb[0].mxu0
        %2624 = vmatprep.mubr.f32.mxu0 0.0
        %2625 = vmatmul.mubr.f32.gmra.mrb[0].mxu0 %v2529
        %v2626 = vpop.f32.mrb[0].mxu0
        %v2627 = vadd.f32 0.0, %v2626
        %v2628 = vpop.f32.mrb[0].mxu0
        %2629 = vmatprep.mubr.f32.mxu0 0.0
        %2630 = vmatmul.mubr.f32.gmra.mrb[0].mxu0 %v2532
        %v2631 = vpop.f32.mrb[0].mxu0
        %v2632 = vadd.f32 0.0, %v2631
        %v2633 = vpop.f32.mrb[0].mxu0
        %2634 = vmatprep.mubr.f32.mxu0 0.0
        %2635 = vmatmul.mubr.f32.gmra.mrb[0].mxu0 %v2535
        %v2636 = vpop.f32.mrb[0].mxu0
        %v2637 = vadd.f32 0.0, %v2636
        %v2638 = vpop.f32.mrb[0].mxu0
        %2639 = vmatprep.mubr.f32.mxu0 0.0
        %2640 = vmatmul.mubr.f32.gmra.mrb[0].mxu0 %v2538
        %v2641 = vpop.f32.mrb[0].mxu0
        %v2642 = vadd.f32 0.0, %v2641
        %v2643 = vpop.f32.mrb[0].mxu0
        %2644 = vdwg.mxu0
        %2645 = vrot.lane.b32.xlu0 %v522, 48
        %v2646 = vpop.permute.xlu0 %2645
        %2647 = vrot.lane.b32.xlu0 %v526, 48
        %v2648 = vpop.permute.xlu0 %2647
        %2649 = vrot.lane.b32.xlu0 %v532, 48
        %v2650 = vpop.permute.xlu0 %2649
        %2651 = vrot.lane.b32.xlu0 %v536, 48
        %v2652 = vpop.permute.xlu0 %2651
        %2653 = vrot.lane.b32.xlu0 %v542, 48
        %v2654 = vpop.permute.xlu0 %2653
        %2655 = vrot.lane.b32.xlu0 %v546, 48
        %v2656 = vpop.permute.xlu0 %2655
        %2657 = vrot.lane.b32.xlu0 %v552, 48
        %v2658 = vpop.permute.xlu0 %2657
        %2659 = vrot.lane.b32.xlu0 %v556, 48
        %v2660 = vpop.permute.xlu0 %2659
        %2661 = vrot.lane.b32.xlu0 %v524, 48
        %v2662 = vpop.permute.xlu0 %2661
        %2663 = vrot.lane.b32.xlu0 %v528, 48
        %v2664 = vpop.permute.xlu0 %2663
        %2665 = vrot.lane.b32.xlu0 %v534, 48
        %v2666 = vpop.permute.xlu0 %2665
        %2667 = vrot.lane.b32.xlu0 %v538, 48
        %v2668 = vpop.permute.xlu0 %2667
        %2669 = vrot.lane.b32.xlu0 %v544, 48
        %v2670 = vpop.permute.xlu0 %2669
        %2671 = vrot.lane.b32.xlu0 %v548, 48
        %v2672 = vpop.permute.xlu0 %2671
        %2673 = vrot.lane.b32.xlu0 %v554, 48
        %v2674 = vpop.permute.xlu0 %2673
        %2675 = vrot.lane.b32.xlu0 %v558, 48
        %v2676 = vpop.permute.xlu0 %2675
        %v2677 = vsel %vm625, %v2646, 0
        %v2679 = vsel %vm625, %v2648, 0
        %v2681 = vsel %vm625, %v2650, 0
        %v2683 = vsel %vm625, %v2652, 0
        %v2685 = vsel %vm625, %v2654, 0
        %v2687 = vsel %vm625, %v2656, 0
        %v2689 = vsel %vm625, %v2658, 0
        %v2691 = vsel %vm625, %v2660, 0
        %v2693 = vsel %vm625, %v2662, 0
        %v2695 = vsel %vm625, %v2664, 0
        %v2697 = vsel %vm625, %v2666, 0
        %v2699 = vsel %vm625, %v2668, 0
        %v2701 = vsel %vm625, %v2670, 0
        %v2703 = vsel %vm625, %v2672, 0
        %v2705 = vsel %vm625, %v2674, 0
        %v2707 = vsel %vm625, %v2676, 0
        %2709 = vmatprep.subr.mxu0 0.0
        %2710 = vmatpush1.xpose.msra.mxu0 %v2693
        %2711 = vmatprep.subr.mxu0 0.0
        %2712 = vmatpush1.xpose.msra.mxu0 %v2695
        %2713 = vmatprep.subr.mxu0 0.0
        %2714 = vmatpush1.xpose.msra.mxu0 %v2697
        %2715 = vmatprep.subr.mxu0 0.0
        %2716 = vmatpush1.xpose.msra.mxu0 %v2699
        %2717 = vmatprep.subr.mxu0 0.0
        %2718 = vmatpush1.xpose.msra.mxu0 %v2701
        %2719 = vmatprep.subr.mxu0 0.0
        %2720 = vmatpush1.xpose.msra.mxu0 %v2703
        %2721 = vmatprep.subr.mxu0 0.0
        %2722 = vmatpush1.xpose.msra.mxu0 %v2705
        %2723 = vmatprep.subr.mxu0 0.0
        %2724 = vmatpush1.xpose.msra.mxu0 %v2707
        %2725 = vmatprep.subr.mxu0 0.0
        %2726 = vmatpush1.xpose.msra.mxu0 0.0
        %2727 = vmatprep.subr.mxu0 0.0
        %2728 = vmatpush1.xpose.msra.mxu0 0.0
        %2729 = vmatprep.subr.mxu0 0.0
        %2730 = vmatpush1.xpose.msra.mxu0 0.0
        %2731 = vmatprep.subr.mxu0 0.0
        %2732 = vmatpush1.xpose.msra.mxu0 0.0
        %2733 = vmatprep.subr.mxu0 0.0
        %2734 = vmatpush1.xpose.msra.mxu0 0.0
        %2735 = vmatprep.subr.mxu0 0.0
        %2736 = vmatpush1.xpose.msra.mxu0 0.0
        %2737 = vmatprep.subr.mxu0 0.0
        %2738 = vmatpush1.xpose.msra.mxu0 0.0
        %2739 = vmatprep.subr.mxu0 0.0
        %2740 = vmatpush1.xpose.msra.mxu0 0.0
        %2741 = vmatprep.subr.mxu0 0.0
        %2742 = vmatpush1.xpose.msra.mxu0 0.0
        %2743 = vmatprep.subr.mxu0 0.0
        %2744 = vmatpush1.xpose.msra.mxu0 0.0
        %2745 = vmatprep.subr.mxu0 0.0
        %2746 = vmatpush1.xpose.msra.mxu0 0.0
        %2747 = vmatprep.subr.mxu0 0.0
        %2748 = vmatpush1.xpose.msra.mxu0 0.0
        %2749 = vmatprep.subr.mxu0 0.0
        %2750 = vmatpush1.xpose.msra.mxu0 0.0
        %2751 = vmatprep.subr.mxu0 0.0
        %2752 = vmatpush1.xpose.msra.mxu0 0.0
        %2753 = vmatprep.subr.mxu0 0.0
        %2754 = vmatpush1.xpose.msra.mxu0 0.0
        %2755 = vmatprep.subr.mxu0 0.0
        %2756 = vmatpush1.xpose.msra.mxu0 0.0
        %2757 = vmatprep.subr.mxu0 0.0
        %2758 = vmatpush1.xpose.msra.mxu0 0.0
        %2759 = vmatprep.subr.mxu0 0.0
        %2760 = vmatpush1.xpose.msra.mxu0 0.0
        %2761 = vmatprep.subr.mxu0 0.0
        %2762 = vmatpush1.xpose.msra.mxu0 0.0
        %2763 = vmatprep.subr.mxu0 0.0
        %2764 = vmatpush1.xpose.msra.mxu0 0.0
        %2765 = vmatprep.subr.mxu0 0.0
        %2766 = vmatpush1.xpose.msra.mxu0 0.0
        %2767 = vmatprep.subr.mxu0 0.0
        %2768 = vmatpush1.xpose.msra.mxu0 0.0
        %2769 = vmatprep.subr.mxu0 0.0
        %2770 = vmatpush1.xpose.msra.mxu0 0.0
        %2771 = vmatprep.subr.mxu0 0.0
        %2772 = vmatpush1.xpose.msra.mxu0 0.0
        %2773 = vmatprep.mubr.f32.mxu0 0.0
        %2774 = vmatmul.mubr.f32.gmra.mrb[0].mxu0 %v2677
        %v2775 = vpop.f32.mrb[0].mxu0
        %v2776 = vadd.f32 0.0, %v2775
        %v2777 = vpop.f32.mrb[0].mxu0
        %2778 = vmatprep.mubr.f32.mxu0 0.0
        %2779 = vmatmul.mubr.f32.gmra.mrb[0].mxu0 %v2679
        %v2780 = vpop.f32.mrb[0].mxu0
        %v2781 = vadd.f32 0.0, %v2780
        %v2782 = vpop.f32.mrb[0].mxu0
        %2783 = vmatprep.mubr.f32.mxu0 0.0
        %2784 = vmatmul.mubr.f32.gmra.mrb[0].mxu0 %v2681
        %v2785 = vpop.f32.mrb[0].mxu0
        %v2786 = vadd.f32 0.0, %v2785
        %v2787 = vpop.f32.mrb[0].mxu0
        %2788 = vmatprep.mubr.f32.mxu0 0.0
        %2789 = vmatmul.mubr.f32.gmra.mrb[0].mxu0 %v2683
        %v2790 = vpop.f32.mrb[0].mxu0
        %v2791 = vadd.f32 0.0, %v2790
        %v2792 = vpop.f32.mrb[0].mxu0
        %2793 = vmatprep.mubr.f32.mxu0 0.0
        %2794 = vmatmul.mubr.f32.gmra.mrb[0].mxu0 %v2685
        %v2795 = vpop.f32.mrb[0].mxu0
        %v2796 = vadd.f32 0.0, %v2795
        %v2797 = vpop.f32.mrb[0].mxu0
        %2798 = vmatprep.mubr.f32.mxu0 0.0
        %2799 = vmatmul.mubr.f32.gmra.mrb[0].mxu0 %v2687
        %v2800 = vpop.f32.mrb[0].mxu0
        %v2801 = vadd.f32 0.0, %v2800
        %v2802 = vpop.f32.mrb[0].mxu0
        %2803 = vmatprep.mubr.f32.mxu0 0.0
        %2804 = vmatmul.mubr.f32.gmra.mrb[0].mxu0 %v2689
        %v2805 = vpop.f32.mrb[0].mxu0
        %v2806 = vadd.f32 0.0, %v2805
        %v2807 = vpop.f32.mrb[0].mxu0
        %2808 = vmatprep.mubr.f32.mxu0 0.0
        %2809 = vmatmul.mubr.f32.gmra.mrb[0].mxu0 %v2691
        %v2810 = vpop.f32.mrb[0].mxu0
        %v2811 = vadd.f32 0.0, %v2810
        %v2812 = vpop.f32.mrb[0].mxu0
        %2813 = vdwg.mxu0
        %v2814 = vsel %vm779, %v2776, -inf
        %2815 = vmax.xlane.f32.xlu0 %v2814
        %v2816 = vpop.xlane.xlu0 %2815
        %v2817 = vsel %vm779, %v2781, -inf
        %2818 = vmax.xlane.f32.xlu0 %v2817
        %v2819 = vpop.xlane.xlu0 %2818
        %v2820 = vsel %vm779, %v2786, -inf
        %2821 = vmax.xlane.f32.xlu0 %v2820
        %v2822 = vpop.xlane.xlu0 %2821
        %v2823 = vsel %vm779, %v2791, -inf
        %2824 = vmax.xlane.f32.xlu0 %v2823
        %v2825 = vpop.xlane.xlu0 %2824
        %v2826 = vsel %vm779, %v2796, -inf
        %2827 = vmax.xlane.f32.xlu0 %v2826
        %v2828 = vpop.xlane.xlu0 %2827
        %v2829 = vsel %vm779, %v2801, -inf
        %2830 = vmax.xlane.f32.xlu0 %v2829
        %v2831 = vpop.xlane.xlu0 %2830
        %v2832 = vsel %vm779, %v2806, -inf
        %2833 = vmax.xlane.f32.xlu0 %v2832
        %v2834 = vpop.xlane.xlu0 %2833
        %v2835 = vsel %vm779, %v2811, -inf
        %2836 = vmax.xlane.f32.xlu0 %v2835
        %v2837 = vpop.xlane.xlu0 %2836
        %v2838 = vsub.f32 %v2776, %v2816
        %v2839 = vsub.f32 %v2781, %v2819
        %v2840 = vsub.f32 %v2786, %v2822
        %v2841 = vsub.f32 %v2791, %v2825
        %v2842 = vsub.f32 %v2796, %v2828
        %v2843 = vsub.f32 %v2801, %v2831
        %v2844 = vsub.f32 %v2806, %v2834
        %v2845 = vsub.f32 %v2811, %v2837
        %v2846 = vmul.f32 %v2838, 1.442695
        %v2847 = vpow.pop %v2846
        %v2848 = vmul.f32 %v2839, 1.442695
        %v2849 = vpow.pop %v2848
        %v2850 = vmul.f32 %v2840, 1.442695
        %v2851 = vpow.pop %v2850
        %v2852 = vmul.f32 %v2841, 1.442695
        %v2853 = vpow.pop %v2852
        %v2854 = vmul.f32 %v2842, 1.442695
        %v2855 = vpow.pop %v2854
        %v2856 = vmul.f32 %v2843, 1.442695
        %v2857 = vpow.pop %v2856
        %v2858 = vmul.f32 %v2844, 1.442695
        %v2859 = vpow.pop %v2858
        %v2860 = vmul.f32 %v2845, 1.442695
        %v2861 = vpow.pop %v2860
        %v2862 = vsel %vm779, %v2847, 0.0
        %2863 = vadd.xlane.f32.xlu0 %v2862
        %v2864 = vpop.xlane.xlu0 %2863
        %v2865 = vsel %vm779, %v2849, 0.0
        %2866 = vadd.xlane.f32.xlu0 %v2865
        %v2867 = vpop.xlane.xlu0 %2866
        %v2868 = vsel %vm779, %v2851, 0.0
        %2869 = vadd.xlane.f32.xlu0 %v2868
        %v2870 = vpop.xlane.xlu0 %2869
        %v2871 = vsel %vm779, %v2853, 0.0
        %2872 = vadd.xlane.f32.xlu0 %v2871
        %v2873 = vpop.xlane.xlu0 %2872
        %v2874 = vsel %vm779, %v2855, 0.0
        %2875 = vadd.xlane.f32.xlu0 %v2874
        %v2876 = vpop.xlane.xlu0 %2875
        %v2877 = vsel %vm779, %v2857, 0.0
        %2878 = vadd.xlane.f32.xlu0 %v2877
        %v2879 = vpop.xlane.xlu0 %2878
        %v2880 = vsel %vm779, %v2859, 0.0
        %2881 = vadd.xlane.f32.xlu0 %v2880
        %v2882 = vpop.xlane.xlu0 %2881
        %v2883 = vsel %vm779, %v2861, 0.0
        %2884 = vadd.xlane.f32.xlu0 %v2883
        %v2885 = vpop.xlane.xlu0 %2884
        %v2886 = vrcp.pop %v2864
        %v2887 = vrcp.pop %v2867
        %v2888 = vrcp.pop %v2870
        %v2889 = vrcp.pop %v2873
        %v2890 = vrcp.pop %v2876
        %v2891 = vrcp.pop %v2879
        %v2892 = vrcp.pop %v2882
        %v2893 = vrcp.pop %v2885
        %v2894 = vmul.f32 %v2847, %v2886
        %v2895 = vmul.f32 %v2849, %v2887
        %v2896 = vmul.f32 %v2851, %v2888
        %v2897 = vmul.f32 %v2853, %v2889
        %v2898 = vmul.f32 %v2855, %v2890
        %v2899 = vmul.f32 %v2857, %v2891
        %v2900 = vmul.f32 %v2859, %v2892
        %v2901 = vmul.f32 %v2861, %v2893
        %2902 = vrot.lane.b32.xlu0 %v595, 48
        %v2903 = vpop.permute.xlu0 %2902
        %2904 = vrot.lane.b32.xlu0 %v598, 48
        %v2905 = vpop.permute.xlu0 %2904
        %2906 = vrot.lane.b32.xlu0 %v603, 48
        %v2907 = vpop.permute.xlu0 %2906
        %2908 = vrot.lane.b32.xlu0 %v606, 48
        %v2909 = vpop.permute.xlu0 %2908
        %2910 = vrot.lane.b32.xlu0 %v611, 48
        %v2911 = vpop.permute.xlu0 %2910
        %2912 = vrot.lane.b32.xlu0 %v614, 48
        %v2913 = vpop.permute.xlu0 %2912
        %2914 = vrot.lane.b32.xlu0 %v619, 48
        %v2915 = vpop.permute.xlu0 %2914
        %2916 = vrot.lane.b32.xlu0 %v622, 48
        %v2917 = vpop.permute.xlu0 %2916
        %v2927 = vsel %vm779, %v2894, 0
        %v2930 = vsel %vm779, %v2895, 0
        %v2933 = vsel %vm779, %v2896, 0
        %v2936 = vsel %vm779, %v2897, 0
        %v2939 = vsel %vm779, %v2898, 0
        %v2942 = vsel %vm779, %v2899, 0
        %v2945 = vsel %vm779, %v2900, 0
        %v2948 = vsel %vm779, %v2901, 0
        %2950 = vmatprep.subr.mxu0 0.0
        %2951 = vmatpush1.msra.mxu0 %v2903
        %2952 = vmatprep.subr.mxu0 0.0
        %2953 = vmatpush1.msra.mxu0 %v2905
        %2954 = vmatprep.subr.mxu0 0.0
        %2955 = vmatpush1.msra.mxu0 %v2907
        %2956 = vmatprep.subr.mxu0 0.0
        %2957 = vmatpush1.msra.mxu0 %v2909
        %2958 = vmatprep.subr.mxu0 0.0
        %2959 = vmatpush1.msra.mxu0 %v2911
        %2960 = vmatprep.subr.mxu0 0.0
        %2961 = vmatpush1.msra.mxu0 %v2913
        %2962 = vmatprep.subr.mxu0 0.0
        %2963 = vmatpush1.msra.mxu0 %v2915
        %2964 = vmatprep.subr.mxu0 0.0
        %2965 = vmatpush1.msra.mxu0 %v2917
        %2966 = vmatprep.subr.mxu0 0.0
        %2967 = vmatpush1.msra.mxu0 0.0
        %2968 = vmatprep.subr.mxu0 0.0
        %2969 = vmatpush1.msra.mxu0 0.0
        %2970 = vmatprep.subr.mxu0 0.0
        %2971 = vmatpush1.msra.mxu0 0.0
        %2972 = vmatprep.subr.mxu0 0.0
        %2973 = vmatpush1.msra.mxu0 0.0
        %2974 = vmatprep.subr.mxu0 0.0
        %2975 = vmatpush1.msra.mxu0 0.0
        %2976 = vmatprep.subr.mxu0 0.0
        %2977 = vmatpush1.msra.mxu0 0.0
        %2978 = vmatprep.subr.mxu0 0.0
        %2979 = vmatpush1.msra.mxu0 0.0
        %2980 = vmatprep.subr.mxu0 0.0
        %2981 = vmatpush1.msra.mxu0 0.0
        %2982 = vmatprep.subr.mxu0 0.0
        %2983 = vmatpush1.msra.mxu0 0.0
        %2984 = vmatprep.subr.mxu0 0.0
        %2985 = vmatpush1.msra.mxu0 0.0
        %2986 = vmatprep.subr.mxu0 0.0
        %2987 = vmatpush1.msra.mxu0 0.0
        %2988 = vmatprep.subr.mxu0 0.0
        %2989 = vmatpush1.msra.mxu0 0.0
        %2990 = vmatprep.subr.mxu0 0.0
        %2991 = vmatpush1.msra.mxu0 0.0
        %2992 = vmatprep.subr.mxu0 0.0
        %2993 = vmatpush1.msra.mxu0 0.0
        %2994 = vmatprep.subr.mxu0 0.0
        %2995 = vmatpush1.msra.mxu0 0.0
        %2996 = vmatprep.subr.mxu0 0.0
        %2997 = vmatpush1.msra.mxu0 0.0
        %2998 = vmatprep.subr.mxu0 0.0
        %2999 = vmatpush1.msra.mxu0 0.0
        %3000 = vmatprep.subr.mxu0 0.0
        %3001 = vmatpush1.msra.mxu0 0.0
        %3002 = vmatprep.subr.mxu0 0.0
        %3003 = vmatpush1.msra.mxu0 0.0
        %3004 = vmatprep.subr.mxu0 0.0
        %3005 = vmatpush1.msra.mxu0 0.0
        %3006 = vmatprep.subr.mxu0 0.0
        %3007 = vmatpush1.msra.mxu0 0.0
        %3008 = vmatprep.subr.mxu0 0.0
        %3009 = vmatpush1.msra.mxu0 0.0
        %3010 = vmatprep.subr.mxu0 0.0
        %3011 = vmatpush1.msra.mxu0 0.0
        %3012 = vmatprep.subr.mxu0 0.0
        %3013 = vmatpush1.msra.mxu0 0.0
        %3014 = vmatprep.mubr.f32.mxu0 0.0
        %3015 = vmatmul.mubr.f32.gmra.mrb[0].mxu0 %v2927
        %v3016 = vpop.f32.mrb[0].mxu0
        %v3017 = vadd.f32 0.0, %v3016
        %v3018 = vpop.f32.mrb[0].mxu0
        %3019 = vmatprep.mubr.f32.mxu0 0.0
        %3020 = vmatmul.mubr.f32.gmra.mrb[0].mxu0 %v2930
        %v3021 = vpop.f32.mrb[0].mxu0
        %v3022 = vadd.f32 0.0, %v3021
        %v3023 = vpop.f32.mrb[0].mxu0
        %3024 = vmatprep.mubr.f32.mxu0 0.0
        %3025 = vmatmul.mubr.f32.gmra.mrb[0].mxu0 %v2933
        %v3026 = vpop.f32.mrb[0].mxu0
        %v3027 = vadd.f32 0.0, %v3026
        %v3028 = vpop.f32.mrb[0].mxu0
        %3029 = vmatprep.mubr.f32.mxu0 0.0
        %3030 = vmatmul.mubr.f32.gmra.mrb[0].mxu0 %v2936
        %v3031 = vpop.f32.mrb[0].mxu0
        %v3032 = vadd.f32 0.0, %v3031
        %v3033 = vpop.f32.mrb[0].mxu0
        %3034 = vmatprep.mubr.f32.mxu0 0.0
        %3035 = vmatmul.mubr.f32.gmra.mrb[0].mxu0 %v2939
        %v3036 = vpop.f32.mrb[0].mxu0
        %v3037 = vadd.f32 0.0, %v3036
        %v3038 = vpop.f32.mrb[0].mxu0
        %3039 = vmatprep.mubr.f32.mxu0 0.0
        %3040 = vmatmul.mubr.f32.gmra.mrb[0].mxu0 %v2942
        %v3041 = vpop.f32.mrb[0].mxu0
        %v3042 = vadd.f32 0.0, %v3041
        %v3043 = vpop.f32.mrb[0].mxu0
        %3044 = vmatprep.mubr.f32.mxu0 0.0
        %3045 = vmatmul.mubr.f32.gmra.mrb[0].mxu0 %v2945
        %v3046 = vpop.f32.mrb[0].mxu0
        %v3047 = vadd.f32 0.0, %v3046
        %v3048 = vpop.f32.mrb[0].mxu0
        %3049 = vmatprep.mubr.f32.mxu0 0.0
        %3050 = vmatmul.mubr.f32.gmra.mrb[0].mxu0 %v2948
        %v3051 = vpop.f32.mrb[0].mxu0
        %v3052 = vadd.f32 0.0, %v3051
        %v3053 = vpop.f32.mrb[0].mxu0
        %3054 = vdwg.mxu0
        %3055 = vrot.lane.b32.xlu0 %v522, 32
        %v3056 = vpop.permute.xlu0 %3055
        %3057 = vrot.lane.b32.xlu0 %v526, 32
        %v3058 = vpop.permute.xlu0 %3057
        %3059 = vrot.lane.b32.xlu0 %v532, 32
        %v3060 = vpop.permute.xlu0 %3059
        %3061 = vrot.lane.b32.xlu0 %v536, 32
        %v3062 = vpop.permute.xlu0 %3061
        %3063 = vrot.lane.b32.xlu0 %v542, 32
        %v3064 = vpop.permute.xlu0 %3063
        %3065 = vrot.lane.b32.xlu0 %v546, 32
        %v3066 = vpop.permute.xlu0 %3065
        %3067 = vrot.lane.b32.xlu0 %v552, 32
        %v3068 = vpop.permute.xlu0 %3067
        %3069 = vrot.lane.b32.xlu0 %v556, 32
        %v3070 = vpop.permute.xlu0 %3069
        %3071 = vrot.lane.b32.xlu0 %v524, 32
        %v3072 = vpop.permute.xlu0 %3071
        %3073 = vrot.lane.b32.xlu0 %v528, 32
        %v3074 = vpop.permute.xlu0 %3073
        %3075 = vrot.lane.b32.xlu0 %v534, 32
        %v3076 = vpop.permute.xlu0 %3075
        %3077 = vrot.lane.b32.xlu0 %v538, 32
        %v3078 = vpop.permute.xlu0 %3077
        %3079 = vrot.lane.b32.xlu0 %v544, 32
        %v3080 = vpop.permute.xlu0 %3079
        %3081 = vrot.lane.b32.xlu0 %v548, 32
        %v3082 = vpop.permute.xlu0 %3081
        %3083 = vrot.lane.b32.xlu0 %v554, 32
        %v3084 = vpop.permute.xlu0 %3083
        %3085 = vrot.lane.b32.xlu0 %v558, 32
        %v3086 = vpop.permute.xlu0 %3085
        %v3087 = vsel %vm625, %v3056, 0
        %v3089 = vsel %vm625, %v3058, 0
        %v3091 = vsel %vm625, %v3060, 0
        %v3093 = vsel %vm625, %v3062, 0
        %v3095 = vsel %vm625, %v3064, 0
        %v3097 = vsel %vm625, %v3066, 0
        %v3099 = vsel %vm625, %v3068, 0
        %v3101 = vsel %vm625, %v3070, 0
        %v3103 = vsel %vm625, %v3072, 0
        %v3105 = vsel %vm625, %v3074, 0
        %v3107 = vsel %vm625, %v3076, 0
        %v3109 = vsel %vm625, %v3078, 0
        %v3111 = vsel %vm625, %v3080, 0
        %v3113 = vsel %vm625, %v3082, 0
        %v3115 = vsel %vm625, %v3084, 0
        %v3117 = vsel %vm625, %v3086, 0
        %3119 = vmatprep.subr.mxu0 0.0
        %3120 = vmatpush1.xpose.msra.mxu0 %v3103
        %3121 = vmatprep.subr.mxu0 0.0
        %3122 = vmatpush1.xpose.msra.mxu0 %v3105
        %3123 = vmatprep.subr.mxu0 0.0
        %3124 = vmatpush1.xpose.msra.mxu0 %v3107
        %3125 = vmatprep.subr.mxu0 0.0
        %3126 = vmatpush1.xpose.msra.mxu0 %v3109
        %3127 = vmatprep.subr.mxu0 0.0
        %3128 = vmatpush1.xpose.msra.mxu0 %v3111
        %3129 = vmatprep.subr.mxu0 0.0
        %3130 = vmatpush1.xpose.msra.mxu0 %v3113
        %3131 = vmatprep.subr.mxu0 0.0
        %3132 = vmatpush1.xpose.msra.mxu0 %v3115
        %3133 = vmatprep.subr.mxu0 0.0
        %3134 = vmatpush1.xpose.msra.mxu0 %v3117
        %3135 = vmatprep.subr.mxu0 0.0
        %3136 = vmatpush1.xpose.msra.mxu0 0.0
        %3137 = vmatprep.subr.mxu0 0.0
        %3138 = vmatpush1.xpose.msra.mxu0 0.0
        %3139 = vmatprep.subr.mxu0 0.0
        %3140 = vmatpush1.xpose.msra.mxu0 0.0
        %3141 = vmatprep.subr.mxu0 0.0
        %3142 = vmatpush1.xpose.msra.mxu0 0.0
        %3143 = vmatprep.subr.mxu0 0.0
        %3144 = vmatpush1.xpose.msra.mxu0 0.0
        %3145 = vmatprep.subr.mxu0 0.0
        %3146 = vmatpush1.xpose.msra.mxu0 0.0
        %3147 = vmatprep.subr.mxu0 0.0
        %3148 = vmatpush1.xpose.msra.mxu0 0.0
        %3149 = vmatprep.subr.mxu0 0.0
        %3150 = vmatpush1.xpose.msra.mxu0 0.0
        %3151 = vmatprep.subr.mxu0 0.0
        %3152 = vmatpush1.xpose.msra.mxu0 0.0
        %3153 = vmatprep.subr.mxu0 0.0
        %3154 = vmatpush1.xpose.msra.mxu0 0.0
        %3155 = vmatprep.subr.mxu0 0.0
        %3156 = vmatpush1.xpose.msra.mxu0 0.0
        %3157 = vmatprep.subr.mxu0 0.0
        %3158 = vmatpush1.xpose.msra.mxu0 0.0
        %3159 = vmatprep.subr.mxu0 0.0
        %3160 = vmatpush1.xpose.msra.mxu0 0.0
        %3161 = vmatprep.subr.mxu0 0.0
        %3162 = vmatpush1.xpose.msra.mxu0 0.0
        %3163 = vmatprep.subr.mxu0 0.0
        %3164 = vmatpush1.xpose.msra.mxu0 0.0
        %3165 = vmatprep.subr.mxu0 0.0
        %3166 = vmatpush1.xpose.msra.mxu0 0.0
        %3167 = vmatprep.subr.mxu0 0.0
        %3168 = vmatpush1.xpose.msra.mxu0 0.0
        %3169 = vmatprep.subr.mxu0 0.0
        %3170 = vmatpush1.xpose.msra.mxu0 0.0
        %3171 = vmatprep.subr.mxu0 0.0
        %3172 = vmatpush1.xpose.msra.mxu0 0.0
        %3173 = vmatprep.subr.mxu0 0.0
        %3174 = vmatpush1.xpose.msra.mxu0 0.0
        %3175 = vmatprep.subr.mxu0 0.0
        %3176 = vmatpush1.xpose.msra.mxu0 0.0
        %3177 = vmatprep.subr.mxu0 0.0
        %3178 = vmatpush1.xpose.msra.mxu0 0.0
        %3179 = vmatprep.subr.mxu0 0.0
        %3180 = vmatpush1.xpose.msra.mxu0 0.0
        %3181 = vmatprep.subr.mxu0 0.0
        %3182 = vmatpush1.xpose.msra.mxu0 0.0
        %3183 = vmatprep.mubr.f32.mxu0 0.0
        %3184 = vmatmul.mubr.f32.gmra.mrb[0].mxu0 %v3087
        %v3185 = vpop.f32.mrb[0].mxu0
        %v3186 = vadd.f32 0.0, %v3185
        %v3187 = vpop.f32.mrb[0].mxu0
        %3188 = vmatprep.mubr.f32.mxu0 0.0
        %3189 = vmatmul.mubr.f32.gmra.mrb[0].mxu0 %v3089
        %v3190 = vpop.f32.mrb[0].mxu0
        %v3191 = vadd.f32 0.0, %v3190
        %v3192 = vpop.f32.mrb[0].mxu0
        %3193 = vmatprep.mubr.f32.mxu0 0.0
        %3194 = vmatmul.mubr.f32.gmra.mrb[0].mxu0 %v3091
        %v3195 = vpop.f32.mrb[0].mxu0
        %v3196 = vadd.f32 0.0, %v3195
        %v3197 = vpop.f32.mrb[0].mxu0
        %3198 = vmatprep.mubr.f32.mxu0 0.0
        %3199 = vmatmul.mubr.f32.gmra.mrb[0].mxu0 %v3093
        %v3200 = vpop.f32.mrb[0].mxu0
        %v3201 = vadd.f32 0.0, %v3200
        %v3202 = vpop.f32.mrb[0].mxu0
        %3203 = vmatprep.mubr.f32.mxu0 0.0
        %3204 = vmatmul.mubr.f32.gmra.mrb[0].mxu0 %v3095
        %v3205 = vpop.f32.mrb[0].mxu0
        %v3206 = vadd.f32 0.0, %v3205
        %v3207 = vpop.f32.mrb[0].mxu0
        %3208 = vmatprep.mubr.f32.mxu0 0.0
        %3209 = vmatmul.mubr.f32.gmra.mrb[0].mxu0 %v3097
        %v3210 = vpop.f32.mrb[0].mxu0
        %v3211 = vadd.f32 0.0, %v3210
        %v3212 = vpop.f32.mrb[0].mxu0
        %3213 = vmatprep.mubr.f32.mxu0 0.0
        %3214 = vmatmul.mubr.f32.gmra.mrb[0].mxu0 %v3099
        %v3215 = vpop.f32.mrb[0].mxu0
        %v3216 = vadd.f32 0.0, %v3215
        %v3217 = vpop.f32.mrb[0].mxu0
        %3218 = vmatprep.mubr.f32.mxu0 0.0
        %3219 = vmatmul.mubr.f32.gmra.mrb[0].mxu0 %v3101
        %v3220 = vpop.f32.mrb[0].mxu0
        %v3221 = vadd.f32 0.0, %v3220
        %v3222 = vpop.f32.mrb[0].mxu0
        %3223 = vdwg.mxu0
        %v3224 = vsel %vm779, %v3186, -inf
        %3225 = vmax.xlane.f32.xlu0 %v3224
        %v3226 = vpop.xlane.xlu0 %3225
        %v3227 = vsel %vm779, %v3191, -inf
        %3228 = vmax.xlane.f32.xlu0 %v3227
        %v3229 = vpop.xlane.xlu0 %3228
        %v3230 = vsel %vm779, %v3196, -inf
        %3231 = vmax.xlane.f32.xlu0 %v3230
        %v3232 = vpop.xlane.xlu0 %3231
        %v3233 = vsel %vm779, %v3201, -inf
        %3234 = vmax.xlane.f32.xlu0 %v3233
        %v3235 = vpop.xlane.xlu0 %3234
        %v3236 = vsel %vm779, %v3206, -inf
        %3237 = vmax.xlane.f32.xlu0 %v3236
        %v3238 = vpop.xlane.xlu0 %3237
        %v3239 = vsel %vm779, %v3211, -inf
        %3240 = vmax.xlane.f32.xlu0 %v3239
        %v3241 = vpop.xlane.xlu0 %3240
        %v3242 = vsel %vm779, %v3216, -inf
        %3243 = vmax.xlane.f32.xlu0 %v3242
        %v3244 = vpop.xlane.xlu0 %3243
        %v3245 = vsel %vm779, %v3221, -inf
        %3246 = vmax.xlane.f32.xlu0 %v3245
        %v3247 = vpop.xlane.xlu0 %3246
        %v3248 = vsub.f32 %v3186, %v3226
        %v3249 = vsub.f32 %v3191, %v3229
        %v3250 = vsub.f32 %v3196, %v3232
        %v3251 = vsub.f32 %v3201, %v3235
        %v3252 = vsub.f32 %v3206, %v3238
        %v3253 = vsub.f32 %v3211, %v3241
        %v3254 = vsub.f32 %v3216, %v3244
        %v3255 = vsub.f32 %v3221, %v3247
        %v3256 = vmul.f32 %v3248, 1.442695
        %v3257 = vpow.pop %v3256
        %v3258 = vmul.f32 %v3249, 1.442695
        %v3259 = vpow.pop %v3258
        %v3260 = vmul.f32 %v3250, 1.442695
        %v3261 = vpow.pop %v3260
        %v3262 = vmul.f32 %v3251, 1.442695
        %v3263 = vpow.pop %v3262
        %v3264 = vmul.f32 %v3252, 1.442695
        %v3265 = vpow.pop %v3264
        %v3266 = vmul.f32 %v3253, 1.442695
        %v3267 = vpow.pop %v3266
        %v3268 = vmul.f32 %v3254, 1.442695
        %v3269 = vpow.pop %v3268
        %v3270 = vmul.f32 %v3255, 1.442695
        %v3271 = vpow.pop %v3270
        %v3272 = vsel %vm779, %v3257, 0.0
        %3273 = vadd.xlane.f32.xlu0 %v3272
        %v3274 = vpop.xlane.xlu0 %3273
        %v3275 = vsel %vm779, %v3259, 0.0
        %3276 = vadd.xlane.f32.xlu0 %v3275
        %v3277 = vpop.xlane.xlu0 %3276
        %v3278 = vsel %vm779, %v3261, 0.0
        %3279 = vadd.xlane.f32.xlu0 %v3278
        %v3280 = vpop.xlane.xlu0 %3279
        %v3281 = vsel %vm779, %v3263, 0.0
        %3282 = vadd.xlane.f32.xlu0 %v3281
        %v3283 = vpop.xlane.xlu0 %3282
        %v3284 = vsel %vm779, %v3265, 0.0
        %3285 = vadd.xlane.f32.xlu0 %v3284
        %v3286 = vpop.xlane.xlu0 %3285
        %v3287 = vsel %vm779, %v3267, 0.0
        %3288 = vadd.xlane.f32.xlu0 %v3287
        %v3289 = vpop.xlane.xlu0 %3288
        %v3290 = vsel %vm779, %v3269, 0.0
        %3291 = vadd.xlane.f32.xlu0 %v3290
        %v3292 = vpop.xlane.xlu0 %3291
        %v3293 = vsel %vm779, %v3271, 0.0
        %3294 = vadd.xlane.f32.xlu0 %v3293
        %v3295 = vpop.xlane.xlu0 %3294
        %v3296 = vrcp.pop %v3274
        %v3297 = vrcp.pop %v3277
        %v3298 = vrcp.pop %v3280
        %v3299 = vrcp.pop %v3283
        %v3300 = vrcp.pop %v3286
        %v3301 = vrcp.pop %v3289
        %v3302 = vrcp.pop %v3292
        %v3303 = vrcp.pop %v3295
        %v3304 = vmul.f32 %v3257, %v3296
        %v3305 = vmul.f32 %v3259, %v3297
        %v3306 = vmul.f32 %v3261, %v3298
        %v3307 = vmul.f32 %v3263, %v3299
        %v3308 = vmul.f32 %v3265, %v3300
        %v3309 = vmul.f32 %v3267, %v3301
        %v3310 = vmul.f32 %v3269, %v3302
        %v3311 = vmul.f32 %v3271, %v3303
        %3312 = vrot.lane.b32.xlu0 %v595, 32
        %v3313 = vpop.permute.xlu0 %3312
        %3314 = vrot.lane.b32.xlu0 %v598, 32
        %v3315 = vpop.permute.xlu0 %3314
        %3316 = vrot.lane.b32.xlu0 %v603, 32
        %v3317 = vpop.permute.xlu0 %3316
        %3318 = vrot.lane.b32.xlu0 %v606, 32
        %v3319 = vpop.permute.xlu0 %3318
        %3320 = vrot.lane.b32.xlu0 %v611, 32
        %v3321 = vpop.permute.xlu0 %3320
        %3322 = vrot.lane.b32.xlu0 %v614, 32
        %v3323 = vpop.permute.xlu0 %3322
        %3324 = vrot.lane.b32.xlu0 %v619, 32
        %v3325 = vpop.permute.xlu0 %3324
        %3326 = vrot.lane.b32.xlu0 %v622, 32
        %v3327 = vpop.permute.xlu0 %3326
        %v3337 = vsel %vm779, %v3304, 0
        %v3340 = vsel %vm779, %v3305, 0
        %v3343 = vsel %vm779, %v3306, 0
        %v3346 = vsel %vm779, %v3307, 0
        %v3349 = vsel %vm779, %v3308, 0
        %v3352 = vsel %vm779, %v3309, 0
        %v3355 = vsel %vm779, %v3310, 0
        %v3358 = vsel %vm779, %v3311, 0
        %3360 = vmatprep.subr.mxu0 0.0
        %3361 = vmatpush1.msra.mxu0 %v3313
        %3362 = vmatprep.subr.mxu0 0.0
        %3363 = vmatpush1.msra.mxu0 %v3315
        %3364 = vmatprep.subr.mxu0 0.0
        %3365 = vmatpush1.msra.mxu0 %v3317
        %3366 = vmatprep.subr.mxu0 0.0
        %3367 = vmatpush1.msra.mxu0 %v3319
        %3368 = vmatprep.subr.mxu0 0.0
        %3369 = vmatpush1.msra.mxu0 %v3321
        %3370 = vmatprep.subr.mxu0 0.0
        %3371 = vmatpush1.msra.mxu0 %v3323
        %3372 = vmatprep.subr.mxu0 0.0
        %3373 = vmatpush1.msra.mxu0 %v3325
        %3374 = vmatprep.subr.mxu0 0.0
        %3375 = vmatpush1.msra.mxu0 %v3327
        %3376 = vmatprep.subr.mxu0 0.0
        %3377 = vmatpush1.msra.mxu0 0.0
        %3378 = vmatprep.subr.mxu0 0.0
        %3379 = vmatpush1.msra.mxu0 0.0
        %3380 = vmatprep.subr.mxu0 0.0
        %3381 = vmatpush1.msra.mxu0 0.0
        %3382 = vmatprep.subr.mxu0 0.0
        %3383 = vmatpush1.msra.mxu0 0.0
        %3384 = vmatprep.subr.mxu0 0.0
        %3385 = vmatpush1.msra.mxu0 0.0
        %3386 = vmatprep.subr.mxu0 0.0
        %3387 = vmatpush1.msra.mxu0 0.0
        %3388 = vmatprep.subr.mxu0 0.0
        %3389 = vmatpush1.msra.mxu0 0.0
        %3390 = vmatprep.subr.mxu0 0.0
        %3391 = vmatpush1.msra.mxu0 0.0
        %3392 = vmatprep.subr.mxu0 0.0
        %3393 = vmatpush1.msra.mxu0 0.0
        %3394 = vmatprep.subr.mxu0 0.0
        %3395 = vmatpush1.msra.mxu0 0.0
        %3396 = vmatprep.subr.mxu0 0.0
        %3397 = vmatpush1.msra.mxu0 0.0
        %3398 = vmatprep.subr.mxu0 0.0
        %3399 = vmatpush1.msra.mxu0 0.0
        %3400 = vmatprep.subr.mxu0 0.0
        %3401 = vmatpush1.msra.mxu0 0.0
        %3402 = vmatprep.subr.mxu0 0.0
        %3403 = vmatpush1.msra.mxu0 0.0
        %3404 = vmatprep.subr.mxu0 0.0
        %3405 = vmatpush1.msra.mxu0 0.0
        %3406 = vmatprep.subr.mxu0 0.0
        %3407 = vmatpush1.msra.mxu0 0.0
        %3408 = vmatprep.subr.mxu0 0.0
        %3409 = vmatpush1.msra.mxu0 0.0
        %3410 = vmatprep.subr.mxu0 0.0
        %3411 = vmatpush1.msra.mxu0 0.0
        %3412 = vmatprep.subr.mxu0 0.0
        %3413 = vmatpush1.msra.mxu0 0.0
        %3414 = vmatprep.subr.mxu0 0.0
        %3415 = vmatpush1.msra.mxu0 0.0
        %3416 = vmatprep.subr.mxu0 0.0
        %3417 = vmatpush1.msra.mxu0 0.0
        %3418 = vmatprep.subr.mxu0 0.0
        %3419 = vmatpush1.msra.mxu0 0.0
        %3420 = vmatprep.subr.mxu0 0.0
        %3421 = vmatpush1.msra.mxu0 0.0
        %3422 = vmatprep.subr.mxu0 0.0
        %3423 = vmatpush1.msra.mxu0 0.0
        %3424 = vmatprep.mubr.f32.mxu0 0.0
        %3425 = vmatmul.mubr.f32.gmra.mrb[0].mxu0 %v3337
        %v3426 = vpop.f32.mrb[0].mxu0
        %v3427 = vadd.f32 0.0, %v3426
        %v3428 = vpop.f32.mrb[0].mxu0
        %3429 = vmatprep.mubr.f32.mxu0 0.0
        %3430 = vmatmul.mubr.f32.gmra.mrb[0].mxu0 %v3340
        %v3431 = vpop.f32.mrb[0].mxu0
        %v3432 = vadd.f32 0.0, %v3431
        %v3433 = vpop.f32.mrb[0].mxu0
        %3434 = vmatprep.mubr.f32.mxu0 0.0
        %3435 = vmatmul.mubr.f32.gmra.mrb[0].mxu0 %v3343
        %v3436 = vpop.f32.mrb[0].mxu0
        %v3437 = vadd.f32 0.0, %v3436
        %v3438 = vpop.f32.mrb[0].mxu0
        %3439 = vmatprep.mubr.f32.mxu0 0.0
        %3440 = vmatmul.mubr.f32.gmra.mrb[0].mxu0 %v3346
        %v3441 = vpop.f32.mrb[0].mxu0
        %v3442 = vadd.f32 0.0, %v3441
        %v3443 = vpop.f32.mrb[0].mxu0
        %3444 = vmatprep.mubr.f32.mxu0 0.0
        %3445 = vmatmul.mubr.f32.gmra.mrb[0].mxu0 %v3349
        %v3446 = vpop.f32.mrb[0].mxu0
        %v3447 = vadd.f32 0.0, %v3446
        %v3448 = vpop.f32.mrb[0].mxu0
        %3449 = vmatprep.mubr.f32.mxu0 0.0
        %3450 = vmatmul.mubr.f32.gmra.mrb[0].mxu0 %v3352
        %v3451 = vpop.f32.mrb[0].mxu0
        %v3452 = vadd.f32 0.0, %v3451
        %v3453 = vpop.f32.mrb[0].mxu0
        %3454 = vmatprep.mubr.f32.mxu0 0.0
        %3455 = vmatmul.mubr.f32.gmra.mrb[0].mxu0 %v3355
        %v3456 = vpop.f32.mrb[0].mxu0
        %v3457 = vadd.f32 0.0, %v3456
        %v3458 = vpop.f32.mrb[0].mxu0
        %3459 = vmatprep.mubr.f32.mxu0 0.0
        %3460 = vmatmul.mubr.f32.gmra.mrb[0].mxu0 %v3358
        %v3461 = vpop.f32.mrb[0].mxu0
        %v3462 = vadd.f32 0.0, %v3461
        %v3463 = vpop.f32.mrb[0].mxu0
        %3464 = vdwg.mxu0
        %3465 = vrot.lane.b32.xlu0 %v522, 16
        %v3466 = vpop.permute.xlu0 %3465
        %3467 = vrot.lane.b32.xlu0 %v526, 16
        %v3468 = vpop.permute.xlu0 %3467
        %3469 = vrot.lane.b32.xlu0 %v532, 16
        %v3470 = vpop.permute.xlu0 %3469
        %3471 = vrot.lane.b32.xlu0 %v536, 16
        %v3472 = vpop.permute.xlu0 %3471
        %3473 = vrot.lane.b32.xlu0 %v542, 16
        %v3474 = vpop.permute.xlu0 %3473
        %3475 = vrot.lane.b32.xlu0 %v546, 16
        %v3476 = vpop.permute.xlu0 %3475
        %3477 = vrot.lane.b32.xlu0 %v552, 16
        %v3478 = vpop.permute.xlu0 %3477
        %3479 = vrot.lane.b32.xlu0 %v556, 16
        %v3480 = vpop.permute.xlu0 %3479
        %3481 = vrot.lane.b32.xlu0 %v524, 16
        %v3482 = vpop.permute.xlu0 %3481
        %3483 = vrot.lane.b32.xlu0 %v528, 16
        %v3484 = vpop.permute.xlu0 %3483
        %3485 = vrot.lane.b32.xlu0 %v534, 16
        %v3486 = vpop.permute.xlu0 %3485
        %3487 = vrot.lane.b32.xlu0 %v538, 16
        %v3488 = vpop.permute.xlu0 %3487
        %3489 = vrot.lane.b32.xlu0 %v544, 16
        %v3490 = vpop.permute.xlu0 %3489
        %3491 = vrot.lane.b32.xlu0 %v548, 16
        %v3492 = vpop.permute.xlu0 %3491
        %3493 = vrot.lane.b32.xlu0 %v554, 16
        %v3494 = vpop.permute.xlu0 %3493
        %3495 = vrot.lane.b32.xlu0 %v558, 16
        %v3496 = vpop.permute.xlu0 %3495
        %v3497 = vsel %vm625, %v3466, 0
        %v3499 = vsel %vm625, %v3468, 0
        %v3501 = vsel %vm625, %v3470, 0
        %v3503 = vsel %vm625, %v3472, 0
        %v3505 = vsel %vm625, %v3474, 0
        %v3507 = vsel %vm625, %v3476, 0
        %v3509 = vsel %vm625, %v3478, 0
        %v3511 = vsel %vm625, %v3480, 0
        %v3513 = vsel %vm625, %v3482, 0
        %v3515 = vsel %vm625, %v3484, 0
        %v3517 = vsel %vm625, %v3486, 0
        %v3519 = vsel %vm625, %v3488, 0
        %v3521 = vsel %vm625, %v3490, 0
        %v3523 = vsel %vm625, %v3492, 0
        %v3525 = vsel %vm625, %v3494, 0
        %v3527 = vsel %vm625, %v3496, 0
        %3529 = vmatprep.subr.mxu0 0.0
        %3530 = vmatpush1.xpose.msra.mxu0 %v3513
        %3531 = vmatprep.subr.mxu0 0.0
        %3532 = vmatpush1.xpose.msra.mxu0 %v3515
        %3533 = vmatprep.subr.mxu0 0.0
        %3534 = vmatpush1.xpose.msra.mxu0 %v3517
        %3535 = vmatprep.subr.mxu0 0.0
        %3536 = vmatpush1.xpose.msra.mxu0 %v3519
        %3537 = vmatprep.subr.mxu0 0.0
        %3538 = vmatpush1.xpose.msra.mxu0 %v3521
        %3539 = vmatprep.subr.mxu0 0.0
        %3540 = vmatpush1.xpose.msra.mxu0 %v3523
        %3541 = vmatprep.subr.mxu0 0.0
        %3542 = vmatpush1.xpose.msra.mxu0 %v3525
        %3543 = vmatprep.subr.mxu0 0.0
        %3544 = vmatpush1.xpose.msra.mxu0 %v3527
        %3545 = vmatprep.subr.mxu0 0.0
        %3546 = vmatpush1.xpose.msra.mxu0 0.0
        %3547 = vmatprep.subr.mxu0 0.0
        %3548 = vmatpush1.xpose.msra.mxu0 0.0
        %3549 = vmatprep.subr.mxu0 0.0
        %3550 = vmatpush1.xpose.msra.mxu0 0.0
        %3551 = vmatprep.subr.mxu0 0.0
        %3552 = vmatpush1.xpose.msra.mxu0 0.0
        %3553 = vmatprep.subr.mxu0 0.0
        %3554 = vmatpush1.xpose.msra.mxu0 0.0
        %3555 = vmatprep.subr.mxu0 0.0
        %3556 = vmatpush1.xpose.msra.mxu0 0.0
        %3557 = vmatprep.subr.mxu0 0.0
        %3558 = vmatpush1.xpose.msra.mxu0 0.0
        %3559 = vmatprep.subr.mxu0 0.0
        %3560 = vmatpush1.xpose.msra.mxu0 0.0
        %3561 = vmatprep.subr.mxu0 0.0
        %3562 = vmatpush1.xpose.msra.mxu0 0.0
        %3563 = vmatprep.subr.mxu0 0.0
        %3564 = vmatpush1.xpose.msra.mxu0 0.0
        %3565 = vmatprep.subr.mxu0 0.0
        %3566 = vmatpush1.xpose.msra.mxu0 0.0
        %3567 = vmatprep.subr.mxu0 0.0
        %3568 = vmatpush1.xpose.msra.mxu0 0.0
        %3569 = vmatprep.subr.mxu0 0.0
        %3570 = vmatpush1.xpose.msra.mxu0 0.0
        %3571 = vmatprep.subr.mxu0 0.0
        %3572 = vmatpush1.xpose.msra.mxu0 0.0
        %3573 = vmatprep.subr.mxu0 0.0
        %3574 = vmatpush1.xpose.msra.mxu0 0.0
        %3575 = vmatprep.subr.mxu0 0.0
        %3576 = vmatpush1.xpose.msra.mxu0 0.0
        %3577 = vmatprep.subr.mxu0 0.0
        %3578 = vmatpush1.xpose.msra.mxu0 0.0
        %3579 = vmatprep.subr.mxu0 0.0
        %3580 = vmatpush1.xpose.msra.mxu0 0.0
        %3581 = vmatprep.subr.mxu0 0.0
        %3582 = vmatpush1.xpose.msra.mxu0 0.0
        %3583 = vmatprep.subr.mxu0 0.0
        %3584 = vmatpush1.xpose.msra.mxu0 0.0
        %3585 = vmatprep.subr.mxu0 0.0
        %3586 = vmatpush1.xpose.msra.mxu0 0.0
        %3587 = vmatprep.subr.mxu0 0.0
        %3588 = vmatpush1.xpose.msra.mxu0 0.0
        %3589 = vmatprep.subr.mxu0 0.0
        %3590 = vmatpush1.xpose.msra.mxu0 0.0
        %3591 = vmatprep.subr.mxu0 0.0
        %3592 = vmatpush1.xpose.msra.mxu0 0.0
        %3593 = vmatprep.mubr.f32.mxu0 0.0
        %3594 = vmatmul.mubr.f32.gmra.mrb[0].mxu0 %v3497
        %v3595 = vpop.f32.mrb[0].mxu0
        %v3596 = vadd.f32 0.0, %v3595
        %v3597 = vpop.f32.mrb[0].mxu0
        %3598 = vmatprep.mubr.f32.mxu0 0.0
        %3599 = vmatmul.mubr.f32.gmra.mrb[0].mxu0 %v3499
        %v3600 = vpop.f32.mrb[0].mxu0
        %v3601 = vadd.f32 0.0, %v3600
        %v3602 = vpop.f32.mrb[0].mxu0
        %3603 = vmatprep.mubr.f32.mxu0 0.0
        %3604 = vmatmul.mubr.f32.gmra.mrb[0].mxu0 %v3501
        %v3605 = vpop.f32.mrb[0].mxu0
        %v3606 = vadd.f32 0.0, %v3605
        %v3607 = vpop.f32.mrb[0].mxu0
        %3608 = vmatprep.mubr.f32.mxu0 0.0
        %3609 = vmatmul.mubr.f32.gmra.mrb[0].mxu0 %v3503
        %v3610 = vpop.f32.mrb[0].mxu0
        %v3611 = vadd.f32 0.0, %v3610
        %v3612 = vpop.f32.mrb[0].mxu0
        %3613 = vmatprep.mubr.f32.mxu0 0.0
        %3614 = vmatmul.mubr.f32.gmra.mrb[0].mxu0 %v3505
        %v3615 = vpop.f32.mrb[0].mxu0
        %v3616 = vadd.f32 0.0, %v3615
        %v3617 = vpop.f32.mrb[0].mxu0
        %3618 = vmatprep.mubr.f32.mxu0 0.0
        %3619 = vmatmul.mubr.f32.gmra.mrb[0].mxu0 %v3507
        %v3620 = vpop.f32.mrb[0].mxu0
        %v3621 = vadd.f32 0.0, %v3620
        %v3622 = vpop.f32.mrb[0].mxu0
        %3623 = vmatprep.mubr.f32.mxu0 0.0
        %3624 = vmatmul.mubr.f32.gmra.mrb[0].mxu0 %v3509
        %v3625 = vpop.f32.mrb[0].mxu0
        %v3626 = vadd.f32 0.0, %v3625
        %v3627 = vpop.f32.mrb[0].mxu0
        %3628 = vmatprep.mubr.f32.mxu0 0.0
        %3629 = vmatmul.mubr.f32.gmra.mrb[0].mxu0 %v3511
        %v3630 = vpop.f32.mrb[0].mxu0
        %v3631 = vadd.f32 0.0, %v3630
        %v3632 = vpop.f32.mrb[0].mxu0
        %3633 = vdwg.mxu0
        %v3634 = vsel %vm779, %v3596, -inf
        %3635 = vmax.xlane.f32.xlu0 %v3634
        %v3636 = vpop.xlane.xlu0 %3635
        %v3637 = vsel %vm779, %v3601, -inf
        %3638 = vmax.xlane.f32.xlu0 %v3637
        %v3639 = vpop.xlane.xlu0 %3638
        %v3640 = vsel %vm779, %v3606, -inf
        %3641 = vmax.xlane.f32.xlu0 %v3640
        %v3642 = vpop.xlane.xlu0 %3641
        %v3643 = vsel %vm779, %v3611, -inf
        %3644 = vmax.xlane.f32.xlu0 %v3643
        %v3645 = vpop.xlane.xlu0 %3644
        %v3646 = vsel %vm779, %v3616, -inf
        %3647 = vmax.xlane.f32.xlu0 %v3646
        %v3648 = vpop.xlane.xlu0 %3647
        %v3649 = vsel %vm779, %v3621, -inf
        %3650 = vmax.xlane.f32.xlu0 %v3649
        %v3651 = vpop.xlane.xlu0 %3650
        %v3652 = vsel %vm779, %v3626, -inf
        %3653 = vmax.xlane.f32.xlu0 %v3652
        %v3654 = vpop.xlane.xlu0 %3653
        %v3655 = vsel %vm779, %v3631, -inf
        %3656 = vmax.xlane.f32.xlu0 %v3655
        %v3657 = vpop.xlane.xlu0 %3656
        %v3658 = vsub.f32 %v3596, %v3636
        %v3659 = vsub.f32 %v3601, %v3639
        %v3660 = vsub.f32 %v3606, %v3642
        %v3661 = vsub.f32 %v3611, %v3645
        %v3662 = vsub.f32 %v3616, %v3648
        %v3663 = vsub.f32 %v3621, %v3651
        %v3664 = vsub.f32 %v3626, %v3654
        %v3665 = vsub.f32 %v3631, %v3657
        %v3666 = vmul.f32 %v3658, 1.442695
        %v3667 = vpow.pop %v3666
        %v3668 = vmul.f32 %v3659, 1.442695
        %v3669 = vpow.pop %v3668
        %v3670 = vmul.f32 %v3660, 1.442695
        %v3671 = vpow.pop %v3670
        %v3672 = vmul.f32 %v3661, 1.442695
        %v3673 = vpow.pop %v3672
        %v3674 = vmul.f32 %v3662, 1.442695
        %v3675 = vpow.pop %v3674
        %v3676 = vmul.f32 %v3663, 1.442695
        %v3677 = vpow.pop %v3676
        %v3678 = vmul.f32 %v3664, 1.442695
        %v3679 = vpow.pop %v3678
        %v3680 = vmul.f32 %v3665, 1.442695
        %v3681 = vpow.pop %v3680
        %v3682 = vsel %vm779, %v3667, 0.0
        %3683 = vadd.xlane.f32.xlu0 %v3682
        %v3684 = vpop.xlane.xlu0 %3683
        %v3685 = vsel %vm779, %v3669, 0.0
        %3686 = vadd.xlane.f32.xlu0 %v3685
        %v3687 = vpop.xlane.xlu0 %3686
        %v3688 = vsel %vm779, %v3671, 0.0
        %3689 = vadd.xlane.f32.xlu0 %v3688
        %v3690 = vpop.xlane.xlu0 %3689
        %v3691 = vsel %vm779, %v3673, 0.0
        %3692 = vadd.xlane.f32.xlu0 %v3691
        %v3693 = vpop.xlane.xlu0 %3692
        %v3694 = vsel %vm779, %v3675, 0.0
        %3695 = vadd.xlane.f32.xlu0 %v3694
        %v3696 = vpop.xlane.xlu0 %3695
        %v3697 = vsel %vm779, %v3677, 0.0
        %3698 = vadd.xlane.f32.xlu0 %v3697
        %v3699 = vpop.xlane.xlu0 %3698
        %v3700 = vsel %vm779, %v3679, 0.0
        %3701 = vadd.xlane.f32.xlu0 %v3700
        %v3702 = vpop.xlane.xlu0 %3701
        %v3703 = vsel %vm779, %v3681, 0.0
        %3704 = vadd.xlane.f32.xlu0 %v3703
        %v3705 = vpop.xlane.xlu0 %3704
        %v3706 = vrcp.pop %v3684
        %v3707 = vrcp.pop %v3687
        %v3708 = vrcp.pop %v3690
        %v3709 = vrcp.pop %v3693
        %v3710 = vrcp.pop %v3696
        %v3711 = vrcp.pop %v3699
        %v3712 = vrcp.pop %v3702
        %v3713 = vrcp.pop %v3705
        %v3714 = vmul.f32 %v3667, %v3706
        %v3715 = vmul.f32 %v3669, %v3707
        %v3716 = vmul.f32 %v3671, %v3708
        %v3717 = vmul.f32 %v3673, %v3709
        %v3718 = vmul.f32 %v3675, %v3710
        %v3719 = vmul.f32 %v3677, %v3711
        %v3720 = vmul.f32 %v3679, %v3712
        %v3721 = vmul.f32 %v3681, %v3713
        %3722 = vrot.lane.b32.xlu0 %v595, 16
        %v3723 = vpop.permute.xlu0 %3722
        %3724 = vrot.lane.b32.xlu0 %v598, 16
        %v3725 = vpop.permute.xlu0 %3724
        %3726 = vrot.lane.b32.xlu0 %v603, 16
        %v3727 = vpop.permute.xlu0 %3726
        %3728 = vrot.lane.b32.xlu0 %v606, 16
        %v3729 = vpop.permute.xlu0 %3728
        %3730 = vrot.lane.b32.xlu0 %v611, 16
        %v3731 = vpop.permute.xlu0 %3730
        %3732 = vrot.lane.b32.xlu0 %v614, 16
        %v3733 = vpop.permute.xlu0 %3732
        %3734 = vrot.lane.b32.xlu0 %v619, 16
        %v3735 = vpop.permute.xlu0 %3734
        %3736 = vrot.lane.b32.xlu0 %v622, 16
        %v3737 = vpop.permute.xlu0 %3736
        %v3747 = vsel %vm779, %v3714, 0
        %v3750 = vsel %vm779, %v3715, 0
        %v3753 = vsel %vm779, %v3716, 0
        %v3756 = vsel %vm779, %v3717, 0
        %v3759 = vsel %vm779, %v3718, 0
        %v3762 = vsel %vm779, %v3719, 0
        %v3765 = vsel %vm779, %v3720, 0
        %v3768 = vsel %vm779, %v3721, 0
        %3770 = vmatprep.subr.mxu0 0.0
        %3771 = vmatpush1.msra.mxu0 %v3723
        %3772 = vmatprep.subr.mxu0 0.0
        %3773 = vmatpush1.msra.mxu0 %v3725
        %3774 = vmatprep.subr.mxu0 0.0
        %3775 = vmatpush1.msra.mxu0 %v3727
        %3776 = vmatprep.subr.mxu0 0.0
        %3777 = vmatpush1.msra.mxu0 %v3729
        %3778 = vmatprep.subr.mxu0 0.0
        %3779 = vmatpush1.msra.mxu0 %v3731
        %3780 = vmatprep.subr.mxu0 0.0
        %3781 = vmatpush1.msra.mxu0 %v3733
        %3782 = vmatprep.subr.mxu0 0.0
        %3783 = vmatpush1.msra.mxu0 %v3735
        %3784 = vmatprep.subr.mxu0 0.0
        %3785 = vmatpush1.msra.mxu0 %v3737
        %3786 = vmatprep.subr.mxu0 0.0
        %3787 = vmatpush1.msra.mxu0 0.0
        %3788 = vmatprep.subr.mxu0 0.0
        %3789 = vmatpush1.msra.mxu0 0.0
        %3790 = vmatprep.subr.mxu0 0.0
        %3791 = vmatpush1.msra.mxu0 0.0
        %3792 = vmatprep.subr.mxu0 0.0
        %3793 = vmatpush1.msra.mxu0 0.0
        %3794 = vmatprep.subr.mxu0 0.0
        %3795 = vmatpush1.msra.mxu0 0.0
        %3796 = vmatprep.subr.mxu0 0.0
        %3797 = vmatpush1.msra.mxu0 0.0
        %3798 = vmatprep.subr.mxu0 0.0
        %3799 = vmatpush1.msra.mxu0 0.0
        %3800 = vmatprep.subr.mxu0 0.0
        %3801 = vmatpush1.msra.mxu0 0.0
        %3802 = vmatprep.subr.mxu0 0.0
        %3803 = vmatpush1.msra.mxu0 0.0
        %3804 = vmatprep.subr.mxu0 0.0
        %3805 = vmatpush1.msra.mxu0 0.0
        %3806 = vmatprep.subr.mxu0 0.0
        %3807 = vmatpush1.msra.mxu0 0.0
        %3808 = vmatprep.subr.mxu0 0.0
        %3809 = vmatpush1.msra.mxu0 0.0
        %3810 = vmatprep.subr.mxu0 0.0
        %3811 = vmatpush1.msra.mxu0 0.0
        %3812 = vmatprep.subr.mxu0 0.0
        %3813 = vmatpush1.msra.mxu0 0.0
        %3814 = vmatprep.subr.mxu0 0.0
        %3815 = vmatpush1.msra.mxu0 0.0
        %3816 = vmatprep.subr.mxu0 0.0
        %3817 = vmatpush1.msra.mxu0 0.0
        %3818 = vmatprep.subr.mxu0 0.0
        %3819 = vmatpush1.msra.mxu0 0.0
        %3820 = vmatprep.subr.mxu0 0.0
        %3821 = vmatpush1.msra.mxu0 0.0
        %3822 = vmatprep.subr.mxu0 0.0
        %3823 = vmatpush1.msra.mxu0 0.0
        %3824 = vmatprep.subr.mxu0 0.0
        %3825 = vmatpush1.msra.mxu0 0.0
        %3826 = vmatprep.subr.mxu0 0.0
        %3827 = vmatpush1.msra.mxu0 0.0
        %3828 = vmatprep.subr.mxu0 0.0
        %3829 = vmatpush1.msra.mxu0 0.0
        %3830 = vmatprep.subr.mxu0 0.0
        %3831 = vmatpush1.msra.mxu0 0.0
        %3832 = vmatprep.subr.mxu0 0.0
        %3833 = vmatpush1.msra.mxu0 0.0
        %3834 = vmatprep.mubr.f32.mxu0 0.0
        %3835 = vmatmul.mubr.f32.gmra.mrb[0].mxu0 %v3747
        %v3836 = vpop.f32.mrb[0].mxu0
        %v3837 = vadd.f32 0.0, %v3836
        %v3838 = vpop.f32.mrb[0].mxu0
        %3839 = vmatprep.mubr.f32.mxu0 0.0
        %3840 = vmatmul.mubr.f32.gmra.mrb[0].mxu0 %v3750
        %v3841 = vpop.f32.mrb[0].mxu0
        %v3842 = vadd.f32 0.0, %v3841
        %v3843 = vpop.f32.mrb[0].mxu0
        %3844 = vmatprep.mubr.f32.mxu0 0.0
        %3845 = vmatmul.mubr.f32.gmra.mrb[0].mxu0 %v3753
        %v3846 = vpop.f32.mrb[0].mxu0
        %v3847 = vadd.f32 0.0, %v3846
        %v3848 = vpop.f32.mrb[0].mxu0
        %3849 = vmatprep.mubr.f32.mxu0 0.0
        %3850 = vmatmul.mubr.f32.gmra.mrb[0].mxu0 %v3756
        %v3851 = vpop.f32.mrb[0].mxu0
        %v3852 = vadd.f32 0.0, %v3851
        %v3853 = vpop.f32.mrb[0].mxu0
        %3854 = vmatprep.mubr.f32.mxu0 0.0
        %3855 = vmatmul.mubr.f32.gmra.mrb[0].mxu0 %v3759
        %v3856 = vpop.f32.mrb[0].mxu0
        %v3857 = vadd.f32 0.0, %v3856
        %v3858 = vpop.f32.mrb[0].mxu0
        %3859 = vmatprep.mubr.f32.mxu0 0.0
        %3860 = vmatmul.mubr.f32.gmra.mrb[0].mxu0 %v3762
        %v3861 = vpop.f32.mrb[0].mxu0
        %v3862 = vadd.f32 0.0, %v3861
        %v3863 = vpop.f32.mrb[0].mxu0
        %3864 = vmatprep.mubr.f32.mxu0 0.0
        %3865 = vmatmul.mubr.f32.gmra.mrb[0].mxu0 %v3765
        %v3866 = vpop.f32.mrb[0].mxu0
        %v3867 = vadd.f32 0.0, %v3866
        %v3868 = vpop.f32.mrb[0].mxu0
        %3869 = vmatprep.mubr.f32.mxu0 0.0
        %3870 = vmatmul.mubr.f32.gmra.mrb[0].mxu0 %v3768
        %v3871 = vpop.f32.mrb[0].mxu0
        %v3872 = vadd.f32 0.0, %v3871
        %v3873 = vpop.f32.mrb[0].mxu0
        %3874 = vdwg.mxu0
        %3883 = vrot.lane.b32.xlu0 %v1377, 16
        %v3884 = vpop.permute.xlu0 %3883
        %3885 = vrot.lane.b32.xlu0 %v1382, 16
        %v3886 = vpop.permute.xlu0 %3885
        %3887 = vrot.lane.b32.xlu0 %v1387, 16
        %v3888 = vpop.permute.xlu0 %3887
        %3889 = vrot.lane.b32.xlu0 %v1392, 16
        %v3890 = vpop.permute.xlu0 %3889
        %3891 = vrot.lane.b32.xlu0 %v1397, 16
        %v3892 = vpop.permute.xlu0 %3891
        %3893 = vrot.lane.b32.xlu0 %v1402, 16
        %v3894 = vpop.permute.xlu0 %3893
        %3895 = vrot.lane.b32.xlu0 %v1407, 16
        %v3896 = vpop.permute.xlu0 %3895
        %3897 = vrot.lane.b32.xlu0 %v1412, 16
        %v3898 = vpop.permute.xlu0 %3897
        %3915 = vrot.lane.b32.xlu0 %v1787, 32
        %v3916 = vpop.permute.xlu0 %3915
        %3917 = vrot.lane.b32.xlu0 %v1792, 32
        %v3918 = vpop.permute.xlu0 %3917
        %3919 = vrot.lane.b32.xlu0 %v1797, 32
        %v3920 = vpop.permute.xlu0 %3919
        %3921 = vrot.lane.b32.xlu0 %v1802, 32
        %v3922 = vpop.permute.xlu0 %3921
        %3923 = vrot.lane.b32.xlu0 %v1807, 32
        %v3924 = vpop.permute.xlu0 %3923
        %3925 = vrot.lane.b32.xlu0 %v1812, 32
        %v3926 = vpop.permute.xlu0 %3925
        %3927 = vrot.lane.b32.xlu0 %v1817, 32
        %v3928 = vpop.permute.xlu0 %3927
        %3929 = vrot.lane.b32.xlu0 %v1822, 32
        %v3930 = vpop.permute.xlu0 %3929
        %3947 = vrot.lane.b32.xlu0 %v2197, 48
        %v3948 = vpop.permute.xlu0 %3947
        %3949 = vrot.lane.b32.xlu0 %v2202, 48
        %v3950 = vpop.permute.xlu0 %3949
        %3951 = vrot.lane.b32.xlu0 %v2207, 48
        %v3952 = vpop.permute.xlu0 %3951
        %3953 = vrot.lane.b32.xlu0 %v2212, 48
        %v3954 = vpop.permute.xlu0 %3953
        %3955 = vrot.lane.b32.xlu0 %v2217, 48
        %v3956 = vpop.permute.xlu0 %3955
        %3957 = vrot.lane.b32.xlu0 %v2222, 48
        %v3958 = vpop.permute.xlu0 %3957
        %3959 = vrot.lane.b32.xlu0 %v2227, 48
        %v3960 = vpop.permute.xlu0 %3959
        %3961 = vrot.lane.b32.xlu0 %v2232, 48
        %v3962 = vpop.permute.xlu0 %3961
        %3979 = vrot.lane.b32.xlu0 %v2607, 64
        %v3980 = vpop.permute.xlu0 %3979
        %3981 = vrot.lane.b32.xlu0 %v2612, 64
        %v3982 = vpop.permute.xlu0 %3981
        %3983 = vrot.lane.b32.xlu0 %v2617, 64
        %v3984 = vpop.permute.xlu0 %3983
        %3985 = vrot.lane.b32.xlu0 %v2622, 64
        %v3986 = vpop.permute.xlu0 %3985
        %3987 = vrot.lane.b32.xlu0 %v2627, 64
        %v3988 = vpop.permute.xlu0 %3987
        %3989 = vrot.lane.b32.xlu0 %v2632, 64
        %v3990 = vpop.permute.xlu0 %3989
        %3991 = vrot.lane.b32.xlu0 %v2637, 64
        %v3992 = vpop.permute.xlu0 %3991
        %3993 = vrot.lane.b32.xlu0 %v2642, 64
        %v3994 = vpop.permute.xlu0 %3993
        %4011 = vrot.lane.b32.xlu0 %v3017, 80
        %v4012 = vpop.permute.xlu0 %4011
        %4013 = vrot.lane.b32.xlu0 %v3022, 80
        %v4014 = vpop.permute.xlu0 %4013
        %4015 = vrot.lane.b32.xlu0 %v3027, 80
        %v4016 = vpop.permute.xlu0 %4015
        %4017 = vrot.lane.b32.xlu0 %v3032, 80
        %v4018 = vpop.permute.xlu0 %4017
        %4019 = vrot.lane.b32.xlu0 %v3037, 80
        %v4020 = vpop.permute.xlu0 %4019
        %4021 = vrot.lane.b32.xlu0 %v3042, 80
        %v4022 = vpop.permute.xlu0 %4021
        %4023 = vrot.lane.b32.xlu0 %v3047, 80
        %v4024 = vpop.permute.xlu0 %4023
        %4025 = vrot.lane.b32.xlu0 %v3052, 80
        %v4026 = vpop.permute.xlu0 %4025
        %4043 = vrot.lane.b32.xlu0 %v3427, 96
        %v4044 = vpop.permute.xlu0 %4043
        %4045 = vrot.lane.b32.xlu0 %v3432, 96
        %v4046 = vpop.permute.xlu0 %4045
        %4047 = vrot.lane.b32.xlu0 %v3437, 96
        %v4048 = vpop.permute.xlu0 %4047
        %4049 = vrot.lane.b32.xlu0 %v3442, 96
        %v4050 = vpop.permute.xlu0 %4049
        %4051 = vrot.lane.b32.xlu0 %v3447, 96
        %v4052 = vpop.permute.xlu0 %4051
        %4053 = vrot.lane.b32.xlu0 %v3452, 96
        %v4054 = vpop.permute.xlu0 %4053
        %4055 = vrot.lane.b32.xlu0 %v3457, 96
        %v4056 = vpop.permute.xlu0 %4055
        %4057 = vrot.lane.b32.xlu0 %v3462, 96
        %v4058 = vpop.permute.xlu0 %4057
        %4075 = vrot.lane.b32.xlu0 %v3837, 112
        %v4076 = vpop.permute.xlu0 %4075
        %4077 = vrot.lane.b32.xlu0 %v3842, 112
        %v4078 = vpop.permute.xlu0 %4077
        %4079 = vrot.lane.b32.xlu0 %v3847, 112
        %v4080 = vpop.permute.xlu0 %4079
        %4081 = vrot.lane.b32.xlu0 %v3852, 112
        %v4082 = vpop.permute.xlu0 %4081
        %4083 = vrot.lane.b32.xlu0 %v3857, 112
        %v4084 = vpop.permute.xlu0 %4083
        %4085 = vrot.lane.b32.xlu0 %v3862, 112
        %v4086 = vpop.permute.xlu0 %4085
        %4087 = vrot.lane.b32.xlu0 %v3867, 112
        %v4088 = vpop.permute.xlu0 %4087
        %4089 = vrot.lane.b32.xlu0 %v3872, 112
        %v4090 = vpop.permute.xlu0 %4089
        %v4099 = vsel %vm625, %v959, %v3884
        %v4100 = vsel %vm625, %v964, %v3886
        %v4101 = vsel %vm625, %v969, %v3888
        %v4102 = vsel %vm625, %v974, %v3890
        %v4103 = vsel %vm625, %v979, %v3892
        %v4104 = vsel %vm625, %v984, %v3894
        %v4105 = vsel %vm625, %v989, %v3896
        %v4106 = vsel %vm625, %v994, %v3898
        %vm4107 = vcmask 261120
        %v4108 = vsel %vm4107, %v4099, %v3916
        %v4109 = vsel %vm4107, %v4100, %v3918
        %v4110 = vsel %vm4107, %v4101, %v3920
        %v4111 = vsel %vm4107, %v4102, %v3922
        %v4112 = vsel %vm4107, %v4103, %v3924
        %v4113 = vsel %vm4107, %v4104, %v3926
        %v4114 = vsel %vm4107, %v4105, %v3928
        %v4115 = vsel %vm4107, %v4106, %v3930
        %vm4116 = vcmask 392192
        %v4117 = vsel %vm4116, %v4108, %v3948
        %v4118 = vsel %vm4116, %v4109, %v3950
        %v4119 = vsel %vm4116, %v4110, %v3952
        %v4120 = vsel %vm4116, %v4111, %v3954
        %v4121 = vsel %vm4116, %v4112, %v3956
        %v4122 = vsel %vm4116, %v4113, %v3958
        %v4123 = vsel %vm4116, %v4114, %v3960
        %v4124 = vsel %vm4116, %v4115, %v3962
        %v4125 = vsel %vm779, %v4117, %v3980
        %v4126 = vsel %vm779, %v4118, %v3982
        %v4127 = vsel %vm779, %v4119, %v3984
        %v4128 = vsel %vm779, %v4120, %v3986
        %v4129 = vsel %vm779, %v4121, %v3988
        %v4130 = vsel %vm779, %v4122, %v3990
        %v4131 = vsel %vm779, %v4123, %v3992
        %v4132 = vsel %vm779, %v4124, %v3994
        %vm4133 = vcmask 654336
        %v4134 = vsel %vm4133, %v4125, %v4012
        %v4135 = vsel %vm4133, %v4126, %v4014
        %v4136 = vsel %vm4133, %v4127, %v4016
        %v4137 = vsel %vm4133, %v4128, %v4018
        %v4138 = vsel %vm4133, %v4129, %v4020
        %v4139 = vsel %vm4133, %v4130, %v4022
        %v4140 = vsel %vm4133, %v4131, %v4024
        %v4141 = vsel %vm4133, %v4132, %v4026
        %vm4142 = vcmask 785408
        %v4143 = vsel %vm4142, %v4134, %v4044
        %v4144 = vsel %vm4142, %v4135, %v4046
        %v4145 = vsel %vm4142, %v4136, %v4048
        %v4146 = vsel %vm4142, %v4137, %v4050
        %v4147 = vsel %vm4142, %v4138, %v4052
        %v4148 = vsel %vm4142, %v4139, %v4054
        %v4149 = vsel %vm4142, %v4140, %v4056
        %v4150 = vsel %vm4142, %v4141, %v4058
        %vm4151 = vcmask 916480
        %v4152 = vsel %vm4151, %v4143, %v4076
        %v4153 = vsel %vm4151, %v4144, %v4078
        %v4154 = vsel %vm4151, %v4145, %v4080
        %v4155 = vsel %vm4151, %v4146, %v4082
        %v4156 = vsel %vm4151, %v4147, %v4084
        %v4157 = vsel %vm4151, %v4148, %v4086
        %v4158 = vsel %vm4151, %v4149, %v4088
        %v4159 = vsel %vm4151, %v4150, %v4090
        %v4160 = vpack.c.bf16 %v4153, %v4152
        %v4161 = vpack.c.bf16 %v4155, %v4154
        %v4162 = vpack.c.bf16 %v4157, %v4156
        %v4163 = vpack.c.bf16 %v4159, %v4158
        %v4164 = vld [vmem:[%s3] sm:$0xf]
        %v4165 = vld [vmem:[%s3 + $0x4] sm:$0xf]
        %v4166 = vld [vmem:[%s3 + $0x8] sm:$0xf]
        %v4167 = vld [vmem:[%s3 + $0xc] sm:$0xf]
        %v4168 = vld [vmem:[%s3 + $0x10] sm:$0xf]
        %v4169 = vld [vmem:[%s3 + $0x14] sm:$0xf]
        %v4170 = vld [vmem:[%s3 + $0x18] sm:$0xf]
        %v4171 = vld [vmem:[%s3 + $0x1c] sm:$0xf]
        %v4172 = vld [vmem:[%s3 + $0x20] sm:$0xf]
        %v4173 = vld [vmem:[%s3 + $0x24] sm:$0xf]
        %v4174 = vld [vmem:[%s3 + $0x28] sm:$0xf]
        %v4175 = vld [vmem:[%s3 + $0x2c] sm:$0xf]
        %v4176 = vld [vmem:[%s3 + $0x30] sm:$0xf]
        %v4177 = vld [vmem:[%s3 + $0x34] sm:$0xf]
        %v4178 = vld [vmem:[%s3 + $0x38] sm:$0xf]
        %v4179 = vld [vmem:[%s3 + $0x3c] sm:$0xf]
        %v4180 = vld [vmem:[%s4] sm:$0x1]
        %v4182 = vlaneseq
        %v4183 = vshrl.u32 %v4182, 7
        %v4184 = vsub.s32 0, %v4183
        %v4185 = vrot.slane %v4180, %v4184
        %v4203 = vunpack.c.l.b16 %v4164
        %v4204 = vunpack.c.l.b16 %v4165
        %v4205 = vunpack.c.l.b16 %v4166
        %v4206 = vunpack.c.l.b16 %v4167
        %v4207 = vunpack.c.l.b16 %v4168
        %v4208 = vunpack.c.l.b16 %v4169
        %v4209 = vunpack.c.l.b16 %v4170
        %v4210 = vunpack.c.l.b16 %v4171
        %v4211 = vunpack.c.l.b16 %v4172
        %v4212 = vunpack.c.l.b16 %v4173
        %v4213 = vunpack.c.l.b16 %v4174
        %v4214 = vunpack.c.l.b16 %v4175
        %v4215 = vunpack.c.l.b16 %v4176
        %v4216 = vunpack.c.l.b16 %v4177
        %v4217 = vunpack.c.l.b16 %v4178
        %v4218 = vunpack.c.l.b16 %v4179
        %v4219 = vpack.c.b16 %v4204, %v4203
        %v4220 = vpack.c.b16 %v4206, %v4205
        %v4221 = vpack.c.b16 %v4208, %v4207
        %v4222 = vpack.c.b16 %v4210, %v4209
        %v4223 = vpack.c.b16 %v4212, %v4211
        %v4224 = vpack.c.b16 %v4214, %v4213
        %v4225 = vpack.c.b16 %v4216, %v4215
        %v4226 = vpack.c.b16 %v4218, %v4217
        %4235 = vmatprep.subr.bf16.mxu0 0
        %4236 = vmatpush1.bf16.msra.mxu0 %v4219
        %4237 = vmatprep.subr.bf16.mxu0 0
        %4238 = vmatpush1.bf16.msra.mxu0 %v4220
        %4239 = vmatprep.subr.bf16.mxu0 0
        %4240 = vmatpush1.bf16.msra.mxu0 %v4221
        %4241 = vmatprep.subr.bf16.mxu0 0
        %4242 = vmatpush1.bf16.msra.mxu0 %v4222
        %4243 = vmatprep.subr.bf16.mxu0 0
        %4244 = vmatpush1.bf16.msra.mxu0 %v4223
        %4245 = vmatprep.subr.bf16.mxu0 0
        %4246 = vmatpush1.bf16.msra.mxu0 %v4224
        %4247 = vmatprep.subr.bf16.mxu0 0
        %4248 = vmatpush1.bf16.msra.mxu0 %v4225
        %4249 = vmatprep.subr.bf16.mxu0 0
        %4250 = vmatpush1.bf16.msra.mxu0 %v4226
        %4251 = vmatprep.subr.bf16.mxu0 0
        %4252 = vmatpush1.bf16.msra.mxu0 0
        %4253 = vmatprep.subr.bf16.mxu0 0
        %4254 = vmatpush1.bf16.msra.mxu0 0
        %4255 = vmatprep.subr.bf16.mxu0 0
        %4256 = vmatpush1.bf16.msra.mxu0 0
        %4257 = vmatprep.subr.bf16.mxu0 0
        %4258 = vmatpush1.bf16.msra.mxu0 0
        %4259 = vmatprep.subr.bf16.mxu0 0
        %4260 = vmatpush1.bf16.msra.mxu0 0
        %4261 = vmatprep.subr.bf16.mxu0 0
        %4262 = vmatpush1.bf16.msra.mxu0 0
        %4263 = vmatprep.subr.bf16.mxu0 0
        %4264 = vmatpush1.bf16.msra.mxu0 0
        %4265 = vmatprep.subr.bf16.mxu0 0
        %4266 = vmatpush1.bf16.msra.mxu0 0
        %4267 = vmatprep.mubr.bf16.mxu0 0
        %4268 = vmatmul.mubr.bf16.gmra.mrb[0].mxu0 %v4160
        %v4269 = vpop.f32.mrb[0].mxu0
        %v4270 = vadd.f32 %v4185, %v4269
        %v4271 = vpop.f32.mrb[0].mxu0
        %v4272 = vpop.f32.mrb[0].mxu0
        %v4273 = vadd.f32 %v4185, %v4272
        %v4274 = vpop.f32.mrb[0].mxu0
        %4275 = vmatprep.mubr.bf16.mxu0 0
        %4276 = vmatmul.mubr.bf16.gmra.mrb[0].mxu0 %v4161
        %v4277 = vpop.f32.mrb[0].mxu0
        %v4278 = vadd.f32 %v4185, %v4277
        %v4279 = vpop.f32.mrb[0].mxu0
        %v4280 = vpop.f32.mrb[0].mxu0
        %v4281 = vadd.f32 %v4185, %v4280
        %v4282 = vpop.f32.mrb[0].mxu0
        %4283 = vmatprep.mubr.bf16.mxu0 0
        %4284 = vmatmul.mubr.bf16.gmra.mrb[0].mxu0 %v4162
        %v4285 = vpop.f32.mrb[0].mxu0
        %v4286 = vadd.f32 %v4185, %v4285
        %v4287 = vpop.f32.mrb[0].mxu0
        %v4288 = vpop.f32.mrb[0].mxu0
        %v4289 = vadd.f32 %v4185, %v4288
        %v4290 = vpop.f32.mrb[0].mxu0
        %4291 = vmatprep.mubr.bf16.mxu0 0
        %4292 = vmatmul.mubr.bf16.gmra.mrb[0].mxu0 %v4163
        %v4293 = vpop.f32.mrb[0].mxu0
        %v4294 = vadd.f32 %v4185, %v4293
        %v4295 = vpop.f32.mrb[0].mxu0
        %v4296 = vpop.f32.mrb[0].mxu0
        %v4297 = vadd.f32 %v4185, %v4296
        %v4298 = vpop.f32.mrb[0].mxu0
        %4299 = vdwg.mxu0
        %v4300 = vpack.c.bf16 %v4273, %v4270
        %v4301 = vpack.c.bf16 %v4281, %v4278
        %v4302 = vpack.c.bf16 %v4289, %v4286
        %v4303 = vpack.c.bf16 %v4297, %v4294
        %v4304 = vld [vmem:[%s5] sm:$0xf]
        %v4305 = vld [vmem:[%s5 + $0x4] sm:$0xf]
        %v4306 = vld [vmem:[%s5 + $0x8] sm:$0xf]
        %v4307 = vld [vmem:[%s5 + $0xc] sm:$0xf]
        %v4308 = vld [vmem:[%s5 + $0x10] sm:$0xf]
        %v4309 = vld [vmem:[%s5 + $0x14] sm:$0xf]
        %v4310 = vld [vmem:[%s5 + $0x18] sm:$0xf]
        %v4311 = vld [vmem:[%s5 + $0x1c] sm:$0xf]
        %v4312 = vld [vmem:[%s5 + $0x20] sm:$0xf]
        %v4313 = vld [vmem:[%s5 + $0x24] sm:$0xf]
        %v4314 = vld [vmem:[%s5 + $0x28] sm:$0xf]
        %v4315 = vld [vmem:[%s5 + $0x2c] sm:$0xf]
        %v4316 = vld [vmem:[%s5 + $0x30] sm:$0xf]
        %v4317 = vld [vmem:[%s5 + $0x34] sm:$0xf]
        %v4318 = vld [vmem:[%s5 + $0x38] sm:$0xf]
        %v4319 = vld [vmem:[%s5 + $0x3c] sm:$0xf]
        %v4320 = vld [vmem:[%s6] sm:$0x1]
        %v4322 = vlaneseq
        %v4323 = vshrl.u32 %v4322, 7
        %v4324 = vsub.s32 0, %v4323
        %v4325 = vrot.slane %v4320, %v4324
        %v4343 = vunpack.c.l.b16 %v4304
        %v4344 = vunpack.c.l.b16 %v4305
        %v4345 = vunpack.c.l.b16 %v4306
        %v4346 = vunpack.c.l.b16 %v4307
        %v4347 = vunpack.c.l.b16 %v4308
        %v4348 = vunpack.c.l.b16 %v4309
        %v4349 = vunpack.c.l.b16 %v4310
        %v4350 = vunpack.c.l.b16 %v4311
        %v4351 = vunpack.c.l.b16 %v4312
        %v4352 = vunpack.c.l.b16 %v4313
        %v4353 = vunpack.c.l.b16 %v4314
        %v4354 = vunpack.c.l.b16 %v4315
        %v4355 = vunpack.c.l.b16 %v4316
        %v4356 = vunpack.c.l.b16 %v4317
        %v4357 = vunpack.c.l.b16 %v4318
        %v4358 = vunpack.c.l.b16 %v4319
        %v4359 = vpack.c.b16 %v4344, %v4343
        %v4360 = vpack.c.b16 %v4346, %v4345
        %v4361 = vpack.c.b16 %v4348, %v4347
        %v4362 = vpack.c.b16 %v4350, %v4349
        %v4363 = vpack.c.b16 %v4352, %v4351
        %v4364 = vpack.c.b16 %v4354, %v4353
        %v4365 = vpack.c.b16 %v4356, %v4355
        %v4366 = vpack.c.b16 %v4358, %v4357
        %4375 = vmatprep.subr.bf16.mxu0 0
        %4376 = vmatpush1.bf16.msra.mxu0 %v4359
        %4377 = vmatprep.subr.bf16.mxu0 0
        %4378 = vmatpush1.bf16.msra.mxu0 %v4360
        %4379 = vmatprep.subr.bf16.mxu0 0
        %4380 = vmatpush1.bf16.msra.mxu0 %v4361
        %4381 = vmatprep.subr.bf16.mxu0 0
        %4382 = vmatpush1.bf16.msra.mxu0 %v4362
        %4383 = vmatprep.subr.bf16.mxu0 0
        %4384 = vmatpush1.bf16.msra.mxu0 %v4363
        %4385 = vmatprep.subr.bf16.mxu0 0
        %4386 = vmatpush1.bf16.msra.mxu0 %v4364
        %4387 = vmatprep.subr.bf16.mxu0 0
        %4388 = vmatpush1.bf16.msra.mxu0 %v4365
        %4389 = vmatprep.subr.bf16.mxu0 0
        %4390 = vmatpush1.bf16.msra.mxu0 %v4366
        %4391 = vmatprep.subr.bf16.mxu0 0
        %4392 = vmatpush1.bf16.msra.mxu0 0
        %4393 = vmatprep.subr.bf16.mxu0 0
        %4394 = vmatpush1.bf16.msra.mxu0 0
        %4395 = vmatprep.subr.bf16.mxu0 0
        %4396 = vmatpush1.bf16.msra.mxu0 0
        %4397 = vmatprep.subr.bf16.mxu0 0
        %4398 = vmatpush1.bf16.msra.mxu0 0
        %4399 = vmatprep.subr.bf16.mxu0 0
        %4400 = vmatpush1.bf16.msra.mxu0 0
        %4401 = vmatprep.subr.bf16.mxu0 0
        %4402 = vmatpush1.bf16.msra.mxu0 0
        %4403 = vmatprep.subr.bf16.mxu0 0
        %4404 = vmatpush1.bf16.msra.mxu0 0
        %4405 = vmatprep.subr.bf16.mxu0 0
        %4406 = vmatpush1.bf16.msra.mxu0 0
        %4407 = vmatprep.mubr.bf16.mxu0 0
        %4408 = vmatmul.mubr.bf16.gmra.mrb[0].mxu0 %v4300
        %v4409 = vpop.f32.mrb[0].mxu0
        %v4410 = vadd.f32 %v4325, %v4409
        %v4411 = vpop.f32.mrb[0].mxu0
        %v4412 = vpop.f32.mrb[0].mxu0
        %v4413 = vadd.f32 %v4325, %v4412
        %v4414 = vpop.f32.mrb[0].mxu0
        %4415 = vmatprep.mubr.bf16.mxu0 0
        %4416 = vmatmul.mubr.bf16.gmra.mrb[0].mxu0 %v4301
        %v4417 = vpop.f32.mrb[0].mxu0
        %v4418 = vadd.f32 %v4325, %v4417
        %v4419 = vpop.f32.mrb[0].mxu0
        %v4420 = vpop.f32.mrb[0].mxu0
        %v4421 = vadd.f32 %v4325, %v4420
        %v4422 = vpop.f32.mrb[0].mxu0
        %4423 = vmatprep.mubr.bf16.mxu0 0
        %4424 = vmatmul.mubr.bf16.gmra.mrb[0].mxu0 %v4302
        %v4425 = vpop.f32.mrb[0].mxu0
        %v4426 = vadd.f32 %v4325, %v4425
        %v4427 = vpop.f32.mrb[0].mxu0
        %v4428 = vpop.f32.mrb[0].mxu0
        %v4429 = vadd.f32 %v4325, %v4428
        %v4430 = vpop.f32.mrb[0].mxu0
        %4431 = vmatprep.mubr.bf16.mxu0 0
        %4432 = vmatmul.mubr.bf16.gmra.mrb[0].mxu0 %v4303
        %v4433 = vpop.f32.mrb[0].mxu0
        %v4434 = vadd.f32 %v4325, %v4433
        %v4435 = vpop.f32.mrb[0].mxu0
        %v4436 = vpop.f32.mrb[0].mxu0
        %v4437 = vadd.f32 %v4325, %v4436
        %v4438 = vpop.f32.mrb[0].mxu0
        %4439 = vdwg.mxu0
        %4440 = vst [vmem:[%s271] sm:$0xff] %v4410
        %4441 = vst [vmem:[%s271 + $0x8] sm:$0xff] %v4413
        %4442 = vst [vmem:[%s271 + $0x10] sm:$0xff] %v4418
        %4443 = vst [vmem:[%s271 + $0x18] sm:$0xff] %v4421
        %4444 = vst [vmem:[%s271 + $0x20] sm:$0xff] %v4426
        %4445 = vst [vmem:[%s271 + $0x28] sm:$0xff] %v4429
        %4446 = vst [vmem:[%s271 + $0x30] sm:$0xff] %v4434
        %4447 = vst [vmem:[%s271 + $0x38] sm:$0xff] %v4437
        %s4448 = sand.u32 %s181, 1
        %s4449 = scalar_lea.sflag [#allocation3], %s4448
        %s4450 = sand.u32 %s181, 1
        %s4451 = smul.addr %s4450, 64
        %s4452 = scalar_lea.vmem [#allocation2], %s4451
        // Predicated region
        $region49: #{bottleneck_forward.5} parent=47 // pred_check
          %p4453 = pneg %p191
        $region50: #{bottleneck_forward.5} parent=47 // pred_check_branch
          %4455 = sbr.rel (%p4453) target = $region52
        $region51: #{bottleneck_forward.5} parent=47 // pred_region
          %s4457 = ssub.s32 1024, 1024
          %4458 = vsyncadd %s4449, %s4457
          %s4459 = smul.addr %s21, 8
          %s4460 = smul.addr %s4459, 128
          %s4461 = scalar_lea.hbm %s7, %s4460
          %s4462 = sshll.u32 %s4452, 4
          %s4463 = int_to_ptr.vmem [resolvable:$true] %s4462
          %4468 = dma.vmem_to_hbm [thread:$0]  %s4463, 1024, %s4461, %s4449, 128, 128, 8
        $region52: #{bottleneck_forward.5} parent=47 // pred_fallthru
          _
      $region48: #{bottleneck_forward.5} parent=5 // pred_fallthru
        _
      %p4469 = scmp.le.s32.totalorder 2, %s16
      // Predicated region
      $region53: #{bottleneck_forward.5} parent=5 // pred_check
        %p4470 = pneg %p4469
      $region54: #{bottleneck_forward.5} parent=5 // pred_check_branch
        %4472 = sbr.rel (%p4470) target = $region56
      $region55: #{bottleneck_forward.5} parent=5 // pred_region
        %s4473 = ssub.s32 %s16, 2
        // Predicated region
        $region57: #{bottleneck_forward.5} parent=55 // pred_check
          %p4474 = pneg %p197
        $region58: #{bottleneck_forward.5} parent=55 // pred_check_branch
          %4476 = sbr.rel (%p4474) target = $region60
        $region59: #{bottleneck_forward.5} parent=55 // pred_region
          %s4477 = sand.u32 %s182, 1
          %s4478 = scalar_lea.sflag [#allocation3], %s4477
          %s4479 = sand.u32 %s182, 1
          %s4480 = smul.addr %s4479, 64
          %s4481 = scalar_lea.vmem [#allocation2], %s4480
          %4482 = dma.done %s4478, 1024
        $region60: #{bottleneck_forward.5} parent=55 // pred_fallthru
          _
      $region56: #{bottleneck_forward.5} parent=5 // pred_fallthru
        _
    $region6: #{bottleneck_forward.5} parent=1 // loop_footer
      %s20 = sadd.s32 1, %s16
    $region7: #{bottleneck_forward.5} parent=1 // loop_footer_branch
      %15 = sbr.rel target = $region3
    $region8: #{bottleneck_forward.5} parent=1 // loop_exit
      _
    %4483 = vsyncpa [#allocation3], 1
    %s4484 = scalar_lea.sflag [#allocation3], 1
    %4485 = vsyncpa %s4484, 1

</llo_original>
